<compile_context>
chip_gen: v7x
topology: tpu7x:2x2x1
jax: 0.10.0
libtpu: 0.0.40
codegen_flags: <defaults>
</compile_context>

<pallas_src>
import jax
import jax.numpy as jnp
from jax.experimental import pallas as pl
from jax.experimental.pallas import tpu as pltpu

D_MODEL = 32
N_HEADS = 4
D_FF = 64
SEQ = 8
BATCH = 2
N_LAYERS = 2
EPS = 1e-6


def _layernorm(x, alpha, bias):
    # Matches tutorial LayerNormalization: alpha * (x - mean) / (std + eps) + bias.
    # torch.std default is unbiased (ddof=1); eps is added to std (NOT var).
    mean = jnp.mean(x, axis=-1, keepdims=True)
    var = jnp.sum((x - mean) ** 2, axis=-1, keepdims=True) / (x.shape[-1] - 1)
    return alpha * (x - mean) / (jnp.sqrt(var) + EPS) + bias


def encoder_kernel(ln_ref, x_ref, mbias_ref, wqkv_ref, bqkv_ref, wo_ref,
                   wffn_ref, bffn_ref, out_ref):
    # wqkv_ref: (L, 3, H, D, d_k) bf16   bqkv_ref: (L, 3, H, 1, d_k) f32
    # wo_ref:   (L, H, d_k, D)   bf16    wffn_ref: (L, 2, D_FF, D_FF) bf16 (padded)
    # bffn_ref: (L, 3, 1, D_FF)  f32     ln_ref:   (4L + 2,) f32 in SMEM
    n_layers, _, n_heads, d, d_k = wqkv_ref.shape
    b, s, _ = mbias_ref.shape
    rows = x_ref.shape[0]
    scale = 1.0 / (d_k ** 0.5)

    x = x_ref[...]                                   # (B*S, D) float32
    mask_bias = mbias_ref[...]                       # (B, S, S) additive bias

    for l in range(n_layers):                        # static layer loop (no grid)
        base = 4 * l

        # ---- residual connection 1: x + MHA(norm(x)) ----
        xn = _layernorm(x, ln_ref[base], ln_ref[base + 1]).astype(jnp.bfloat16)
        attn = jnp.zeros((rows, d), jnp.float32)
        for h in range(n_heads):                     # leading-dim weight indexing: no lane slices
            qh = (jnp.dot(xn, wqkv_ref[l, 0, h], preferred_element_type=jnp.float32)
                  + bqkv_ref[l, 0, h]).reshape(b, s, d_k)
            kh = (jnp.dot(xn, wqkv_ref[l, 1, h], preferred_element_type=jnp.float32)
                  + bqkv_ref[l, 1, h]).reshape(b, s, d_k)
            vh = (jnp.dot(xn, wqkv_ref[l, 2, h], preferred_element_type=jnp.float32)
                  + bqkv_ref[l, 2, h]).reshape(b, s, d_k)
            scores = jnp.einsum('bqd,bkd->bqk', qh, kh,
                                preferred_element_type=jnp.float32) * scale + mask_bias
            scores = scores - jnp.max(scores, axis=-1, keepdims=True)
            p = jnp.exp(scores)
            p = p * pl.reciprocal(jnp.sum(p, axis=-1, keepdims=True), approx=True)
            oh = jnp.einsum('bqk,bkd->bqd', p, vh,
                            preferred_element_type=jnp.float32).reshape(rows, d_k)
            # concat(heads) @ Wo  ==  sum_h  head_h @ Wo[h*d_k:(h+1)*d_k, :]
            attn = attn + jnp.dot(oh.astype(jnp.bfloat16), wo_ref[l, h],
                                  preferred_element_type=jnp.float32)
        x = x + attn + bffn_ref[l, 0, :, 0:d]        # + output-proj bias; dropout = identity

        # ---- residual connection 2: x + FFN(norm(x)) ----
        xn = _layernorm(x, ln_ref[base + 2], ln_ref[base + 3]).astype(jnp.bfloat16)
        h1 = jnp.maximum(
            jnp.dot(xn, wffn_ref[l, 0, 0:d, :], preferred_element_type=jnp.float32)
            + bffn_ref[l, 1], 0.0)
        x = x + (jnp.dot(h1.astype(jnp.bfloat16), wffn_ref[l, 1, :, 0:d],
                         preferred_element_type=jnp.float32) + bffn_ref[l, 2, :, 0:d])

    # ---- final LayerNormalization, single HBM writeback ----
    out_ref[...] = _layernorm(x, ln_ref[4 * n_layers],
                              ln_ref[4 * n_layers + 1]).astype(out_ref.dtype)


def encoder_forward(x, mask, params):
    batch, seq, d = x.shape
    layers = params["layers"]
    n_layers = len(layers)
    n_heads = N_HEADS
    d_k = d // n_heads
    d_ff = layers[0]["w1"].shape[-1]

    # ---- pack parameters wrapper-side (all head splitting done here) ----
    def split_cols(w):      # (D, D) -> (H, D, d_k)
        return jnp.stack([w[:, h * d_k:(h + 1) * d_k] for h in range(n_heads)])

    def split_bias(bvec):   # (1, D) -> (H, 1, d_k)
        return jnp.stack([bvec[:, h * d_k:(h + 1) * d_k] for h in range(n_heads)])

    wqkv = jnp.stack([jnp.stack([split_cols(lp["wq"]), split_cols(lp["wk"]),
                                 split_cols(lp["wv"])]) for lp in layers])   # (L,3,H,D,dk)
    bqkv = jnp.stack([jnp.stack([split_bias(lp["bq"]), split_bias(lp["bk"]),
                                 split_bias(lp["bv"])]) for lp in layers])   # (L,3,H,1,dk)
    wo = jnp.stack([jnp.stack([lp["wo"][h * d_k:(h + 1) * d_k, :]
                               for h in range(n_heads)]) for lp in layers])  # (L,H,dk,D)

    # FFN weights padded into one slab; biases (bo|b1|b2) into another.
    wffn = jnp.zeros((n_layers, 2, d_ff, d_ff), jnp.float32)
    bffn = jnp.zeros((n_layers, 3, 1, d_ff), jnp.float32)
    for i, lp in enumerate(layers):
        wffn = wffn.at[i, 0, :d, :].set(lp["w1"])
        wffn = wffn.at[i, 1, :, :d].set(lp["w2"])
        bffn = bffn.at[i, 0, :, :d].set(lp["bo"])
        bffn = bffn.at[i, 1].set(lp["b1"])
        bffn = bffn.at[i, 2, :, :d].set(lp["b2"])

    ln_parts = []
    for lp in layers:
        ln_parts += [lp["ln1_a"].reshape(-1), lp["ln1_b"].reshape(-1),
                     lp["ln2_a"].reshape(-1), lp["ln2_b"].reshape(-1)]
    ln_parts += [params["norm_a"].reshape(-1), params["norm_b"].reshape(-1)]
    ln_flat = jnp.concatenate(ln_parts).astype(jnp.float32)                  # (4L + 2,)

    x_flat = x.reshape(batch * seq, d).astype(jnp.float32)
    # Additive attention bias (0 = attend, -1e9 = masked); identical across
    # layers and heads, so computed once here.
    attn_bias = jnp.where(mask[:, 0, :, :] == 0,
                          jnp.float32(-1e9), jnp.float32(0.0))               # (B, S, S)

    vmem = pl.BlockSpec(memory_space=pltpu.MemorySpace.VMEM)
    smem = pl.BlockSpec(memory_space=pltpu.MemorySpace.SMEM)

    out_flat = pl.pallas_call(
        encoder_kernel,
        out_shape=jax.ShapeDtypeStruct((batch * seq, d), x.dtype),
        in_specs=[smem, vmem, vmem, vmem, vmem, vmem, vmem, vmem],
        out_specs=vmem,
    )(ln_flat, x_flat, attn_bias,
      wqkv.astype(jnp.bfloat16), bqkv, wo.astype(jnp.bfloat16),
      wffn.astype(jnp.bfloat16), bffn)

    return out_flat.reshape(batch, seq, d)


def init_params(key):
    def dense(k, shape):
        return jax.random.normal(k, shape, jnp.float32) * 0.02

    layers = []
    for _ in range(N_LAYERS):
        key, *ks = jax.random.split(key, 7)
        layers.append(dict(
            wq=dense(ks[0], (D_MODEL, D_MODEL)), bq=jnp.zeros((1, D_MODEL), jnp.float32),
            wk=dense(ks[1], (D_MODEL, D_MODEL)), bk=jnp.zeros((1, D_MODEL), jnp.float32),
            wv=dense(ks[2], (D_MODEL, D_MODEL)), bv=jnp.zeros((1, D_MODEL), jnp.float32),
            wo=dense(ks[3], (D_MODEL, D_MODEL)), bo=jnp.zeros((1, D_MODEL), jnp.float32),
            ln1_a=jnp.ones((1, 1), jnp.float32), ln1_b=jnp.zeros((1, 1), jnp.float32),
            ln2_a=jnp.ones((1, 1), jnp.float32), ln2_b=jnp.zeros((1, 1), jnp.float32),
            w1=dense(ks[4], (D_MODEL, D_FF)), b1=jnp.zeros((1, D_FF), jnp.float32),
            w2=dense(ks[5], (D_FF, D_MODEL)), b2=jnp.zeros((1, D_MODEL), jnp.float32),
        ))
    return dict(layers=layers,
                norm_a=jnp.ones((1, 1), jnp.float32),
                norm_b=jnp.zeros((1, 1), jnp.float32)), key


if __name__ == "__main__":
    key = jax.random.PRNGKey(0)
    params, key = init_params(key)

    key, kx = jax.random.split(key)
    x = jax.random.normal(kx, (BATCH, SEQ, D_MODEL), jnp.float32)

    # padding mask: batch 0 fully valid, batch 1 has last 2 key positions masked
    lengths = jnp.array([SEQ, SEQ - 2])
    pos = jnp.arange(SEQ)
    key_valid = (pos[None, :] < lengths[:, None]).astype(jnp.float32)   # (B, S)
    mask = jnp.broadcast_to(key_valid[:, None, None, :], (BATCH, 1, SEQ, SEQ))
    mask = jnp.asarray(mask, jnp.float32)

    fwd = jax.jit(encoder_forward)
    out = fwd(x, mask, params)
    jax.block_until_ready(out)
    assert out.shape == (BATCH, SEQ, D_MODEL)
    print("KERNEL_OK")
</pallas_src>

<mosaic_0001>
module attributes {stable_mosaic.version = 11 : i64} {
  func.func @encoder_kernel(%arg0: memref<10xf32, #tpu.memory_space<smem>>, %arg1: memref<16x32xf32, #tpu.memory_space<vmem>>, %arg2: memref<2x8x8xf32, #tpu.memory_space<vmem>>, %arg3: memref<2x3x4x32x8xbf16, #tpu.memory_space<vmem>>, %arg4: memref<2x3x4x1x8xf32, #tpu.memory_space<vmem>>, %arg5: memref<2x4x8x32xbf16, #tpu.memory_space<vmem>>, %arg6: memref<2x2x64x64xbf16, #tpu.memory_space<vmem>>, %arg7: memref<2x3x1x64xf32, #tpu.memory_space<vmem>>, %arg8: memref<16x32xf32, #tpu.memory_space<vmem>>) attributes {dimension_semantics = [], scalar_prefetch = 0 : i64, scratch_operands = 0 : i64, tpu.core_type = #tpu.core_type<tc>} {
    %c0 = arith.constant 0 : index
    %c0_0 = arith.constant 0 : index
    %0 = vector.load %arg1[%c0, %c0_0] : memref<16x32xf32, #tpu.memory_space<vmem>>, vector<16x32xf32>
    %c0_1 = arith.constant 0 : index
    %c0_2 = arith.constant 0 : index
    %c0_3 = arith.constant 0 : index
    %1 = vector.load %arg2[%c0_1, %c0_2, %c0_3] : memref<2x8x8xf32, #tpu.memory_space<vmem>>, vector<2x8x8xf32>
    %c0_4 = arith.constant 0 : index
    %2 = memref.load %arg0[%c0_4] : memref<10xf32, #tpu.memory_space<smem>>
    %c1 = arith.constant 1 : index
    %3 = memref.load %arg0[%c1] : memref<10xf32, #tpu.memory_space<smem>>
    %cst = arith.constant dense<0.000000e+00> : vector<16xf32>
    %4 = vector.multi_reduction <add>, %0, %cst [1] : vector<16x32xf32> to vector<16xf32>
    %5 = vector.shape_cast %4 : vector<16xf32> to vector<16x1xf32>
    %cst_5 = arith.constant 3.200000e+01 : f32
    %6 = vector.broadcast %cst_5 : f32 to vector<16x1xf32>
    %7 = arith.divf %5, %6 : vector<16x1xf32>
    %8 = vector.broadcast %7 : vector<16x1xf32> to vector<16x32xf32>
    %9 = arith.subf %0, %8 : vector<16x32xf32>
    %10 = arith.mulf %9, %9 : vector<16x32xf32>
    %cst_6 = arith.constant dense<0.000000e+00> : vector<16xf32>
    %11 = vector.multi_reduction <add>, %10, %cst_6 [1] : vector<16x32xf32> to vector<16xf32>
    %12 = vector.shape_cast %11 : vector<16xf32> to vector<16x1xf32>
    %cst_7 = arith.constant 3.100000e+01 : f32
    %13 = vector.broadcast %cst_7 : f32 to vector<16x1xf32>
    %14 = arith.divf %12, %13 : vector<16x1xf32>
    %15 = vector.broadcast %7 : vector<16x1xf32> to vector<16x32xf32>
    %16 = arith.subf %0, %15 : vector<16x32xf32>
    %17 = vector.broadcast %2 : f32 to vector<16x32xf32>
    %18 = arith.mulf %17, %16 : vector<16x32xf32>
    %19 = math.sqrt %14 : vector<16x1xf32>
    %cst_8 = arith.constant 9.99999997E-7 : f32
    %20 = vector.broadcast %cst_8 : f32 to vector<16x1xf32>
    %21 = arith.addf %19, %20 : vector<16x1xf32>
    %22 = vector.broadcast %21 : vector<16x1xf32> to vector<16x32xf32>
    %23 = arith.divf %18, %22 : vector<16x32xf32>
    %24 = vector.broadcast %3 : f32 to vector<16x32xf32>
    %25 = arith.addf %23, %24 : vector<16x32xf32>
    %26 = arith.truncf %25 : vector<16x32xf32> to vector<16x32xbf16>
    %cst_9 = arith.constant 0.000000e+00 : f32
    %27 = vector.broadcast %cst_9 : f32 to vector<16x32xf32>
    %c0_10 = arith.constant 0 : index
    %c0_11 = arith.constant 0 : index
    %c0_12 = arith.constant 0 : index
    %c0_13 = arith.constant 0 : index
    %c0_14 = arith.constant 0 : index
    %28 = vector.load %arg3[%c0_10, %c0_11, %c0_12, %c0_13, %c0_14] : memref<2x3x4x32x8xbf16, #tpu.memory_space<vmem>>, vector<1x1x1x32x8xbf16>
    %29 = vector.shape_cast %28 : vector<1x1x1x32x8xbf16> to vector<32x8xbf16>
    %cst_15 = arith.constant dense<0.000000e+00> : vector<16x8xf32>
    %30 = tpu.matmul %26, %29, %cst_15 {dimension_numbers = #tpu.dot_dimension_numbers<[1], [0], [0], [1], [0, 0, 1, 1], [], []>} : vector<16x32xbf16>, vector<32x8xbf16>, vector<16x8xf32> -> vector<16x8xf32>
    %c0_16 = arith.constant 0 : index
    %c0_17 = arith.constant 0 : index
    %c0_18 = arith.constant 0 : index
    %c0_19 = arith.constant 0 : index
    %c0_20 = arith.constant 0 : index
    %31 = vector.load %arg4[%c0_16, %c0_17, %c0_18, %c0_19, %c0_20] : memref<2x3x4x1x8xf32, #tpu.memory_space<vmem>>, vector<1x1x1x1x8xf32>
    %32 = vector.shape_cast %31 : vector<1x1x1x1x8xf32> to vector<1x8xf32>
    %33 = vector.broadcast %32 : vector<1x8xf32> to vector<16x8xf32>
    %34 = arith.addf %30, %33 : vector<16x8xf32>
    %35 = vector.shape_cast %34 : vector<16x8xf32> to vector<2x8x8xf32>
    %c0_21 = arith.constant 0 : index
    %c1_22 = arith.constant 1 : index
    %c0_23 = arith.constant 0 : index
    %c0_24 = arith.constant 0 : index
    %c0_25 = arith.constant 0 : index
    %36 = vector.load %arg3[%c0_21, %c1_22, %c0_23, %c0_24, %c0_25] : memref<2x3x4x32x8xbf16, #tpu.memory_space<vmem>>, vector<1x1x1x32x8xbf16>
    %37 = vector.shape_cast %36 : vector<1x1x1x32x8xbf16> to vector<32x8xbf16>
    %cst_26 = arith.constant dense<0.000000e+00> : vector<16x8xf32>
    %38 = tpu.matmul %26, %37, %cst_26 {dimension_numbers = #tpu.dot_dimension_numbers<[1], [0], [0], [1], [0, 0, 1, 1], [], []>} : vector<16x32xbf16>, vector<32x8xbf16>, vector<16x8xf32> -> vector<16x8xf32>
    %c0_27 = arith.constant 0 : index
    %c1_28 = arith.constant 1 : index
    %c0_29 = arith.constant 0 : index
    %c0_30 = arith.constant 0 : index
    %c0_31 = arith.constant 0 : index
    %39 = vector.load %arg4[%c0_27, %c1_28, %c0_29, %c0_30, %c0_31] : memref<2x3x4x1x8xf32, #tpu.memory_space<vmem>>, vector<1x1x1x1x8xf32>
    %40 = vector.shape_cast %39 : vector<1x1x1x1x8xf32> to vector<1x8xf32>
    %41 = vector.broadcast %40 : vector<1x8xf32> to vector<16x8xf32>
    %42 = arith.addf %38, %41 : vector<16x8xf32>
    %43 = vector.shape_cast %42 : vector<16x8xf32> to vector<2x8x8xf32>
    %c0_32 = arith.constant 0 : index
    %c2 = arith.constant 2 : index
    %c0_33 = arith.constant 0 : index
    %c0_34 = arith.constant 0 : index
    %c0_35 = arith.constant 0 : index
    %44 = vector.load %arg3[%c0_32, %c2, %c0_33, %c0_34, %c0_35] : memref<2x3x4x32x8xbf16, #tpu.memory_space<vmem>>, vector<1x1x1x32x8xbf16>
    %45 = vector.shape_cast %44 : vector<1x1x1x32x8xbf16> to vector<32x8xbf16>
    %cst_36 = arith.constant dense<0.000000e+00> : vector<16x8xf32>
    %46 = tpu.matmul %26, %45, %cst_36 {dimension_numbers = #tpu.dot_dimension_numbers<[1], [0], [0], [1], [0, 0, 1, 1], [], []>} : vector<16x32xbf16>, vector<32x8xbf16>, vector<16x8xf32> -> vector<16x8xf32>
    %c0_37 = arith.constant 0 : index
    %c2_38 = arith.constant 2 : index
    %c0_39 = arith.constant 0 : index
    %c0_40 = arith.constant 0 : index
    %c0_41 = arith.constant 0 : index
    %47 = vector.load %arg4[%c0_37, %c2_38, %c0_39, %c0_40, %c0_41] : memref<2x3x4x1x8xf32, #tpu.memory_space<vmem>>, vector<1x1x1x1x8xf32>
    %48 = vector.shape_cast %47 : vector<1x1x1x1x8xf32> to vector<1x8xf32>
    %49 = vector.broadcast %48 : vector<1x8xf32> to vector<16x8xf32>
    %50 = arith.addf %46, %49 : vector<16x8xf32>
    %51 = vector.shape_cast %50 : vector<16x8xf32> to vector<2x8x8xf32>
    "tpu.trace_start"() <{level = 10 : i32, message = "bqd,bkd->bqk"}> : () -> ()
    %cst_42 = arith.constant dense<0.000000e+00> : vector<2x8x8xf32>
    %52 = tpu.matmul %35, %43, %cst_42 {dimension_numbers = #tpu.dot_dimension_numbers<[2], [2], [1], [1], [0, 0, 0, 1, 1, 1], [0], [0]>} : vector<2x8x8xf32>, vector<2x8x8xf32>, vector<2x8x8xf32> -> vector<2x8x8xf32>
    "tpu.trace_stop"() : () -> ()
    %cst_43 = arith.constant 0.353553385 : f32
    %53 = vector.broadcast %cst_43 : f32 to vector<2x8x8xf32>
    %54 = arith.mulf %52, %53 : vector<2x8x8xf32>
    %55 = arith.addf %54, %1 : vector<2x8x8xf32>
    %cst_44 = arith.constant dense<0xFF800000> : vector<2x8xf32>
    %56 = vector.multi_reduction <maximumf>, %55, %cst_44 [2] : vector<2x8x8xf32> to vector<2x8xf32>
    %57 = vector.shape_cast %56 : vector<2x8xf32> to vector<2x8x1xf32>
    %58 = vector.broadcast %57 : vector<2x8x1xf32> to vector<2x8x8xf32>
    %59 = arith.subf %55, %58 : vector<2x8x8xf32>
    %60 = math.exp %59 : vector<2x8x8xf32>
    %cst_45 = arith.constant dense<0.000000e+00> : vector<2x8xf32>
    %61 = vector.multi_reduction <add>, %60, %cst_45 [2] : vector<2x8x8xf32> to vector<2x8xf32>
    %62 = vector.shape_cast %61 : vector<2x8xf32> to vector<2x8x1xf32>
    %63 = tpu.reciprocal %62 {approx = true} : vector<2x8x1xf32> -> vector<2x8x1xf32>
    %64 = vector.broadcast %63 : vector<2x8x1xf32> to vector<2x8x8xf32>
    %65 = arith.mulf %60, %64 : vector<2x8x8xf32>
    "tpu.trace_start"() <{level = 10 : i32, message = "bqk,bkd->bqd"}> : () -> ()
    %cst_46 = arith.constant dense<0.000000e+00> : vector<2x8x8xf32>
    %66 = tpu.matmul %65, %51, %cst_46 {dimension_numbers = #tpu.dot_dimension_numbers<[2], [1], [1], [2], [0, 0, 0, 1, 1, 2], [0], [0]>} : vector<2x8x8xf32>, vector<2x8x8xf32>, vector<2x8x8xf32> -> vector<2x8x8xf32>
    "tpu.trace_stop"() : () -> ()
    %67 = vector.shape_cast %66 : vector<2x8x8xf32> to vector<16x8xf32>
    %68 = arith.truncf %67 : vector<16x8xf32> to vector<16x8xbf16>
    %c0_47 = arith.constant 0 : index
    %c0_48 = arith.constant 0 : index
    %c0_49 = arith.constant 0 : index
    %c0_50 = arith.constant 0 : index
    %69 = vector.load %arg5[%c0_47, %c0_48, %c0_49, %c0_50] : memref<2x4x8x32xbf16, #tpu.memory_space<vmem>>, vector<1x1x8x32xbf16>
    %70 = vector.shape_cast %69 : vector<1x1x8x32xbf16> to vector<8x32xbf16>
    %cst_51 = arith.constant dense<0.000000e+00> : vector<16x32xf32>
    %71 = tpu.matmul %68, %70, %cst_51 {dimension_numbers = #tpu.dot_dimension_numbers<[1], [0], [0], [1], [0, 0, 1, 1], [], []>} : vector<16x8xbf16>, vector<8x32xbf16>, vector<16x32xf32> -> vector<16x32xf32>
    %72 = arith.addf %27, %71 : vector<16x32xf32>
    %c0_52 = arith.constant 0 : index
    %c0_53 = arith.constant 0 : index
    %c1_54 = arith.constant 1 : index
    %c0_55 = arith.constant 0 : index
    %c0_56 = arith.constant 0 : index
    %73 = vector.load %arg3[%c0_52, %c0_53, %c1_54, %c0_55, %c0_56] : memref<2x3x4x32x8xbf16, #tpu.memory_space<vmem>>, vector<1x1x1x32x8xbf16>
    %74 = vector.shape_cast %73 : vector<1x1x1x32x8xbf16> to vector<32x8xbf16>
    %cst_57 = arith.constant dense<0.000000e+00> : vector<16x8xf32>
    %75 = tpu.matmul %26, %74, %cst_57 {dimension_numbers = #tpu.dot_dimension_numbers<[1], [0], [0], [1], [0, 0, 1, 1], [], []>} : vector<16x32xbf16>, vector<32x8xbf16>, vector<16x8xf32> -> vector<16x8xf32>
    %c0_58 = arith.constant 0 : index
    %c0_59 = arith.constant 0 : index
    %c1_60 = arith.constant 1 : index
    %c0_61 = arith.constant 0 : index
    %c0_62 = arith.constant 0 : index
    %76 = vector.load %arg4[%c0_58, %c0_59, %c1_60, %c0_61, %c0_62] : memref<2x3x4x1x8xf32, #tpu.memory_space<vmem>>, vector<1x1x1x1x8xf32>
    %77 = vector.shape_cast %76 : vector<1x1x1x1x8xf32> to vector<1x8xf32>
    %78 = vector.broadcast %77 : vector<1x8xf32> to vector<16x8xf32>
    %79 = arith.addf %75, %78 : vector<16x8xf32>
    %80 = vector.shape_cast %79 : vector<16x8xf32> to vector<2x8x8xf32>
    %c0_63 = arith.constant 0 : index
    %c1_64 = arith.constant 1 : index
    %c1_65 = arith.constant 1 : index
    %c0_66 = arith.constant 0 : index
    %c0_67 = arith.constant 0 : index
    %81 = vector.load %arg3[%c0_63, %c1_64, %c1_65, %c0_66, %c0_67] : memref<2x3x4x32x8xbf16, #tpu.memory_space<vmem>>, vector<1x1x1x32x8xbf16>
    %82 = vector.shape_cast %81 : vector<1x1x1x32x8xbf16> to vector<32x8xbf16>
    %cst_68 = arith.constant dense<0.000000e+00> : vector<16x8xf32>
    %83 = tpu.matmul %26, %82, %cst_68 {dimension_numbers = #tpu.dot_dimension_numbers<[1], [0], [0], [1], [0, 0, 1, 1], [], []>} : vector<16x32xbf16>, vector<32x8xbf16>, vector<16x8xf32> -> vector<16x8xf32>
    %c0_69 = arith.constant 0 : index
    %c1_70 = arith.constant 1 : index
    %c1_71 = arith.constant 1 : index
    %c0_72 = arith.constant 0 : index
    %c0_73 = arith.constant 0 : index
    %84 = vector.load %arg4[%c0_69, %c1_70, %c1_71, %c0_72, %c0_73] : memref<2x3x4x1x8xf32, #tpu.memory_space<vmem>>, vector<1x1x1x1x8xf32>
    %85 = vector.shape_cast %84 : vector<1x1x1x1x8xf32> to vector<1x8xf32>
    %86 = vector.broadcast %85 : vector<1x8xf32> to vector<16x8xf32>
    %87 = arith.addf %83, %86 : vector<16x8xf32>
    %88 = vector.shape_cast %87 : vector<16x8xf32> to vector<2x8x8xf32>
    %c0_74 = arith.constant 0 : index
    %c2_75 = arith.constant 2 : index
    %c1_76 = arith.constant 1 : index
    %c0_77 = arith.constant 0 : index
    %c0_78 = arith.constant 0 : index
    %89 = vector.load %arg3[%c0_74, %c2_75, %c1_76, %c0_77, %c0_78] : memref<2x3x4x32x8xbf16, #tpu.memory_space<vmem>>, vector<1x1x1x32x8xbf16>
    %90 = vector.shape_cast %89 : vector<1x1x1x32x8xbf16> to vector<32x8xbf16>
    %cst_79 = arith.constant dense<0.000000e+00> : vector<16x8xf32>
    %91 = tpu.matmul %26, %90, %cst_79 {dimension_numbers = #tpu.dot_dimension_numbers<[1], [0], [0], [1], [0, 0, 1, 1], [], []>} : vector<16x32xbf16>, vector<32x8xbf16>, vector<16x8xf32> -> vector<16x8xf32>
    %c0_80 = arith.constant 0 : index
    %c2_81 = arith.constant 2 : index
    %c1_82 = arith.constant 1 : index
    %c0_83 = arith.constant 0 : index
    %c0_84 = arith.constant 0 : index
    %92 = vector.load %arg4[%c0_80, %c2_81, %c1_82, %c0_83, %c0_84] : memref<2x3x4x1x8xf32, #tpu.memory_space<vmem>>, vector<1x1x1x1x8xf32>
    %93 = vector.shape_cast %92 : vector<1x1x1x1x8xf32> to vector<1x8xf32>
    %94 = vector.broadcast %93 : vector<1x8xf32> to vector<16x8xf32>
    %95 = arith.addf %91, %94 : vector<16x8xf32>
    %96 = vector.shape_cast %95 : vector<16x8xf32> to vector<2x8x8xf32>
    "tpu.trace_start"() <{level = 10 : i32, message = "bqd,bkd->bqk"}> : () -> ()
    %cst_85 = arith.constant dense<0.000000e+00> : vector<2x8x8xf32>
    %97 = tpu.matmul %80, %88, %cst_85 {dimension_numbers = #tpu.dot_dimension_numbers<[2], [2], [1], [1], [0, 0, 0, 1, 1, 1], [0], [0]>} : vector<2x8x8xf32>, vector<2x8x8xf32>, vector<2x8x8xf32> -> vector<2x8x8xf32>
    "tpu.trace_stop"() : () -> ()
    %cst_86 = arith.constant 0.353553385 : f32
    %98 = vector.broadcast %cst_86 : f32 to vector<2x8x8xf32>
    %99 = arith.mulf %97, %98 : vector<2x8x8xf32>
    %100 = arith.addf %99, %1 : vector<2x8x8xf32>
    %cst_87 = arith.constant dense<0xFF800000> : vector<2x8xf32>
    %101 = vector.multi_reduction <maximumf>, %100, %cst_87 [2] : vector<2x8x8xf32> to vector<2x8xf32>
    %102 = vector.shape_cast %101 : vector<2x8xf32> to vector<2x8x1xf32>
    %103 = vector.broadcast %102 : vector<2x8x1xf32> to vector<2x8x8xf32>
    %104 = arith.subf %100, %103 : vector<2x8x8xf32>
    %105 = math.exp %104 : vector<2x8x8xf32>
    %cst_88 = arith.constant dense<0.000000e+00> : vector<2x8xf32>
    %106 = vector.multi_reduction <add>, %105, %cst_88 [2] : vector<2x8x8xf32> to vector<2x8xf32>
    %107 = vector.shape_cast %106 : vector<2x8xf32> to vector<2x8x1xf32>
    %108 = tpu.reciprocal %107 {approx = true} : vector<2x8x1xf32> -> vector<2x8x1xf32>
    %109 = vector.broadcast %108 : vector<2x8x1xf32> to vector<2x8x8xf32>
    %110 = arith.mulf %105, %109 : vector<2x8x8xf32>
    "tpu.trace_start"() <{level = 10 : i32, message = "bqk,bkd->bqd"}> : () -> ()
    %cst_89 = arith.constant dense<0.000000e+00> : vector<2x8x8xf32>
    %111 = tpu.matmul %110, %96, %cst_89 {dimension_numbers = #tpu.dot_dimension_numbers<[2], [1], [1], [2], [0, 0, 0, 1, 1, 2], [0], [0]>} : vector<2x8x8xf32>, vector<2x8x8xf32>, vector<2x8x8xf32> -> vector<2x8x8xf32>
    "tpu.trace_stop"() : () -> ()
    %112 = vector.shape_cast %111 : vector<2x8x8xf32> to vector<16x8xf32>
    %113 = arith.truncf %112 : vector<16x8xf32> to vector<16x8xbf16>
    %c0_90 = arith.constant 0 : index
    %c1_91 = arith.constant 1 : index
    %c0_92 = arith.constant 0 : index
    %c0_93 = arith.constant 0 : index
    %114 = vector.load %arg5[%c0_90, %c1_91, %c0_92, %c0_93] : memref<2x4x8x32xbf16, #tpu.memory_space<vmem>>, vector<1x1x8x32xbf16>
    %115 = vector.shape_cast %114 : vector<1x1x8x32xbf16> to vector<8x32xbf16>
    %cst_94 = arith.constant dense<0.000000e+00> : vector<16x32xf32>
    %116 = tpu.matmul %113, %115, %cst_94 {dimension_numbers = #tpu.dot_dimension_numbers<[1], [0], [0], [1], [0, 0, 1, 1], [], []>} : vector<16x8xbf16>, vector<8x32xbf16>, vector<16x32xf32> -> vector<16x32xf32>
    %117 = arith.addf %72, %116 : vector<16x32xf32>
    %c0_95 = arith.constant 0 : index
    %c0_96 = arith.constant 0 : index
    %c2_97 = arith.constant 2 : index
    %c0_98 = arith.constant 0 : index
    %c0_99 = arith.constant 0 : index
    %118 = vector.load %arg3[%c0_95, %c0_96, %c2_97, %c0_98, %c0_99] : memref<2x3x4x32x8xbf16, #tpu.memory_space<vmem>>, vector<1x1x1x32x8xbf16>
    %119 = vector.shape_cast %118 : vector<1x1x1x32x8xbf16> to vector<32x8xbf16>
    %cst_100 = arith.constant dense<0.000000e+00> : vector<16x8xf32>
    %120 = tpu.matmul %26, %119, %cst_100 {dimension_numbers = #tpu.dot_dimension_numbers<[1], [0], [0], [1], [0, 0, 1, 1], [], []>} : vector<16x32xbf16>, vector<32x8xbf16>, vector<16x8xf32> -> vector<16x8xf32>
    %c0_101 = arith.constant 0 : index
    %c0_102 = arith.constant 0 : index
    %c2_103 = arith.constant 2 : index
    %c0_104 = arith.constant 0 : index
    %c0_105 = arith.constant 0 : index
    %121 = vector.load %arg4[%c0_101, %c0_102, %c2_103, %c0_104, %c0_105] : memref<2x3x4x1x8xf32, #tpu.memory_space<vmem>>, vector<1x1x1x1x8xf32>
    %122 = vector.shape_cast %121 : vector<1x1x1x1x8xf32> to vector<1x8xf32>
    %123 = vector.broadcast %122 : vector<1x8xf32> to vector<16x8xf32>
    %124 = arith.addf %120, %123 : vector<16x8xf32>
    %125 = vector.shape_cast %124 : vector<16x8xf32> to vector<2x8x8xf32>
    %c0_106 = arith.constant 0 : index
    %c1_107 = arith.constant 1 : index
    %c2_108 = arith.constant 2 : index
    %c0_109 = arith.constant 0 : index
    %c0_110 = arith.constant 0 : index
    %126 = vector.load %arg3[%c0_106, %c1_107, %c2_108, %c0_109, %c0_110] : memref<2x3x4x32x8xbf16, #tpu.memory_space<vmem>>, vector<1x1x1x32x8xbf16>
    %127 = vector.shape_cast %126 : vector<1x1x1x32x8xbf16> to vector<32x8xbf16>
    %cst_111 = arith.constant dense<0.000000e+00> : vector<16x8xf32>
    %128 = tpu.matmul %26, %127, %cst_111 {dimension_numbers = #tpu.dot_dimension_numbers<[1], [0], [0], [1], [0, 0, 1, 1], [], []>} : vector<16x32xbf16>, vector<32x8xbf16>, vector<16x8xf32> -> vector<16x8xf32>
    %c0_112 = arith.constant 0 : index
    %c1_113 = arith.constant 1 : index
    %c2_114 = arith.constant 2 : index
    %c0_115 = arith.constant 0 : index
    %c0_116 = arith.constant 0 : index
    %129 = vector.load %arg4[%c0_112, %c1_113, %c2_114, %c0_115, %c0_116] : memref<2x3x4x1x8xf32, #tpu.memory_space<vmem>>, vector<1x1x1x1x8xf32>
    %130 = vector.shape_cast %129 : vector<1x1x1x1x8xf32> to vector<1x8xf32>
    %131 = vector.broadcast %130 : vector<1x8xf32> to vector<16x8xf32>
    %132 = arith.addf %128, %131 : vector<16x8xf32>
    %133 = vector.shape_cast %132 : vector<16x8xf32> to vector<2x8x8xf32>
    %c0_117 = arith.constant 0 : index
    %c2_118 = arith.constant 2 : index
    %c2_119 = arith.constant 2 : index
    %c0_120 = arith.constant 0 : index
    %c0_121 = arith.constant 0 : index
    %134 = vector.load %arg3[%c0_117, %c2_118, %c2_119, %c0_120, %c0_121] : memref<2x3x4x32x8xbf16, #tpu.memory_space<vmem>>, vector<1x1x1x32x8xbf16>
    %135 = vector.shape_cast %134 : vector<1x1x1x32x8xbf16> to vector<32x8xbf16>
    %cst_122 = arith.constant dense<0.000000e+00> : vector<16x8xf32>
    %136 = tpu.matmul %26, %135, %cst_122 {dimension_numbers = #tpu.dot_dimension_numbers<[1], [0], [0], [1], [0, 0, 1, 1], [], []>} : vector<16x32xbf16>, vector<32x8xbf16>, vector<16x8xf32> -> vector<16x8xf32>
    %c0_123 = arith.constant 0 : index
    %c2_124 = arith.constant 2 : index
    %c2_125 = arith.constant 2 : index
    %c0_126 = arith.constant 0 : index
    %c0_127 = arith.constant 0 : index
    %137 = vector.load %arg4[%c0_123, %c2_124, %c2_125, %c0_126, %c0_127] : memref<2x3x4x1x8xf32, #tpu.memory_space<vmem>>, vector<1x1x1x1x8xf32>
    %138 = vector.shape_cast %137 : vector<1x1x1x1x8xf32> to vector<1x8xf32>
    %139 = vector.broadcast %138 : vector<1x8xf32> to vector<16x8xf32>
    %140 = arith.addf %136, %139 : vector<16x8xf32>
    %141 = vector.shape_cast %140 : vector<16x8xf32> to vector<2x8x8xf32>
    "tpu.trace_start"() <{level = 10 : i32, message = "bqd,bkd->bqk"}> : () -> ()
    %cst_128 = arith.constant dense<0.000000e+00> : vector<2x8x8xf32>
    %142 = tpu.matmul %125, %133, %cst_128 {dimension_numbers = #tpu.dot_dimension_numbers<[2], [2], [1], [1], [0, 0, 0, 1, 1, 1], [0], [0]>} : vector<2x8x8xf32>, vector<2x8x8xf32>, vector<2x8x8xf32> -> vector<2x8x8xf32>
    "tpu.trace_stop"() : () -> ()
    %cst_129 = arith.constant 0.353553385 : f32
    %143 = vector.broadcast %cst_129 : f32 to vector<2x8x8xf32>
    %144 = arith.mulf %142, %143 : vector<2x8x8xf32>
    %145 = arith.addf %144, %1 : vector<2x8x8xf32>
    %cst_130 = arith.constant dense<0xFF800000> : vector<2x8xf32>
    %146 = vector.multi_reduction <maximumf>, %145, %cst_130 [2] : vector<2x8x8xf32> to vector<2x8xf32>
    %147 = vector.shape_cast %146 : vector<2x8xf32> to vector<2x8x1xf32>
    %148 = vector.broadcast %147 : vector<2x8x1xf32> to vector<2x8x8xf32>
    %149 = arith.subf %145, %148 : vector<2x8x8xf32>
    %150 = math.exp %149 : vector<2x8x8xf32>
    %cst_131 = arith.constant dense<0.000000e+00> : vector<2x8xf32>
    %151 = vector.multi_reduction <add>, %150, %cst_131 [2] : vector<2x8x8xf32> to vector<2x8xf32>
    %152 = vector.shape_cast %151 : vector<2x8xf32> to vector<2x8x1xf32>
    %153 = tpu.reciprocal %152 {approx = true} : vector<2x8x1xf32> -> vector<2x8x1xf32>
    %154 = vector.broadcast %153 : vector<2x8x1xf32> to vector<2x8x8xf32>
    %155 = arith.mulf %150, %154 : vector<2x8x8xf32>
    "tpu.trace_start"() <{level = 10 : i32, message = "bqk,bkd->bqd"}> : () -> ()
    %cst_132 = arith.constant dense<0.000000e+00> : vector<2x8x8xf32>
    %156 = tpu.matmul %155, %141, %cst_132 {dimension_numbers = #tpu.dot_dimension_numbers<[2], [1], [1], [2], [0, 0, 0, 1, 1, 2], [0], [0]>} : vector<2x8x8xf32>, vector<2x8x8xf32>, vector<2x8x8xf32> -> vector<2x8x8xf32>
    "tpu.trace_stop"() : () -> ()
    %157 = vector.shape_cast %156 : vector<2x8x8xf32> to vector<16x8xf32>
    %158 = arith.truncf %157 : vector<16x8xf32> to vector<16x8xbf16>
    %c0_133 = arith.constant 0 : index
    %c2_134 = arith.constant 2 : index
    %c0_135 = arith.constant 0 : index
    %c0_136 = arith.constant 0 : index
    %159 = vector.load %arg5[%c0_133, %c2_134, %c0_135, %c0_136] : memref<2x4x8x32xbf16, #tpu.memory_space<vmem>>, vector<1x1x8x32xbf16>
    %160 = vector.shape_cast %159 : vector<1x1x8x32xbf16> to vector<8x32xbf16>
    %cst_137 = arith.constant dense<0.000000e+00> : vector<16x32xf32>
    %161 = tpu.matmul %158, %160, %cst_137 {dimension_numbers = #tpu.dot_dimension_numbers<[1], [0], [0], [1], [0, 0, 1, 1], [], []>} : vector<16x8xbf16>, vector<8x32xbf16>, vector<16x32xf32> -> vector<16x32xf32>
    %162 = arith.addf %117, %161 : vector<16x32xf32>
    %c0_138 = arith.constant 0 : index
    %c0_139 = arith.constant 0 : index
    %c3 = arith.constant 3 : index
    %c0_140 = arith.constant 0 : index
    %c0_141 = arith.constant 0 : index
    %163 = vector.load %arg3[%c0_138, %c0_139, %c3, %c0_140, %c0_141] : memref<2x3x4x32x8xbf16, #tpu.memory_space<vmem>>, vector<1x1x1x32x8xbf16>
    %164 = vector.shape_cast %163 : vector<1x1x1x32x8xbf16> to vector<32x8xbf16>
    %cst_142 = arith.constant dense<0.000000e+00> : vector<16x8xf32>
    %165 = tpu.matmul %26, %164, %cst_142 {dimension_numbers = #tpu.dot_dimension_numbers<[1], [0], [0], [1], [0, 0, 1, 1], [], []>} : vector<16x32xbf16>, vector<32x8xbf16>, vector<16x8xf32> -> vector<16x8xf32>
    %c0_143 = arith.constant 0 : index
    %c0_144 = arith.constant 0 : index
    %c3_145 = arith.constant 3 : index
    %c0_146 = arith.constant 0 : index
    %c0_147 = arith.constant 0 : index
    %166 = vector.load %arg4[%c0_143, %c0_144, %c3_145, %c0_146, %c0_147] : memref<2x3x4x1x8xf32, #tpu.memory_space<vmem>>, vector<1x1x1x1x8xf32>
    %167 = vector.shape_cast %166 : vector<1x1x1x1x8xf32> to vector<1x8xf32>
    %168 = vector.broadcast %167 : vector<1x8xf32> to vector<16x8xf32>
    %169 = arith.addf %165, %168 : vector<16x8xf32>
    %170 = vector.shape_cast %169 : vector<16x8xf32> to vector<2x8x8xf32>
    %c0_148 = arith.constant 0 : index
    %c1_149 = arith.constant 1 : index
    %c3_150 = arith.constant 3 : index
    %c0_151 = arith.constant 0 : index
    %c0_152 = arith.constant 0 : index
    %171 = vector.load %arg3[%c0_148, %c1_149, %c3_150, %c0_151, %c0_152] : memref<2x3x4x32x8xbf16, #tpu.memory_space<vmem>>, vector<1x1x1x32x8xbf16>
    %172 = vector.shape_cast %171 : vector<1x1x1x32x8xbf16> to vector<32x8xbf16>
    %cst_153 = arith.constant dense<0.000000e+00> : vector<16x8xf32>
    %173 = tpu.matmul %26, %172, %cst_153 {dimension_numbers = #tpu.dot_dimension_numbers<[1], [0], [0], [1], [0, 0, 1, 1], [], []>} : vector<16x32xbf16>, vector<32x8xbf16>, vector<16x8xf32> -> vector<16x8xf32>
    %c0_154 = arith.constant 0 : index
    %c1_155 = arith.constant 1 : index
    %c3_156 = arith.constant 3 : index
    %c0_157 = arith.constant 0 : index
    %c0_158 = arith.constant 0 : index
    %174 = vector.load %arg4[%c0_154, %c1_155, %c3_156, %c0_157, %c0_158] : memref<2x3x4x1x8xf32, #tpu.memory_space<vmem>>, vector<1x1x1x1x8xf32>
    %175 = vector.shape_cast %174 : vector<1x1x1x1x8xf32> to vector<1x8xf32>
    %176 = vector.broadcast %175 : vector<1x8xf32> to vector<16x8xf32>
    %177 = arith.addf %173, %176 : vector<16x8xf32>
    %178 = vector.shape_cast %177 : vector<16x8xf32> to vector<2x8x8xf32>
    %c0_159 = arith.constant 0 : index
    %c2_160 = arith.constant 2 : index
    %c3_161 = arith.constant 3 : index
    %c0_162 = arith.constant 0 : index
    %c0_163 = arith.constant 0 : index
    %179 = vector.load %arg3[%c0_159, %c2_160, %c3_161, %c0_162, %c0_163] : memref<2x3x4x32x8xbf16, #tpu.memory_space<vmem>>, vector<1x1x1x32x8xbf16>
    %180 = vector.shape_cast %179 : vector<1x1x1x32x8xbf16> to vector<32x8xbf16>
    %cst_164 = arith.constant dense<0.000000e+00> : vector<16x8xf32>
    %181 = tpu.matmul %26, %180, %cst_164 {dimension_numbers = #tpu.dot_dimension_numbers<[1], [0], [0], [1], [0, 0, 1, 1], [], []>} : vector<16x32xbf16>, vector<32x8xbf16>, vector<16x8xf32> -> vector<16x8xf32>
    %c0_165 = arith.constant 0 : index
    %c2_166 = arith.constant 2 : index
    %c3_167 = arith.constant 3 : index
    %c0_168 = arith.constant 0 : index
    %c0_169 = arith.constant 0 : index
    %182 = vector.load %arg4[%c0_165, %c2_166, %c3_167, %c0_168, %c0_169] : memref<2x3x4x1x8xf32, #tpu.memory_space<vmem>>, vector<1x1x1x1x8xf32>
    %183 = vector.shape_cast %182 : vector<1x1x1x1x8xf32> to vector<1x8xf32>
    %184 = vector.broadcast %183 : vector<1x8xf32> to vector<16x8xf32>
    %185 = arith.addf %181, %184 : vector<16x8xf32>
    %186 = vector.shape_cast %185 : vector<16x8xf32> to vector<2x8x8xf32>
    "tpu.trace_start"() <{level = 10 : i32, message = "bqd,bkd->bqk"}> : () -> ()
    %cst_170 = arith.constant dense<0.000000e+00> : vector<2x8x8xf32>
    %187 = tpu.matmul %170, %178, %cst_170 {dimension_numbers = #tpu.dot_dimension_numbers<[2], [2], [1], [1], [0, 0, 0, 1, 1, 1], [0], [0]>} : vector<2x8x8xf32>, vector<2x8x8xf32>, vector<2x8x8xf32> -> vector<2x8x8xf32>
    "tpu.trace_stop"() : () -> ()
    %cst_171 = arith.constant 0.353553385 : f32
    %188 = vector.broadcast %cst_171 : f32 to vector<2x8x8xf32>
    %189 = arith.mulf %187, %188 : vector<2x8x8xf32>
    %190 = arith.addf %189, %1 : vector<2x8x8xf32>
    %cst_172 = arith.constant dense<0xFF800000> : vector<2x8xf32>
    %191 = vector.multi_reduction <maximumf>, %190, %cst_172 [2] : vector<2x8x8xf32> to vector<2x8xf32>
    %192 = vector.shape_cast %191 : vector<2x8xf32> to vector<2x8x1xf32>
    %193 = vector.broadcast %192 : vector<2x8x1xf32> to vector<2x8x8xf32>
    %194 = arith.subf %190, %193 : vector<2x8x8xf32>
    %195 = math.exp %194 : vector<2x8x8xf32>
    %cst_173 = arith.constant dense<0.000000e+00> : vector<2x8xf32>
    %196 = vector.multi_reduction <add>, %195, %cst_173 [2] : vector<2x8x8xf32> to vector<2x8xf32>
    %197 = vector.shape_cast %196 : vector<2x8xf32> to vector<2x8x1xf32>
    %198 = tpu.reciprocal %197 {approx = true} : vector<2x8x1xf32> -> vector<2x8x1xf32>
    %199 = vector.broadcast %198 : vector<2x8x1xf32> to vector<2x8x8xf32>
    %200 = arith.mulf %195, %199 : vector<2x8x8xf32>
    "tpu.trace_start"() <{level = 10 : i32, message = "bqk,bkd->bqd"}> : () -> ()
    %cst_174 = arith.constant dense<0.000000e+00> : vector<2x8x8xf32>
    %201 = tpu.matmul %200, %186, %cst_174 {dimension_numbers = #tpu.dot_dimension_numbers<[2], [1], [1], [2], [0, 0, 0, 1, 1, 2], [0], [0]>} : vector<2x8x8xf32>, vector<2x8x8xf32>, vector<2x8x8xf32> -> vector<2x8x8xf32>
    "tpu.trace_stop"() : () -> ()
    %202 = vector.shape_cast %201 : vector<2x8x8xf32> to vector<16x8xf32>
    %203 = arith.truncf %202 : vector<16x8xf32> to vector<16x8xbf16>
    %c0_175 = arith.constant 0 : index
    %c3_176 = arith.constant 3 : index
    %c0_177 = arith.constant 0 : index
    %c0_178 = arith.constant 0 : index
    %204 = vector.load %arg5[%c0_175, %c3_176, %c0_177, %c0_178] : memref<2x4x8x32xbf16, #tpu.memory_space<vmem>>, vector<1x1x8x32xbf16>
    %205 = vector.shape_cast %204 : vector<1x1x8x32xbf16> to vector<8x32xbf16>
    %cst_179 = arith.constant dense<0.000000e+00> : vector<16x32xf32>
    %206 = tpu.matmul %203, %205, %cst_179 {dimension_numbers = #tpu.dot_dimension_numbers<[1], [0], [0], [1], [0, 0, 1, 1], [], []>} : vector<16x8xbf16>, vector<8x32xbf16>, vector<16x32xf32> -> vector<16x32xf32>
    %207 = arith.addf %162, %206 : vector<16x32xf32>
    %208 = arith.addf %0, %207 : vector<16x32xf32>
    %c0_180 = arith.constant 0 : index
    %c0_181 = arith.constant 0 : index
    %c0_182 = arith.constant 0 : index
    %c0_183 = arith.constant 0 : index
    %209 = vector.load %arg7[%c0_180, %c0_181, %c0_182, %c0_183] : memref<2x3x1x64xf32, #tpu.memory_space<vmem>>, vector<1x1x1x32xf32>
    %210 = vector.shape_cast %209 : vector<1x1x1x32xf32> to vector<1x32xf32>
    %211 = vector.broadcast %210 : vector<1x32xf32> to vector<16x32xf32>
    %212 = arith.addf %208, %211 : vector<16x32xf32>
    %c2_184 = arith.constant 2 : index
    %213 = memref.load %arg0[%c2_184] : memref<10xf32, #tpu.memory_space<smem>>
    %c3_185 = arith.constant 3 : index
    %214 = memref.load %arg0[%c3_185] : memref<10xf32, #tpu.memory_space<smem>>
    %cst_186 = arith.constant dense<0.000000e+00> : vector<16xf32>
    %215 = vector.multi_reduction <add>, %212, %cst_186 [1] : vector<16x32xf32> to vector<16xf32>
    %216 = vector.shape_cast %215 : vector<16xf32> to vector<16x1xf32>
    %cst_187 = arith.constant 3.200000e+01 : f32
    %217 = vector.broadcast %cst_187 : f32 to vector<16x1xf32>
    %218 = arith.divf %216, %217 : vector<16x1xf32>
    %219 = vector.broadcast %218 : vector<16x1xf32> to vector<16x32xf32>
    %220 = arith.subf %212, %219 : vector<16x32xf32>
    %221 = arith.mulf %220, %220 : vector<16x32xf32>
    %cst_188 = arith.constant dense<0.000000e+00> : vector<16xf32>
    %222 = vector.multi_reduction <add>, %221, %cst_188 [1] : vector<16x32xf32> to vector<16xf32>
    %223 = vector.shape_cast %222 : vector<16xf32> to vector<16x1xf32>
    %cst_189 = arith.constant 3.100000e+01 : f32
    %224 = vector.broadcast %cst_189 : f32 to vector<16x1xf32>
    %225 = arith.divf %223, %224 : vector<16x1xf32>
    %226 = vector.broadcast %218 : vector<16x1xf32> to vector<16x32xf32>
    %227 = arith.subf %212, %226 : vector<16x32xf32>
    %228 = vector.broadcast %213 : f32 to vector<16x32xf32>
    %229 = arith.mulf %228, %227 : vector<16x32xf32>
    %230 = math.sqrt %225 : vector<16x1xf32>
    %cst_190 = arith.constant 9.99999997E-7 : f32
    %231 = vector.broadcast %cst_190 : f32 to vector<16x1xf32>
    %232 = arith.addf %230, %231 : vector<16x1xf32>
    %233 = vector.broadcast %232 : vector<16x1xf32> to vector<16x32xf32>
    %234 = arith.divf %229, %233 : vector<16x32xf32>
    %235 = vector.broadcast %214 : f32 to vector<16x32xf32>
    %236 = arith.addf %234, %235 : vector<16x32xf32>
    %237 = arith.truncf %236 : vector<16x32xf32> to vector<16x32xbf16>
    %c0_191 = arith.constant 0 : index
    %c0_192 = arith.constant 0 : index
    %c0_193 = arith.constant 0 : index
    %c0_194 = arith.constant 0 : index
    %238 = vector.load %arg6[%c0_191, %c0_192, %c0_193, %c0_194] : memref<2x2x64x64xbf16, #tpu.memory_space<vmem>>, vector<1x1x32x64xbf16>
    %239 = vector.shape_cast %238 : vector<1x1x32x64xbf16> to vector<32x64xbf16>
    %cst_195 = arith.constant dense<0.000000e+00> : vector<16x64xf32>
    %240 = tpu.matmul %237, %239, %cst_195 {dimension_numbers = #tpu.dot_dimension_numbers<[1], [0], [0], [1], [0, 0, 1, 1], [], []>} : vector<16x32xbf16>, vector<32x64xbf16>, vector<16x64xf32> -> vector<16x64xf32>
    %c0_196 = arith.constant 0 : index
    %c1_197 = arith.constant 1 : index
    %c0_198 = arith.constant 0 : index
    %c0_199 = arith.constant 0 : index
    %241 = vector.load %arg7[%c0_196, %c1_197, %c0_198, %c0_199] : memref<2x3x1x64xf32, #tpu.memory_space<vmem>>, vector<1x1x1x64xf32>
    %242 = vector.shape_cast %241 : vector<1x1x1x64xf32> to vector<1x64xf32>
    %243 = vector.broadcast %242 : vector<1x64xf32> to vector<16x64xf32>
    %244 = arith.addf %240, %243 : vector<16x64xf32>
    %cst_200 = arith.constant 0.000000e+00 : f32
    %245 = vector.broadcast %cst_200 : f32 to vector<16x64xf32>
    %246 = arith.maximumf %244, %245 : vector<16x64xf32>
    %247 = arith.truncf %246 : vector<16x64xf32> to vector<16x64xbf16>
    %c0_201 = arith.constant 0 : index
    %c1_202 = arith.constant 1 : index
    %c0_203 = arith.constant 0 : index
    %c0_204 = arith.constant 0 : index
    %248 = vector.load %arg6[%c0_201, %c1_202, %c0_203, %c0_204] : memref<2x2x64x64xbf16, #tpu.memory_space<vmem>>, vector<1x1x64x32xbf16>
    %249 = vector.shape_cast %248 : vector<1x1x64x32xbf16> to vector<64x32xbf16>
    %cst_205 = arith.constant dense<0.000000e+00> : vector<16x32xf32>
    %250 = tpu.matmul %247, %249, %cst_205 {dimension_numbers = #tpu.dot_dimension_numbers<[1], [0], [0], [1], [0, 0, 1, 1], [], []>} : vector<16x64xbf16>, vector<64x32xbf16>, vector<16x32xf32> -> vector<16x32xf32>
    %c0_206 = arith.constant 0 : index
    %c2_207 = arith.constant 2 : index
    %c0_208 = arith.constant 0 : index
    %c0_209 = arith.constant 0 : index
    %251 = vector.load %arg7[%c0_206, %c2_207, %c0_208, %c0_209] : memref<2x3x1x64xf32, #tpu.memory_space<vmem>>, vector<1x1x1x32xf32>
    %252 = vector.shape_cast %251 : vector<1x1x1x32xf32> to vector<1x32xf32>
    %253 = vector.broadcast %252 : vector<1x32xf32> to vector<16x32xf32>
    %254 = arith.addf %250, %253 : vector<16x32xf32>
    %255 = arith.addf %212, %254 : vector<16x32xf32>
    %c4 = arith.constant 4 : index
    %256 = memref.load %arg0[%c4] : memref<10xf32, #tpu.memory_space<smem>>
    %c5 = arith.constant 5 : index
    %257 = memref.load %arg0[%c5] : memref<10xf32, #tpu.memory_space<smem>>
    %cst_210 = arith.constant dense<0.000000e+00> : vector<16xf32>
    %258 = vector.multi_reduction <add>, %255, %cst_210 [1] : vector<16x32xf32> to vector<16xf32>
    %259 = vector.shape_cast %258 : vector<16xf32> to vector<16x1xf32>
    %cst_211 = arith.constant 3.200000e+01 : f32
    %260 = vector.broadcast %cst_211 : f32 to vector<16x1xf32>
    %261 = arith.divf %259, %260 : vector<16x1xf32>
    %262 = vector.broadcast %261 : vector<16x1xf32> to vector<16x32xf32>
    %263 = arith.subf %255, %262 : vector<16x32xf32>
    %264 = arith.mulf %263, %263 : vector<16x32xf32>
    %cst_212 = arith.constant dense<0.000000e+00> : vector<16xf32>
    %265 = vector.multi_reduction <add>, %264, %cst_212 [1] : vector<16x32xf32> to vector<16xf32>
    %266 = vector.shape_cast %265 : vector<16xf32> to vector<16x1xf32>
    %cst_213 = arith.constant 3.100000e+01 : f32
    %267 = vector.broadcast %cst_213 : f32 to vector<16x1xf32>
    %268 = arith.divf %266, %267 : vector<16x1xf32>
    %269 = vector.broadcast %261 : vector<16x1xf32> to vector<16x32xf32>
    %270 = arith.subf %255, %269 : vector<16x32xf32>
    %271 = vector.broadcast %256 : f32 to vector<16x32xf32>
    %272 = arith.mulf %271, %270 : vector<16x32xf32>
    %273 = math.sqrt %268 : vector<16x1xf32>
    %cst_214 = arith.constant 9.99999997E-7 : f32
    %274 = vector.broadcast %cst_214 : f32 to vector<16x1xf32>
    %275 = arith.addf %273, %274 : vector<16x1xf32>
    %276 = vector.broadcast %275 : vector<16x1xf32> to vector<16x32xf32>
    %277 = arith.divf %272, %276 : vector<16x32xf32>
    %278 = vector.broadcast %257 : f32 to vector<16x32xf32>
    %279 = arith.addf %277, %278 : vector<16x32xf32>
    %280 = arith.truncf %279 : vector<16x32xf32> to vector<16x32xbf16>
    %cst_215 = arith.constant 0.000000e+00 : f32
    %281 = vector.broadcast %cst_215 : f32 to vector<16x32xf32>
    %c1_216 = arith.constant 1 : index
    %c0_217 = arith.constant 0 : index
    %c0_218 = arith.constant 0 : index
    %c0_219 = arith.constant 0 : index
    %c0_220 = arith.constant 0 : index
    %282 = vector.load %arg3[%c1_216, %c0_217, %c0_218, %c0_219, %c0_220] : memref<2x3x4x32x8xbf16, #tpu.memory_space<vmem>>, vector<1x1x1x32x8xbf16>
    %283 = vector.shape_cast %282 : vector<1x1x1x32x8xbf16> to vector<32x8xbf16>
    %cst_221 = arith.constant dense<0.000000e+00> : vector<16x8xf32>
    %284 = tpu.matmul %280, %283, %cst_221 {dimension_numbers = #tpu.dot_dimension_numbers<[1], [0], [0], [1], [0, 0, 1, 1], [], []>} : vector<16x32xbf16>, vector<32x8xbf16>, vector<16x8xf32> -> vector<16x8xf32>
    %c1_222 = arith.constant 1 : index
    %c0_223 = arith.constant 0 : index
    %c0_224 = arith.constant 0 : index
    %c0_225 = arith.constant 0 : index
    %c0_226 = arith.constant 0 : index
    %285 = vector.load %arg4[%c1_222, %c0_223, %c0_224, %c0_225, %c0_226] : memref<2x3x4x1x8xf32, #tpu.memory_space<vmem>>, vector<1x1x1x1x8xf32>
    %286 = vector.shape_cast %285 : vector<1x1x1x1x8xf32> to vector<1x8xf32>
    %287 = vector.broadcast %286 : vector<1x8xf32> to vector<16x8xf32>
    %288 = arith.addf %284, %287 : vector<16x8xf32>
    %289 = vector.shape_cast %288 : vector<16x8xf32> to vector<2x8x8xf32>
    %c1_227 = arith.constant 1 : index
    %c1_228 = arith.constant 1 : index
    %c0_229 = arith.constant 0 : index
    %c0_230 = arith.constant 0 : index
    %c0_231 = arith.constant 0 : index
    %290 = vector.load %arg3[%c1_227, %c1_228, %c0_229, %c0_230, %c0_231] : memref<2x3x4x32x8xbf16, #tpu.memory_space<vmem>>, vector<1x1x1x32x8xbf16>
    %291 = vector.shape_cast %290 : vector<1x1x1x32x8xbf16> to vector<32x8xbf16>
    %cst_232 = arith.constant dense<0.000000e+00> : vector<16x8xf32>
    %292 = tpu.matmul %280, %291, %cst_232 {dimension_numbers = #tpu.dot_dimension_numbers<[1], [0], [0], [1], [0, 0, 1, 1], [], []>} : vector<16x32xbf16>, vector<32x8xbf16>, vector<16x8xf32> -> vector<16x8xf32>
    %c1_233 = arith.constant 1 : index
    %c1_234 = arith.constant 1 : index
    %c0_235 = arith.constant 0 : index
    %c0_236 = arith.constant 0 : index
    %c0_237 = arith.constant 0 : index
    %293 = vector.load %arg4[%c1_233, %c1_234, %c0_235, %c0_236, %c0_237] : memref<2x3x4x1x8xf32, #tpu.memory_space<vmem>>, vector<1x1x1x1x8xf32>
    %294 = vector.shape_cast %293 : vector<1x1x1x1x8xf32> to vector<1x8xf32>
    %295 = vector.broadcast %294 : vector<1x8xf32> to vector<16x8xf32>
    %296 = arith.addf %292, %295 : vector<16x8xf32>
    %297 = vector.shape_cast %296 : vector<16x8xf32> to vector<2x8x8xf32>
    %c1_238 = arith.constant 1 : index
    %c2_239 = arith.constant 2 : index
    %c0_240 = arith.constant 0 : index
    %c0_241 = arith.constant 0 : index
    %c0_242 = arith.constant 0 : index
    %298 = vector.load %arg3[%c1_238, %c2_239, %c0_240, %c0_241, %c0_242] : memref<2x3x4x32x8xbf16, #tpu.memory_space<vmem>>, vector<1x1x1x32x8xbf16>
    %299 = vector.shape_cast %298 : vector<1x1x1x32x8xbf16> to vector<32x8xbf16>
    %cst_243 = arith.constant dense<0.000000e+00> : vector<16x8xf32>
    %300 = tpu.matmul %280, %299, %cst_243 {dimension_numbers = #tpu.dot_dimension_numbers<[1], [0], [0], [1], [0, 0, 1, 1], [], []>} : vector<16x32xbf16>, vector<32x8xbf16>, vector<16x8xf32> -> vector<16x8xf32>
    %c1_244 = arith.constant 1 : index
    %c2_245 = arith.constant 2 : index
    %c0_246 = arith.constant 0 : index
    %c0_247 = arith.constant 0 : index
    %c0_248 = arith.constant 0 : index
    %301 = vector.load %arg4[%c1_244, %c2_245, %c0_246, %c0_247, %c0_248] : memref<2x3x4x1x8xf32, #tpu.memory_space<vmem>>, vector<1x1x1x1x8xf32>
    %302 = vector.shape_cast %301 : vector<1x1x1x1x8xf32> to vector<1x8xf32>
    %303 = vector.broadcast %302 : vector<1x8xf32> to vector<16x8xf32>
    %304 = arith.addf %300, %303 : vector<16x8xf32>
    %305 = vector.shape_cast %304 : vector<16x8xf32> to vector<2x8x8xf32>
    "tpu.trace_start"() <{level = 10 : i32, message = "bqd,bkd->bqk"}> : () -> ()
    %cst_249 = arith.constant dense<0.000000e+00> : vector<2x8x8xf32>
    %306 = tpu.matmul %289, %297, %cst_249 {dimension_numbers = #tpu.dot_dimension_numbers<[2], [2], [1], [1], [0, 0, 0, 1, 1, 1], [0], [0]>} : vector<2x8x8xf32>, vector<2x8x8xf32>, vector<2x8x8xf32> -> vector<2x8x8xf32>
    "tpu.trace_stop"() : () -> ()
    %cst_250 = arith.constant 0.353553385 : f32
    %307 = vector.broadcast %cst_250 : f32 to vector<2x8x8xf32>
    %308 = arith.mulf %306, %307 : vector<2x8x8xf32>
    %309 = arith.addf %308, %1 : vector<2x8x8xf32>
    %cst_251 = arith.constant dense<0xFF800000> : vector<2x8xf32>
    %310 = vector.multi_reduction <maximumf>, %309, %cst_251 [2] : vector<2x8x8xf32> to vector<2x8xf32>
    %311 = vector.shape_cast %310 : vector<2x8xf32> to vector<2x8x1xf32>
    %312 = vector.broadcast %311 : vector<2x8x1xf32> to vector<2x8x8xf32>
    %313 = arith.subf %309, %312 : vector<2x8x8xf32>
    %314 = math.exp %313 : vector<2x8x8xf32>
    %cst_252 = arith.constant dense<0.000000e+00> : vector<2x8xf32>
    %315 = vector.multi_reduction <add>, %314, %cst_252 [2] : vector<2x8x8xf32> to vector<2x8xf32>
    %316 = vector.shape_cast %315 : vector<2x8xf32> to vector<2x8x1xf32>
    %317 = tpu.reciprocal %316 {approx = true} : vector<2x8x1xf32> -> vector<2x8x1xf32>
    %318 = vector.broadcast %317 : vector<2x8x1xf32> to vector<2x8x8xf32>
    %319 = arith.mulf %314, %318 : vector<2x8x8xf32>
    "tpu.trace_start"() <{level = 10 : i32, message = "bqk,bkd->bqd"}> : () -> ()
    %cst_253 = arith.constant dense<0.000000e+00> : vector<2x8x8xf32>
    %320 = tpu.matmul %319, %305, %cst_253 {dimension_numbers = #tpu.dot_dimension_numbers<[2], [1], [1], [2], [0, 0, 0, 1, 1, 2], [0], [0]>} : vector<2x8x8xf32>, vector<2x8x8xf32>, vector<2x8x8xf32> -> vector<2x8x8xf32>
    "tpu.trace_stop"() : () -> ()
    %321 = vector.shape_cast %320 : vector<2x8x8xf32> to vector<16x8xf32>
    %322 = arith.truncf %321 : vector<16x8xf32> to vector<16x8xbf16>
    %c1_254 = arith.constant 1 : index
    %c0_255 = arith.constant 0 : index
    %c0_256 = arith.constant 0 : index
    %c0_257 = arith.constant 0 : index
    %323 = vector.load %arg5[%c1_254, %c0_255, %c0_256, %c0_257] : memref<2x4x8x32xbf16, #tpu.memory_space<vmem>>, vector<1x1x8x32xbf16>
    %324 = vector.shape_cast %323 : vector<1x1x8x32xbf16> to vector<8x32xbf16>
    %cst_258 = arith.constant dense<0.000000e+00> : vector<16x32xf32>
    %325 = tpu.matmul %322, %324, %cst_258 {dimension_numbers = #tpu.dot_dimension_numbers<[1], [0], [0], [1], [0, 0, 1, 1], [], []>} : vector<16x8xbf16>, vector<8x32xbf16>, vector<16x32xf32> -> vector<16x32xf32>
    %326 = arith.addf %281, %325 : vector<16x32xf32>
    %c1_259 = arith.constant 1 : index
    %c0_260 = arith.constant 0 : index
    %c1_261 = arith.constant 1 : index
    %c0_262 = arith.constant 0 : index
    %c0_263 = arith.constant 0 : index
    %327 = vector.load %arg3[%c1_259, %c0_260, %c1_261, %c0_262, %c0_263] : memref<2x3x4x32x8xbf16, #tpu.memory_space<vmem>>, vector<1x1x1x32x8xbf16>
    %328 = vector.shape_cast %327 : vector<1x1x1x32x8xbf16> to vector<32x8xbf16>
    %cst_264 = arith.constant dense<0.000000e+00> : vector<16x8xf32>
    %329 = tpu.matmul %280, %328, %cst_264 {dimension_numbers = #tpu.dot_dimension_numbers<[1], [0], [0], [1], [0, 0, 1, 1], [], []>} : vector<16x32xbf16>, vector<32x8xbf16>, vector<16x8xf32> -> vector<16x8xf32>
    %c1_265 = arith.constant 1 : index
    %c0_266 = arith.constant 0 : index
    %c1_267 = arith.constant 1 : index
    %c0_268 = arith.constant 0 : index
    %c0_269 = arith.constant 0 : index
    %330 = vector.load %arg4[%c1_265, %c0_266, %c1_267, %c0_268, %c0_269] : memref<2x3x4x1x8xf32, #tpu.memory_space<vmem>>, vector<1x1x1x1x8xf32>
    %331 = vector.shape_cast %330 : vector<1x1x1x1x8xf32> to vector<1x8xf32>
    %332 = vector.broadcast %331 : vector<1x8xf32> to vector<16x8xf32>
    %333 = arith.addf %329, %332 : vector<16x8xf32>
    %334 = vector.shape_cast %333 : vector<16x8xf32> to vector<2x8x8xf32>
    %c1_270 = arith.constant 1 : index
    %c1_271 = arith.constant 1 : index
    %c1_272 = arith.constant 1 : index
    %c0_273 = arith.constant 0 : index
    %c0_274 = arith.constant 0 : index
    %335 = vector.load %arg3[%c1_270, %c1_271, %c1_272, %c0_273, %c0_274] : memref<2x3x4x32x8xbf16, #tpu.memory_space<vmem>>, vector<1x1x1x32x8xbf16>
    %336 = vector.shape_cast %335 : vector<1x1x1x32x8xbf16> to vector<32x8xbf16>
    %cst_275 = arith.constant dense<0.000000e+00> : vector<16x8xf32>
    %337 = tpu.matmul %280, %336, %cst_275 {dimension_numbers = #tpu.dot_dimension_numbers<[1], [0], [0], [1], [0, 0, 1, 1], [], []>} : vector<16x32xbf16>, vector<32x8xbf16>, vector<16x8xf32> -> vector<16x8xf32>
    %c1_276 = arith.constant 1 : index
    %c1_277 = arith.constant 1 : index
    %c1_278 = arith.constant 1 : index
    %c0_279 = arith.constant 0 : index
    %c0_280 = arith.constant 0 : index
    %338 = vector.load %arg4[%c1_276, %c1_277, %c1_278, %c0_279, %c0_280] : memref<2x3x4x1x8xf32, #tpu.memory_space<vmem>>, vector<1x1x1x1x8xf32>
    %339 = vector.shape_cast %338 : vector<1x1x1x1x8xf32> to vector<1x8xf32>
    %340 = vector.broadcast %339 : vector<1x8xf32> to vector<16x8xf32>
    %341 = arith.addf %337, %340 : vector<16x8xf32>
    %342 = vector.shape_cast %341 : vector<16x8xf32> to vector<2x8x8xf32>
    %c1_281 = arith.constant 1 : index
    %c2_282 = arith.constant 2 : index
    %c1_283 = arith.constant 1 : index
    %c0_284 = arith.constant 0 : index
    %c0_285 = arith.constant 0 : index
    %343 = vector.load %arg3[%c1_281, %c2_282, %c1_283, %c0_284, %c0_285] : memref<2x3x4x32x8xbf16, #tpu.memory_space<vmem>>, vector<1x1x1x32x8xbf16>
    %344 = vector.shape_cast %343 : vector<1x1x1x32x8xbf16> to vector<32x8xbf16>
    %cst_286 = arith.constant dense<0.000000e+00> : vector<16x8xf32>
    %345 = tpu.matmul %280, %344, %cst_286 {dimension_numbers = #tpu.dot_dimension_numbers<[1], [0], [0], [1], [0, 0, 1, 1], [], []>} : vector<16x32xbf16>, vector<32x8xbf16>, vector<16x8xf32> -> vector<16x8xf32>
    %c1_287 = arith.constant 1 : index
    %c2_288 = arith.constant 2 : index
    %c1_289 = arith.constant 1 : index
    %c0_290 = arith.constant 0 : index
    %c0_291 = arith.constant 0 : index
    %346 = vector.load %arg4[%c1_287, %c2_288, %c1_289, %c0_290, %c0_291] : memref<2x3x4x1x8xf32, #tpu.memory_space<vmem>>, vector<1x1x1x1x8xf32>
    %347 = vector.shape_cast %346 : vector<1x1x1x1x8xf32> to vector<1x8xf32>
    %348 = vector.broadcast %347 : vector<1x8xf32> to vector<16x8xf32>
    %349 = arith.addf %345, %348 : vector<16x8xf32>
    %350 = vector.shape_cast %349 : vector<16x8xf32> to vector<2x8x8xf32>
    "tpu.trace_start"() <{level = 10 : i32, message = "bqd,bkd->bqk"}> : () -> ()
    %cst_292 = arith.constant dense<0.000000e+00> : vector<2x8x8xf32>
    %351 = tpu.matmul %334, %342, %cst_292 {dimension_numbers = #tpu.dot_dimension_numbers<[2], [2], [1], [1], [0, 0, 0, 1, 1, 1], [0], [0]>} : vector<2x8x8xf32>, vector<2x8x8xf32>, vector<2x8x8xf32> -> vector<2x8x8xf32>
    "tpu.trace_stop"() : () -> ()
    %cst_293 = arith.constant 0.353553385 : f32
    %352 = vector.broadcast %cst_293 : f32 to vector<2x8x8xf32>
    %353 = arith.mulf %351, %352 : vector<2x8x8xf32>
    %354 = arith.addf %353, %1 : vector<2x8x8xf32>
    %cst_294 = arith.constant dense<0xFF800000> : vector<2x8xf32>
    %355 = vector.multi_reduction <maximumf>, %354, %cst_294 [2] : vector<2x8x8xf32> to vector<2x8xf32>
    %356 = vector.shape_cast %355 : vector<2x8xf32> to vector<2x8x1xf32>
    %357 = vector.broadcast %356 : vector<2x8x1xf32> to vector<2x8x8xf32>
    %358 = arith.subf %354, %357 : vector<2x8x8xf32>
    %359 = math.exp %358 : vector<2x8x8xf32>
    %cst_295 = arith.constant dense<0.000000e+00> : vector<2x8xf32>
    %360 = vector.multi_reduction <add>, %359, %cst_295 [2] : vector<2x8x8xf32> to vector<2x8xf32>
    %361 = vector.shape_cast %360 : vector<2x8xf32> to vector<2x8x1xf32>
    %362 = tpu.reciprocal %361 {approx = true} : vector<2x8x1xf32> -> vector<2x8x1xf32>
    %363 = vector.broadcast %362 : vector<2x8x1xf32> to vector<2x8x8xf32>
    %364 = arith.mulf %359, %363 : vector<2x8x8xf32>
    "tpu.trace_start"() <{level = 10 : i32, message = "bqk,bkd->bqd"}> : () -> ()
    %cst_296 = arith.constant dense<0.000000e+00> : vector<2x8x8xf32>
    %365 = tpu.matmul %364, %350, %cst_296 {dimension_numbers = #tpu.dot_dimension_numbers<[2], [1], [1], [2], [0, 0, 0, 1, 1, 2], [0], [0]>} : vector<2x8x8xf32>, vector<2x8x8xf32>, vector<2x8x8xf32> -> vector<2x8x8xf32>
    "tpu.trace_stop"() : () -> ()
    %366 = vector.shape_cast %365 : vector<2x8x8xf32> to vector<16x8xf32>
    %367 = arith.truncf %366 : vector<16x8xf32> to vector<16x8xbf16>
    %c1_297 = arith.constant 1 : index
    %c1_298 = arith.constant 1 : index
    %c0_299 = arith.constant 0 : index
    %c0_300 = arith.constant 0 : index
    %368 = vector.load %arg5[%c1_297, %c1_298, %c0_299, %c0_300] : memref<2x4x8x32xbf16, #tpu.memory_space<vmem>>, vector<1x1x8x32xbf16>
    %369 = vector.shape_cast %368 : vector<1x1x8x32xbf16> to vector<8x32xbf16>
    %cst_301 = arith.constant dense<0.000000e+00> : vector<16x32xf32>
    %370 = tpu.matmul %367, %369, %cst_301 {dimension_numbers = #tpu.dot_dimension_numbers<[1], [0], [0], [1], [0, 0, 1, 1], [], []>} : vector<16x8xbf16>, vector<8x32xbf16>, vector<16x32xf32> -> vector<16x32xf32>
    %371 = arith.addf %326, %370 : vector<16x32xf32>
    %c1_302 = arith.constant 1 : index
    %c0_303 = arith.constant 0 : index
    %c2_304 = arith.constant 2 : index
    %c0_305 = arith.constant 0 : index
    %c0_306 = arith.constant 0 : index
    %372 = vector.load %arg3[%c1_302, %c0_303, %c2_304, %c0_305, %c0_306] : memref<2x3x4x32x8xbf16, #tpu.memory_space<vmem>>, vector<1x1x1x32x8xbf16>
    %373 = vector.shape_cast %372 : vector<1x1x1x32x8xbf16> to vector<32x8xbf16>
    %cst_307 = arith.constant dense<0.000000e+00> : vector<16x8xf32>
    %374 = tpu.matmul %280, %373, %cst_307 {dimension_numbers = #tpu.dot_dimension_numbers<[1], [0], [0], [1], [0, 0, 1, 1], [], []>} : vector<16x32xbf16>, vector<32x8xbf16>, vector<16x8xf32> -> vector<16x8xf32>
    %c1_308 = arith.constant 1 : index
    %c0_309 = arith.constant 0 : index
    %c2_310 = arith.constant 2 : index
    %c0_311 = arith.constant 0 : index
    %c0_312 = arith.constant 0 : index
    %375 = vector.load %arg4[%c1_308, %c0_309, %c2_310, %c0_311, %c0_312] : memref<2x3x4x1x8xf32, #tpu.memory_space<vmem>>, vector<1x1x1x1x8xf32>
    %376 = vector.shape_cast %375 : vector<1x1x1x1x8xf32> to vector<1x8xf32>
    %377 = vector.broadcast %376 : vector<1x8xf32> to vector<16x8xf32>
    %378 = arith.addf %374, %377 : vector<16x8xf32>
    %379 = vector.shape_cast %378 : vector<16x8xf32> to vector<2x8x8xf32>
    %c1_313 = arith.constant 1 : index
    %c1_314 = arith.constant 1 : index
    %c2_315 = arith.constant 2 : index
    %c0_316 = arith.constant 0 : index
    %c0_317 = arith.constant 0 : index
    %380 = vector.load %arg3[%c1_313, %c1_314, %c2_315, %c0_316, %c0_317] : memref<2x3x4x32x8xbf16, #tpu.memory_space<vmem>>, vector<1x1x1x32x8xbf16>
    %381 = vector.shape_cast %380 : vector<1x1x1x32x8xbf16> to vector<32x8xbf16>
    %cst_318 = arith.constant dense<0.000000e+00> : vector<16x8xf32>
    %382 = tpu.matmul %280, %381, %cst_318 {dimension_numbers = #tpu.dot_dimension_numbers<[1], [0], [0], [1], [0, 0, 1, 1], [], []>} : vector<16x32xbf16>, vector<32x8xbf16>, vector<16x8xf32> -> vector<16x8xf32>
    %c1_319 = arith.constant 1 : index
    %c1_320 = arith.constant 1 : index
    %c2_321 = arith.constant 2 : index
    %c0_322 = arith.constant 0 : index
    %c0_323 = arith.constant 0 : index
    %383 = vector.load %arg4[%c1_319, %c1_320, %c2_321, %c0_322, %c0_323] : memref<2x3x4x1x8xf32, #tpu.memory_space<vmem>>, vector<1x1x1x1x8xf32>
    %384 = vector.shape_cast %383 : vector<1x1x1x1x8xf32> to vector<1x8xf32>
    %385 = vector.broadcast %384 : vector<1x8xf32> to vector<16x8xf32>
    %386 = arith.addf %382, %385 : vector<16x8xf32>
    %387 = vector.shape_cast %386 : vector<16x8xf32> to vector<2x8x8xf32>
    %c1_324 = arith.constant 1 : index
    %c2_325 = arith.constant 2 : index
    %c2_326 = arith.constant 2 : index
    %c0_327 = arith.constant 0 : index
    %c0_328 = arith.constant 0 : index
    %388 = vector.load %arg3[%c1_324, %c2_325, %c2_326, %c0_327, %c0_328] : memref<2x3x4x32x8xbf16, #tpu.memory_space<vmem>>, vector<1x1x1x32x8xbf16>
    %389 = vector.shape_cast %388 : vector<1x1x1x32x8xbf16> to vector<32x8xbf16>
    %cst_329 = arith.constant dense<0.000000e+00> : vector<16x8xf32>
    %390 = tpu.matmul %280, %389, %cst_329 {dimension_numbers = #tpu.dot_dimension_numbers<[1], [0], [0], [1], [0, 0, 1, 1], [], []>} : vector<16x32xbf16>, vector<32x8xbf16>, vector<16x8xf32> -> vector<16x8xf32>
    %c1_330 = arith.constant 1 : index
    %c2_331 = arith.constant 2 : index
    %c2_332 = arith.constant 2 : index
    %c0_333 = arith.constant 0 : index
    %c0_334 = arith.constant 0 : index
    %391 = vector.load %arg4[%c1_330, %c2_331, %c2_332, %c0_333, %c0_334] : memref<2x3x4x1x8xf32, #tpu.memory_space<vmem>>, vector<1x1x1x1x8xf32>
    %392 = vector.shape_cast %391 : vector<1x1x1x1x8xf32> to vector<1x8xf32>
    %393 = vector.broadcast %392 : vector<1x8xf32> to vector<16x8xf32>
    %394 = arith.addf %390, %393 : vector<16x8xf32>
    %395 = vector.shape_cast %394 : vector<16x8xf32> to vector<2x8x8xf32>
    "tpu.trace_start"() <{level = 10 : i32, message = "bqd,bkd->bqk"}> : () -> ()
    %cst_335 = arith.constant dense<0.000000e+00> : vector<2x8x8xf32>
    %396 = tpu.matmul %379, %387, %cst_335 {dimension_numbers = #tpu.dot_dimension_numbers<[2], [2], [1], [1], [0, 0, 0, 1, 1, 1], [0], [0]>} : vector<2x8x8xf32>, vector<2x8x8xf32>, vector<2x8x8xf32> -> vector<2x8x8xf32>
    "tpu.trace_stop"() : () -> ()
    %cst_336 = arith.constant 0.353553385 : f32
    %397 = vector.broadcast %cst_336 : f32 to vector<2x8x8xf32>
    %398 = arith.mulf %396, %397 : vector<2x8x8xf32>
    %399 = arith.addf %398, %1 : vector<2x8x8xf32>
    %cst_337 = arith.constant dense<0xFF800000> : vector<2x8xf32>
    %400 = vector.multi_reduction <maximumf>, %399, %cst_337 [2] : vector<2x8x8xf32> to vector<2x8xf32>
    %401 = vector.shape_cast %400 : vector<2x8xf32> to vector<2x8x1xf32>
    %402 = vector.broadcast %401 : vector<2x8x1xf32> to vector<2x8x8xf32>
    %403 = arith.subf %399, %402 : vector<2x8x8xf32>
    %404 = math.exp %403 : vector<2x8x8xf32>
    %cst_338 = arith.constant dense<0.000000e+00> : vector<2x8xf32>
    %405 = vector.multi_reduction <add>, %404, %cst_338 [2] : vector<2x8x8xf32> to vector<2x8xf32>
    %406 = vector.shape_cast %405 : vector<2x8xf32> to vector<2x8x1xf32>
    %407 = tpu.reciprocal %406 {approx = true} : vector<2x8x1xf32> -> vector<2x8x1xf32>
    %408 = vector.broadcast %407 : vector<2x8x1xf32> to vector<2x8x8xf32>
    %409 = arith.mulf %404, %408 : vector<2x8x8xf32>
    "tpu.trace_start"() <{level = 10 : i32, message = "bqk,bkd->bqd"}> : () -> ()
    %cst_339 = arith.constant dense<0.000000e+00> : vector<2x8x8xf32>
    %410 = tpu.matmul %409, %395, %cst_339 {dimension_numbers = #tpu.dot_dimension_numbers<[2], [1], [1], [2], [0, 0, 0, 1, 1, 2], [0], [0]>} : vector<2x8x8xf32>, vector<2x8x8xf32>, vector<2x8x8xf32> -> vector<2x8x8xf32>
    "tpu.trace_stop"() : () -> ()
    %411 = vector.shape_cast %410 : vector<2x8x8xf32> to vector<16x8xf32>
    %412 = arith.truncf %411 : vector<16x8xf32> to vector<16x8xbf16>
    %c1_340 = arith.constant 1 : index
    %c2_341 = arith.constant 2 : index
    %c0_342 = arith.constant 0 : index
    %c0_343 = arith.constant 0 : index
    %413 = vector.load %arg5[%c1_340, %c2_341, %c0_342, %c0_343] : memref<2x4x8x32xbf16, #tpu.memory_space<vmem>>, vector<1x1x8x32xbf16>
    %414 = vector.shape_cast %413 : vector<1x1x8x32xbf16> to vector<8x32xbf16>
    %cst_344 = arith.constant dense<0.000000e+00> : vector<16x32xf32>
    %415 = tpu.matmul %412, %414, %cst_344 {dimension_numbers = #tpu.dot_dimension_numbers<[1], [0], [0], [1], [0, 0, 1, 1], [], []>} : vector<16x8xbf16>, vector<8x32xbf16>, vector<16x32xf32> -> vector<16x32xf32>
    %416 = arith.addf %371, %415 : vector<16x32xf32>
    %c1_345 = arith.constant 1 : index
    %c0_346 = arith.constant 0 : index
    %c3_347 = arith.constant 3 : index
    %c0_348 = arith.constant 0 : index
    %c0_349 = arith.constant 0 : index
    %417 = vector.load %arg3[%c1_345, %c0_346, %c3_347, %c0_348, %c0_349] : memref<2x3x4x32x8xbf16, #tpu.memory_space<vmem>>, vector<1x1x1x32x8xbf16>
    %418 = vector.shape_cast %417 : vector<1x1x1x32x8xbf16> to vector<32x8xbf16>
    %cst_350 = arith.constant dense<0.000000e+00> : vector<16x8xf32>
    %419 = tpu.matmul %280, %418, %cst_350 {dimension_numbers = #tpu.dot_dimension_numbers<[1], [0], [0], [1], [0, 0, 1, 1], [], []>} : vector<16x32xbf16>, vector<32x8xbf16>, vector<16x8xf32> -> vector<16x8xf32>
    %c1_351 = arith.constant 1 : index
    %c0_352 = arith.constant 0 : index
    %c3_353 = arith.constant 3 : index
    %c0_354 = arith.constant 0 : index
    %c0_355 = arith.constant 0 : index
    %420 = vector.load %arg4[%c1_351, %c0_352, %c3_353, %c0_354, %c0_355] : memref<2x3x4x1x8xf32, #tpu.memory_space<vmem>>, vector<1x1x1x1x8xf32>
    %421 = vector.shape_cast %420 : vector<1x1x1x1x8xf32> to vector<1x8xf32>
    %422 = vector.broadcast %421 : vector<1x8xf32> to vector<16x8xf32>
    %423 = arith.addf %419, %422 : vector<16x8xf32>
    %424 = vector.shape_cast %423 : vector<16x8xf32> to vector<2x8x8xf32>
    %c1_356 = arith.constant 1 : index
    %c1_357 = arith.constant 1 : index
    %c3_358 = arith.constant 3 : index
    %c0_359 = arith.constant 0 : index
    %c0_360 = arith.constant 0 : index
    %425 = vector.load %arg3[%c1_356, %c1_357, %c3_358, %c0_359, %c0_360] : memref<2x3x4x32x8xbf16, #tpu.memory_space<vmem>>, vector<1x1x1x32x8xbf16>
    %426 = vector.shape_cast %425 : vector<1x1x1x32x8xbf16> to vector<32x8xbf16>
    %cst_361 = arith.constant dense<0.000000e+00> : vector<16x8xf32>
    %427 = tpu.matmul %280, %426, %cst_361 {dimension_numbers = #tpu.dot_dimension_numbers<[1], [0], [0], [1], [0, 0, 1, 1], [], []>} : vector<16x32xbf16>, vector<32x8xbf16>, vector<16x8xf32> -> vector<16x8xf32>
    %c1_362 = arith.constant 1 : index
    %c1_363 = arith.constant 1 : index
    %c3_364 = arith.constant 3 : index
    %c0_365 = arith.constant 0 : index
    %c0_366 = arith.constant 0 : index
    %428 = vector.load %arg4[%c1_362, %c1_363, %c3_364, %c0_365, %c0_366] : memref<2x3x4x1x8xf32, #tpu.memory_space<vmem>>, vector<1x1x1x1x8xf32>
    %429 = vector.shape_cast %428 : vector<1x1x1x1x8xf32> to vector<1x8xf32>
    %430 = vector.broadcast %429 : vector<1x8xf32> to vector<16x8xf32>
    %431 = arith.addf %427, %430 : vector<16x8xf32>
    %432 = vector.shape_cast %431 : vector<16x8xf32> to vector<2x8x8xf32>
    %c1_367 = arith.constant 1 : index
    %c2_368 = arith.constant 2 : index
    %c3_369 = arith.constant 3 : index
    %c0_370 = arith.constant 0 : index
    %c0_371 = arith.constant 0 : index
    %433 = vector.load %arg3[%c1_367, %c2_368, %c3_369, %c0_370, %c0_371] : memref<2x3x4x32x8xbf16, #tpu.memory_space<vmem>>, vector<1x1x1x32x8xbf16>
    %434 = vector.shape_cast %433 : vector<1x1x1x32x8xbf16> to vector<32x8xbf16>
    %cst_372 = arith.constant dense<0.000000e+00> : vector<16x8xf32>
    %435 = tpu.matmul %280, %434, %cst_372 {dimension_numbers = #tpu.dot_dimension_numbers<[1], [0], [0], [1], [0, 0, 1, 1], [], []>} : vector<16x32xbf16>, vector<32x8xbf16>, vector<16x8xf32> -> vector<16x8xf32>
    %c1_373 = arith.constant 1 : index
    %c2_374 = arith.constant 2 : index
    %c3_375 = arith.constant 3 : index
    %c0_376 = arith.constant 0 : index
    %c0_377 = arith.constant 0 : index
    %436 = vector.load %arg4[%c1_373, %c2_374, %c3_375, %c0_376, %c0_377] : memref<2x3x4x1x8xf32, #tpu.memory_space<vmem>>, vector<1x1x1x1x8xf32>
    %437 = vector.shape_cast %436 : vector<1x1x1x1x8xf32> to vector<1x8xf32>
    %438 = vector.broadcast %437 : vector<1x8xf32> to vector<16x8xf32>
    %439 = arith.addf %435, %438 : vector<16x8xf32>
    %440 = vector.shape_cast %439 : vector<16x8xf32> to vector<2x8x8xf32>
    "tpu.trace_start"() <{level = 10 : i32, message = "bqd,bkd->bqk"}> : () -> ()
    %cst_378 = arith.constant dense<0.000000e+00> : vector<2x8x8xf32>
    %441 = tpu.matmul %424, %432, %cst_378 {dimension_numbers = #tpu.dot_dimension_numbers<[2], [2], [1], [1], [0, 0, 0, 1, 1, 1], [0], [0]>} : vector<2x8x8xf32>, vector<2x8x8xf32>, vector<2x8x8xf32> -> vector<2x8x8xf32>
    "tpu.trace_stop"() : () -> ()
    %cst_379 = arith.constant 0.353553385 : f32
    %442 = vector.broadcast %cst_379 : f32 to vector<2x8x8xf32>
    %443 = arith.mulf %441, %442 : vector<2x8x8xf32>
    %444 = arith.addf %443, %1 : vector<2x8x8xf32>
    %cst_380 = arith.constant dense<0xFF800000> : vector<2x8xf32>
    %445 = vector.multi_reduction <maximumf>, %444, %cst_380 [2] : vector<2x8x8xf32> to vector<2x8xf32>
    %446 = vector.shape_cast %445 : vector<2x8xf32> to vector<2x8x1xf32>
    %447 = vector.broadcast %446 : vector<2x8x1xf32> to vector<2x8x8xf32>
    %448 = arith.subf %444, %447 : vector<2x8x8xf32>
    %449 = math.exp %448 : vector<2x8x8xf32>
    %cst_381 = arith.constant dense<0.000000e+00> : vector<2x8xf32>
    %450 = vector.multi_reduction <add>, %449, %cst_381 [2] : vector<2x8x8xf32> to vector<2x8xf32>
    %451 = vector.shape_cast %450 : vector<2x8xf32> to vector<2x8x1xf32>
    %452 = tpu.reciprocal %451 {approx = true} : vector<2x8x1xf32> -> vector<2x8x1xf32>
    %453 = vector.broadcast %452 : vector<2x8x1xf32> to vector<2x8x8xf32>
    %454 = arith.mulf %449, %453 : vector<2x8x8xf32>
    "tpu.trace_start"() <{level = 10 : i32, message = "bqk,bkd->bqd"}> : () -> ()
    %cst_382 = arith.constant dense<0.000000e+00> : vector<2x8x8xf32>
    %455 = tpu.matmul %454, %440, %cst_382 {dimension_numbers = #tpu.dot_dimension_numbers<[2], [1], [1], [2], [0, 0, 0, 1, 1, 2], [0], [0]>} : vector<2x8x8xf32>, vector<2x8x8xf32>, vector<2x8x8xf32> -> vector<2x8x8xf32>
    "tpu.trace_stop"() : () -> ()
    %456 = vector.shape_cast %455 : vector<2x8x8xf32> to vector<16x8xf32>
    %457 = arith.truncf %456 : vector<16x8xf32> to vector<16x8xbf16>
    %c1_383 = arith.constant 1 : index
    %c3_384 = arith.constant 3 : index
    %c0_385 = arith.constant 0 : index
    %c0_386 = arith.constant 0 : index
    %458 = vector.load %arg5[%c1_383, %c3_384, %c0_385, %c0_386] : memref<2x4x8x32xbf16, #tpu.memory_space<vmem>>, vector<1x1x8x32xbf16>
    %459 = vector.shape_cast %458 : vector<1x1x8x32xbf16> to vector<8x32xbf16>
    %cst_387 = arith.constant dense<0.000000e+00> : vector<16x32xf32>
    %460 = tpu.matmul %457, %459, %cst_387 {dimension_numbers = #tpu.dot_dimension_numbers<[1], [0], [0], [1], [0, 0, 1, 1], [], []>} : vector<16x8xbf16>, vector<8x32xbf16>, vector<16x32xf32> -> vector<16x32xf32>
    %461 = arith.addf %416, %460 : vector<16x32xf32>
    %462 = arith.addf %255, %461 : vector<16x32xf32>
    %c1_388 = arith.constant 1 : index
    %c0_389 = arith.constant 0 : index
    %c0_390 = arith.constant 0 : index
    %c0_391 = arith.constant 0 : index
    %463 = vector.load %arg7[%c1_388, %c0_389, %c0_390, %c0_391] : memref<2x3x1x64xf32, #tpu.memory_space<vmem>>, vector<1x1x1x32xf32>
    %464 = vector.shape_cast %463 : vector<1x1x1x32xf32> to vector<1x32xf32>
    %465 = vector.broadcast %464 : vector<1x32xf32> to vector<16x32xf32>
    %466 = arith.addf %462, %465 : vector<16x32xf32>
    %c6 = arith.constant 6 : index
    %467 = memref.load %arg0[%c6] : memref<10xf32, #tpu.memory_space<smem>>
    %c7 = arith.constant 7 : index
    %468 = memref.load %arg0[%c7] : memref<10xf32, #tpu.memory_space<smem>>
    %cst_392 = arith.constant dense<0.000000e+00> : vector<16xf32>
    %469 = vector.multi_reduction <add>, %466, %cst_392 [1] : vector<16x32xf32> to vector<16xf32>
    %470 = vector.shape_cast %469 : vector<16xf32> to vector<16x1xf32>
    %cst_393 = arith.constant 3.200000e+01 : f32
    %471 = vector.broadcast %cst_393 : f32 to vector<16x1xf32>
    %472 = arith.divf %470, %471 : vector<16x1xf32>
    %473 = vector.broadcast %472 : vector<16x1xf32> to vector<16x32xf32>
    %474 = arith.subf %466, %473 : vector<16x32xf32>
    %475 = arith.mulf %474, %474 : vector<16x32xf32>
    %cst_394 = arith.constant dense<0.000000e+00> : vector<16xf32>
    %476 = vector.multi_reduction <add>, %475, %cst_394 [1] : vector<16x32xf32> to vector<16xf32>
    %477 = vector.shape_cast %476 : vector<16xf32> to vector<16x1xf32>
    %cst_395 = arith.constant 3.100000e+01 : f32
    %478 = vector.broadcast %cst_395 : f32 to vector<16x1xf32>
    %479 = arith.divf %477, %478 : vector<16x1xf32>
    %480 = vector.broadcast %472 : vector<16x1xf32> to vector<16x32xf32>
    %481 = arith.subf %466, %480 : vector<16x32xf32>
    %482 = vector.broadcast %467 : f32 to vector<16x32xf32>
    %483 = arith.mulf %482, %481 : vector<16x32xf32>
    %484 = math.sqrt %479 : vector<16x1xf32>
    %cst_396 = arith.constant 9.99999997E-7 : f32
    %485 = vector.broadcast %cst_396 : f32 to vector<16x1xf32>
    %486 = arith.addf %484, %485 : vector<16x1xf32>
    %487 = vector.broadcast %486 : vector<16x1xf32> to vector<16x32xf32>
    %488 = arith.divf %483, %487 : vector<16x32xf32>
    %489 = vector.broadcast %468 : f32 to vector<16x32xf32>
    %490 = arith.addf %488, %489 : vector<16x32xf32>
    %491 = arith.truncf %490 : vector<16x32xf32> to vector<16x32xbf16>
    %c1_397 = arith.constant 1 : index
    %c0_398 = arith.constant 0 : index
    %c0_399 = arith.constant 0 : index
    %c0_400 = arith.constant 0 : index
    %492 = vector.load %arg6[%c1_397, %c0_398, %c0_399, %c0_400] : memref<2x2x64x64xbf16, #tpu.memory_space<vmem>>, vector<1x1x32x64xbf16>
    %493 = vector.shape_cast %492 : vector<1x1x32x64xbf16> to vector<32x64xbf16>
    %cst_401 = arith.constant dense<0.000000e+00> : vector<16x64xf32>
    %494 = tpu.matmul %491, %493, %cst_401 {dimension_numbers = #tpu.dot_dimension_numbers<[1], [0], [0], [1], [0, 0, 1, 1], [], []>} : vector<16x32xbf16>, vector<32x64xbf16>, vector<16x64xf32> -> vector<16x64xf32>
    %c1_402 = arith.constant 1 : index
    %c1_403 = arith.constant 1 : index
    %c0_404 = arith.constant 0 : index
    %c0_405 = arith.constant 0 : index
    %495 = vector.load %arg7[%c1_402, %c1_403, %c0_404, %c0_405] : memref<2x3x1x64xf32, #tpu.memory_space<vmem>>, vector<1x1x1x64xf32>
    %496 = vector.shape_cast %495 : vector<1x1x1x64xf32> to vector<1x64xf32>
    %497 = vector.broadcast %496 : vector<1x64xf32> to vector<16x64xf32>
    %498 = arith.addf %494, %497 : vector<16x64xf32>
    %cst_406 = arith.constant 0.000000e+00 : f32
    %499 = vector.broadcast %cst_406 : f32 to vector<16x64xf32>
    %500 = arith.maximumf %498, %499 : vector<16x64xf32>
    %501 = arith.truncf %500 : vector<16x64xf32> to vector<16x64xbf16>
    %c1_407 = arith.constant 1 : index
    %c1_408 = arith.constant 1 : index
    %c0_409 = arith.constant 0 : index
    %c0_410 = arith.constant 0 : index
    %502 = vector.load %arg6[%c1_407, %c1_408, %c0_409, %c0_410] : memref<2x2x64x64xbf16, #tpu.memory_space<vmem>>, vector<1x1x64x32xbf16>
    %503 = vector.shape_cast %502 : vector<1x1x64x32xbf16> to vector<64x32xbf16>
    %cst_411 = arith.constant dense<0.000000e+00> : vector<16x32xf32>
    %504 = tpu.matmul %501, %503, %cst_411 {dimension_numbers = #tpu.dot_dimension_numbers<[1], [0], [0], [1], [0, 0, 1, 1], [], []>} : vector<16x64xbf16>, vector<64x32xbf16>, vector<16x32xf32> -> vector<16x32xf32>
    %c1_412 = arith.constant 1 : index
    %c2_413 = arith.constant 2 : index
    %c0_414 = arith.constant 0 : index
    %c0_415 = arith.constant 0 : index
    %505 = vector.load %arg7[%c1_412, %c2_413, %c0_414, %c0_415] : memref<2x3x1x64xf32, #tpu.memory_space<vmem>>, vector<1x1x1x32xf32>
    %506 = vector.shape_cast %505 : vector<1x1x1x32xf32> to vector<1x32xf32>
    %507 = vector.broadcast %506 : vector<1x32xf32> to vector<16x32xf32>
    %508 = arith.addf %504, %507 : vector<16x32xf32>
    %509 = arith.addf %466, %508 : vector<16x32xf32>
    %c8 = arith.constant 8 : index
    %510 = memref.load %arg0[%c8] : memref<10xf32, #tpu.memory_space<smem>>
    %c9 = arith.constant 9 : index
    %511 = memref.load %arg0[%c9] : memref<10xf32, #tpu.memory_space<smem>>
    %cst_416 = arith.constant dense<0.000000e+00> : vector<16xf32>
    %512 = vector.multi_reduction <add>, %509, %cst_416 [1] : vector<16x32xf32> to vector<16xf32>
    %513 = vector.shape_cast %512 : vector<16xf32> to vector<16x1xf32>
    %cst_417 = arith.constant 3.200000e+01 : f32
    %514 = vector.broadcast %cst_417 : f32 to vector<16x1xf32>
    %515 = arith.divf %513, %514 : vector<16x1xf32>
    %516 = vector.broadcast %515 : vector<16x1xf32> to vector<16x32xf32>
    %517 = arith.subf %509, %516 : vector<16x32xf32>
    %518 = arith.mulf %517, %517 : vector<16x32xf32>
    %cst_418 = arith.constant dense<0.000000e+00> : vector<16xf32>
    %519 = vector.multi_reduction <add>, %518, %cst_418 [1] : vector<16x32xf32> to vector<16xf32>
    %520 = vector.shape_cast %519 : vector<16xf32> to vector<16x1xf32>
    %cst_419 = arith.constant 3.100000e+01 : f32
    %521 = vector.broadcast %cst_419 : f32 to vector<16x1xf32>
    %522 = arith.divf %520, %521 : vector<16x1xf32>
    %523 = vector.broadcast %515 : vector<16x1xf32> to vector<16x32xf32>
    %524 = arith.subf %509, %523 : vector<16x32xf32>
    %525 = vector.broadcast %510 : f32 to vector<16x32xf32>
    %526 = arith.mulf %525, %524 : vector<16x32xf32>
    %527 = math.sqrt %522 : vector<16x1xf32>
    %cst_420 = arith.constant 9.99999997E-7 : f32
    %528 = vector.broadcast %cst_420 : f32 to vector<16x1xf32>
    %529 = arith.addf %527, %528 : vector<16x1xf32>
    %530 = vector.broadcast %529 : vector<16x1xf32> to vector<16x32xf32>
    %531 = arith.divf %526, %530 : vector<16x32xf32>
    %532 = vector.broadcast %511 : f32 to vector<16x32xf32>
    %533 = arith.addf %531, %532 : vector<16x32xf32>
    %c0_421 = arith.constant 0 : index
    %c0_422 = arith.constant 0 : index
    %534 = vector.load %arg8[%c0_421, %c0_422] : memref<16x32xf32, #tpu.memory_space<vmem>>, vector<16x32xf32>
    tpu.vector_store %arg8[%c0_421, %c0_422], %533 {strides = array<i32>} : memref<16x32xf32, #tpu.memory_space<vmem>>, vector<16x32xf32>,
    return
  }
}

</mosaic_0001>

<llo_original>
// kernel: encoder_forward.1
$region0: #{encoder_forward.1}
  #allocation0 [shape = 'u32[]', space=smem, size = 0x4, offset = 0x4, fixed_abs, tag = 'smem constant byte address 0x4 - core index']
  #allocation1 [shape = 'u32[144,128]{1,0:T(1,128)}', space=vmem, size = 0x12000, scoped, tag = 'internal scratch']
  %s0 = inlined_call_operand.vmem [shape: f32[10], index: 0, kind: input, shape index: {}]
  %s1 = inlined_call_operand.vmem [shape: f32[16,32], index: 1, kind: input, shape index: {}]
  %s2 = inlined_call_operand.vmem [shape: f32[2,8,8], index: 2, kind: input, shape index: {}]
  %s3 = inlined_call_operand.vmem [shape: bf16[2,3,4,32,8], index: 3, kind: input, shape index: {}]
  %s4 = inlined_call_operand.vmem [shape: f32[2,3,4,1,8], index: 4, kind: input, shape index: {}]
  %s5 = inlined_call_operand.vmem [shape: bf16[2,4,8,32], index: 5, kind: input, shape index: {}]
  %s6 = inlined_call_operand.vmem [shape: bf16[2,2,64,64], index: 6, kind: input, shape index: {}]
  %s7 = inlined_call_operand.vmem [shape: f32[2,3,1,64], index: 7, kind: input, shape index: {}]
  %s8 = inlined_call_operand.hbm [shape: f32[16,32], index: 8, kind: output, shape index: {}]
  %s9 = sld [smem:[#allocation0]]
  $region46: #{encoder_forward.1} parent=0
    _
  %s11 = ssub.s32 1, %s9
  %s12 = scalar_select 0, %s11, %s9
  $region1: #{encoder_forward.1} parent=0
    #allocation2 [shape = 'u8[512]{0}', space=smem, size = 0x200, scoped, tag = 'input window, operand 0, single buffered']
    #allocation3 [shape = 's32[1]{0}', space=sflag, size = 0x4, scoped, tag = 'scoped memory for encoder_forward.1']
    #allocation4 [shape = 's32[1]{0}', space=sflag, size = 0x4, scoped, tag = 'scoped memory for encoder_forward.1']
    #allocation5 [shape = 'u8[8192]{0}', space=vmem, size = 0x2000, scoped, tag = 'output window, operand 0, single buffered']
    %13 = vsyncpa [#allocation4], 0
    %14 = vsyncpa [#allocation3], 0
    // Predicated region
    $region2: #{encoder_forward.1} parent=1 // pred_check
      _
    $region3: #{encoder_forward.1} parent=1 // pred_check_branch
      %16 = sbr.rel (0) target = $region5
    $region4: #{encoder_forward.1} parent=1 // pred_region
      %s18 = ssub.s32 16, 16
      %19 = vsyncadd [#allocation4], %s18
      %s21 = sshll.u32 %s0, 4
      %s22 = int_to_ptr.vmem [resolvable:$true] %s21
      %24 = dma.vmem_to_smem %s22, 16, [#allocation2], [#allocation4]
    $region5: #{encoder_forward.1} parent=1 // pred_fallthru
      _
    // Predicated region
    $region6: #{encoder_forward.1} parent=1 // pred_check
      _
    $region7: #{encoder_forward.1} parent=1 // pred_check_branch
      %26 = sbr.rel (0) target = $region9
    $region8: #{encoder_forward.1} parent=1 // pred_region
      _
    $region9: #{encoder_forward.1} parent=1 // pred_fallthru
      _
    // Predicated region
    $region10: #{encoder_forward.1} parent=1 // pred_check
      _
    $region11: #{encoder_forward.1} parent=1 // pred_check_branch
      %28 = sbr.rel (0) target = $region13
    $region12: #{encoder_forward.1} parent=1 // pred_region
      _
    $region13: #{encoder_forward.1} parent=1 // pred_fallthru
      _
    // Predicated region
    $region14: #{encoder_forward.1} parent=1 // pred_check
      _
    $region15: #{encoder_forward.1} parent=1 // pred_check_branch
      %30 = sbr.rel (0) target = $region17
    $region16: #{encoder_forward.1} parent=1 // pred_region
      _
    $region17: #{encoder_forward.1} parent=1 // pred_fallthru
      _
    // Predicated region
    $region18: #{encoder_forward.1} parent=1 // pred_check
      _
    $region19: #{encoder_forward.1} parent=1 // pred_check_branch
      %32 = sbr.rel (0) target = $region21
    $region20: #{encoder_forward.1} parent=1 // pred_region
      _
    $region21: #{encoder_forward.1} parent=1 // pred_fallthru
      _
    // Predicated region
    $region22: #{encoder_forward.1} parent=1 // pred_check
      _
    $region23: #{encoder_forward.1} parent=1 // pred_check_branch
      %34 = sbr.rel (0) target = $region25
    $region24: #{encoder_forward.1} parent=1 // pred_region
      _
    $region25: #{encoder_forward.1} parent=1 // pred_fallthru
      _
    // Predicated region
    $region26: #{encoder_forward.1} parent=1 // pred_check
      _
    $region27: #{encoder_forward.1} parent=1 // pred_check_branch
      %36 = sbr.rel (0) target = $region29
    $region28: #{encoder_forward.1} parent=1 // pred_region
      _
    $region29: #{encoder_forward.1} parent=1 // pred_fallthru
      _
    // Predicated region
    $region30: #{encoder_forward.1} parent=1 // pred_check
      _
    $region31: #{encoder_forward.1} parent=1 // pred_check_branch
      %38 = sbr.rel (0) target = $region33
    $region32: #{encoder_forward.1} parent=1 // pred_region
      _
    $region33: #{encoder_forward.1} parent=1 // pred_fallthru
      _
    // Predicated region
    $region34: #{encoder_forward.1} parent=1 // pred_check
      _
    $region35: #{encoder_forward.1} parent=1 // pred_check_branch
      %40 = sbr.rel (0) target = $region37
    $region36: #{encoder_forward.1} parent=1 // pred_region
      %41 = dma.done [#allocation4], 16
    $region37: #{encoder_forward.1} parent=1 // pred_fallthru
      _
    %42 = sfence
    %v44 = vld [vmem:[%s1] sm:$0xff]
    %v45 = vld [vmem:[%s1 + $0x8] sm:$0xff]
    %v46 = vld [vmem:[%s2] sm:$0xff]
    %v47 = vld [vmem:[%s2 + $0x8] sm:$0xff]
    %s48 = sld [smem:[#allocation2]]
    %s49 = sld [smem:[#allocation2 + $0x1]]
    %vm50 = vcmask 261120
    %v51 = vsel %vm50, %v44, 0.0
    %52 = vadd.xlane.f32.xlu0 %v51
    %v53 = vpop.xlane.xlu0 %52
    %v54 = vsel %vm50, %v45, 0.0
    %55 = vadd.xlane.f32.xlu0 %v54
    %v56 = vpop.xlane.xlu0 %55
    %v57 = vrcp.pop 32.0
    %v58 = vmul.f32 %v53, %v57
    %v59 = vmul.f32 %v56, %v57
    %v60 = vsub.f32 %v44, %v58
    %v61 = vsub.f32 %v45, %v59
    %v62 = vmul.f32 %v60, %v60
    %v63 = vmul.f32 %v61, %v61
    %v64 = vsel %vm50, %v62, 0.0
    %65 = vadd.xlane.f32.xlu0 %v64
    %v66 = vpop.xlane.xlu0 %65
    %v67 = vsel %vm50, %v63, 0.0
    %68 = vadd.xlane.f32.xlu0 %v67
    %v69 = vpop.xlane.xlu0 %68
    %v70 = vrcp.pop 31.0
    %v71 = vmul.f32 %v66, %v70
    %v72 = vmul.f32 %v69, %v70
    %v73 = vstv %s48
    %v74 = vmul.f32 %v73, %v60
    %v75 = vmul.f32 %v73, %v61
    %v76 = vrsqrt.pop %v71
    %v77 = vmul.f32 %v71, %v76
    %vm78 = vcmp.eq.f32.partialorder %v71, inf
    %v79 = vsel %vm78, %v71, %v77
    %vm80 = vcmp.eq.f32.partialorder %v71, 0.0
    %v81 = vand.u32 %v71, 2147483648
    %v82 = vsel %vm80, %v81, %v79
    %v83 = vrsqrt.pop %v72
    %v84 = vmul.f32 %v72, %v83
    %vm85 = vcmp.eq.f32.partialorder %v72, inf
    %v86 = vsel %vm85, %v72, %v84
    %vm87 = vcmp.eq.f32.partialorder %v72, 0.0
    %v88 = vand.u32 %v72, 2147483648
    %v89 = vsel %vm87, %v88, %v86
    %v90 = vadd.f32 %v82, 1e-06
    %v91 = vadd.f32 %v89, 1e-06
    %v92 = vrcp.pop %v90
    %v93 = vmul.f32 %v74, %v92
    %v94 = vrcp.pop %v91
    %v95 = vmul.f32 %v75, %v94
    %v96 = vstv %s49
    %v97 = vadd.f32 %v93, %v96
    %v98 = vadd.f32 %v95, %v96
    %v99 = vpack.c.bf16 %v98, %v97
    %v100 = vld [vmem:[%s3] sm:$0xf]
    %v101 = vld [vmem:[%s3 + $0x4] sm:$0xf]
    %v102 = vld [vmem:[%s3 + $0x8] sm:$0xf]
    %v103 = vld [vmem:[%s3 + $0xc] sm:$0xf]
    %v104 = vld [vmem:[%s4] sm:$0x1]
    %v106 = vlaneseq
    %v107 = vshrl.u32 %v106, 7
    %v108 = vsub.s32 0, %v107
    %v109 = vrot.slane %v104, %v108
    %v115 = vunpack.c.l.b16 %v100
    %v116 = vunpack.c.l.b16 %v101
    %v117 = vunpack.c.l.b16 %v102
    %v118 = vunpack.c.l.b16 %v103
    %v119 = vpack.c.b16 %v116, %v115
    %v120 = vpack.c.b16 %v118, %v117
    %v124 = vsel %vm50, %v99, 0
    %126 = vmatprep.subr.bf16.mxu0 0
    %127 = vmatpush1.bf16.msra.mxu0 %v119
    %128 = vmatprep.subr.bf16.mxu0 0
    %129 = vmatpush1.bf16.msra.mxu0 %v120
    %130 = vmatprep.subr.bf16.mxu0 0
    %131 = vmatpush1.bf16.msra.mxu0 0
    %132 = vmatprep.subr.bf16.mxu0 0
    %133 = vmatpush1.bf16.msra.mxu0 0
    %134 = vmatprep.subr.bf16.mxu0 0
    %135 = vmatpush1.bf16.msra.mxu0 0
    %136 = vmatprep.subr.bf16.mxu0 0
    %137 = vmatpush1.bf16.msra.mxu0 0
    %138 = vmatprep.subr.bf16.mxu0 0
    %139 = vmatpush1.bf16.msra.mxu0 0
    %140 = vmatprep.subr.bf16.mxu0 0
    %141 = vmatpush1.bf16.msra.mxu0 0
    %142 = vmatprep.subr.bf16.mxu0 0
    %143 = vmatpush1.bf16.msra.mxu0 0
    %144 = vmatprep.subr.bf16.mxu0 0
    %145 = vmatpush1.bf16.msra.mxu0 0
    %146 = vmatprep.subr.bf16.mxu0 0
    %147 = vmatpush1.bf16.msra.mxu0 0
    %148 = vmatprep.subr.bf16.mxu0 0
    %149 = vmatpush1.bf16.msra.mxu0 0
    %150 = vmatprep.subr.bf16.mxu0 0
    %151 = vmatpush1.bf16.msra.mxu0 0
    %152 = vmatprep.subr.bf16.mxu0 0
    %153 = vmatpush1.bf16.msra.mxu0 0
    %154 = vmatprep.subr.bf16.mxu0 0
    %155 = vmatpush1.bf16.msra.mxu0 0
    %156 = vmatprep.subr.bf16.mxu0 0
    %157 = vmatpush1.bf16.msra.mxu0 0
    %158 = vmatprep.mubr.bf16.mxu0 0
    %159 = vmatmul.mubr.bf16.gmra.mrb[0].mxu0 %v124
    %v160 = vpop.f32.mrb[0].mxu0
    %v161 = vadd.f32 %v109, %v160
    %v162 = vpop.f32.mrb[0].mxu0
    %v163 = vpop.f32.mrb[0].mxu0
    %v164 = vadd.f32 %v109, %v163
    %v165 = vpop.f32.mrb[0].mxu0
    %166 = vdwg.mxu0
    %s167 = scalar_lea.vmem %s3, 64
    %v168 = vld [vmem:[%s167] sm:$0xf]
    %v169 = vld [vmem:[%s167 + $0x4] sm:$0xf]
    %v170 = vld [vmem:[%s167 + $0x8] sm:$0xf]
    %v171 = vld [vmem:[%s167 + $0xc] sm:$0xf]
    %s172 = scalar_lea.vmem %s4, 4
    %v173 = vld [vmem:[%s172] sm:$0x1]
    %v175 = vlaneseq
    %v176 = vshrl.u32 %v175, 7
    %v177 = vsub.s32 0, %v176
    %v178 = vrot.slane %v173, %v177
    %v184 = vunpack.c.l.b16 %v168
    %v185 = vunpack.c.l.b16 %v169
    %v186 = vunpack.c.l.b16 %v170
    %v187 = vunpack.c.l.b16 %v171
    %v188 = vpack.c.b16 %v185, %v184
    %v189 = vpack.c.b16 %v187, %v186
    %192 = vmatprep.subr.bf16.mxu0 0
    %193 = vmatpush1.bf16.msra.mxu0 %v188
    %194 = vmatprep.subr.bf16.mxu0 0
    %195 = vmatpush1.bf16.msra.mxu0 %v189
    %196 = vmatprep.subr.bf16.mxu0 0
    %197 = vmatpush1.bf16.msra.mxu0 0
    %198 = vmatprep.subr.bf16.mxu0 0
    %199 = vmatpush1.bf16.msra.mxu0 0
    %200 = vmatprep.subr.bf16.mxu0 0
    %201 = vmatpush1.bf16.msra.mxu0 0
    %202 = vmatprep.subr.bf16.mxu0 0
    %203 = vmatpush1.bf16.msra.mxu0 0
    %204 = vmatprep.subr.bf16.mxu0 0
    %205 = vmatpush1.bf16.msra.mxu0 0
    %206 = vmatprep.subr.bf16.mxu0 0
    %207 = vmatpush1.bf16.msra.mxu0 0
    %208 = vmatprep.subr.bf16.mxu0 0
    %209 = vmatpush1.bf16.msra.mxu0 0
    %210 = vmatprep.subr.bf16.mxu0 0
    %211 = vmatpush1.bf16.msra.mxu0 0
    %212 = vmatprep.subr.bf16.mxu0 0
    %213 = vmatpush1.bf16.msra.mxu0 0
    %214 = vmatprep.subr.bf16.mxu0 0
    %215 = vmatpush1.bf16.msra.mxu0 0
    %216 = vmatprep.subr.bf16.mxu0 0
    %217 = vmatpush1.bf16.msra.mxu0 0
    %218 = vmatprep.subr.bf16.mxu0 0
    %219 = vmatpush1.bf16.msra.mxu0 0
    %220 = vmatprep.subr.bf16.mxu0 0
    %221 = vmatpush1.bf16.msra.mxu0 0
    %222 = vmatprep.subr.bf16.mxu0 0
    %223 = vmatpush1.bf16.msra.mxu0 0
    %224 = vmatprep.mubr.bf16.mxu0 0
    %225 = vmatmul.mubr.bf16.gmra.mrb[0].mxu0 %v124
    %v226 = vpop.f32.mrb[0].mxu0
    %v227 = vadd.f32 %v178, %v226
    %v228 = vpop.f32.mrb[0].mxu0
    %v229 = vpop.f32.mrb[0].mxu0
    %v230 = vadd.f32 %v178, %v229
    %v231 = vpop.f32.mrb[0].mxu0
    %232 = vdwg.mxu0
    %s233 = scalar_lea.vmem %s3, 128
    %v234 = vld [vmem:[%s233] sm:$0xf]
    %v235 = vld [vmem:[%s233 + $0x4] sm:$0xf]
    %v236 = vld [vmem:[%s233 + $0x8] sm:$0xf]
    %v237 = vld [vmem:[%s233 + $0xc] sm:$0xf]
    %s238 = scalar_lea.vmem %s4, 8
    %v239 = vld [vmem:[%s238] sm:$0x1]
    %v241 = vlaneseq
    %v242 = vshrl.u32 %v241, 7
    %v243 = vsub.s32 0, %v242
    %v244 = vrot.slane %v239, %v243
    %v250 = vunpack.c.l.b16 %v234
    %v251 = vunpack.c.l.b16 %v235
    %v252 = vunpack.c.l.b16 %v236
    %v253 = vunpack.c.l.b16 %v237
    %v254 = vpack.c.b16 %v251, %v250
    %v255 = vpack.c.b16 %v253, %v252
    %258 = vmatprep.subr.bf16.mxu0 0
    %259 = vmatpush1.bf16.msra.mxu0 %v254
    %260 = vmatprep.subr.bf16.mxu0 0
    %261 = vmatpush1.bf16.msra.mxu0 %v255
    %262 = vmatprep.subr.bf16.mxu0 0
    %263 = vmatpush1.bf16.msra.mxu0 0
    %264 = vmatprep.subr.bf16.mxu0 0
    %265 = vmatpush1.bf16.msra.mxu0 0
    %266 = vmatprep.subr.bf16.mxu0 0
    %267 = vmatpush1.bf16.msra.mxu0 0
    %268 = vmatprep.subr.bf16.mxu0 0
    %269 = vmatpush1.bf16.msra.mxu0 0
    %270 = vmatprep.subr.bf16.mxu0 0
    %271 = vmatpush1.bf16.msra.mxu0 0
    %272 = vmatprep.subr.bf16.mxu0 0
    %273 = vmatpush1.bf16.msra.mxu0 0
    %274 = vmatprep.subr.bf16.mxu0 0
    %275 = vmatpush1.bf16.msra.mxu0 0
    %276 = vmatprep.subr.bf16.mxu0 0
    %277 = vmatpush1.bf16.msra.mxu0 0
    %278 = vmatprep.subr.bf16.mxu0 0
    %279 = vmatpush1.bf16.msra.mxu0 0
    %280 = vmatprep.subr.bf16.mxu0 0
    %281 = vmatpush1.bf16.msra.mxu0 0
    %282 = vmatprep.subr.bf16.mxu0 0
    %283 = vmatpush1.bf16.msra.mxu0 0
    %284 = vmatprep.subr.bf16.mxu0 0
    %285 = vmatpush1.bf16.msra.mxu0 0
    %286 = vmatprep.subr.bf16.mxu0 0
    %287 = vmatpush1.bf16.msra.mxu0 0
    %288 = vmatprep.subr.bf16.mxu0 0
    %289 = vmatpush1.bf16.msra.mxu0 0
    %290 = vmatprep.mubr.bf16.mxu0 0
    %291 = vmatmul.mubr.bf16.gmra.mrb[0].mxu0 %v124
    %v292 = vpop.f32.mrb[0].mxu0
    %v293 = vadd.f32 %v244, %v292
    %v294 = vpop.f32.mrb[0].mxu0
    %v295 = vpop.f32.mrb[0].mxu0
    %v296 = vadd.f32 %v244, %v295
    %v297 = vpop.f32.mrb[0].mxu0
    %298 = vdwg.mxu0
    %vm299 = vcmask 64512
    %v301 = vsel %vm299, %v161, 0
    %v304 = vsel %vm299, %v227, 0
    %306 = vmatprep.subr.mxu0 0.0
    %307 = vmatpush1.xpose.msra.mxu0 %v304
    %308 = vmatprep.subr.mxu0 0.0
    %309 = vmatpush1.xpose.msra.mxu0 0.0
    %310 = vmatprep.subr.mxu0 0.0
    %311 = vmatpush1.xpose.msra.mxu0 0.0
    %312 = vmatprep.subr.mxu0 0.0
    %313 = vmatpush1.xpose.msra.mxu0 0.0
    %314 = vmatprep.subr.mxu0 0.0
    %315 = vmatpush1.xpose.msra.mxu0 0.0
    %316 = vmatprep.subr.mxu0 0.0
    %317 = vmatpush1.xpose.msra.mxu0 0.0
    %318 = vmatprep.subr.mxu0 0.0
    %319 = vmatpush1.xpose.msra.mxu0 0.0
    %320 = vmatprep.subr.mxu0 0.0
    %321 = vmatpush1.xpose.msra.mxu0 0.0
    %322 = vmatprep.subr.mxu0 0.0
    %323 = vmatpush1.xpose.msra.mxu0 0.0
    %324 = vmatprep.subr.mxu0 0.0
    %325 = vmatpush1.xpose.msra.mxu0 0.0
    %326 = vmatprep.subr.mxu0 0.0
    %327 = vmatpush1.xpose.msra.mxu0 0.0
    %328 = vmatprep.subr.mxu0 0.0
    %329 = vmatpush1.xpose.msra.mxu0 0.0
    %330 = vmatprep.subr.mxu0 0.0
    %331 = vmatpush1.xpose.msra.mxu0 0.0
    %332 = vmatprep.subr.mxu0 0.0
    %333 = vmatpush1.xpose.msra.mxu0 0.0
    %334 = vmatprep.subr.mxu0 0.0
    %335 = vmatpush1.xpose.msra.mxu0 0.0
    %336 = vmatprep.subr.mxu0 0.0
    %337 = vmatpush1.xpose.msra.mxu0 0.0
    %338 = vmatprep.subr.mxu0 0.0
    %339 = vmatpush1.xpose.msra.mxu0 0.0
    %340 = vmatprep.subr.mxu0 0.0
    %341 = vmatpush1.xpose.msra.mxu0 0.0
    %342 = vmatprep.subr.mxu0 0.0
    %343 = vmatpush1.xpose.msra.mxu0 0.0
    %344 = vmatprep.subr.mxu0 0.0
    %345 = vmatpush1.xpose.msra.mxu0 0.0
    %346 = vmatprep.subr.mxu0 0.0
    %347 = vmatpush1.xpose.msra.mxu0 0.0
    %348 = vmatprep.subr.mxu0 0.0
    %349 = vmatpush1.xpose.msra.mxu0 0.0
    %350 = vmatprep.subr.mxu0 0.0
    %351 = vmatpush1.xpose.msra.mxu0 0.0
    %352 = vmatprep.subr.mxu0 0.0
    %353 = vmatpush1.xpose.msra.mxu0 0.0
    %354 = vmatprep.subr.mxu0 0.0
    %355 = vmatpush1.xpose.msra.mxu0 0.0
    %356 = vmatprep.subr.mxu0 0.0
    %357 = vmatpush1.xpose.msra.mxu0 0.0
    %358 = vmatprep.subr.mxu0 0.0
    %359 = vmatpush1.xpose.msra.mxu0 0.0
    %360 = vmatprep.subr.mxu0 0.0
    %361 = vmatpush1.xpose.msra.mxu0 0.0
    %362 = vmatprep.subr.mxu0 0.0
    %363 = vmatpush1.xpose.msra.mxu0 0.0
    %364 = vmatprep.subr.mxu0 0.0
    %365 = vmatpush1.xpose.msra.mxu0 0.0
    %366 = vmatprep.subr.mxu0 0.0
    %367 = vmatpush1.xpose.msra.mxu0 0.0
    %368 = vmatprep.subr.mxu0 0.0
    %369 = vmatpush1.xpose.msra.mxu0 0.0
    %370 = vmatprep.mubr.f32.mxu0 0.0
    %371 = vmatmul.mubr.f32.gmra.mrb[0].mxu0 %v301
    %v372 = vpop.f32.mrb[0].mxu0
    %v373 = vadd.f32 0.0, %v372
    %v374 = vpop.f32.mrb[0].mxu0
    %375 = vdwg.mxu0
    %v377 = vsel %vm299, %v164, 0
    %v380 = vsel %vm299, %v230, 0
    %382 = vmatprep.subr.mxu0 0.0
    %383 = vmatpush1.xpose.msra.mxu0 %v380
    %384 = vmatprep.subr.mxu0 0.0
    %385 = vmatpush1.xpose.msra.mxu0 0.0
    %386 = vmatprep.subr.mxu0 0.0
    %387 = vmatpush1.xpose.msra.mxu0 0.0
    %388 = vmatprep.subr.mxu0 0.0
    %389 = vmatpush1.xpose.msra.mxu0 0.0
    %390 = vmatprep.subr.mxu0 0.0
    %391 = vmatpush1.xpose.msra.mxu0 0.0
    %392 = vmatprep.subr.mxu0 0.0
    %393 = vmatpush1.xpose.msra.mxu0 0.0
    %394 = vmatprep.subr.mxu0 0.0
    %395 = vmatpush1.xpose.msra.mxu0 0.0
    %396 = vmatprep.subr.mxu0 0.0
    %397 = vmatpush1.xpose.msra.mxu0 0.0
    %398 = vmatprep.subr.mxu0 0.0
    %399 = vmatpush1.xpose.msra.mxu0 0.0
    %400 = vmatprep.subr.mxu0 0.0
    %401 = vmatpush1.xpose.msra.mxu0 0.0
    %402 = vmatprep.subr.mxu0 0.0
    %403 = vmatpush1.xpose.msra.mxu0 0.0
    %404 = vmatprep.subr.mxu0 0.0
    %405 = vmatpush1.xpose.msra.mxu0 0.0
    %406 = vmatprep.subr.mxu0 0.0
    %407 = vmatpush1.xpose.msra.mxu0 0.0
    %408 = vmatprep.subr.mxu0 0.0
    %409 = vmatpush1.xpose.msra.mxu0 0.0
    %410 = vmatprep.subr.mxu0 0.0
    %411 = vmatpush1.xpose.msra.mxu0 0.0
    %412 = vmatprep.subr.mxu0 0.0
    %413 = vmatpush1.xpose.msra.mxu0 0.0
    %414 = vmatprep.subr.mxu0 0.0
    %415 = vmatpush1.xpose.msra.mxu0 0.0
    %416 = vmatprep.subr.mxu0 0.0
    %417 = vmatpush1.xpose.msra.mxu0 0.0
    %418 = vmatprep.subr.mxu0 0.0
    %419 = vmatpush1.xpose.msra.mxu0 0.0
    %420 = vmatprep.subr.mxu0 0.0
    %421 = vmatpush1.xpose.msra.mxu0 0.0
    %422 = vmatprep.subr.mxu0 0.0
    %423 = vmatpush1.xpose.msra.mxu0 0.0
    %424 = vmatprep.subr.mxu0 0.0
    %425 = vmatpush1.xpose.msra.mxu0 0.0
    %426 = vmatprep.subr.mxu0 0.0
    %427 = vmatpush1.xpose.msra.mxu0 0.0
    %428 = vmatprep.subr.mxu0 0.0
    %429 = vmatpush1.xpose.msra.mxu0 0.0
    %430 = vmatprep.subr.mxu0 0.0
    %431 = vmatpush1.xpose.msra.mxu0 0.0
    %432 = vmatprep.subr.mxu0 0.0
    %433 = vmatpush1.xpose.msra.mxu0 0.0
    %434 = vmatprep.subr.mxu0 0.0
    %435 = vmatpush1.xpose.msra.mxu0 0.0
    %436 = vmatprep.subr.mxu0 0.0
    %437 = vmatpush1.xpose.msra.mxu0 0.0
    %438 = vmatprep.subr.mxu0 0.0
    %439 = vmatpush1.xpose.msra.mxu0 0.0
    %440 = vmatprep.subr.mxu0 0.0
    %441 = vmatpush1.xpose.msra.mxu0 0.0
    %442 = vmatprep.subr.mxu0 0.0
    %443 = vmatpush1.xpose.msra.mxu0 0.0
    %444 = vmatprep.subr.mxu0 0.0
    %445 = vmatpush1.xpose.msra.mxu0 0.0
    %446 = vmatprep.mubr.f32.mxu0 0.0
    %447 = vmatmul.mubr.f32.gmra.mrb[0].mxu0 %v377
    %v448 = vpop.f32.mrb[0].mxu0
    %v449 = vadd.f32 0.0, %v448
    %v450 = vpop.f32.mrb[0].mxu0
    %451 = vdwg.mxu0
    %v452 = vmul.f32 %v373, 0.35355338
    %v453 = vmul.f32 %v449, 0.35355338
    %v454 = vadd.f32 %v452, %v46
    %v455 = vadd.f32 %v453, %v47
    %v456 = vsel %vm299, %v454, -inf
    %457 = vmax.xlane.f32.xlu0 %v456
    %v458 = vpop.xlane.xlu0 %457
    %v459 = vsel %vm299, %v455, -inf
    %460 = vmax.xlane.f32.xlu0 %v459
    %v461 = vpop.xlane.xlu0 %460
    %v462 = vsub.f32 %v454, %v458
    %v463 = vsub.f32 %v455, %v461
    %v464 = vmul.f32 %v462, 1.442695
    %v465 = vpow.pop %v464
    %v466 = vmul.f32 %v463, 1.442695
    %v467 = vpow.pop %v466
    %v468 = vsel %vm299, %v465, 0.0
    %469 = vadd.xlane.f32.xlu0 %v468
    %v470 = vpop.xlane.xlu0 %469
    %v471 = vsel %vm299, %v467, 0.0
    %472 = vadd.xlane.f32.xlu0 %v471
    %v473 = vpop.xlane.xlu0 %472
    %v474 = vrcp.pop %v470
    %v475 = vrcp.pop %v473
    %v476 = vmul.f32 %v465, %v474
    %v477 = vmul.f32 %v467, %v475
    %v479 = vsel %vm299, %v476, 0
    %481 = vmatprep.subr.mxu0 0.0
    %482 = vmatpush1.msra.mxu0 %v293
    %483 = vmatprep.subr.mxu0 0.0
    %484 = vmatpush1.msra.mxu0 0.0
    %485 = vmatprep.subr.mxu0 0.0
    %486 = vmatpush1.msra.mxu0 0.0
    %487 = vmatprep.subr.mxu0 0.0
    %488 = vmatpush1.msra.mxu0 0.0
    %489 = vmatprep.subr.mxu0 0.0
    %490 = vmatpush1.msra.mxu0 0.0
    %491 = vmatprep.subr.mxu0 0.0
    %492 = vmatpush1.msra.mxu0 0.0
    %493 = vmatprep.subr.mxu0 0.0
    %494 = vmatpush1.msra.mxu0 0.0
    %495 = vmatprep.subr.mxu0 0.0
    %496 = vmatpush1.msra.mxu0 0.0
    %497 = vmatprep.subr.mxu0 0.0
    %498 = vmatpush1.msra.mxu0 0.0
    %499 = vmatprep.subr.mxu0 0.0
    %500 = vmatpush1.msra.mxu0 0.0
    %501 = vmatprep.subr.mxu0 0.0
    %502 = vmatpush1.msra.mxu0 0.0
    %503 = vmatprep.subr.mxu0 0.0
    %504 = vmatpush1.msra.mxu0 0.0
    %505 = vmatprep.subr.mxu0 0.0
    %506 = vmatpush1.msra.mxu0 0.0
    %507 = vmatprep.subr.mxu0 0.0
    %508 = vmatpush1.msra.mxu0 0.0
    %509 = vmatprep.subr.mxu0 0.0
    %510 = vmatpush1.msra.mxu0 0.0
    %511 = vmatprep.subr.mxu0 0.0
    %512 = vmatpush1.msra.mxu0 0.0
    %513 = vmatprep.subr.mxu0 0.0
    %514 = vmatpush1.msra.mxu0 0.0
    %515 = vmatprep.subr.mxu0 0.0
    %516 = vmatpush1.msra.mxu0 0.0
    %517 = vmatprep.subr.mxu0 0.0
    %518 = vmatpush1.msra.mxu0 0.0
    %519 = vmatprep.subr.mxu0 0.0
    %520 = vmatpush1.msra.mxu0 0.0
    %521 = vmatprep.subr.mxu0 0.0
    %522 = vmatpush1.msra.mxu0 0.0
    %523 = vmatprep.subr.mxu0 0.0
    %524 = vmatpush1.msra.mxu0 0.0
    %525 = vmatprep.subr.mxu0 0.0
    %526 = vmatpush1.msra.mxu0 0.0
    %527 = vmatprep.subr.mxu0 0.0
    %528 = vmatpush1.msra.mxu0 0.0
    %529 = vmatprep.subr.mxu0 0.0
    %530 = vmatpush1.msra.mxu0 0.0
    %531 = vmatprep.subr.mxu0 0.0
    %532 = vmatpush1.msra.mxu0 0.0
    %533 = vmatprep.subr.mxu0 0.0
    %534 = vmatpush1.msra.mxu0 0.0
    %535 = vmatprep.subr.mxu0 0.0
    %536 = vmatpush1.msra.mxu0 0.0
    %537 = vmatprep.subr.mxu0 0.0
    %538 = vmatpush1.msra.mxu0 0.0
    %539 = vmatprep.subr.mxu0 0.0
    %540 = vmatpush1.msra.mxu0 0.0
    %541 = vmatprep.subr.mxu0 0.0
    %542 = vmatpush1.msra.mxu0 0.0
    %543 = vmatprep.subr.mxu0 0.0
    %544 = vmatpush1.msra.mxu0 0.0
    %545 = vmatprep.mubr.f32.mxu0 0.0
    %546 = vmatmul.mubr.f32.gmra.mrb[0].mxu0 %v479
    %v547 = vpop.f32.mrb[0].mxu0
    %v548 = vadd.f32 0.0, %v547
    %v549 = vpop.f32.mrb[0].mxu0
    %550 = vdwg.mxu0
    %v552 = vsel %vm299, %v477, 0
    %554 = vmatprep.subr.mxu0 0.0
    %555 = vmatpush1.msra.mxu0 %v296
    %556 = vmatprep.subr.mxu0 0.0
    %557 = vmatpush1.msra.mxu0 0.0
    %558 = vmatprep.subr.mxu0 0.0
    %559 = vmatpush1.msra.mxu0 0.0
    %560 = vmatprep.subr.mxu0 0.0
    %561 = vmatpush1.msra.mxu0 0.0
    %562 = vmatprep.subr.mxu0 0.0
    %563 = vmatpush1.msra.mxu0 0.0
    %564 = vmatprep.subr.mxu0 0.0
    %565 = vmatpush1.msra.mxu0 0.0
    %566 = vmatprep.subr.mxu0 0.0
    %567 = vmatpush1.msra.mxu0 0.0
    %568 = vmatprep.subr.mxu0 0.0
    %569 = vmatpush1.msra.mxu0 0.0
    %570 = vmatprep.subr.mxu0 0.0
    %571 = vmatpush1.msra.mxu0 0.0
    %572 = vmatprep.subr.mxu0 0.0
    %573 = vmatpush1.msra.mxu0 0.0
    %574 = vmatprep.subr.mxu0 0.0
    %575 = vmatpush1.msra.mxu0 0.0
    %576 = vmatprep.subr.mxu0 0.0
    %577 = vmatpush1.msra.mxu0 0.0
    %578 = vmatprep.subr.mxu0 0.0
    %579 = vmatpush1.msra.mxu0 0.0
    %580 = vmatprep.subr.mxu0 0.0
    %581 = vmatpush1.msra.mxu0 0.0
    %582 = vmatprep.subr.mxu0 0.0
    %583 = vmatpush1.msra.mxu0 0.0
    %584 = vmatprep.subr.mxu0 0.0
    %585 = vmatpush1.msra.mxu0 0.0
    %586 = vmatprep.subr.mxu0 0.0
    %587 = vmatpush1.msra.mxu0 0.0
    %588 = vmatprep.subr.mxu0 0.0
    %589 = vmatpush1.msra.mxu0 0.0
    %590 = vmatprep.subr.mxu0 0.0
    %591 = vmatpush1.msra.mxu0 0.0
    %592 = vmatprep.subr.mxu0 0.0
    %593 = vmatpush1.msra.mxu0 0.0
    %594 = vmatprep.subr.mxu0 0.0
    %595 = vmatpush1.msra.mxu0 0.0
    %596 = vmatprep.subr.mxu0 0.0
    %597 = vmatpush1.msra.mxu0 0.0
    %598 = vmatprep.subr.mxu0 0.0
    %599 = vmatpush1.msra.mxu0 0.0
    %600 = vmatprep.subr.mxu0 0.0
    %601 = vmatpush1.msra.mxu0 0.0
    %602 = vmatprep.subr.mxu0 0.0
    %603 = vmatpush1.msra.mxu0 0.0
    %604 = vmatprep.subr.mxu0 0.0
    %605 = vmatpush1.msra.mxu0 0.0
    %606 = vmatprep.subr.mxu0 0.0
    %607 = vmatpush1.msra.mxu0 0.0
    %608 = vmatprep.subr.mxu0 0.0
    %609 = vmatpush1.msra.mxu0 0.0
    %610 = vmatprep.subr.mxu0 0.0
    %611 = vmatpush1.msra.mxu0 0.0
    %612 = vmatprep.subr.mxu0 0.0
    %613 = vmatpush1.msra.mxu0 0.0
    %614 = vmatprep.subr.mxu0 0.0
    %615 = vmatpush1.msra.mxu0 0.0
    %616 = vmatprep.subr.mxu0 0.0
    %617 = vmatpush1.msra.mxu0 0.0
    %618 = vmatprep.mubr.f32.mxu0 0.0
    %619 = vmatmul.mubr.f32.gmra.mrb[0].mxu0 %v552
    %v620 = vpop.f32.mrb[0].mxu0
    %v621 = vadd.f32 0.0, %v620
    %v622 = vpop.f32.mrb[0].mxu0
    %623 = vdwg.mxu0
    %v624 = vpack.c.bf16 %v621, %v548
    %v625 = vld [vmem:[%s5] sm:$0xf]
    %s626 = scalar_lea.vmem %s3, 16
    %v627 = vld [vmem:[%s626] sm:$0xf]
    %v628 = vld [vmem:[%s626 + $0x4] sm:$0xf]
    %v629 = vld [vmem:[%s626 + $0x8] sm:$0xf]
    %v630 = vld [vmem:[%s626 + $0xc] sm:$0xf]
    %s631 = scalar_lea.vmem %s4, 1
    %v632 = vld [vmem:[%s631] sm:$0x1]
    %v634 = vlaneseq
    %v635 = vshrl.u32 %v634, 7
    %v636 = vsub.s32 0, %v635
    %v637 = vrot.slane %v632, %v636
    %v643 = vunpack.c.l.b16 %v627
    %v644 = vunpack.c.l.b16 %v628
    %v645 = vunpack.c.l.b16 %v629
    %v646 = vunpack.c.l.b16 %v630
    %v647 = vpack.c.b16 %v644, %v643
    %v648 = vpack.c.b16 %v646, %v645
    %651 = vmatprep.subr.bf16.mxu0 0
    %652 = vmatpush1.bf16.msra.mxu0 %v647
    %653 = vmatprep.subr.bf16.mxu0 0
    %654 = vmatpush1.bf16.msra.mxu0 %v648
    %655 = vmatprep.subr.bf16.mxu0 0
    %656 = vmatpush1.bf16.msra.mxu0 0
    %657 = vmatprep.subr.bf16.mxu0 0
    %658 = vmatpush1.bf16.msra.mxu0 0
    %659 = vmatprep.subr.bf16.mxu0 0
    %660 = vmatpush1.bf16.msra.mxu0 0
    %661 = vmatprep.subr.bf16.mxu0 0
    %662 = vmatpush1.bf16.msra.mxu0 0
    %663 = vmatprep.subr.bf16.mxu0 0
    %664 = vmatpush1.bf16.msra.mxu0 0
    %665 = vmatprep.subr.bf16.mxu0 0
    %666 = vmatpush1.bf16.msra.mxu0 0
    %667 = vmatprep.subr.bf16.mxu0 0
    %668 = vmatpush1.bf16.msra.mxu0 0
    %669 = vmatprep.subr.bf16.mxu0 0
    %670 = vmatpush1.bf16.msra.mxu0 0
    %671 = vmatprep.subr.bf16.mxu0 0
    %672 = vmatpush1.bf16.msra.mxu0 0
    %673 = vmatprep.subr.bf16.mxu0 0
    %674 = vmatpush1.bf16.msra.mxu0 0
    %675 = vmatprep.subr.bf16.mxu0 0
    %676 = vmatpush1.bf16.msra.mxu0 0
    %677 = vmatprep.subr.bf16.mxu0 0
    %678 = vmatpush1.bf16.msra.mxu0 0
    %679 = vmatprep.subr.bf16.mxu0 0
    %680 = vmatpush1.bf16.msra.mxu0 0
    %681 = vmatprep.subr.bf16.mxu0 0
    %682 = vmatpush1.bf16.msra.mxu0 0
    %683 = vmatprep.mubr.bf16.mxu0 0
    %684 = vmatmul.mubr.bf16.gmra.mrb[0].mxu0 %v124
    %v685 = vpop.f32.mrb[0].mxu0
    %v686 = vadd.f32 %v637, %v685
    %v687 = vpop.f32.mrb[0].mxu0
    %v688 = vpop.f32.mrb[0].mxu0
    %v689 = vadd.f32 %v637, %v688
    %v690 = vpop.f32.mrb[0].mxu0
    %691 = vdwg.mxu0
    %s692 = scalar_lea.vmem %s3, 80
    %v693 = vld [vmem:[%s692] sm:$0xf]
    %v694 = vld [vmem:[%s692 + $0x4] sm:$0xf]
    %v695 = vld [vmem:[%s692 + $0x8] sm:$0xf]
    %v696 = vld [vmem:[%s692 + $0xc] sm:$0xf]
    %s697 = scalar_lea.vmem %s4, 5
    %v698 = vld [vmem:[%s697] sm:$0x1]
    %v700 = vlaneseq
    %v701 = vshrl.u32 %v700, 7
    %v702 = vsub.s32 0, %v701
    %v703 = vrot.slane %v698, %v702
    %v709 = vunpack.c.l.b16 %v693
    %v710 = vunpack.c.l.b16 %v694
    %v711 = vunpack.c.l.b16 %v695
    %v712 = vunpack.c.l.b16 %v696
    %v713 = vpack.c.b16 %v710, %v709
    %v714 = vpack.c.b16 %v712, %v711
    %717 = vmatprep.subr.bf16.mxu0 0
    %718 = vmatpush1.bf16.msra.mxu0 %v713
    %719 = vmatprep.subr.bf16.mxu0 0
    %720 = vmatpush1.bf16.msra.mxu0 %v714
    %721 = vmatprep.subr.bf16.mxu0 0
    %722 = vmatpush1.bf16.msra.mxu0 0
    %723 = vmatprep.subr.bf16.mxu0 0
    %724 = vmatpush1.bf16.msra.mxu0 0
    %725 = vmatprep.subr.bf16.mxu0 0
    %726 = vmatpush1.bf16.msra.mxu0 0
    %727 = vmatprep.subr.bf16.mxu0 0
    %728 = vmatpush1.bf16.msra.mxu0 0
    %729 = vmatprep.subr.bf16.mxu0 0
    %730 = vmatpush1.bf16.msra.mxu0 0
    %731 = vmatprep.subr.bf16.mxu0 0
    %732 = vmatpush1.bf16.msra.mxu0 0
    %733 = vmatprep.subr.bf16.mxu0 0
    %734 = vmatpush1.bf16.msra.mxu0 0
    %735 = vmatprep.subr.bf16.mxu0 0
    %736 = vmatpush1.bf16.msra.mxu0 0
    %737 = vmatprep.subr.bf16.mxu0 0
    %738 = vmatpush1.bf16.msra.mxu0 0
    %739 = vmatprep.subr.bf16.mxu0 0
    %740 = vmatpush1.bf16.msra.mxu0 0
    %741 = vmatprep.subr.bf16.mxu0 0
    %742 = vmatpush1.bf16.msra.mxu0 0
    %743 = vmatprep.subr.bf16.mxu0 0
    %744 = vmatpush1.bf16.msra.mxu0 0
    %745 = vmatprep.subr.bf16.mxu0 0
    %746 = vmatpush1.bf16.msra.mxu0 0
    %747 = vmatprep.subr.bf16.mxu0 0
    %748 = vmatpush1.bf16.msra.mxu0 0
    %749 = vmatprep.mubr.bf16.mxu0 0
    %750 = vmatmul.mubr.bf16.gmra.mrb[0].mxu0 %v124
    %v751 = vpop.f32.mrb[0].mxu0
    %v752 = vadd.f32 %v703, %v751
    %v753 = vpop.f32.mrb[0].mxu0
    %v754 = vpop.f32.mrb[0].mxu0
    %v755 = vadd.f32 %v703, %v754
    %v756 = vpop.f32.mrb[0].mxu0
    %757 = vdwg.mxu0
    %s758 = scalar_lea.vmem %s3, 144
    %v759 = vld [vmem:[%s758] sm:$0xf]
    %v760 = vld [vmem:[%s758 + $0x4] sm:$0xf]
    %v761 = vld [vmem:[%s758 + $0x8] sm:$0xf]
    %v762 = vld [vmem:[%s758 + $0xc] sm:$0xf]
    %s763 = scalar_lea.vmem %s4, 9
    %v764 = vld [vmem:[%s763] sm:$0x1]
    %v766 = vlaneseq
    %v767 = vshrl.u32 %v766, 7
    %v768 = vsub.s32 0, %v767
    %v769 = vrot.slane %v764, %v768
    %v775 = vunpack.c.l.b16 %v759
    %v776 = vunpack.c.l.b16 %v760
    %v777 = vunpack.c.l.b16 %v761
    %v778 = vunpack.c.l.b16 %v762
    %v779 = vpack.c.b16 %v776, %v775
    %v780 = vpack.c.b16 %v778, %v777
    %783 = vmatprep.subr.bf16.mxu0 0
    %784 = vmatpush1.bf16.msra.mxu0 %v779
    %785 = vmatprep.subr.bf16.mxu0 0
    %786 = vmatpush1.bf16.msra.mxu0 %v780
    %787 = vmatprep.subr.bf16.mxu0 0
    %788 = vmatpush1.bf16.msra.mxu0 0
    %789 = vmatprep.subr.bf16.mxu0 0
    %790 = vmatpush1.bf16.msra.mxu0 0
    %791 = vmatprep.subr.bf16.mxu0 0
    %792 = vmatpush1.bf16.msra.mxu0 0
    %793 = vmatprep.subr.bf16.mxu0 0
    %794 = vmatpush1.bf16.msra.mxu0 0
    %795 = vmatprep.subr.bf16.mxu0 0
    %796 = vmatpush1.bf16.msra.mxu0 0
    %797 = vmatprep.subr.bf16.mxu0 0
    %798 = vmatpush1.bf16.msra.mxu0 0
    %799 = vmatprep.subr.bf16.mxu0 0
    %800 = vmatpush1.bf16.msra.mxu0 0
    %801 = vmatprep.subr.bf16.mxu0 0
    %802 = vmatpush1.bf16.msra.mxu0 0
    %803 = vmatprep.subr.bf16.mxu0 0
    %804 = vmatpush1.bf16.msra.mxu0 0
    %805 = vmatprep.subr.bf16.mxu0 0
    %806 = vmatpush1.bf16.msra.mxu0 0
    %807 = vmatprep.subr.bf16.mxu0 0
    %808 = vmatpush1.bf16.msra.mxu0 0
    %809 = vmatprep.subr.bf16.mxu0 0
    %810 = vmatpush1.bf16.msra.mxu0 0
    %811 = vmatprep.subr.bf16.mxu0 0
    %812 = vmatpush1.bf16.msra.mxu0 0
    %813 = vmatprep.subr.bf16.mxu0 0
    %814 = vmatpush1.bf16.msra.mxu0 0
    %815 = vmatprep.mubr.bf16.mxu0 0
    %816 = vmatmul.mubr.bf16.gmra.mrb[0].mxu0 %v124
    %v817 = vpop.f32.mrb[0].mxu0
    %v818 = vadd.f32 %v769, %v817
    %v819 = vpop.f32.mrb[0].mxu0
    %v820 = vpop.f32.mrb[0].mxu0
    %v821 = vadd.f32 %v769, %v820
    %v822 = vpop.f32.mrb[0].mxu0
    %823 = vdwg.mxu0
    %v825 = vsel %vm299, %v686, 0
    %v828 = vsel %vm299, %v752, 0
    %830 = vmatprep.subr.mxu0 0.0
    %831 = vmatpush1.xpose.msra.mxu0 %v828
    %832 = vmatprep.subr.mxu0 0.0
    %833 = vmatpush1.xpose.msra.mxu0 0.0
    %834 = vmatprep.subr.mxu0 0.0
    %835 = vmatpush1.xpose.msra.mxu0 0.0
    %836 = vmatprep.subr.mxu0 0.0
    %837 = vmatpush1.xpose.msra.mxu0 0.0
    %838 = vmatprep.subr.mxu0 0.0
    %839 = vmatpush1.xpose.msra.mxu0 0.0
    %840 = vmatprep.subr.mxu0 0.0
    %841 = vmatpush1.xpose.msra.mxu0 0.0
    %842 = vmatprep.subr.mxu0 0.0
    %843 = vmatpush1.xpose.msra.mxu0 0.0
    %844 = vmatprep.subr.mxu0 0.0
    %845 = vmatpush1.xpose.msra.mxu0 0.0
    %846 = vmatprep.subr.mxu0 0.0
    %847 = vmatpush1.xpose.msra.mxu0 0.0
    %848 = vmatprep.subr.mxu0 0.0
    %849 = vmatpush1.xpose.msra.mxu0 0.0
    %850 = vmatprep.subr.mxu0 0.0
    %851 = vmatpush1.xpose.msra.mxu0 0.0
    %852 = vmatprep.subr.mxu0 0.0
    %853 = vmatpush1.xpose.msra.mxu0 0.0
    %854 = vmatprep.subr.mxu0 0.0
    %855 = vmatpush1.xpose.msra.mxu0 0.0
    %856 = vmatprep.subr.mxu0 0.0
    %857 = vmatpush1.xpose.msra.mxu0 0.0
    %858 = vmatprep.subr.mxu0 0.0
    %859 = vmatpush1.xpose.msra.mxu0 0.0
    %860 = vmatprep.subr.mxu0 0.0
    %861 = vmatpush1.xpose.msra.mxu0 0.0
    %862 = vmatprep.subr.mxu0 0.0
    %863 = vmatpush1.xpose.msra.mxu0 0.0
    %864 = vmatprep.subr.mxu0 0.0
    %865 = vmatpush1.xpose.msra.mxu0 0.0
    %866 = vmatprep.subr.mxu0 0.0
    %867 = vmatpush1.xpose.msra.mxu0 0.0
    %868 = vmatprep.subr.mxu0 0.0
    %869 = vmatpush1.xpose.msra.mxu0 0.0
    %870 = vmatprep.subr.mxu0 0.0
    %871 = vmatpush1.xpose.msra.mxu0 0.0
    %872 = vmatprep.subr.mxu0 0.0
    %873 = vmatpush1.xpose.msra.mxu0 0.0
    %874 = vmatprep.subr.mxu0 0.0
    %875 = vmatpush1.xpose.msra.mxu0 0.0
    %876 = vmatprep.subr.mxu0 0.0
    %877 = vmatpush1.xpose.msra.mxu0 0.0
    %878 = vmatprep.subr.mxu0 0.0
    %879 = vmatpush1.xpose.msra.mxu0 0.0
    %880 = vmatprep.subr.mxu0 0.0
    %881 = vmatpush1.xpose.msra.mxu0 0.0
    %882 = vmatprep.subr.mxu0 0.0
    %883 = vmatpush1.xpose.msra.mxu0 0.0
    %884 = vmatprep.subr.mxu0 0.0
    %885 = vmatpush1.xpose.msra.mxu0 0.0
    %886 = vmatprep.subr.mxu0 0.0
    %887 = vmatpush1.xpose.msra.mxu0 0.0
    %888 = vmatprep.subr.mxu0 0.0
    %889 = vmatpush1.xpose.msra.mxu0 0.0
    %890 = vmatprep.subr.mxu0 0.0
    %891 = vmatpush1.xpose.msra.mxu0 0.0
    %892 = vmatprep.subr.mxu0 0.0
    %893 = vmatpush1.xpose.msra.mxu0 0.0
    %894 = vmatprep.mubr.f32.mxu0 0.0
    %895 = vmatmul.mubr.f32.gmra.mrb[0].mxu0 %v825
    %v896 = vpop.f32.mrb[0].mxu0
    %v897 = vadd.f32 0.0, %v896
    %v898 = vpop.f32.mrb[0].mxu0
    %899 = vdwg.mxu0
    %v901 = vsel %vm299, %v689, 0
    %v904 = vsel %vm299, %v755, 0
    %906 = vmatprep.subr.mxu0 0.0
    %907 = vmatpush1.xpose.msra.mxu0 %v904
    %908 = vmatprep.subr.mxu0 0.0
    %909 = vmatpush1.xpose.msra.mxu0 0.0
    %910 = vmatprep.subr.mxu0 0.0
    %911 = vmatpush1.xpose.msra.mxu0 0.0
    %912 = vmatprep.subr.mxu0 0.0
    %913 = vmatpush1.xpose.msra.mxu0 0.0
    %914 = vmatprep.subr.mxu0 0.0
    %915 = vmatpush1.xpose.msra.mxu0 0.0
    %916 = vmatprep.subr.mxu0 0.0
    %917 = vmatpush1.xpose.msra.mxu0 0.0
    %918 = vmatprep.subr.mxu0 0.0
    %919 = vmatpush1.xpose.msra.mxu0 0.0
    %920 = vmatprep.subr.mxu0 0.0
    %921 = vmatpush1.xpose.msra.mxu0 0.0
    %922 = vmatprep.subr.mxu0 0.0
    %923 = vmatpush1.xpose.msra.mxu0 0.0
    %924 = vmatprep.subr.mxu0 0.0
    %925 = vmatpush1.xpose.msra.mxu0 0.0
    %926 = vmatprep.subr.mxu0 0.0
    %927 = vmatpush1.xpose.msra.mxu0 0.0
    %928 = vmatprep.subr.mxu0 0.0
    %929 = vmatpush1.xpose.msra.mxu0 0.0
    %930 = vmatprep.subr.mxu0 0.0
    %931 = vmatpush1.xpose.msra.mxu0 0.0
    %932 = vmatprep.subr.mxu0 0.0
    %933 = vmatpush1.xpose.msra.mxu0 0.0
    %934 = vmatprep.subr.mxu0 0.0
    %935 = vmatpush1.xpose.msra.mxu0 0.0
    %936 = vmatprep.subr.mxu0 0.0
    %937 = vmatpush1.xpose.msra.mxu0 0.0
    %938 = vmatprep.subr.mxu0 0.0
    %939 = vmatpush1.xpose.msra.mxu0 0.0
    %940 = vmatprep.subr.mxu0 0.0
    %941 = vmatpush1.xpose.msra.mxu0 0.0
    %942 = vmatprep.subr.mxu0 0.0
    %943 = vmatpush1.xpose.msra.mxu0 0.0
    %944 = vmatprep.subr.mxu0 0.0
    %945 = vmatpush1.xpose.msra.mxu0 0.0
    %946 = vmatprep.subr.mxu0 0.0
    %947 = vmatpush1.xpose.msra.mxu0 0.0
    %948 = vmatprep.subr.mxu0 0.0
    %949 = vmatpush1.xpose.msra.mxu0 0.0
    %950 = vmatprep.subr.mxu0 0.0
    %951 = vmatpush1.xpose.msra.mxu0 0.0
    %952 = vmatprep.subr.mxu0 0.0
    %953 = vmatpush1.xpose.msra.mxu0 0.0
    %954 = vmatprep.subr.mxu0 0.0
    %955 = vmatpush1.xpose.msra.mxu0 0.0
    %956 = vmatprep.subr.mxu0 0.0
    %957 = vmatpush1.xpose.msra.mxu0 0.0
    %958 = vmatprep.subr.mxu0 0.0
    %959 = vmatpush1.xpose.msra.mxu0 0.0
    %960 = vmatprep.subr.mxu0 0.0
    %961 = vmatpush1.xpose.msra.mxu0 0.0
    %962 = vmatprep.subr.mxu0 0.0
    %963 = vmatpush1.xpose.msra.mxu0 0.0
    %964 = vmatprep.subr.mxu0 0.0
    %965 = vmatpush1.xpose.msra.mxu0 0.0
    %966 = vmatprep.subr.mxu0 0.0
    %967 = vmatpush1.xpose.msra.mxu0 0.0
    %968 = vmatprep.subr.mxu0 0.0
    %969 = vmatpush1.xpose.msra.mxu0 0.0
    %970 = vmatprep.mubr.f32.mxu0 0.0
    %971 = vmatmul.mubr.f32.gmra.mrb[0].mxu0 %v901
    %v972 = vpop.f32.mrb[0].mxu0
    %v973 = vadd.f32 0.0, %v972
    %v974 = vpop.f32.mrb[0].mxu0
    %975 = vdwg.mxu0
    %v976 = vmul.f32 %v897, 0.35355338
    %v977 = vmul.f32 %v973, 0.35355338
    %v978 = vadd.f32 %v976, %v46
    %v979 = vadd.f32 %v977, %v47
    %v980 = vsel %vm299, %v978, -inf
    %981 = vmax.xlane.f32.xlu0 %v980
    %v982 = vpop.xlane.xlu0 %981
    %v983 = vsel %vm299, %v979, -inf
    %984 = vmax.xlane.f32.xlu0 %v983
    %v985 = vpop.xlane.xlu0 %984
    %v986 = vsub.f32 %v978, %v982
    %v987 = vsub.f32 %v979, %v985
    %v988 = vmul.f32 %v986, 1.442695
    %v989 = vpow.pop %v988
    %v990 = vmul.f32 %v987, 1.442695
    %v991 = vpow.pop %v990
    %v992 = vsel %vm299, %v989, 0.0
    %993 = vadd.xlane.f32.xlu0 %v992
    %v994 = vpop.xlane.xlu0 %993
    %v995 = vsel %vm299, %v991, 0.0
    %996 = vadd.xlane.f32.xlu0 %v995
    %v997 = vpop.xlane.xlu0 %996
    %v998 = vrcp.pop %v994
    %v999 = vrcp.pop %v997
    %v1000 = vmul.f32 %v989, %v998
    %v1001 = vmul.f32 %v991, %v999
    %v1003 = vsel %vm299, %v1000, 0
    %1005 = vmatprep.subr.mxu0 0.0
    %1006 = vmatpush1.msra.mxu0 %v818
    %1007 = vmatprep.subr.mxu0 0.0
    %1008 = vmatpush1.msra.mxu0 0.0
    %1009 = vmatprep.subr.mxu0 0.0
    %1010 = vmatpush1.msra.mxu0 0.0
    %1011 = vmatprep.subr.mxu0 0.0
    %1012 = vmatpush1.msra.mxu0 0.0
    %1013 = vmatprep.subr.mxu0 0.0
    %1014 = vmatpush1.msra.mxu0 0.0
    %1015 = vmatprep.subr.mxu0 0.0
    %1016 = vmatpush1.msra.mxu0 0.0
    %1017 = vmatprep.subr.mxu0 0.0
    %1018 = vmatpush1.msra.mxu0 0.0
    %1019 = vmatprep.subr.mxu0 0.0
    %1020 = vmatpush1.msra.mxu0 0.0
    %1021 = vmatprep.subr.mxu0 0.0
    %1022 = vmatpush1.msra.mxu0 0.0
    %1023 = vmatprep.subr.mxu0 0.0
    %1024 = vmatpush1.msra.mxu0 0.0
    %1025 = vmatprep.subr.mxu0 0.0
    %1026 = vmatpush1.msra.mxu0 0.0
    %1027 = vmatprep.subr.mxu0 0.0
    %1028 = vmatpush1.msra.mxu0 0.0
    %1029 = vmatprep.subr.mxu0 0.0
    %1030 = vmatpush1.msra.mxu0 0.0
    %1031 = vmatprep.subr.mxu0 0.0
    %1032 = vmatpush1.msra.mxu0 0.0
    %1033 = vmatprep.subr.mxu0 0.0
    %1034 = vmatpush1.msra.mxu0 0.0
    %1035 = vmatprep.subr.mxu0 0.0
    %1036 = vmatpush1.msra.mxu0 0.0
    %1037 = vmatprep.subr.mxu0 0.0
    %1038 = vmatpush1.msra.mxu0 0.0
    %1039 = vmatprep.subr.mxu0 0.0
    %1040 = vmatpush1.msra.mxu0 0.0
    %1041 = vmatprep.subr.mxu0 0.0
    %1042 = vmatpush1.msra.mxu0 0.0
    %1043 = vmatprep.subr.mxu0 0.0
    %1044 = vmatpush1.msra.mxu0 0.0
    %1045 = vmatprep.subr.mxu0 0.0
    %1046 = vmatpush1.msra.mxu0 0.0
    %1047 = vmatprep.subr.mxu0 0.0
    %1048 = vmatpush1.msra.mxu0 0.0
    %1049 = vmatprep.subr.mxu0 0.0
    %1050 = vmatpush1.msra.mxu0 0.0
    %1051 = vmatprep.subr.mxu0 0.0
    %1052 = vmatpush1.msra.mxu0 0.0
    %1053 = vmatprep.subr.mxu0 0.0
    %1054 = vmatpush1.msra.mxu0 0.0
    %1055 = vmatprep.subr.mxu0 0.0
    %1056 = vmatpush1.msra.mxu0 0.0
    %1057 = vmatprep.subr.mxu0 0.0
    %1058 = vmatpush1.msra.mxu0 0.0
    %1059 = vmatprep.subr.mxu0 0.0
    %1060 = vmatpush1.msra.mxu0 0.0
    %1061 = vmatprep.subr.mxu0 0.0
    %1062 = vmatpush1.msra.mxu0 0.0
    %1063 = vmatprep.subr.mxu0 0.0
    %1064 = vmatpush1.msra.mxu0 0.0
    %1065 = vmatprep.subr.mxu0 0.0
    %1066 = vmatpush1.msra.mxu0 0.0
    %1067 = vmatprep.subr.mxu0 0.0
    %1068 = vmatpush1.msra.mxu0 0.0
    %1069 = vmatprep.mubr.f32.mxu0 0.0
    %1070 = vmatmul.mubr.f32.gmra.mrb[0].mxu0 %v1003
    %v1071 = vpop.f32.mrb[0].mxu0
    %v1072 = vadd.f32 0.0, %v1071
    %v1073 = vpop.f32.mrb[0].mxu0
    %1074 = vdwg.mxu0
    %v1076 = vsel %vm299, %v1001, 0
    %1078 = vmatprep.subr.mxu0 0.0
    %1079 = vmatpush1.msra.mxu0 %v821
    %1080 = vmatprep.subr.mxu0 0.0
    %1081 = vmatpush1.msra.mxu0 0.0
    %1082 = vmatprep.subr.mxu0 0.0
    %1083 = vmatpush1.msra.mxu0 0.0
    %1084 = vmatprep.subr.mxu0 0.0
    %1085 = vmatpush1.msra.mxu0 0.0
    %1086 = vmatprep.subr.mxu0 0.0
    %1087 = vmatpush1.msra.mxu0 0.0
    %1088 = vmatprep.subr.mxu0 0.0
    %1089 = vmatpush1.msra.mxu0 0.0
    %1090 = vmatprep.subr.mxu0 0.0
    %1091 = vmatpush1.msra.mxu0 0.0
    %1092 = vmatprep.subr.mxu0 0.0
    %1093 = vmatpush1.msra.mxu0 0.0
    %1094 = vmatprep.subr.mxu0 0.0
    %1095 = vmatpush1.msra.mxu0 0.0
    %1096 = vmatprep.subr.mxu0 0.0
    %1097 = vmatpush1.msra.mxu0 0.0
    %1098 = vmatprep.subr.mxu0 0.0
    %1099 = vmatpush1.msra.mxu0 0.0
    %1100 = vmatprep.subr.mxu0 0.0
    %1101 = vmatpush1.msra.mxu0 0.0
    %1102 = vmatprep.subr.mxu0 0.0
    %1103 = vmatpush1.msra.mxu0 0.0
    %1104 = vmatprep.subr.mxu0 0.0
    %1105 = vmatpush1.msra.mxu0 0.0
    %1106 = vmatprep.subr.mxu0 0.0
    %1107 = vmatpush1.msra.mxu0 0.0
    %1108 = vmatprep.subr.mxu0 0.0
    %1109 = vmatpush1.msra.mxu0 0.0
    %1110 = vmatprep.subr.mxu0 0.0
    %1111 = vmatpush1.msra.mxu0 0.0
    %1112 = vmatprep.subr.mxu0 0.0
    %1113 = vmatpush1.msra.mxu0 0.0
    %1114 = vmatprep.subr.mxu0 0.0
    %1115 = vmatpush1.msra.mxu0 0.0
    %1116 = vmatprep.subr.mxu0 0.0
    %1117 = vmatpush1.msra.mxu0 0.0
    %1118 = vmatprep.subr.mxu0 0.0
    %1119 = vmatpush1.msra.mxu0 0.0
    %1120 = vmatprep.subr.mxu0 0.0
    %1121 = vmatpush1.msra.mxu0 0.0
    %1122 = vmatprep.subr.mxu0 0.0
    %1123 = vmatpush1.msra.mxu0 0.0
    %1124 = vmatprep.subr.mxu0 0.0
    %1125 = vmatpush1.msra.mxu0 0.0
    %1126 = vmatprep.subr.mxu0 0.0
    %1127 = vmatpush1.msra.mxu0 0.0
    %1128 = vmatprep.subr.mxu0 0.0
    %1129 = vmatpush1.msra.mxu0 0.0
    %1130 = vmatprep.subr.mxu0 0.0
    %1131 = vmatpush1.msra.mxu0 0.0
    %1132 = vmatprep.subr.mxu0 0.0
    %1133 = vmatpush1.msra.mxu0 0.0
    %1134 = vmatprep.subr.mxu0 0.0
    %1135 = vmatpush1.msra.mxu0 0.0
    %1136 = vmatprep.subr.mxu0 0.0
    %1137 = vmatpush1.msra.mxu0 0.0
    %1138 = vmatprep.subr.mxu0 0.0
    %1139 = vmatpush1.msra.mxu0 0.0
    %1140 = vmatprep.subr.mxu0 0.0
    %1141 = vmatpush1.msra.mxu0 0.0
    %1142 = vmatprep.mubr.f32.mxu0 0.0
    %1143 = vmatmul.mubr.f32.gmra.mrb[0].mxu0 %v1076
    %v1144 = vpop.f32.mrb[0].mxu0
    %v1145 = vadd.f32 0.0, %v1144
    %v1146 = vpop.f32.mrb[0].mxu0
    %1147 = vdwg.mxu0
    %v1148 = vpack.c.bf16 %v1145, %v1072
    %s1149 = scalar_lea.vmem %s5, 4
    %v1150 = vld [vmem:[%s1149] sm:$0xf]
    %v1152 = vsel %vm299, %v1148, 0
    %vm1154 = vcmask 1043456
    %v1156 = vsel %vm1154, %v1150, 0
    %1158 = vmatprep.subr.bf16.mxu0 0
    %1159 = vmatpush1.bf16.msra.mxu0 %v1156
    %1160 = vmatprep.subr.bf16.mxu0 0
    %1161 = vmatpush1.bf16.msra.mxu0 0
    %1162 = vmatprep.subr.bf16.mxu0 0
    %1163 = vmatpush1.bf16.msra.mxu0 0
    %1164 = vmatprep.subr.bf16.mxu0 0
    %1165 = vmatpush1.bf16.msra.mxu0 0
    %1166 = vmatprep.subr.bf16.mxu0 0
    %1167 = vmatpush1.bf16.msra.mxu0 0
    %1168 = vmatprep.subr.bf16.mxu0 0
    %1169 = vmatpush1.bf16.msra.mxu0 0
    %1170 = vmatprep.subr.bf16.mxu0 0
    %1171 = vmatpush1.bf16.msra.mxu0 0
    %1172 = vmatprep.subr.bf16.mxu0 0
    %1173 = vmatpush1.bf16.msra.mxu0 0
    %1174 = vmatprep.subr.bf16.mxu0 0
    %1175 = vmatpush1.bf16.msra.mxu0 0
    %1176 = vmatprep.subr.bf16.mxu0 0
    %1177 = vmatpush1.bf16.msra.mxu0 0
    %1178 = vmatprep.subr.bf16.mxu0 0
    %1179 = vmatpush1.bf16.msra.mxu0 0
    %1180 = vmatprep.subr.bf16.mxu0 0
    %1181 = vmatpush1.bf16.msra.mxu0 0
    %1182 = vmatprep.subr.bf16.mxu0 0
    %1183 = vmatpush1.bf16.msra.mxu0 0
    %1184 = vmatprep.subr.bf16.mxu0 0
    %1185 = vmatpush1.bf16.msra.mxu0 0
    %1186 = vmatprep.subr.bf16.mxu0 0
    %1187 = vmatpush1.bf16.msra.mxu0 0
    %1188 = vmatprep.subr.bf16.mxu0 0
    %1189 = vmatpush1.bf16.msra.mxu0 0
    %1190 = vmatprep.mubr.bf16.mxu0 0
    %1191 = vmatmul.mubr.bf16.gmra.mrb[0].mxu0 %v1152
    %v1192 = vpop.f32.mrb[0].mxu0
    %v1193 = vadd.f32 0.0, %v1192
    %v1194 = vpop.f32.mrb[0].mxu0
    %v1195 = vpop.f32.mrb[0].mxu0
    %v1196 = vadd.f32 0.0, %v1195
    %v1197 = vpop.f32.mrb[0].mxu0
    %1198 = vdwg.mxu0
    %v1200 = vsel %vm299, %v624, 0
    %v1203 = vsel %vm1154, %v625, 0
    %1205 = vmatprep.subr.bf16.mxu0 0
    %1206 = vmatpush1.bf16.msra.mxu0 %v1203
    %1207 = vmatprep.subr.bf16.mxu0 0
    %1208 = vmatpush1.bf16.msra.mxu0 0
    %1209 = vmatprep.subr.bf16.mxu0 0
    %1210 = vmatpush1.bf16.msra.mxu0 0
    %1211 = vmatprep.subr.bf16.mxu0 0
    %1212 = vmatpush1.bf16.msra.mxu0 0
    %1213 = vmatprep.subr.bf16.mxu0 0
    %1214 = vmatpush1.bf16.msra.mxu0 0
    %1215 = vmatprep.subr.bf16.mxu0 0
    %1216 = vmatpush1.bf16.msra.mxu0 0
    %1217 = vmatprep.subr.bf16.mxu0 0
    %1218 = vmatpush1.bf16.msra.mxu0 0
    %1219 = vmatprep.subr.bf16.mxu0 0
    %1220 = vmatpush1.bf16.msra.mxu0 0
    %1221 = vmatprep.subr.bf16.mxu0 0
    %1222 = vmatpush1.bf16.msra.mxu0 0
    %1223 = vmatprep.subr.bf16.mxu0 0
    %1224 = vmatpush1.bf16.msra.mxu0 0
    %1225 = vmatprep.subr.bf16.mxu0 0
    %1226 = vmatpush1.bf16.msra.mxu0 0
    %1227 = vmatprep.subr.bf16.mxu0 0
    %1228 = vmatpush1.bf16.msra.mxu0 0
    %1229 = vmatprep.subr.bf16.mxu0 0
    %1230 = vmatpush1.bf16.msra.mxu0 0
    %1231 = vmatprep.subr.bf16.mxu0 0
    %1232 = vmatpush1.bf16.msra.mxu0 0
    %1233 = vmatprep.subr.bf16.mxu0 0
    %1234 = vmatpush1.bf16.msra.mxu0 0
    %1235 = vmatprep.subr.bf16.mxu0 0
    %1236 = vmatpush1.bf16.msra.mxu0 0
    %1237 = vmatprep.mubr.bf16.mxu0 0
    %1238 = vmatmul.mubr.bf16.gmra.mrb[0].mxu0 %v1200
    %v1239 = vpop.f32.mrb[0].mxu0
    %v1240 = vadd.f32 %v1193, %v1239
    %v1241 = vpop.f32.mrb[0].mxu0
    %v1242 = vpop.f32.mrb[0].mxu0
    %v1243 = vadd.f32 %v1196, %v1242
    %v1244 = vpop.f32.mrb[0].mxu0
    %1245 = vdwg.mxu0
    %s1246 = scalar_lea.vmem %s3, 32
    %v1247 = vld [vmem:[%s1246] sm:$0xf]
    %v1248 = vld [vmem:[%s1246 + $0x4] sm:$0xf]
    %v1249 = vld [vmem:[%s1246 + $0x8] sm:$0xf]
    %v1250 = vld [vmem:[%s1246 + $0xc] sm:$0xf]
    %s1251 = scalar_lea.vmem %s4, 2
    %v1252 = vld [vmem:[%s1251] sm:$0x1]
    %v1254 = vlaneseq
    %v1255 = vshrl.u32 %v1254, 7
    %v1256 = vsub.s32 0, %v1255
    %v1257 = vrot.slane %v1252, %v1256
    %v1263 = vunpack.c.l.b16 %v1247
    %v1264 = vunpack.c.l.b16 %v1248
    %v1265 = vunpack.c.l.b16 %v1249
    %v1266 = vunpack.c.l.b16 %v1250
    %v1267 = vpack.c.b16 %v1264, %v1263
    %v1268 = vpack.c.b16 %v1266, %v1265
    %1271 = vmatprep.subr.bf16.mxu0 0
    %1272 = vmatpush1.bf16.msra.mxu0 %v1267
    %1273 = vmatprep.subr.bf16.mxu0 0
    %1274 = vmatpush1.bf16.msra.mxu0 %v1268
    %1275 = vmatprep.subr.bf16.mxu0 0
    %1276 = vmatpush1.bf16.msra.mxu0 0
    %1277 = vmatprep.subr.bf16.mxu0 0
    %1278 = vmatpush1.bf16.msra.mxu0 0
    %1279 = vmatprep.subr.bf16.mxu0 0
    %1280 = vmatpush1.bf16.msra.mxu0 0
    %1281 = vmatprep.subr.bf16.mxu0 0
    %1282 = vmatpush1.bf16.msra.mxu0 0
    %1283 = vmatprep.subr.bf16.mxu0 0
    %1284 = vmatpush1.bf16.msra.mxu0 0
    %1285 = vmatprep.subr.bf16.mxu0 0
    %1286 = vmatpush1.bf16.msra.mxu0 0
    %1287 = vmatprep.subr.bf16.mxu0 0
    %1288 = vmatpush1.bf16.msra.mxu0 0
    %1289 = vmatprep.subr.bf16.mxu0 0
    %1290 = vmatpush1.bf16.msra.mxu0 0
    %1291 = vmatprep.subr.bf16.mxu0 0
    %1292 = vmatpush1.bf16.msra.mxu0 0
    %1293 = vmatprep.subr.bf16.mxu0 0
    %1294 = vmatpush1.bf16.msra.mxu0 0
    %1295 = vmatprep.subr.bf16.mxu0 0
    %1296 = vmatpush1.bf16.msra.mxu0 0
    %1297 = vmatprep.subr.bf16.mxu0 0
    %1298 = vmatpush1.bf16.msra.mxu0 0
    %1299 = vmatprep.subr.bf16.mxu0 0
    %1300 = vmatpush1.bf16.msra.mxu0 0
    %1301 = vmatprep.subr.bf16.mxu0 0
    %1302 = vmatpush1.bf16.msra.mxu0 0
    %1303 = vmatprep.mubr.bf16.mxu0 0
    %1304 = vmatmul.mubr.bf16.gmra.mrb[0].mxu0 %v124
    %v1305 = vpop.f32.mrb[0].mxu0
    %v1306 = vadd.f32 %v1257, %v1305
    %v1307 = vpop.f32.mrb[0].mxu0
    %v1308 = vpop.f32.mrb[0].mxu0
    %v1309 = vadd.f32 %v1257, %v1308
    %v1310 = vpop.f32.mrb[0].mxu0
    %1311 = vdwg.mxu0
    %s1312 = scalar_lea.vmem %s3, 96
    %v1313 = vld [vmem:[%s1312] sm:$0xf]
    %v1314 = vld [vmem:[%s1312 + $0x4] sm:$0xf]
    %v1315 = vld [vmem:[%s1312 + $0x8] sm:$0xf]
    %v1316 = vld [vmem:[%s1312 + $0xc] sm:$0xf]
    %s1317 = scalar_lea.vmem %s4, 6
    %v1318 = vld [vmem:[%s1317] sm:$0x1]
    %v1320 = vlaneseq
    %v1321 = vshrl.u32 %v1320, 7
    %v1322 = vsub.s32 0, %v1321
    %v1323 = vrot.slane %v1318, %v1322
    %v1329 = vunpack.c.l.b16 %v1313
    %v1330 = vunpack.c.l.b16 %v1314
    %v1331 = vunpack.c.l.b16 %v1315
    %v1332 = vunpack.c.l.b16 %v1316
    %v1333 = vpack.c.b16 %v1330, %v1329
    %v1334 = vpack.c.b16 %v1332, %v1331
    %1337 = vmatprep.subr.bf16.mxu0 0
    %1338 = vmatpush1.bf16.msra.mxu0 %v1333
    %1339 = vmatprep.subr.bf16.mxu0 0
    %1340 = vmatpush1.bf16.msra.mxu0 %v1334
    %1341 = vmatprep.subr.bf16.mxu0 0
    %1342 = vmatpush1.bf16.msra.mxu0 0
    %1343 = vmatprep.subr.bf16.mxu0 0
    %1344 = vmatpush1.bf16.msra.mxu0 0
    %1345 = vmatprep.subr.bf16.mxu0 0
    %1346 = vmatpush1.bf16.msra.mxu0 0
    %1347 = vmatprep.subr.bf16.mxu0 0
    %1348 = vmatpush1.bf16.msra.mxu0 0
    %1349 = vmatprep.subr.bf16.mxu0 0
    %1350 = vmatpush1.bf16.msra.mxu0 0
    %1351 = vmatprep.subr.bf16.mxu0 0
    %1352 = vmatpush1.bf16.msra.mxu0 0
    %1353 = vmatprep.subr.bf16.mxu0 0
    %1354 = vmatpush1.bf16.msra.mxu0 0
    %1355 = vmatprep.subr.bf16.mxu0 0
    %1356 = vmatpush1.bf16.msra.mxu0 0
    %1357 = vmatprep.subr.bf16.mxu0 0
    %1358 = vmatpush1.bf16.msra.mxu0 0
    %1359 = vmatprep.subr.bf16.mxu0 0
    %1360 = vmatpush1.bf16.msra.mxu0 0
    %1361 = vmatprep.subr.bf16.mxu0 0
    %1362 = vmatpush1.bf16.msra.mxu0 0
    %1363 = vmatprep.subr.bf16.mxu0 0
    %1364 = vmatpush1.bf16.msra.mxu0 0
    %1365 = vmatprep.subr.bf16.mxu0 0
    %1366 = vmatpush1.bf16.msra.mxu0 0
    %1367 = vmatprep.subr.bf16.mxu0 0
    %1368 = vmatpush1.bf16.msra.mxu0 0
    %1369 = vmatprep.mubr.bf16.mxu0 0
    %1370 = vmatmul.mubr.bf16.gmra.mrb[0].mxu0 %v124
    %v1371 = vpop.f32.mrb[0].mxu0
    %v1372 = vadd.f32 %v1323, %v1371
    %v1373 = vpop.f32.mrb[0].mxu0
    %v1374 = vpop.f32.mrb[0].mxu0
    %v1375 = vadd.f32 %v1323, %v1374
    %v1376 = vpop.f32.mrb[0].mxu0
    %1377 = vdwg.mxu0
    %s1378 = scalar_lea.vmem %s3, 160
    %v1379 = vld [vmem:[%s1378] sm:$0xf]
    %v1380 = vld [vmem:[%s1378 + $0x4] sm:$0xf]
    %v1381 = vld [vmem:[%s1378 + $0x8] sm:$0xf]
    %v1382 = vld [vmem:[%s1378 + $0xc] sm:$0xf]
    %s1383 = scalar_lea.vmem %s4, 10
    %v1384 = vld [vmem:[%s1383] sm:$0x1]
    %v1386 = vlaneseq
    %v1387 = vshrl.u32 %v1386, 7
    %v1388 = vsub.s32 0, %v1387
    %v1389 = vrot.slane %v1384, %v1388
    %v1395 = vunpack.c.l.b16 %v1379
    %v1396 = vunpack.c.l.b16 %v1380
    %v1397 = vunpack.c.l.b16 %v1381
    %v1398 = vunpack.c.l.b16 %v1382
    %v1399 = vpack.c.b16 %v1396, %v1395
    %v1400 = vpack.c.b16 %v1398, %v1397
    %1403 = vmatprep.subr.bf16.mxu0 0
    %1404 = vmatpush1.bf16.msra.mxu0 %v1399
    %1405 = vmatprep.subr.bf16.mxu0 0
    %1406 = vmatpush1.bf16.msra.mxu0 %v1400
    %1407 = vmatprep.subr.bf16.mxu0 0
    %1408 = vmatpush1.bf16.msra.mxu0 0
    %1409 = vmatprep.subr.bf16.mxu0 0
    %1410 = vmatpush1.bf16.msra.mxu0 0
    %1411 = vmatprep.subr.bf16.mxu0 0
    %1412 = vmatpush1.bf16.msra.mxu0 0
    %1413 = vmatprep.subr.bf16.mxu0 0
    %1414 = vmatpush1.bf16.msra.mxu0 0
    %1415 = vmatprep.subr.bf16.mxu0 0
    %1416 = vmatpush1.bf16.msra.mxu0 0
    %1417 = vmatprep.subr.bf16.mxu0 0
    %1418 = vmatpush1.bf16.msra.mxu0 0
    %1419 = vmatprep.subr.bf16.mxu0 0
    %1420 = vmatpush1.bf16.msra.mxu0 0
    %1421 = vmatprep.subr.bf16.mxu0 0
    %1422 = vmatpush1.bf16.msra.mxu0 0
    %1423 = vmatprep.subr.bf16.mxu0 0
    %1424 = vmatpush1.bf16.msra.mxu0 0
    %1425 = vmatprep.subr.bf16.mxu0 0
    %1426 = vmatpush1.bf16.msra.mxu0 0
    %1427 = vmatprep.subr.bf16.mxu0 0
    %1428 = vmatpush1.bf16.msra.mxu0 0
    %1429 = vmatprep.subr.bf16.mxu0 0
    %1430 = vmatpush1.bf16.msra.mxu0 0
    %1431 = vmatprep.subr.bf16.mxu0 0
    %1432 = vmatpush1.bf16.msra.mxu0 0
    %1433 = vmatprep.subr.bf16.mxu0 0
    %1434 = vmatpush1.bf16.msra.mxu0 0
    %1435 = vmatprep.mubr.bf16.mxu0 0
    %1436 = vmatmul.mubr.bf16.gmra.mrb[0].mxu0 %v124
    %v1437 = vpop.f32.mrb[0].mxu0
    %v1438 = vadd.f32 %v1389, %v1437
    %v1439 = vpop.f32.mrb[0].mxu0
    %v1440 = vpop.f32.mrb[0].mxu0
    %v1441 = vadd.f32 %v1389, %v1440
    %v1442 = vpop.f32.mrb[0].mxu0
    %1443 = vdwg.mxu0
    %v1445 = vsel %vm299, %v1306, 0
    %v1448 = vsel %vm299, %v1372, 0
    %1450 = vmatprep.subr.mxu0 0.0
    %1451 = vmatpush1.xpose.msra.mxu0 %v1448
    %1452 = vmatprep.subr.mxu0 0.0
    %1453 = vmatpush1.xpose.msra.mxu0 0.0
    %1454 = vmatprep.subr.mxu0 0.0
    %1455 = vmatpush1.xpose.msra.mxu0 0.0
    %1456 = vmatprep.subr.mxu0 0.0
    %1457 = vmatpush1.xpose.msra.mxu0 0.0
    %1458 = vmatprep.subr.mxu0 0.0
    %1459 = vmatpush1.xpose.msra.mxu0 0.0
    %1460 = vmatprep.subr.mxu0 0.0
    %1461 = vmatpush1.xpose.msra.mxu0 0.0
    %1462 = vmatprep.subr.mxu0 0.0
    %1463 = vmatpush1.xpose.msra.mxu0 0.0
    %1464 = vmatprep.subr.mxu0 0.0
    %1465 = vmatpush1.xpose.msra.mxu0 0.0
    %1466 = vmatprep.subr.mxu0 0.0
    %1467 = vmatpush1.xpose.msra.mxu0 0.0
    %1468 = vmatprep.subr.mxu0 0.0
    %1469 = vmatpush1.xpose.msra.mxu0 0.0
    %1470 = vmatprep.subr.mxu0 0.0
    %1471 = vmatpush1.xpose.msra.mxu0 0.0
    %1472 = vmatprep.subr.mxu0 0.0
    %1473 = vmatpush1.xpose.msra.mxu0 0.0
    %1474 = vmatprep.subr.mxu0 0.0
    %1475 = vmatpush1.xpose.msra.mxu0 0.0
    %1476 = vmatprep.subr.mxu0 0.0
    %1477 = vmatpush1.xpose.msra.mxu0 0.0
    %1478 = vmatprep.subr.mxu0 0.0
    %1479 = vmatpush1.xpose.msra.mxu0 0.0
    %1480 = vmatprep.subr.mxu0 0.0
    %1481 = vmatpush1.xpose.msra.mxu0 0.0
    %1482 = vmatprep.subr.mxu0 0.0
    %1483 = vmatpush1.xpose.msra.mxu0 0.0
    %1484 = vmatprep.subr.mxu0 0.0
    %1485 = vmatpush1.xpose.msra.mxu0 0.0
    %1486 = vmatprep.subr.mxu0 0.0
    %1487 = vmatpush1.xpose.msra.mxu0 0.0
    %1488 = vmatprep.subr.mxu0 0.0
    %1489 = vmatpush1.xpose.msra.mxu0 0.0
    %1490 = vmatprep.subr.mxu0 0.0
    %1491 = vmatpush1.xpose.msra.mxu0 0.0
    %1492 = vmatprep.subr.mxu0 0.0
    %1493 = vmatpush1.xpose.msra.mxu0 0.0
    %1494 = vmatprep.subr.mxu0 0.0
    %1495 = vmatpush1.xpose.msra.mxu0 0.0
    %1496 = vmatprep.subr.mxu0 0.0
    %1497 = vmatpush1.xpose.msra.mxu0 0.0
    %1498 = vmatprep.subr.mxu0 0.0
    %1499 = vmatpush1.xpose.msra.mxu0 0.0
    %1500 = vmatprep.subr.mxu0 0.0
    %1501 = vmatpush1.xpose.msra.mxu0 0.0
    %1502 = vmatprep.subr.mxu0 0.0
    %1503 = vmatpush1.xpose.msra.mxu0 0.0
    %1504 = vmatprep.subr.mxu0 0.0
    %1505 = vmatpush1.xpose.msra.mxu0 0.0
    %1506 = vmatprep.subr.mxu0 0.0
    %1507 = vmatpush1.xpose.msra.mxu0 0.0
    %1508 = vmatprep.subr.mxu0 0.0
    %1509 = vmatpush1.xpose.msra.mxu0 0.0
    %1510 = vmatprep.subr.mxu0 0.0
    %1511 = vmatpush1.xpose.msra.mxu0 0.0
    %1512 = vmatprep.subr.mxu0 0.0
    %1513 = vmatpush1.xpose.msra.mxu0 0.0
    %1514 = vmatprep.mubr.f32.mxu0 0.0
    %1515 = vmatmul.mubr.f32.gmra.mrb[0].mxu0 %v1445
    %v1516 = vpop.f32.mrb[0].mxu0
    %v1517 = vadd.f32 0.0, %v1516
    %v1518 = vpop.f32.mrb[0].mxu0
    %1519 = vdwg.mxu0
    %v1521 = vsel %vm299, %v1309, 0
    %v1524 = vsel %vm299, %v1375, 0
    %1526 = vmatprep.subr.mxu0 0.0
    %1527 = vmatpush1.xpose.msra.mxu0 %v1524
    %1528 = vmatprep.subr.mxu0 0.0
    %1529 = vmatpush1.xpose.msra.mxu0 0.0
    %1530 = vmatprep.subr.mxu0 0.0
    %1531 = vmatpush1.xpose.msra.mxu0 0.0
    %1532 = vmatprep.subr.mxu0 0.0
    %1533 = vmatpush1.xpose.msra.mxu0 0.0
    %1534 = vmatprep.subr.mxu0 0.0
    %1535 = vmatpush1.xpose.msra.mxu0 0.0
    %1536 = vmatprep.subr.mxu0 0.0
    %1537 = vmatpush1.xpose.msra.mxu0 0.0
    %1538 = vmatprep.subr.mxu0 0.0
    %1539 = vmatpush1.xpose.msra.mxu0 0.0
    %1540 = vmatprep.subr.mxu0 0.0
    %1541 = vmatpush1.xpose.msra.mxu0 0.0
    %1542 = vmatprep.subr.mxu0 0.0
    %1543 = vmatpush1.xpose.msra.mxu0 0.0
    %1544 = vmatprep.subr.mxu0 0.0
    %1545 = vmatpush1.xpose.msra.mxu0 0.0
    %1546 = vmatprep.subr.mxu0 0.0
    %1547 = vmatpush1.xpose.msra.mxu0 0.0
    %1548 = vmatprep.subr.mxu0 0.0
    %1549 = vmatpush1.xpose.msra.mxu0 0.0
    %1550 = vmatprep.subr.mxu0 0.0
    %1551 = vmatpush1.xpose.msra.mxu0 0.0
    %1552 = vmatprep.subr.mxu0 0.0
    %1553 = vmatpush1.xpose.msra.mxu0 0.0
    %1554 = vmatprep.subr.mxu0 0.0
    %1555 = vmatpush1.xpose.msra.mxu0 0.0
    %1556 = vmatprep.subr.mxu0 0.0
    %1557 = vmatpush1.xpose.msra.mxu0 0.0
    %1558 = vmatprep.subr.mxu0 0.0
    %1559 = vmatpush1.xpose.msra.mxu0 0.0
    %1560 = vmatprep.subr.mxu0 0.0
    %1561 = vmatpush1.xpose.msra.mxu0 0.0
    %1562 = vmatprep.subr.mxu0 0.0
    %1563 = vmatpush1.xpose.msra.mxu0 0.0
    %1564 = vmatprep.subr.mxu0 0.0
    %1565 = vmatpush1.xpose.msra.mxu0 0.0
    %1566 = vmatprep.subr.mxu0 0.0
    %1567 = vmatpush1.xpose.msra.mxu0 0.0
    %1568 = vmatprep.subr.mxu0 0.0
    %1569 = vmatpush1.xpose.msra.mxu0 0.0
    %1570 = vmatprep.subr.mxu0 0.0
    %1571 = vmatpush1.xpose.msra.mxu0 0.0
    %1572 = vmatprep.subr.mxu0 0.0
    %1573 = vmatpush1.xpose.msra.mxu0 0.0
    %1574 = vmatprep.subr.mxu0 0.0
    %1575 = vmatpush1.xpose.msra.mxu0 0.0
    %1576 = vmatprep.subr.mxu0 0.0
    %1577 = vmatpush1.xpose.msra.mxu0 0.0
    %1578 = vmatprep.subr.mxu0 0.0
    %1579 = vmatpush1.xpose.msra.mxu0 0.0
    %1580 = vmatprep.subr.mxu0 0.0
    %1581 = vmatpush1.xpose.msra.mxu0 0.0
    %1582 = vmatprep.subr.mxu0 0.0
    %1583 = vmatpush1.xpose.msra.mxu0 0.0
    %1584 = vmatprep.subr.mxu0 0.0
    %1585 = vmatpush1.xpose.msra.mxu0 0.0
    %1586 = vmatprep.subr.mxu0 0.0
    %1587 = vmatpush1.xpose.msra.mxu0 0.0
    %1588 = vmatprep.subr.mxu0 0.0
    %1589 = vmatpush1.xpose.msra.mxu0 0.0
    %1590 = vmatprep.mubr.f32.mxu0 0.0
    %1591 = vmatmul.mubr.f32.gmra.mrb[0].mxu0 %v1521
    %v1592 = vpop.f32.mrb[0].mxu0
    %v1593 = vadd.f32 0.0, %v1592
    %v1594 = vpop.f32.mrb[0].mxu0
    %1595 = vdwg.mxu0
    %v1596 = vmul.f32 %v1517, 0.35355338
    %v1597 = vmul.f32 %v1593, 0.35355338
    %v1598 = vadd.f32 %v1596, %v46
    %v1599 = vadd.f32 %v1597, %v47
    %v1600 = vsel %vm299, %v1598, -inf
    %1601 = vmax.xlane.f32.xlu0 %v1600
    %v1602 = vpop.xlane.xlu0 %1601
    %v1603 = vsel %vm299, %v1599, -inf
    %1604 = vmax.xlane.f32.xlu0 %v1603
    %v1605 = vpop.xlane.xlu0 %1604
    %v1606 = vsub.f32 %v1598, %v1602
    %v1607 = vsub.f32 %v1599, %v1605
    %v1608 = vmul.f32 %v1606, 1.442695
    %v1609 = vpow.pop %v1608
    %v1610 = vmul.f32 %v1607, 1.442695
    %v1611 = vpow.pop %v1610
    %v1612 = vsel %vm299, %v1609, 0.0
    %1613 = vadd.xlane.f32.xlu0 %v1612
    %v1614 = vpop.xlane.xlu0 %1613
    %v1615 = vsel %vm299, %v1611, 0.0
    %1616 = vadd.xlane.f32.xlu0 %v1615
    %v1617 = vpop.xlane.xlu0 %1616
    %v1618 = vrcp.pop %v1614
    %v1619 = vrcp.pop %v1617
    %v1620 = vmul.f32 %v1609, %v1618
    %v1621 = vmul.f32 %v1611, %v1619
    %v1623 = vsel %vm299, %v1620, 0
    %1625 = vmatprep.subr.mxu0 0.0
    %1626 = vmatpush1.msra.mxu0 %v1438
    %1627 = vmatprep.subr.mxu0 0.0
    %1628 = vmatpush1.msra.mxu0 0.0
    %1629 = vmatprep.subr.mxu0 0.0
    %1630 = vmatpush1.msra.mxu0 0.0
    %1631 = vmatprep.subr.mxu0 0.0
    %1632 = vmatpush1.msra.mxu0 0.0
    %1633 = vmatprep.subr.mxu0 0.0
    %1634 = vmatpush1.msra.mxu0 0.0
    %1635 = vmatprep.subr.mxu0 0.0
    %1636 = vmatpush1.msra.mxu0 0.0
    %1637 = vmatprep.subr.mxu0 0.0
    %1638 = vmatpush1.msra.mxu0 0.0
    %1639 = vmatprep.subr.mxu0 0.0
    %1640 = vmatpush1.msra.mxu0 0.0
    %1641 = vmatprep.subr.mxu0 0.0
    %1642 = vmatpush1.msra.mxu0 0.0
    %1643 = vmatprep.subr.mxu0 0.0
    %1644 = vmatpush1.msra.mxu0 0.0
    %1645 = vmatprep.subr.mxu0 0.0
    %1646 = vmatpush1.msra.mxu0 0.0
    %1647 = vmatprep.subr.mxu0 0.0
    %1648 = vmatpush1.msra.mxu0 0.0
    %1649 = vmatprep.subr.mxu0 0.0
    %1650 = vmatpush1.msra.mxu0 0.0
    %1651 = vmatprep.subr.mxu0 0.0
    %1652 = vmatpush1.msra.mxu0 0.0
    %1653 = vmatprep.subr.mxu0 0.0
    %1654 = vmatpush1.msra.mxu0 0.0
    %1655 = vmatprep.subr.mxu0 0.0
    %1656 = vmatpush1.msra.mxu0 0.0
    %1657 = vmatprep.subr.mxu0 0.0
    %1658 = vmatpush1.msra.mxu0 0.0
    %1659 = vmatprep.subr.mxu0 0.0
    %1660 = vmatpush1.msra.mxu0 0.0
    %1661 = vmatprep.subr.mxu0 0.0
    %1662 = vmatpush1.msra.mxu0 0.0
    %1663 = vmatprep.subr.mxu0 0.0
    %1664 = vmatpush1.msra.mxu0 0.0
    %1665 = vmatprep.subr.mxu0 0.0
    %1666 = vmatpush1.msra.mxu0 0.0
    %1667 = vmatprep.subr.mxu0 0.0
    %1668 = vmatpush1.msra.mxu0 0.0
    %1669 = vmatprep.subr.mxu0 0.0
    %1670 = vmatpush1.msra.mxu0 0.0
    %1671 = vmatprep.subr.mxu0 0.0
    %1672 = vmatpush1.msra.mxu0 0.0
    %1673 = vmatprep.subr.mxu0 0.0
    %1674 = vmatpush1.msra.mxu0 0.0
    %1675 = vmatprep.subr.mxu0 0.0
    %1676 = vmatpush1.msra.mxu0 0.0
    %1677 = vmatprep.subr.mxu0 0.0
    %1678 = vmatpush1.msra.mxu0 0.0
    %1679 = vmatprep.subr.mxu0 0.0
    %1680 = vmatpush1.msra.mxu0 0.0
    %1681 = vmatprep.subr.mxu0 0.0
    %1682 = vmatpush1.msra.mxu0 0.0
    %1683 = vmatprep.subr.mxu0 0.0
    %1684 = vmatpush1.msra.mxu0 0.0
    %1685 = vmatprep.subr.mxu0 0.0
    %1686 = vmatpush1.msra.mxu0 0.0
    %1687 = vmatprep.subr.mxu0 0.0
    %1688 = vmatpush1.msra.mxu0 0.0
    %1689 = vmatprep.mubr.f32.mxu0 0.0
    %1690 = vmatmul.mubr.f32.gmra.mrb[0].mxu0 %v1623
    %v1691 = vpop.f32.mrb[0].mxu0
    %v1692 = vadd.f32 0.0, %v1691
    %v1693 = vpop.f32.mrb[0].mxu0
    %1694 = vdwg.mxu0
    %v1696 = vsel %vm299, %v1621, 0
    %1698 = vmatprep.subr.mxu0 0.0
    %1699 = vmatpush1.msra.mxu0 %v1441
    %1700 = vmatprep.subr.mxu0 0.0
    %1701 = vmatpush1.msra.mxu0 0.0
    %1702 = vmatprep.subr.mxu0 0.0
    %1703 = vmatpush1.msra.mxu0 0.0
    %1704 = vmatprep.subr.mxu0 0.0
    %1705 = vmatpush1.msra.mxu0 0.0
    %1706 = vmatprep.subr.mxu0 0.0
    %1707 = vmatpush1.msra.mxu0 0.0
    %1708 = vmatprep.subr.mxu0 0.0
    %1709 = vmatpush1.msra.mxu0 0.0
    %1710 = vmatprep.subr.mxu0 0.0
    %1711 = vmatpush1.msra.mxu0 0.0
    %1712 = vmatprep.subr.mxu0 0.0
    %1713 = vmatpush1.msra.mxu0 0.0
    %1714 = vmatprep.subr.mxu0 0.0
    %1715 = vmatpush1.msra.mxu0 0.0
    %1716 = vmatprep.subr.mxu0 0.0
    %1717 = vmatpush1.msra.mxu0 0.0
    %1718 = vmatprep.subr.mxu0 0.0
    %1719 = vmatpush1.msra.mxu0 0.0
    %1720 = vmatprep.subr.mxu0 0.0
    %1721 = vmatpush1.msra.mxu0 0.0
    %1722 = vmatprep.subr.mxu0 0.0
    %1723 = vmatpush1.msra.mxu0 0.0
    %1724 = vmatprep.subr.mxu0 0.0
    %1725 = vmatpush1.msra.mxu0 0.0
    %1726 = vmatprep.subr.mxu0 0.0
    %1727 = vmatpush1.msra.mxu0 0.0
    %1728 = vmatprep.subr.mxu0 0.0
    %1729 = vmatpush1.msra.mxu0 0.0
    %1730 = vmatprep.subr.mxu0 0.0
    %1731 = vmatpush1.msra.mxu0 0.0
    %1732 = vmatprep.subr.mxu0 0.0
    %1733 = vmatpush1.msra.mxu0 0.0
    %1734 = vmatprep.subr.mxu0 0.0
    %1735 = vmatpush1.msra.mxu0 0.0
    %1736 = vmatprep.subr.mxu0 0.0
    %1737 = vmatpush1.msra.mxu0 0.0
    %1738 = vmatprep.subr.mxu0 0.0
    %1739 = vmatpush1.msra.mxu0 0.0
    %1740 = vmatprep.subr.mxu0 0.0
    %1741 = vmatpush1.msra.mxu0 0.0
    %1742 = vmatprep.subr.mxu0 0.0
    %1743 = vmatpush1.msra.mxu0 0.0
    %1744 = vmatprep.subr.mxu0 0.0
    %1745 = vmatpush1.msra.mxu0 0.0
    %1746 = vmatprep.subr.mxu0 0.0
    %1747 = vmatpush1.msra.mxu0 0.0
    %1748 = vmatprep.subr.mxu0 0.0
    %1749 = vmatpush1.msra.mxu0 0.0
    %1750 = vmatprep.subr.mxu0 0.0
    %1751 = vmatpush1.msra.mxu0 0.0
    %1752 = vmatprep.subr.mxu0 0.0
    %1753 = vmatpush1.msra.mxu0 0.0
    %1754 = vmatprep.subr.mxu0 0.0
    %1755 = vmatpush1.msra.mxu0 0.0
    %1756 = vmatprep.subr.mxu0 0.0
    %1757 = vmatpush1.msra.mxu0 0.0
    %1758 = vmatprep.subr.mxu0 0.0
    %1759 = vmatpush1.msra.mxu0 0.0
    %1760 = vmatprep.subr.mxu0 0.0
    %1761 = vmatpush1.msra.mxu0 0.0
    %1762 = vmatprep.mubr.f32.mxu0 0.0
    %1763 = vmatmul.mubr.f32.gmra.mrb[0].mxu0 %v1696
    %v1764 = vpop.f32.mrb[0].mxu0
    %v1765 = vadd.f32 0.0, %v1764
    %v1766 = vpop.f32.mrb[0].mxu0
    %1767 = vdwg.mxu0
    %v1768 = vpack.c.bf16 %v1765, %v1692
    %s1769 = scalar_lea.vmem %s5, 8
    %v1770 = vld [vmem:[%s1769] sm:$0xf]
    %v1772 = vsel %vm299, %v1768, 0
    %v1775 = vsel %vm1154, %v1770, 0
    %1777 = vmatprep.subr.bf16.mxu0 0
    %1778 = vmatpush1.bf16.msra.mxu0 %v1775
    %1779 = vmatprep.subr.bf16.mxu0 0
    %1780 = vmatpush1.bf16.msra.mxu0 0
    %1781 = vmatprep.subr.bf16.mxu0 0
    %1782 = vmatpush1.bf16.msra.mxu0 0
    %1783 = vmatprep.subr.bf16.mxu0 0
    %1784 = vmatpush1.bf16.msra.mxu0 0
    %1785 = vmatprep.subr.bf16.mxu0 0
    %1786 = vmatpush1.bf16.msra.mxu0 0
    %1787 = vmatprep.subr.bf16.mxu0 0
    %1788 = vmatpush1.bf16.msra.mxu0 0
    %1789 = vmatprep.subr.bf16.mxu0 0
    %1790 = vmatpush1.bf16.msra.mxu0 0
    %1791 = vmatprep.subr.bf16.mxu0 0
    %1792 = vmatpush1.bf16.msra.mxu0 0
    %1793 = vmatprep.subr.bf16.mxu0 0
    %1794 = vmatpush1.bf16.msra.mxu0 0
    %1795 = vmatprep.subr.bf16.mxu0 0
    %1796 = vmatpush1.bf16.msra.mxu0 0
    %1797 = vmatprep.subr.bf16.mxu0 0
    %1798 = vmatpush1.bf16.msra.mxu0 0
    %1799 = vmatprep.subr.bf16.mxu0 0
    %1800 = vmatpush1.bf16.msra.mxu0 0
    %1801 = vmatprep.subr.bf16.mxu0 0
    %1802 = vmatpush1.bf16.msra.mxu0 0
    %1803 = vmatprep.subr.bf16.mxu0 0
    %1804 = vmatpush1.bf16.msra.mxu0 0
    %1805 = vmatprep.subr.bf16.mxu0 0
    %1806 = vmatpush1.bf16.msra.mxu0 0
    %1807 = vmatprep.subr.bf16.mxu0 0
    %1808 = vmatpush1.bf16.msra.mxu0 0
    %1809 = vmatprep.mubr.bf16.mxu0 0
    %1810 = vmatmul.mubr.bf16.gmra.mrb[0].mxu0 %v1772
    %v1811 = vpop.f32.mrb[0].mxu0
    %v1812 = vadd.f32 0.0, %v1811
    %v1813 = vpop.f32.mrb[0].mxu0
    %v1814 = vpop.f32.mrb[0].mxu0
    %v1815 = vadd.f32 0.0, %v1814
    %v1816 = vpop.f32.mrb[0].mxu0
    %1817 = vdwg.mxu0
    %v1818 = vadd.f32 %v1240, %v1812
    %v1819 = vadd.f32 %v1243, %v1815
    %s1820 = scalar_lea.vmem %s3, 48
    %v1821 = vld [vmem:[%s1820] sm:$0xf]
    %v1822 = vld [vmem:[%s1820 + $0x4] sm:$0xf]
    %v1823 = vld [vmem:[%s1820 + $0x8] sm:$0xf]
    %v1824 = vld [vmem:[%s1820 + $0xc] sm:$0xf]
    %s1825 = scalar_lea.vmem %s4, 3
    %v1826 = vld [vmem:[%s1825] sm:$0x1]
    %v1828 = vlaneseq
    %v1829 = vshrl.u32 %v1828, 7
    %v1830 = vsub.s32 0, %v1829
    %v1831 = vrot.slane %v1826, %v1830
    %v1837 = vunpack.c.l.b16 %v1821
    %v1838 = vunpack.c.l.b16 %v1822
    %v1839 = vunpack.c.l.b16 %v1823
    %v1840 = vunpack.c.l.b16 %v1824
    %v1841 = vpack.c.b16 %v1838, %v1837
    %v1842 = vpack.c.b16 %v1840, %v1839
    %1845 = vmatprep.subr.bf16.mxu0 0
    %1846 = vmatpush1.bf16.msra.mxu0 %v1841
    %1847 = vmatprep.subr.bf16.mxu0 0
    %1848 = vmatpush1.bf16.msra.mxu0 %v1842
    %1849 = vmatprep.subr.bf16.mxu0 0
    %1850 = vmatpush1.bf16.msra.mxu0 0
    %1851 = vmatprep.subr.bf16.mxu0 0
    %1852 = vmatpush1.bf16.msra.mxu0 0
    %1853 = vmatprep.subr.bf16.mxu0 0
    %1854 = vmatpush1.bf16.msra.mxu0 0
    %1855 = vmatprep.subr.bf16.mxu0 0
    %1856 = vmatpush1.bf16.msra.mxu0 0
    %1857 = vmatprep.subr.bf16.mxu0 0
    %1858 = vmatpush1.bf16.msra.mxu0 0
    %1859 = vmatprep.subr.bf16.mxu0 0
    %1860 = vmatpush1.bf16.msra.mxu0 0
    %1861 = vmatprep.subr.bf16.mxu0 0
    %1862 = vmatpush1.bf16.msra.mxu0 0
    %1863 = vmatprep.subr.bf16.mxu0 0
    %1864 = vmatpush1.bf16.msra.mxu0 0
    %1865 = vmatprep.subr.bf16.mxu0 0
    %1866 = vmatpush1.bf16.msra.mxu0 0
    %1867 = vmatprep.subr.bf16.mxu0 0
    %1868 = vmatpush1.bf16.msra.mxu0 0
    %1869 = vmatprep.subr.bf16.mxu0 0
    %1870 = vmatpush1.bf16.msra.mxu0 0
    %1871 = vmatprep.subr.bf16.mxu0 0
    %1872 = vmatpush1.bf16.msra.mxu0 0
    %1873 = vmatprep.subr.bf16.mxu0 0
    %1874 = vmatpush1.bf16.msra.mxu0 0
    %1875 = vmatprep.subr.bf16.mxu0 0
    %1876 = vmatpush1.bf16.msra.mxu0 0
    %1877 = vmatprep.mubr.bf16.mxu0 0
    %1878 = vmatmul.mubr.bf16.gmra.mrb[0].mxu0 %v124
    %v1879 = vpop.f32.mrb[0].mxu0
    %v1880 = vadd.f32 %v1831, %v1879
    %v1881 = vpop.f32.mrb[0].mxu0
    %v1882 = vpop.f32.mrb[0].mxu0
    %v1883 = vadd.f32 %v1831, %v1882
    %v1884 = vpop.f32.mrb[0].mxu0
    %1885 = vdwg.mxu0
    %s1886 = scalar_lea.vmem %s3, 112
    %v1887 = vld [vmem:[%s1886] sm:$0xf]
    %v1888 = vld [vmem:[%s1886 + $0x4] sm:$0xf]
    %v1889 = vld [vmem:[%s1886 + $0x8] sm:$0xf]
    %v1890 = vld [vmem:[%s1886 + $0xc] sm:$0xf]
    %s1891 = scalar_lea.vmem %s4, 7
    %v1892 = vld [vmem:[%s1891] sm:$0x1]
    %v1894 = vlaneseq
    %v1895 = vshrl.u32 %v1894, 7
    %v1896 = vsub.s32 0, %v1895
    %v1897 = vrot.slane %v1892, %v1896
    %v1903 = vunpack.c.l.b16 %v1887
    %v1904 = vunpack.c.l.b16 %v1888
    %v1905 = vunpack.c.l.b16 %v1889
    %v1906 = vunpack.c.l.b16 %v1890
    %v1907 = vpack.c.b16 %v1904, %v1903
    %v1908 = vpack.c.b16 %v1906, %v1905
    %1911 = vmatprep.subr.bf16.mxu0 0
    %1912 = vmatpush1.bf16.msra.mxu0 %v1907
    %1913 = vmatprep.subr.bf16.mxu0 0
    %1914 = vmatpush1.bf16.msra.mxu0 %v1908
    %1915 = vmatprep.subr.bf16.mxu0 0
    %1916 = vmatpush1.bf16.msra.mxu0 0
    %1917 = vmatprep.subr.bf16.mxu0 0
    %1918 = vmatpush1.bf16.msra.mxu0 0
    %1919 = vmatprep.subr.bf16.mxu0 0
    %1920 = vmatpush1.bf16.msra.mxu0 0
    %1921 = vmatprep.subr.bf16.mxu0 0
    %1922 = vmatpush1.bf16.msra.mxu0 0
    %1923 = vmatprep.subr.bf16.mxu0 0
    %1924 = vmatpush1.bf16.msra.mxu0 0
    %1925 = vmatprep.subr.bf16.mxu0 0
    %1926 = vmatpush1.bf16.msra.mxu0 0
    %1927 = vmatprep.subr.bf16.mxu0 0
    %1928 = vmatpush1.bf16.msra.mxu0 0
    %1929 = vmatprep.subr.bf16.mxu0 0
    %1930 = vmatpush1.bf16.msra.mxu0 0
    %1931 = vmatprep.subr.bf16.mxu0 0
    %1932 = vmatpush1.bf16.msra.mxu0 0
    %1933 = vmatprep.subr.bf16.mxu0 0
    %1934 = vmatpush1.bf16.msra.mxu0 0
    %1935 = vmatprep.subr.bf16.mxu0 0
    %1936 = vmatpush1.bf16.msra.mxu0 0
    %1937 = vmatprep.subr.bf16.mxu0 0
    %1938 = vmatpush1.bf16.msra.mxu0 0
    %1939 = vmatprep.subr.bf16.mxu0 0
    %1940 = vmatpush1.bf16.msra.mxu0 0
    %1941 = vmatprep.subr.bf16.mxu0 0
    %1942 = vmatpush1.bf16.msra.mxu0 0
    %1943 = vmatprep.mubr.bf16.mxu0 0
    %1944 = vmatmul.mubr.bf16.gmra.mrb[0].mxu0 %v124
    %v1945 = vpop.f32.mrb[0].mxu0
    %v1946 = vadd.f32 %v1897, %v1945
    %v1947 = vpop.f32.mrb[0].mxu0
    %v1948 = vpop.f32.mrb[0].mxu0
    %v1949 = vadd.f32 %v1897, %v1948
    %v1950 = vpop.f32.mrb[0].mxu0
    %1951 = vdwg.mxu0
    %s1952 = scalar_lea.vmem %s3, 176
    %v1953 = vld [vmem:[%s1952] sm:$0xf]
    %v1954 = vld [vmem:[%s1952 + $0x4] sm:$0xf]
    %v1955 = vld [vmem:[%s1952 + $0x8] sm:$0xf]
    %v1956 = vld [vmem:[%s1952 + $0xc] sm:$0xf]
    %s1957 = scalar_lea.vmem %s4, 11
    %v1958 = vld [vmem:[%s1957] sm:$0x1]
    %v1960 = vlaneseq
    %v1961 = vshrl.u32 %v1960, 7
    %v1962 = vsub.s32 0, %v1961
    %v1963 = vrot.slane %v1958, %v1962
    %v1969 = vunpack.c.l.b16 %v1953
    %v1970 = vunpack.c.l.b16 %v1954
    %v1971 = vunpack.c.l.b16 %v1955
    %v1972 = vunpack.c.l.b16 %v1956
    %v1973 = vpack.c.b16 %v1970, %v1969
    %v1974 = vpack.c.b16 %v1972, %v1971
    %1977 = vmatprep.subr.bf16.mxu0 0
    %1978 = vmatpush1.bf16.msra.mxu0 %v1973
    %1979 = vmatprep.subr.bf16.mxu0 0
    %1980 = vmatpush1.bf16.msra.mxu0 %v1974
    %1981 = vmatprep.subr.bf16.mxu0 0
    %1982 = vmatpush1.bf16.msra.mxu0 0
    %1983 = vmatprep.subr.bf16.mxu0 0
    %1984 = vmatpush1.bf16.msra.mxu0 0
    %1985 = vmatprep.subr.bf16.mxu0 0
    %1986 = vmatpush1.bf16.msra.mxu0 0
    %1987 = vmatprep.subr.bf16.mxu0 0
    %1988 = vmatpush1.bf16.msra.mxu0 0
    %1989 = vmatprep.subr.bf16.mxu0 0
    %1990 = vmatpush1.bf16.msra.mxu0 0
    %1991 = vmatprep.subr.bf16.mxu0 0
    %1992 = vmatpush1.bf16.msra.mxu0 0
    %1993 = vmatprep.subr.bf16.mxu0 0
    %1994 = vmatpush1.bf16.msra.mxu0 0
    %1995 = vmatprep.subr.bf16.mxu0 0
    %1996 = vmatpush1.bf16.msra.mxu0 0
    %1997 = vmatprep.subr.bf16.mxu0 0
    %1998 = vmatpush1.bf16.msra.mxu0 0
    %1999 = vmatprep.subr.bf16.mxu0 0
    %2000 = vmatpush1.bf16.msra.mxu0 0
    %2001 = vmatprep.subr.bf16.mxu0 0
    %2002 = vmatpush1.bf16.msra.mxu0 0
    %2003 = vmatprep.subr.bf16.mxu0 0
    %2004 = vmatpush1.bf16.msra.mxu0 0
    %2005 = vmatprep.subr.bf16.mxu0 0
    %2006 = vmatpush1.bf16.msra.mxu0 0
    %2007 = vmatprep.subr.bf16.mxu0 0
    %2008 = vmatpush1.bf16.msra.mxu0 0
    %2009 = vmatprep.mubr.bf16.mxu0 0
    %2010 = vmatmul.mubr.bf16.gmra.mrb[0].mxu0 %v124
    %v2011 = vpop.f32.mrb[0].mxu0
    %v2012 = vadd.f32 %v1963, %v2011
    %v2013 = vpop.f32.mrb[0].mxu0
    %v2014 = vpop.f32.mrb[0].mxu0
    %v2015 = vadd.f32 %v1963, %v2014
    %v2016 = vpop.f32.mrb[0].mxu0
    %2017 = vdwg.mxu0
    %v2019 = vsel %vm299, %v1880, 0
    %v2022 = vsel %vm299, %v1946, 0
    %2024 = vmatprep.subr.mxu0 0.0
    %2025 = vmatpush1.xpose.msra.mxu0 %v2022
    %2026 = vmatprep.subr.mxu0 0.0
    %2027 = vmatpush1.xpose.msra.mxu0 0.0
    %2028 = vmatprep.subr.mxu0 0.0
    %2029 = vmatpush1.xpose.msra.mxu0 0.0
    %2030 = vmatprep.subr.mxu0 0.0
    %2031 = vmatpush1.xpose.msra.mxu0 0.0
    %2032 = vmatprep.subr.mxu0 0.0
    %2033 = vmatpush1.xpose.msra.mxu0 0.0
    %2034 = vmatprep.subr.mxu0 0.0
    %2035 = vmatpush1.xpose.msra.mxu0 0.0
    %2036 = vmatprep.subr.mxu0 0.0
    %2037 = vmatpush1.xpose.msra.mxu0 0.0
    %2038 = vmatprep.subr.mxu0 0.0
    %2039 = vmatpush1.xpose.msra.mxu0 0.0
    %2040 = vmatprep.subr.mxu0 0.0
    %2041 = vmatpush1.xpose.msra.mxu0 0.0
    %2042 = vmatprep.subr.mxu0 0.0
    %2043 = vmatpush1.xpose.msra.mxu0 0.0
    %2044 = vmatprep.subr.mxu0 0.0
    %2045 = vmatpush1.xpose.msra.mxu0 0.0
    %2046 = vmatprep.subr.mxu0 0.0
    %2047 = vmatpush1.xpose.msra.mxu0 0.0
    %2048 = vmatprep.subr.mxu0 0.0
    %2049 = vmatpush1.xpose.msra.mxu0 0.0
    %2050 = vmatprep.subr.mxu0 0.0
    %2051 = vmatpush1.xpose.msra.mxu0 0.0
    %2052 = vmatprep.subr.mxu0 0.0
    %2053 = vmatpush1.xpose.msra.mxu0 0.0
    %2054 = vmatprep.subr.mxu0 0.0
    %2055 = vmatpush1.xpose.msra.mxu0 0.0
    %2056 = vmatprep.subr.mxu0 0.0
    %2057 = vmatpush1.xpose.msra.mxu0 0.0
    %2058 = vmatprep.subr.mxu0 0.0
    %2059 = vmatpush1.xpose.msra.mxu0 0.0
    %2060 = vmatprep.subr.mxu0 0.0
    %2061 = vmatpush1.xpose.msra.mxu0 0.0
    %2062 = vmatprep.subr.mxu0 0.0
    %2063 = vmatpush1.xpose.msra.mxu0 0.0
    %2064 = vmatprep.subr.mxu0 0.0
    %2065 = vmatpush1.xpose.msra.mxu0 0.0
    %2066 = vmatprep.subr.mxu0 0.0
    %2067 = vmatpush1.xpose.msra.mxu0 0.0
    %2068 = vmatprep.subr.mxu0 0.0
    %2069 = vmatpush1.xpose.msra.mxu0 0.0
    %2070 = vmatprep.subr.mxu0 0.0
    %2071 = vmatpush1.xpose.msra.mxu0 0.0
    %2072 = vmatprep.subr.mxu0 0.0
    %2073 = vmatpush1.xpose.msra.mxu0 0.0
    %2074 = vmatprep.subr.mxu0 0.0
    %2075 = vmatpush1.xpose.msra.mxu0 0.0
    %2076 = vmatprep.subr.mxu0 0.0
    %2077 = vmatpush1.xpose.msra.mxu0 0.0
    %2078 = vmatprep.subr.mxu0 0.0
    %2079 = vmatpush1.xpose.msra.mxu0 0.0
    %2080 = vmatprep.subr.mxu0 0.0
    %2081 = vmatpush1.xpose.msra.mxu0 0.0
    %2082 = vmatprep.subr.mxu0 0.0
    %2083 = vmatpush1.xpose.msra.mxu0 0.0
    %2084 = vmatprep.subr.mxu0 0.0
    %2085 = vmatpush1.xpose.msra.mxu0 0.0
    %2086 = vmatprep.subr.mxu0 0.0
    %2087 = vmatpush1.xpose.msra.mxu0 0.0
    %2088 = vmatprep.mubr.f32.mxu0 0.0
    %2089 = vmatmul.mubr.f32.gmra.mrb[0].mxu0 %v2019
    %v2090 = vpop.f32.mrb[0].mxu0
    %v2091 = vadd.f32 0.0, %v2090
    %v2092 = vpop.f32.mrb[0].mxu0
    %2093 = vdwg.mxu0
    %v2095 = vsel %vm299, %v1883, 0
    %v2098 = vsel %vm299, %v1949, 0
    %2100 = vmatprep.subr.mxu0 0.0
    %2101 = vmatpush1.xpose.msra.mxu0 %v2098
    %2102 = vmatprep.subr.mxu0 0.0
    %2103 = vmatpush1.xpose.msra.mxu0 0.0
    %2104 = vmatprep.subr.mxu0 0.0
    %2105 = vmatpush1.xpose.msra.mxu0 0.0
    %2106 = vmatprep.subr.mxu0 0.0
    %2107 = vmatpush1.xpose.msra.mxu0 0.0
    %2108 = vmatprep.subr.mxu0 0.0
    %2109 = vmatpush1.xpose.msra.mxu0 0.0
    %2110 = vmatprep.subr.mxu0 0.0
    %2111 = vmatpush1.xpose.msra.mxu0 0.0
    %2112 = vmatprep.subr.mxu0 0.0
    %2113 = vmatpush1.xpose.msra.mxu0 0.0
    %2114 = vmatprep.subr.mxu0 0.0
    %2115 = vmatpush1.xpose.msra.mxu0 0.0
    %2116 = vmatprep.subr.mxu0 0.0
    %2117 = vmatpush1.xpose.msra.mxu0 0.0
    %2118 = vmatprep.subr.mxu0 0.0
    %2119 = vmatpush1.xpose.msra.mxu0 0.0
    %2120 = vmatprep.subr.mxu0 0.0
    %2121 = vmatpush1.xpose.msra.mxu0 0.0
    %2122 = vmatprep.subr.mxu0 0.0
    %2123 = vmatpush1.xpose.msra.mxu0 0.0
    %2124 = vmatprep.subr.mxu0 0.0
    %2125 = vmatpush1.xpose.msra.mxu0 0.0
    %2126 = vmatprep.subr.mxu0 0.0
    %2127 = vmatpush1.xpose.msra.mxu0 0.0
    %2128 = vmatprep.subr.mxu0 0.0
    %2129 = vmatpush1.xpose.msra.mxu0 0.0
    %2130 = vmatprep.subr.mxu0 0.0
    %2131 = vmatpush1.xpose.msra.mxu0 0.0
    %2132 = vmatprep.subr.mxu0 0.0
    %2133 = vmatpush1.xpose.msra.mxu0 0.0
    %2134 = vmatprep.subr.mxu0 0.0
    %2135 = vmatpush1.xpose.msra.mxu0 0.0
    %2136 = vmatprep.subr.mxu0 0.0
    %2137 = vmatpush1.xpose.msra.mxu0 0.0
    %2138 = vmatprep.subr.mxu0 0.0
    %2139 = vmatpush1.xpose.msra.mxu0 0.0
    %2140 = vmatprep.subr.mxu0 0.0
    %2141 = vmatpush1.xpose.msra.mxu0 0.0
    %2142 = vmatprep.subr.mxu0 0.0
    %2143 = vmatpush1.xpose.msra.mxu0 0.0
    %2144 = vmatprep.subr.mxu0 0.0
    %2145 = vmatpush1.xpose.msra.mxu0 0.0
    %2146 = vmatprep.subr.mxu0 0.0
    %2147 = vmatpush1.xpose.msra.mxu0 0.0
    %2148 = vmatprep.subr.mxu0 0.0
    %2149 = vmatpush1.xpose.msra.mxu0 0.0
    %2150 = vmatprep.subr.mxu0 0.0
    %2151 = vmatpush1.xpose.msra.mxu0 0.0
    %2152 = vmatprep.subr.mxu0 0.0
    %2153 = vmatpush1.xpose.msra.mxu0 0.0
    %2154 = vmatprep.subr.mxu0 0.0
    %2155 = vmatpush1.xpose.msra.mxu0 0.0
    %2156 = vmatprep.subr.mxu0 0.0
    %2157 = vmatpush1.xpose.msra.mxu0 0.0
    %2158 = vmatprep.subr.mxu0 0.0
    %2159 = vmatpush1.xpose.msra.mxu0 0.0
    %2160 = vmatprep.subr.mxu0 0.0
    %2161 = vmatpush1.xpose.msra.mxu0 0.0
    %2162 = vmatprep.subr.mxu0 0.0
    %2163 = vmatpush1.xpose.msra.mxu0 0.0
    %2164 = vmatprep.mubr.f32.mxu0 0.0
    %2165 = vmatmul.mubr.f32.gmra.mrb[0].mxu0 %v2095
    %v2166 = vpop.f32.mrb[0].mxu0
    %v2167 = vadd.f32 0.0, %v2166
    %v2168 = vpop.f32.mrb[0].mxu0
    %2169 = vdwg.mxu0
    %v2170 = vmul.f32 %v2091, 0.35355338
    %v2171 = vmul.f32 %v2167, 0.35355338
    %v2172 = vadd.f32 %v2170, %v46
    %v2173 = vadd.f32 %v2171, %v47
    %v2174 = vsel %vm299, %v2172, -inf
    %2175 = vmax.xlane.f32.xlu0 %v2174
    %v2176 = vpop.xlane.xlu0 %2175
    %v2177 = vsel %vm299, %v2173, -inf
    %2178 = vmax.xlane.f32.xlu0 %v2177
    %v2179 = vpop.xlane.xlu0 %2178
    %v2180 = vsub.f32 %v2172, %v2176
    %v2181 = vsub.f32 %v2173, %v2179
    %v2182 = vmul.f32 %v2180, 1.442695
    %v2183 = vpow.pop %v2182
    %v2184 = vmul.f32 %v2181, 1.442695
    %v2185 = vpow.pop %v2184
    %v2186 = vsel %vm299, %v2183, 0.0
    %2187 = vadd.xlane.f32.xlu0 %v2186
    %v2188 = vpop.xlane.xlu0 %2187
    %v2189 = vsel %vm299, %v2185, 0.0
    %2190 = vadd.xlane.f32.xlu0 %v2189
    %v2191 = vpop.xlane.xlu0 %2190
    %v2192 = vrcp.pop %v2188
    %v2193 = vrcp.pop %v2191
    %v2194 = vmul.f32 %v2183, %v2192
    %v2195 = vmul.f32 %v2185, %v2193
    %v2197 = vsel %vm299, %v2194, 0
    %2199 = vmatprep.subr.mxu0 0.0
    %2200 = vmatpush1.msra.mxu0 %v2012
    %2201 = vmatprep.subr.mxu0 0.0
    %2202 = vmatpush1.msra.mxu0 0.0
    %2203 = vmatprep.subr.mxu0 0.0
    %2204 = vmatpush1.msra.mxu0 0.0
    %2205 = vmatprep.subr.mxu0 0.0
    %2206 = vmatpush1.msra.mxu0 0.0
    %2207 = vmatprep.subr.mxu0 0.0
    %2208 = vmatpush1.msra.mxu0 0.0
    %2209 = vmatprep.subr.mxu0 0.0
    %2210 = vmatpush1.msra.mxu0 0.0
    %2211 = vmatprep.subr.mxu0 0.0
    %2212 = vmatpush1.msra.mxu0 0.0
    %2213 = vmatprep.subr.mxu0 0.0
    %2214 = vmatpush1.msra.mxu0 0.0
    %2215 = vmatprep.subr.mxu0 0.0
    %2216 = vmatpush1.msra.mxu0 0.0
    %2217 = vmatprep.subr.mxu0 0.0
    %2218 = vmatpush1.msra.mxu0 0.0
    %2219 = vmatprep.subr.mxu0 0.0
    %2220 = vmatpush1.msra.mxu0 0.0
    %2221 = vmatprep.subr.mxu0 0.0
    %2222 = vmatpush1.msra.mxu0 0.0
    %2223 = vmatprep.subr.mxu0 0.0
    %2224 = vmatpush1.msra.mxu0 0.0
    %2225 = vmatprep.subr.mxu0 0.0
    %2226 = vmatpush1.msra.mxu0 0.0
    %2227 = vmatprep.subr.mxu0 0.0
    %2228 = vmatpush1.msra.mxu0 0.0
    %2229 = vmatprep.subr.mxu0 0.0
    %2230 = vmatpush1.msra.mxu0 0.0
    %2231 = vmatprep.subr.mxu0 0.0
    %2232 = vmatpush1.msra.mxu0 0.0
    %2233 = vmatprep.subr.mxu0 0.0
    %2234 = vmatpush1.msra.mxu0 0.0
    %2235 = vmatprep.subr.mxu0 0.0
    %2236 = vmatpush1.msra.mxu0 0.0
    %2237 = vmatprep.subr.mxu0 0.0
    %2238 = vmatpush1.msra.mxu0 0.0
    %2239 = vmatprep.subr.mxu0 0.0
    %2240 = vmatpush1.msra.mxu0 0.0
    %2241 = vmatprep.subr.mxu0 0.0
    %2242 = vmatpush1.msra.mxu0 0.0
    %2243 = vmatprep.subr.mxu0 0.0
    %2244 = vmatpush1.msra.mxu0 0.0
    %2245 = vmatprep.subr.mxu0 0.0
    %2246 = vmatpush1.msra.mxu0 0.0
    %2247 = vmatprep.subr.mxu0 0.0
    %2248 = vmatpush1.msra.mxu0 0.0
    %2249 = vmatprep.subr.mxu0 0.0
    %2250 = vmatpush1.msra.mxu0 0.0
    %2251 = vmatprep.subr.mxu0 0.0
    %2252 = vmatpush1.msra.mxu0 0.0
    %2253 = vmatprep.subr.mxu0 0.0
    %2254 = vmatpush1.msra.mxu0 0.0
    %2255 = vmatprep.subr.mxu0 0.0
    %2256 = vmatpush1.msra.mxu0 0.0
    %2257 = vmatprep.subr.mxu0 0.0
    %2258 = vmatpush1.msra.mxu0 0.0
    %2259 = vmatprep.subr.mxu0 0.0
    %2260 = vmatpush1.msra.mxu0 0.0
    %2261 = vmatprep.subr.mxu0 0.0
    %2262 = vmatpush1.msra.mxu0 0.0
    %2263 = vmatprep.mubr.f32.mxu0 0.0
    %2264 = vmatmul.mubr.f32.gmra.mrb[0].mxu0 %v2197
    %v2265 = vpop.f32.mrb[0].mxu0
    %v2266 = vadd.f32 0.0, %v2265
    %v2267 = vpop.f32.mrb[0].mxu0
    %2268 = vdwg.mxu0
    %v2270 = vsel %vm299, %v2195, 0
    %2272 = vmatprep.subr.mxu0 0.0
    %2273 = vmatpush1.msra.mxu0 %v2015
    %2274 = vmatprep.subr.mxu0 0.0
    %2275 = vmatpush1.msra.mxu0 0.0
    %2276 = vmatprep.subr.mxu0 0.0
    %2277 = vmatpush1.msra.mxu0 0.0
    %2278 = vmatprep.subr.mxu0 0.0
    %2279 = vmatpush1.msra.mxu0 0.0
    %2280 = vmatprep.subr.mxu0 0.0
    %2281 = vmatpush1.msra.mxu0 0.0
    %2282 = vmatprep.subr.mxu0 0.0
    %2283 = vmatpush1.msra.mxu0 0.0
    %2284 = vmatprep.subr.mxu0 0.0
    %2285 = vmatpush1.msra.mxu0 0.0
    %2286 = vmatprep.subr.mxu0 0.0
    %2287 = vmatpush1.msra.mxu0 0.0
    %2288 = vmatprep.subr.mxu0 0.0
    %2289 = vmatpush1.msra.mxu0 0.0
    %2290 = vmatprep.subr.mxu0 0.0
    %2291 = vmatpush1.msra.mxu0 0.0
    %2292 = vmatprep.subr.mxu0 0.0
    %2293 = vmatpush1.msra.mxu0 0.0
    %2294 = vmatprep.subr.mxu0 0.0
    %2295 = vmatpush1.msra.mxu0 0.0
    %2296 = vmatprep.subr.mxu0 0.0
    %2297 = vmatpush1.msra.mxu0 0.0
    %2298 = vmatprep.subr.mxu0 0.0
    %2299 = vmatpush1.msra.mxu0 0.0
    %2300 = vmatprep.subr.mxu0 0.0
    %2301 = vmatpush1.msra.mxu0 0.0
    %2302 = vmatprep.subr.mxu0 0.0
    %2303 = vmatpush1.msra.mxu0 0.0
    %2304 = vmatprep.subr.mxu0 0.0
    %2305 = vmatpush1.msra.mxu0 0.0
    %2306 = vmatprep.subr.mxu0 0.0
    %2307 = vmatpush1.msra.mxu0 0.0
    %2308 = vmatprep.subr.mxu0 0.0
    %2309 = vmatpush1.msra.mxu0 0.0
    %2310 = vmatprep.subr.mxu0 0.0
    %2311 = vmatpush1.msra.mxu0 0.0
    %2312 = vmatprep.subr.mxu0 0.0
    %2313 = vmatpush1.msra.mxu0 0.0
    %2314 = vmatprep.subr.mxu0 0.0
    %2315 = vmatpush1.msra.mxu0 0.0
    %2316 = vmatprep.subr.mxu0 0.0
    %2317 = vmatpush1.msra.mxu0 0.0
    %2318 = vmatprep.subr.mxu0 0.0
    %2319 = vmatpush1.msra.mxu0 0.0
    %2320 = vmatprep.subr.mxu0 0.0
    %2321 = vmatpush1.msra.mxu0 0.0
    %2322 = vmatprep.subr.mxu0 0.0
    %2323 = vmatpush1.msra.mxu0 0.0
    %2324 = vmatprep.subr.mxu0 0.0
    %2325 = vmatpush1.msra.mxu0 0.0
    %2326 = vmatprep.subr.mxu0 0.0
    %2327 = vmatpush1.msra.mxu0 0.0
    %2328 = vmatprep.subr.mxu0 0.0
    %2329 = vmatpush1.msra.mxu0 0.0
    %2330 = vmatprep.subr.mxu0 0.0
    %2331 = vmatpush1.msra.mxu0 0.0
    %2332 = vmatprep.subr.mxu0 0.0
    %2333 = vmatpush1.msra.mxu0 0.0
    %2334 = vmatprep.subr.mxu0 0.0
    %2335 = vmatpush1.msra.mxu0 0.0
    %2336 = vmatprep.mubr.f32.mxu0 0.0
    %2337 = vmatmul.mubr.f32.gmra.mrb[0].mxu0 %v2270
    %v2338 = vpop.f32.mrb[0].mxu0
    %v2339 = vadd.f32 0.0, %v2338
    %v2340 = vpop.f32.mrb[0].mxu0
    %2341 = vdwg.mxu0
    %v2342 = vpack.c.bf16 %v2339, %v2266
    %s2343 = scalar_lea.vmem %s5, 12
    %v2344 = vld [vmem:[%s2343] sm:$0xf]
    %v2346 = vsel %vm299, %v2342, 0
    %v2349 = vsel %vm1154, %v2344, 0
    %2351 = vmatprep.subr.bf16.mxu0 0
    %2352 = vmatpush1.bf16.msra.mxu0 %v2349
    %2353 = vmatprep.subr.bf16.mxu0 0
    %2354 = vmatpush1.bf16.msra.mxu0 0
    %2355 = vmatprep.subr.bf16.mxu0 0
    %2356 = vmatpush1.bf16.msra.mxu0 0
    %2357 = vmatprep.subr.bf16.mxu0 0
    %2358 = vmatpush1.bf16.msra.mxu0 0
    %2359 = vmatprep.subr.bf16.mxu0 0
    %2360 = vmatpush1.bf16.msra.mxu0 0
    %2361 = vmatprep.subr.bf16.mxu0 0
    %2362 = vmatpush1.bf16.msra.mxu0 0
    %2363 = vmatprep.subr.bf16.mxu0 0
    %2364 = vmatpush1.bf16.msra.mxu0 0
    %2365 = vmatprep.subr.bf16.mxu0 0
    %2366 = vmatpush1.bf16.msra.mxu0 0
    %2367 = vmatprep.subr.bf16.mxu0 0
    %2368 = vmatpush1.bf16.msra.mxu0 0
    %2369 = vmatprep.subr.bf16.mxu0 0
    %2370 = vmatpush1.bf16.msra.mxu0 0
    %2371 = vmatprep.subr.bf16.mxu0 0
    %2372 = vmatpush1.bf16.msra.mxu0 0
    %2373 = vmatprep.subr.bf16.mxu0 0
    %2374 = vmatpush1.bf16.msra.mxu0 0
    %2375 = vmatprep.subr.bf16.mxu0 0
    %2376 = vmatpush1.bf16.msra.mxu0 0
    %2377 = vmatprep.subr.bf16.mxu0 0
    %2378 = vmatpush1.bf16.msra.mxu0 0
    %2379 = vmatprep.subr.bf16.mxu0 0
    %2380 = vmatpush1.bf16.msra.mxu0 0
    %2381 = vmatprep.subr.bf16.mxu0 0
    %2382 = vmatpush1.bf16.msra.mxu0 0
    %2383 = vmatprep.mubr.bf16.mxu0 0
    %2384 = vmatmul.mubr.bf16.gmra.mrb[0].mxu0 %v2346
    %v2385 = vpop.f32.mrb[0].mxu0
    %v2386 = vadd.f32 0.0, %v2385
    %v2387 = vpop.f32.mrb[0].mxu0
    %v2388 = vpop.f32.mrb[0].mxu0
    %v2389 = vadd.f32 0.0, %v2388
    %v2390 = vpop.f32.mrb[0].mxu0
    %2391 = vdwg.mxu0
    %v2392 = vadd.f32 %v1818, %v2386
    %v2393 = vadd.f32 %v1819, %v2389
    %v2394 = vadd.f32 %v44, %v2392
    %v2395 = vadd.f32 %v45, %v2393
    %v2396 = vld [vmem:[%s7] sm:$0x1]
    %v2398 = vlaneseq
    %v2399 = vshrl.u32 %v2398, 7
    %v2400 = vsub.s32 0, %v2399
    %v2401 = vrot.slane %v2396, %v2400
    %v2403 = vadd.f32 %v2394, %v2401
    %v2404 = vadd.f32 %v2395, %v2401
    %s2405 = sld [smem:[#allocation2 + $0x2]]
    %s2406 = sld [smem:[#allocation2 + $0x3]]
    %v2407 = vsel %vm50, %v2403, 0.0
    %2408 = vadd.xlane.f32.xlu0 %v2407
    %v2409 = vpop.xlane.xlu0 %2408
    %v2410 = vsel %vm50, %v2404, 0.0
    %2411 = vadd.xlane.f32.xlu0 %v2410
    %v2412 = vpop.xlane.xlu0 %2411
    %v2413 = vmul.f32 %v2409, %v57
    %v2414 = vmul.f32 %v2412, %v57
    %v2415 = vsub.f32 %v2403, %v2413
    %v2416 = vsub.f32 %v2404, %v2414
    %v2417 = vmul.f32 %v2415, %v2415
    %v2418 = vmul.f32 %v2416, %v2416
    %v2419 = vsel %vm50, %v2417, 0.0
    %2420 = vadd.xlane.f32.xlu0 %v2419
    %v2421 = vpop.xlane.xlu0 %2420
    %v2422 = vsel %vm50, %v2418, 0.0
    %2423 = vadd.xlane.f32.xlu0 %v2422
    %v2424 = vpop.xlane.xlu0 %2423
    %v2425 = vmul.f32 %v2421, %v70
    %v2426 = vmul.f32 %v2424, %v70
    %v2427 = vstv %s2405
    %v2428 = vmul.f32 %v2427, %v2415
    %v2429 = vmul.f32 %v2427, %v2416
    %v2430 = vrsqrt.pop %v2425
    %v2431 = vmul.f32 %v2425, %v2430
    %vm2432 = vcmp.eq.f32.partialorder %v2425, inf
    %v2433 = vsel %vm2432, %v2425, %v2431
    %vm2434 = vcmp.eq.f32.partialorder %v2425, 0.0
    %v2435 = vand.u32 %v2425, 2147483648
    %v2436 = vsel %vm2434, %v2435, %v2433
    %v2437 = vrsqrt.pop %v2426
    %v2438 = vmul.f32 %v2426, %v2437
    %vm2439 = vcmp.eq.f32.partialorder %v2426, inf
    %v2440 = vsel %vm2439, %v2426, %v2438
    %vm2441 = vcmp.eq.f32.partialorder %v2426, 0.0
    %v2442 = vand.u32 %v2426, 2147483648
    %v2443 = vsel %vm2441, %v2442, %v2440
    %v2444 = vadd.f32 %v2436, 1e-06
    %v2445 = vadd.f32 %v2443, 1e-06
    %v2446 = vrcp.pop %v2444
    %v2447 = vmul.f32 %v2428, %v2446
    %v2448 = vrcp.pop %v2445
    %v2449 = vmul.f32 %v2429, %v2448
    %v2450 = vstv %s2406
    %v2451 = vadd.f32 %v2447, %v2450
    %v2452 = vadd.f32 %v2449, %v2450
    %v2453 = vpack.c.bf16 %v2452, %v2451
    %v2454 = vld [vmem:[%s6] sm:$0xf]
    %v2455 = vld [vmem:[%s6 + $0x4] sm:$0xf]
    %v2456 = vld [vmem:[%s6 + $0x8] sm:$0xf]
    %v2457 = vld [vmem:[%s6 + $0xc] sm:$0xf]
    %s2458 = scalar_lea.vmem %s7, 1
    %v2459 = vld [vmem:[%s2458] sm:$0x1]
    %v2461 = vlaneseq
    %v2462 = vshrl.u32 %v2461, 7
    %v2463 = vsub.s32 0, %v2462
    %v2464 = vrot.slane %v2459, %v2463
    %v2470 = vunpack.c.l.b16 %v2454
    %v2471 = vunpack.c.l.b16 %v2455
    %v2472 = vunpack.c.l.b16 %v2456
    %v2473 = vunpack.c.l.b16 %v2457
    %v2474 = vpack.c.b16 %v2471, %v2470
    %v2475 = vpack.c.b16 %v2473, %v2472
    %v2479 = vsel %vm50, %v2453, 0
    %2481 = vmatprep.subr.bf16.mxu0 0
    %2482 = vmatpush1.bf16.msra.mxu0 %v2474
    %2483 = vmatprep.subr.bf16.mxu0 0
    %2484 = vmatpush1.bf16.msra.mxu0 %v2475
    %2485 = vmatprep.subr.bf16.mxu0 0
    %2486 = vmatpush1.bf16.msra.mxu0 0
    %2487 = vmatprep.subr.bf16.mxu0 0
    %2488 = vmatpush1.bf16.msra.mxu0 0
    %2489 = vmatprep.subr.bf16.mxu0 0
    %2490 = vmatpush1.bf16.msra.mxu0 0
    %2491 = vmatprep.subr.bf16.mxu0 0
    %2492 = vmatpush1.bf16.msra.mxu0 0
    %2493 = vmatprep.subr.bf16.mxu0 0
    %2494 = vmatpush1.bf16.msra.mxu0 0
    %2495 = vmatprep.subr.bf16.mxu0 0
    %2496 = vmatpush1.bf16.msra.mxu0 0
    %2497 = vmatprep.subr.bf16.mxu0 0
    %2498 = vmatpush1.bf16.msra.mxu0 0
    %2499 = vmatprep.subr.bf16.mxu0 0
    %2500 = vmatpush1.bf16.msra.mxu0 0
    %2501 = vmatprep.subr.bf16.mxu0 0
    %2502 = vmatpush1.bf16.msra.mxu0 0
    %2503 = vmatprep.subr.bf16.mxu0 0
    %2504 = vmatpush1.bf16.msra.mxu0 0
    %2505 = vmatprep.subr.bf16.mxu0 0
    %2506 = vmatpush1.bf16.msra.mxu0 0
    %2507 = vmatprep.subr.bf16.mxu0 0
    %2508 = vmatpush1.bf16.msra.mxu0 0
    %2509 = vmatprep.subr.bf16.mxu0 0
    %2510 = vmatpush1.bf16.msra.mxu0 0
    %2511 = vmatprep.subr.bf16.mxu0 0
    %2512 = vmatpush1.bf16.msra.mxu0 0
    %2513 = vmatprep.mubr.bf16.mxu0 0
    %2514 = vmatmul.mubr.bf16.gmra.mrb[0].mxu0 %v2479
    %v2515 = vpop.f32.mrb[0].mxu0
    %v2516 = vadd.f32 %v2464, %v2515
    %v2517 = vpop.f32.mrb[0].mxu0
    %v2518 = vpop.f32.mrb[0].mxu0
    %v2519 = vadd.f32 %v2464, %v2518
    %v2520 = vpop.f32.mrb[0].mxu0
    %2521 = vdwg.mxu0
    %v2522 = vmax.f32 %v2516, 0.0
    %v2523 = vmax.f32 %v2519, 0.0
    %v2524 = vpack.c.bf16 %v2523, %v2522
    %s2525 = scalar_lea.vmem %s6, 32
    %v2526 = vld [vmem:[%s2525] sm:$0xf]
    %v2527 = vld [vmem:[%s2525 + $0x4] sm:$0xf]
    %v2528 = vld [vmem:[%s2525 + $0x8] sm:$0xf]
    %v2529 = vld [vmem:[%s2525 + $0xc] sm:$0xf]
    %v2530 = vld [vmem:[%s2525 + $0x10] sm:$0xf]
    %v2531 = vld [vmem:[%s2525 + $0x14] sm:$0xf]
    %v2532 = vld [vmem:[%s2525 + $0x18] sm:$0xf]
    %v2533 = vld [vmem:[%s2525 + $0x1c] sm:$0xf]
    %s2534 = scalar_lea.vmem %s7, 2
    %v2535 = vld [vmem:[%s2534] sm:$0x1]
    %v2537 = vlaneseq
    %v2538 = vshrl.u32 %v2537, 7
    %v2539 = vsub.s32 0, %v2538
    %v2540 = vrot.slane %v2535, %v2539
    %v2550 = vunpack.c.l.b16 %v2526
    %v2551 = vunpack.c.l.b16 %v2527
    %v2552 = vunpack.c.l.b16 %v2528
    %v2553 = vunpack.c.l.b16 %v2529
    %v2554 = vunpack.c.l.b16 %v2530
    %v2555 = vunpack.c.l.b16 %v2531
    %v2556 = vunpack.c.l.b16 %v2532
    %v2557 = vunpack.c.l.b16 %v2533
    %v2558 = vpack.c.b16 %v2551, %v2550
    %v2559 = vpack.c.b16 %v2553, %v2552
    %v2560 = vpack.c.b16 %v2555, %v2554
    %v2561 = vpack.c.b16 %v2557, %v2556
    %vm2566 = vcmask 523264
    %v2568 = vsel %vm2566, %v2524, 0
    %2570 = vmatprep.subr.bf16.mxu0 0
    %2571 = vmatpush1.bf16.msra.mxu0 %v2558
    %2572 = vmatprep.subr.bf16.mxu0 0
    %2573 = vmatpush1.bf16.msra.mxu0 %v2559
    %2574 = vmatprep.subr.bf16.mxu0 0
    %2575 = vmatpush1.bf16.msra.mxu0 %v2560
    %2576 = vmatprep.subr.bf16.mxu0 0
    %2577 = vmatpush1.bf16.msra.mxu0 %v2561
    %2578 = vmatprep.subr.bf16.mxu0 0
    %2579 = vmatpush1.bf16.msra.mxu0 0
    %2580 = vmatprep.subr.bf16.mxu0 0
    %2581 = vmatpush1.bf16.msra.mxu0 0
    %2582 = vmatprep.subr.bf16.mxu0 0
    %2583 = vmatpush1.bf16.msra.mxu0 0
    %2584 = vmatprep.subr.bf16.mxu0 0
    %2585 = vmatpush1.bf16.msra.mxu0 0
    %2586 = vmatprep.subr.bf16.mxu0 0
    %2587 = vmatpush1.bf16.msra.mxu0 0
    %2588 = vmatprep.subr.bf16.mxu0 0
    %2589 = vmatpush1.bf16.msra.mxu0 0
    %2590 = vmatprep.subr.bf16.mxu0 0
    %2591 = vmatpush1.bf16.msra.mxu0 0
    %2592 = vmatprep.subr.bf16.mxu0 0
    %2593 = vmatpush1.bf16.msra.mxu0 0
    %2594 = vmatprep.subr.bf16.mxu0 0
    %2595 = vmatpush1.bf16.msra.mxu0 0
    %2596 = vmatprep.subr.bf16.mxu0 0
    %2597 = vmatpush1.bf16.msra.mxu0 0
    %2598 = vmatprep.subr.bf16.mxu0 0
    %2599 = vmatpush1.bf16.msra.mxu0 0
    %2600 = vmatprep.subr.bf16.mxu0 0
    %2601 = vmatpush1.bf16.msra.mxu0 0
    %2602 = vmatprep.mubr.bf16.mxu0 0
    %2603 = vmatmul.mubr.bf16.gmra.mrb[0].mxu0 %v2568
    %v2604 = vpop.f32.mrb[0].mxu0
    %v2605 = vadd.f32 %v2540, %v2604
    %v2606 = vpop.f32.mrb[0].mxu0
    %v2607 = vpop.f32.mrb[0].mxu0
    %v2608 = vadd.f32 %v2540, %v2607
    %v2609 = vpop.f32.mrb[0].mxu0
    %2610 = vdwg.mxu0
    %v2611 = vadd.f32 %v2403, %v2605
    %v2612 = vadd.f32 %v2404, %v2608
    %s2613 = sld [smem:[#allocation2 + $0x4]]
    %s2614 = sld [smem:[#allocation2 + $0x5]]
    %v2615 = vsel %vm50, %v2611, 0.0
    %2616 = vadd.xlane.f32.xlu0 %v2615
    %v2617 = vpop.xlane.xlu0 %2616
    %v2618 = vsel %vm50, %v2612, 0.0
    %2619 = vadd.xlane.f32.xlu0 %v2618
    %v2620 = vpop.xlane.xlu0 %2619
    %v2621 = vmul.f32 %v2617, %v57
    %v2622 = vmul.f32 %v2620, %v57
    %v2623 = vsub.f32 %v2611, %v2621
    %v2624 = vsub.f32 %v2612, %v2622
    %v2625 = vmul.f32 %v2623, %v2623
    %v2626 = vmul.f32 %v2624, %v2624
    %v2627 = vsel %vm50, %v2625, 0.0
    %2628 = vadd.xlane.f32.xlu0 %v2627
    %v2629 = vpop.xlane.xlu0 %2628
    %v2630 = vsel %vm50, %v2626, 0.0
    %2631 = vadd.xlane.f32.xlu0 %v2630
    %v2632 = vpop.xlane.xlu0 %2631
    %v2633 = vmul.f32 %v2629, %v70
    %v2634 = vmul.f32 %v2632, %v70
    %v2635 = vstv %s2613
    %v2636 = vmul.f32 %v2635, %v2623
    %v2637 = vmul.f32 %v2635, %v2624
    %v2638 = vrsqrt.pop %v2633
    %v2639 = vmul.f32 %v2633, %v2638
    %vm2640 = vcmp.eq.f32.partialorder %v2633, inf
    %v2641 = vsel %vm2640, %v2633, %v2639
    %vm2642 = vcmp.eq.f32.partialorder %v2633, 0.0
    %v2643 = vand.u32 %v2633, 2147483648
    %v2644 = vsel %vm2642, %v2643, %v2641
    %v2645 = vrsqrt.pop %v2634
    %v2646 = vmul.f32 %v2634, %v2645
    %vm2647 = vcmp.eq.f32.partialorder %v2634, inf
    %v2648 = vsel %vm2647, %v2634, %v2646
    %vm2649 = vcmp.eq.f32.partialorder %v2634, 0.0
    %v2650 = vand.u32 %v2634, 2147483648
    %v2651 = vsel %vm2649, %v2650, %v2648
    %v2652 = vadd.f32 %v2644, 1e-06
    %v2653 = vadd.f32 %v2651, 1e-06
    %v2654 = vrcp.pop %v2652
    %v2655 = vmul.f32 %v2636, %v2654
    %v2656 = vrcp.pop %v2653
    %v2657 = vmul.f32 %v2637, %v2656
    %v2658 = vstv %s2614
    %v2659 = vadd.f32 %v2655, %v2658
    %v2660 = vadd.f32 %v2657, %v2658
    %v2661 = vpack.c.bf16 %v2660, %v2659
    %s2662 = scalar_lea.vmem %s3, 192
    %v2663 = vld [vmem:[%s2662] sm:$0xf]
    %v2664 = vld [vmem:[%s2662 + $0x4] sm:$0xf]
    %v2665 = vld [vmem:[%s2662 + $0x8] sm:$0xf]
    %v2666 = vld [vmem:[%s2662 + $0xc] sm:$0xf]
    %s2667 = scalar_lea.vmem %s4, 12
    %v2668 = vld [vmem:[%s2667] sm:$0x1]
    %v2670 = vlaneseq
    %v2671 = vshrl.u32 %v2670, 7
    %v2672 = vsub.s32 0, %v2671
    %v2673 = vrot.slane %v2668, %v2672
    %v2679 = vunpack.c.l.b16 %v2663
    %v2680 = vunpack.c.l.b16 %v2664
    %v2681 = vunpack.c.l.b16 %v2665
    %v2682 = vunpack.c.l.b16 %v2666
    %v2683 = vpack.c.b16 %v2680, %v2679
    %v2684 = vpack.c.b16 %v2682, %v2681
    %v2688 = vsel %vm50, %v2661, 0
    %2690 = vmatprep.subr.bf16.mxu0 0
    %2691 = vmatpush1.bf16.msra.mxu0 %v2683
    %2692 = vmatprep.subr.bf16.mxu0 0
    %2693 = vmatpush1.bf16.msra.mxu0 %v2684
    %2694 = vmatprep.subr.bf16.mxu0 0
    %2695 = vmatpush1.bf16.msra.mxu0 0
    %2696 = vmatprep.subr.bf16.mxu0 0
    %2697 = vmatpush1.bf16.msra.mxu0 0
    %2698 = vmatprep.subr.bf16.mxu0 0
    %2699 = vmatpush1.bf16.msra.mxu0 0
    %2700 = vmatprep.subr.bf16.mxu0 0
    %2701 = vmatpush1.bf16.msra.mxu0 0
    %2702 = vmatprep.subr.bf16.mxu0 0
    %2703 = vmatpush1.bf16.msra.mxu0 0
    %2704 = vmatprep.subr.bf16.mxu0 0
    %2705 = vmatpush1.bf16.msra.mxu0 0
    %2706 = vmatprep.subr.bf16.mxu0 0
    %2707 = vmatpush1.bf16.msra.mxu0 0
    %2708 = vmatprep.subr.bf16.mxu0 0
    %2709 = vmatpush1.bf16.msra.mxu0 0
    %2710 = vmatprep.subr.bf16.mxu0 0
    %2711 = vmatpush1.bf16.msra.mxu0 0
    %2712 = vmatprep.subr.bf16.mxu0 0
    %2713 = vmatpush1.bf16.msra.mxu0 0
    %2714 = vmatprep.subr.bf16.mxu0 0
    %2715 = vmatpush1.bf16.msra.mxu0 0
    %2716 = vmatprep.subr.bf16.mxu0 0
    %2717 = vmatpush1.bf16.msra.mxu0 0
    %2718 = vmatprep.subr.bf16.mxu0 0
    %2719 = vmatpush1.bf16.msra.mxu0 0
    %2720 = vmatprep.subr.bf16.mxu0 0
    %2721 = vmatpush1.bf16.msra.mxu0 0
    %2722 = vmatprep.mubr.bf16.mxu0 0
    %2723 = vmatmul.mubr.bf16.gmra.mrb[0].mxu0 %v2688
    %v2724 = vpop.f32.mrb[0].mxu0
    %v2725 = vadd.f32 %v2673, %v2724
    %v2726 = vpop.f32.mrb[0].mxu0
    %v2727 = vpop.f32.mrb[0].mxu0
    %v2728 = vadd.f32 %v2673, %v2727
    %v2729 = vpop.f32.mrb[0].mxu0
    %2730 = vdwg.mxu0
    %s2731 = scalar_lea.vmem %s3, 256
    %v2732 = vld [vmem:[%s2731] sm:$0xf]
    %v2733 = vld [vmem:[%s2731 + $0x4] sm:$0xf]
    %v2734 = vld [vmem:[%s2731 + $0x8] sm:$0xf]
    %v2735 = vld [vmem:[%s2731 + $0xc] sm:$0xf]
    %s2736 = scalar_lea.vmem %s4, 16
    %v2737 = vld [vmem:[%s2736] sm:$0x1]
    %v2739 = vlaneseq
    %v2740 = vshrl.u32 %v2739, 7
    %v2741 = vsub.s32 0, %v2740
    %v2742 = vrot.slane %v2737, %v2741
    %v2748 = vunpack.c.l.b16 %v2732
    %v2749 = vunpack.c.l.b16 %v2733
    %v2750 = vunpack.c.l.b16 %v2734
    %v2751 = vunpack.c.l.b16 %v2735
    %v2752 = vpack.c.b16 %v2749, %v2748
    %v2753 = vpack.c.b16 %v2751, %v2750
    %2756 = vmatprep.subr.bf16.mxu0 0
    %2757 = vmatpush1.bf16.msra.mxu0 %v2752
    %2758 = vmatprep.subr.bf16.mxu0 0
    %2759 = vmatpush1.bf16.msra.mxu0 %v2753
    %2760 = vmatprep.subr.bf16.mxu0 0
    %2761 = vmatpush1.bf16.msra.mxu0 0
    %2762 = vmatprep.subr.bf16.mxu0 0
    %2763 = vmatpush1.bf16.msra.mxu0 0
    %2764 = vmatprep.subr.bf16.mxu0 0
    %2765 = vmatpush1.bf16.msra.mxu0 0
    %2766 = vmatprep.subr.bf16.mxu0 0
    %2767 = vmatpush1.bf16.msra.mxu0 0
    %2768 = vmatprep.subr.bf16.mxu0 0
    %2769 = vmatpush1.bf16.msra.mxu0 0
    %2770 = vmatprep.subr.bf16.mxu0 0
    %2771 = vmatpush1.bf16.msra.mxu0 0
    %2772 = vmatprep.subr.bf16.mxu0 0
    %2773 = vmatpush1.bf16.msra.mxu0 0
    %2774 = vmatprep.subr.bf16.mxu0 0
    %2775 = vmatpush1.bf16.msra.mxu0 0
    %2776 = vmatprep.subr.bf16.mxu0 0
    %2777 = vmatpush1.bf16.msra.mxu0 0
    %2778 = vmatprep.subr.bf16.mxu0 0
    %2779 = vmatpush1.bf16.msra.mxu0 0
    %2780 = vmatprep.subr.bf16.mxu0 0
    %2781 = vmatpush1.bf16.msra.mxu0 0
    %2782 = vmatprep.subr.bf16.mxu0 0
    %2783 = vmatpush1.bf16.msra.mxu0 0
    %2784 = vmatprep.subr.bf16.mxu0 0
    %2785 = vmatpush1.bf16.msra.mxu0 0
    %2786 = vmatprep.subr.bf16.mxu0 0
    %2787 = vmatpush1.bf16.msra.mxu0 0
    %2788 = vmatprep.mubr.bf16.mxu0 0
    %2789 = vmatmul.mubr.bf16.gmra.mrb[0].mxu0 %v2688
    %v2790 = vpop.f32.mrb[0].mxu0
    %v2791 = vadd.f32 %v2742, %v2790
    %v2792 = vpop.f32.mrb[0].mxu0
    %v2793 = vpop.f32.mrb[0].mxu0
    %v2794 = vadd.f32 %v2742, %v2793
    %v2795 = vpop.f32.mrb[0].mxu0
    %2796 = vdwg.mxu0
    %s2797 = scalar_lea.vmem %s3, 320
    %v2798 = vld [vmem:[%s2797] sm:$0xf]
    %v2799 = vld [vmem:[%s2797 + $0x4] sm:$0xf]
    %v2800 = vld [vmem:[%s2797 + $0x8] sm:$0xf]
    %v2801 = vld [vmem:[%s2797 + $0xc] sm:$0xf]
    %s2802 = scalar_lea.vmem %s4, 20
    %v2803 = vld [vmem:[%s2802] sm:$0x1]
    %v2805 = vlaneseq
    %v2806 = vshrl.u32 %v2805, 7
    %v2807 = vsub.s32 0, %v2806
    %v2808 = vrot.slane %v2803, %v2807
    %v2814 = vunpack.c.l.b16 %v2798
    %v2815 = vunpack.c.l.b16 %v2799
    %v2816 = vunpack.c.l.b16 %v2800
    %v2817 = vunpack.c.l.b16 %v2801
    %v2818 = vpack.c.b16 %v2815, %v2814
    %v2819 = vpack.c.b16 %v2817, %v2816
    %2822 = vmatprep.subr.bf16.mxu0 0
    %2823 = vmatpush1.bf16.msra.mxu0 %v2818
    %2824 = vmatprep.subr.bf16.mxu0 0
    %2825 = vmatpush1.bf16.msra.mxu0 %v2819
    %2826 = vmatprep.subr.bf16.mxu0 0
    %2827 = vmatpush1.bf16.msra.mxu0 0
    %2828 = vmatprep.subr.bf16.mxu0 0
    %2829 = vmatpush1.bf16.msra.mxu0 0
    %2830 = vmatprep.subr.bf16.mxu0 0
    %2831 = vmatpush1.bf16.msra.mxu0 0
    %2832 = vmatprep.subr.bf16.mxu0 0
    %2833 = vmatpush1.bf16.msra.mxu0 0
    %2834 = vmatprep.subr.bf16.mxu0 0
    %2835 = vmatpush1.bf16.msra.mxu0 0
    %2836 = vmatprep.subr.bf16.mxu0 0
    %2837 = vmatpush1.bf16.msra.mxu0 0
    %2838 = vmatprep.subr.bf16.mxu0 0
    %2839 = vmatpush1.bf16.msra.mxu0 0
    %2840 = vmatprep.subr.bf16.mxu0 0
    %2841 = vmatpush1.bf16.msra.mxu0 0
    %2842 = vmatprep.subr.bf16.mxu0 0
    %2843 = vmatpush1.bf16.msra.mxu0 0
    %2844 = vmatprep.subr.bf16.mxu0 0
    %2845 = vmatpush1.bf16.msra.mxu0 0
    %2846 = vmatprep.subr.bf16.mxu0 0
    %2847 = vmatpush1.bf16.msra.mxu0 0
    %2848 = vmatprep.subr.bf16.mxu0 0
    %2849 = vmatpush1.bf16.msra.mxu0 0
    %2850 = vmatprep.subr.bf16.mxu0 0
    %2851 = vmatpush1.bf16.msra.mxu0 0
    %2852 = vmatprep.subr.bf16.mxu0 0
    %2853 = vmatpush1.bf16.msra.mxu0 0
    %2854 = vmatprep.mubr.bf16.mxu0 0
    %2855 = vmatmul.mubr.bf16.gmra.mrb[0].mxu0 %v2688
    %v2856 = vpop.f32.mrb[0].mxu0
    %v2857 = vadd.f32 %v2808, %v2856
    %v2858 = vpop.f32.mrb[0].mxu0
    %v2859 = vpop.f32.mrb[0].mxu0
    %v2860 = vadd.f32 %v2808, %v2859
    %v2861 = vpop.f32.mrb[0].mxu0
    %2862 = vdwg.mxu0
    %v2864 = vsel %vm299, %v2725, 0
    %v2867 = vsel %vm299, %v2791, 0
    %2869 = vmatprep.subr.mxu0 0.0
    %2870 = vmatpush1.xpose.msra.mxu0 %v2867
    %2871 = vmatprep.subr.mxu0 0.0
    %2872 = vmatpush1.xpose.msra.mxu0 0.0
    %2873 = vmatprep.subr.mxu0 0.0
    %2874 = vmatpush1.xpose.msra.mxu0 0.0
    %2875 = vmatprep.subr.mxu0 0.0
    %2876 = vmatpush1.xpose.msra.mxu0 0.0
    %2877 = vmatprep.subr.mxu0 0.0
    %2878 = vmatpush1.xpose.msra.mxu0 0.0
    %2879 = vmatprep.subr.mxu0 0.0
    %2880 = vmatpush1.xpose.msra.mxu0 0.0
    %2881 = vmatprep.subr.mxu0 0.0
    %2882 = vmatpush1.xpose.msra.mxu0 0.0
    %2883 = vmatprep.subr.mxu0 0.0
    %2884 = vmatpush1.xpose.msra.mxu0 0.0
    %2885 = vmatprep.subr.mxu0 0.0
    %2886 = vmatpush1.xpose.msra.mxu0 0.0
    %2887 = vmatprep.subr.mxu0 0.0
    %2888 = vmatpush1.xpose.msra.mxu0 0.0
    %2889 = vmatprep.subr.mxu0 0.0
    %2890 = vmatpush1.xpose.msra.mxu0 0.0
    %2891 = vmatprep.subr.mxu0 0.0
    %2892 = vmatpush1.xpose.msra.mxu0 0.0
    %2893 = vmatprep.subr.mxu0 0.0
    %2894 = vmatpush1.xpose.msra.mxu0 0.0
    %2895 = vmatprep.subr.mxu0 0.0
    %2896 = vmatpush1.xpose.msra.mxu0 0.0
    %2897 = vmatprep.subr.mxu0 0.0
    %2898 = vmatpush1.xpose.msra.mxu0 0.0
    %2899 = vmatprep.subr.mxu0 0.0
    %2900 = vmatpush1.xpose.msra.mxu0 0.0
    %2901 = vmatprep.subr.mxu0 0.0
    %2902 = vmatpush1.xpose.msra.mxu0 0.0
    %2903 = vmatprep.subr.mxu0 0.0
    %2904 = vmatpush1.xpose.msra.mxu0 0.0
    %2905 = vmatprep.subr.mxu0 0.0
    %2906 = vmatpush1.xpose.msra.mxu0 0.0
    %2907 = vmatprep.subr.mxu0 0.0
    %2908 = vmatpush1.xpose.msra.mxu0 0.0
    %2909 = vmatprep.subr.mxu0 0.0
    %2910 = vmatpush1.xpose.msra.mxu0 0.0
    %2911 = vmatprep.subr.mxu0 0.0
    %2912 = vmatpush1.xpose.msra.mxu0 0.0
    %2913 = vmatprep.subr.mxu0 0.0
    %2914 = vmatpush1.xpose.msra.mxu0 0.0
    %2915 = vmatprep.subr.mxu0 0.0
    %2916 = vmatpush1.xpose.msra.mxu0 0.0
    %2917 = vmatprep.subr.mxu0 0.0
    %2918 = vmatpush1.xpose.msra.mxu0 0.0
    %2919 = vmatprep.subr.mxu0 0.0
    %2920 = vmatpush1.xpose.msra.mxu0 0.0
    %2921 = vmatprep.subr.mxu0 0.0
    %2922 = vmatpush1.xpose.msra.mxu0 0.0
    %2923 = vmatprep.subr.mxu0 0.0
    %2924 = vmatpush1.xpose.msra.mxu0 0.0
    %2925 = vmatprep.subr.mxu0 0.0
    %2926 = vmatpush1.xpose.msra.mxu0 0.0
    %2927 = vmatprep.subr.mxu0 0.0
    %2928 = vmatpush1.xpose.msra.mxu0 0.0
    %2929 = vmatprep.subr.mxu0 0.0
    %2930 = vmatpush1.xpose.msra.mxu0 0.0
    %2931 = vmatprep.subr.mxu0 0.0
    %2932 = vmatpush1.xpose.msra.mxu0 0.0
    %2933 = vmatprep.mubr.f32.mxu0 0.0
    %2934 = vmatmul.mubr.f32.gmra.mrb[0].mxu0 %v2864
    %v2935 = vpop.f32.mrb[0].mxu0
    %v2936 = vadd.f32 0.0, %v2935
    %v2937 = vpop.f32.mrb[0].mxu0
    %2938 = vdwg.mxu0
    %v2940 = vsel %vm299, %v2728, 0
    %v2943 = vsel %vm299, %v2794, 0
    %2945 = vmatprep.subr.mxu0 0.0
    %2946 = vmatpush1.xpose.msra.mxu0 %v2943
    %2947 = vmatprep.subr.mxu0 0.0
    %2948 = vmatpush1.xpose.msra.mxu0 0.0
    %2949 = vmatprep.subr.mxu0 0.0
    %2950 = vmatpush1.xpose.msra.mxu0 0.0
    %2951 = vmatprep.subr.mxu0 0.0
    %2952 = vmatpush1.xpose.msra.mxu0 0.0
    %2953 = vmatprep.subr.mxu0 0.0
    %2954 = vmatpush1.xpose.msra.mxu0 0.0
    %2955 = vmatprep.subr.mxu0 0.0
    %2956 = vmatpush1.xpose.msra.mxu0 0.0
    %2957 = vmatprep.subr.mxu0 0.0
    %2958 = vmatpush1.xpose.msra.mxu0 0.0
    %2959 = vmatprep.subr.mxu0 0.0
    %2960 = vmatpush1.xpose.msra.mxu0 0.0
    %2961 = vmatprep.subr.mxu0 0.0
    %2962 = vmatpush1.xpose.msra.mxu0 0.0
    %2963 = vmatprep.subr.mxu0 0.0
    %2964 = vmatpush1.xpose.msra.mxu0 0.0
    %2965 = vmatprep.subr.mxu0 0.0
    %2966 = vmatpush1.xpose.msra.mxu0 0.0
    %2967 = vmatprep.subr.mxu0 0.0
    %2968 = vmatpush1.xpose.msra.mxu0 0.0
    %2969 = vmatprep.subr.mxu0 0.0
    %2970 = vmatpush1.xpose.msra.mxu0 0.0
    %2971 = vmatprep.subr.mxu0 0.0
    %2972 = vmatpush1.xpose.msra.mxu0 0.0
    %2973 = vmatprep.subr.mxu0 0.0
    %2974 = vmatpush1.xpose.msra.mxu0 0.0
    %2975 = vmatprep.subr.mxu0 0.0
    %2976 = vmatpush1.xpose.msra.mxu0 0.0
    %2977 = vmatprep.subr.mxu0 0.0
    %2978 = vmatpush1.xpose.msra.mxu0 0.0
    %2979 = vmatprep.subr.mxu0 0.0
    %2980 = vmatpush1.xpose.msra.mxu0 0.0
    %2981 = vmatprep.subr.mxu0 0.0
    %2982 = vmatpush1.xpose.msra.mxu0 0.0
    %2983 = vmatprep.subr.mxu0 0.0
    %2984 = vmatpush1.xpose.msra.mxu0 0.0
    %2985 = vmatprep.subr.mxu0 0.0
    %2986 = vmatpush1.xpose.msra.mxu0 0.0
    %2987 = vmatprep.subr.mxu0 0.0
    %2988 = vmatpush1.xpose.msra.mxu0 0.0
    %2989 = vmatprep.subr.mxu0 0.0
    %2990 = vmatpush1.xpose.msra.mxu0 0.0
    %2991 = vmatprep.subr.mxu0 0.0
    %2992 = vmatpush1.xpose.msra.mxu0 0.0
    %2993 = vmatprep.subr.mxu0 0.0
    %2994 = vmatpush1.xpose.msra.mxu0 0.0
    %2995 = vmatprep.subr.mxu0 0.0
    %2996 = vmatpush1.xpose.msra.mxu0 0.0
    %2997 = vmatprep.subr.mxu0 0.0
    %2998 = vmatpush1.xpose.msra.mxu0 0.0
    %2999 = vmatprep.subr.mxu0 0.0
    %3000 = vmatpush1.xpose.msra.mxu0 0.0
    %3001 = vmatprep.subr.mxu0 0.0
    %3002 = vmatpush1.xpose.msra.mxu0 0.0
    %3003 = vmatprep.subr.mxu0 0.0
    %3004 = vmatpush1.xpose.msra.mxu0 0.0
    %3005 = vmatprep.subr.mxu0 0.0
    %3006 = vmatpush1.xpose.msra.mxu0 0.0
    %3007 = vmatprep.subr.mxu0 0.0
    %3008 = vmatpush1.xpose.msra.mxu0 0.0
    %3009 = vmatprep.mubr.f32.mxu0 0.0
    %3010 = vmatmul.mubr.f32.gmra.mrb[0].mxu0 %v2940
    %v3011 = vpop.f32.mrb[0].mxu0
    %v3012 = vadd.f32 0.0, %v3011
    %v3013 = vpop.f32.mrb[0].mxu0
    %3014 = vdwg.mxu0
    %v3015 = vmul.f32 %v2936, 0.35355338
    %v3016 = vmul.f32 %v3012, 0.35355338
    %v3017 = vadd.f32 %v3015, %v46
    %v3018 = vadd.f32 %v3016, %v47
    %v3019 = vsel %vm299, %v3017, -inf
    %3020 = vmax.xlane.f32.xlu0 %v3019
    %v3021 = vpop.xlane.xlu0 %3020
    %v3022 = vsel %vm299, %v3018, -inf
    %3023 = vmax.xlane.f32.xlu0 %v3022
    %v3024 = vpop.xlane.xlu0 %3023
    %v3025 = vsub.f32 %v3017, %v3021
    %v3026 = vsub.f32 %v3018, %v3024
    %v3027 = vmul.f32 %v3025, 1.442695
    %v3028 = vpow.pop %v3027
    %v3029 = vmul.f32 %v3026, 1.442695
    %v3030 = vpow.pop %v3029
    %v3031 = vsel %vm299, %v3028, 0.0
    %3032 = vadd.xlane.f32.xlu0 %v3031
    %v3033 = vpop.xlane.xlu0 %3032
    %v3034 = vsel %vm299, %v3030, 0.0
    %3035 = vadd.xlane.f32.xlu0 %v3034
    %v3036 = vpop.xlane.xlu0 %3035
    %v3037 = vrcp.pop %v3033
    %v3038 = vrcp.pop %v3036
    %v3039 = vmul.f32 %v3028, %v3037
    %v3040 = vmul.f32 %v3030, %v3038
    %v3042 = vsel %vm299, %v3039, 0
    %3044 = vmatprep.subr.mxu0 0.0
    %3045 = vmatpush1.msra.mxu0 %v2857
    %3046 = vmatprep.subr.mxu0 0.0
    %3047 = vmatpush1.msra.mxu0 0.0
    %3048 = vmatprep.subr.mxu0 0.0
    %3049 = vmatpush1.msra.mxu0 0.0
    %3050 = vmatprep.subr.mxu0 0.0
    %3051 = vmatpush1.msra.mxu0 0.0
    %3052 = vmatprep.subr.mxu0 0.0
    %3053 = vmatpush1.msra.mxu0 0.0
    %3054 = vmatprep.subr.mxu0 0.0
    %3055 = vmatpush1.msra.mxu0 0.0
    %3056 = vmatprep.subr.mxu0 0.0
    %3057 = vmatpush1.msra.mxu0 0.0
    %3058 = vmatprep.subr.mxu0 0.0
    %3059 = vmatpush1.msra.mxu0 0.0
    %3060 = vmatprep.subr.mxu0 0.0
    %3061 = vmatpush1.msra.mxu0 0.0
    %3062 = vmatprep.subr.mxu0 0.0
    %3063 = vmatpush1.msra.mxu0 0.0
    %3064 = vmatprep.subr.mxu0 0.0
    %3065 = vmatpush1.msra.mxu0 0.0
    %3066 = vmatprep.subr.mxu0 0.0
    %3067 = vmatpush1.msra.mxu0 0.0
    %3068 = vmatprep.subr.mxu0 0.0
    %3069 = vmatpush1.msra.mxu0 0.0
    %3070 = vmatprep.subr.mxu0 0.0
    %3071 = vmatpush1.msra.mxu0 0.0
    %3072 = vmatprep.subr.mxu0 0.0
    %3073 = vmatpush1.msra.mxu0 0.0
    %3074 = vmatprep.subr.mxu0 0.0
    %3075 = vmatpush1.msra.mxu0 0.0
    %3076 = vmatprep.subr.mxu0 0.0
    %3077 = vmatpush1.msra.mxu0 0.0
    %3078 = vmatprep.subr.mxu0 0.0
    %3079 = vmatpush1.msra.mxu0 0.0
    %3080 = vmatprep.subr.mxu0 0.0
    %3081 = vmatpush1.msra.mxu0 0.0
    %3082 = vmatprep.subr.mxu0 0.0
    %3083 = vmatpush1.msra.mxu0 0.0
    %3084 = vmatprep.subr.mxu0 0.0
    %3085 = vmatpush1.msra.mxu0 0.0
    %3086 = vmatprep.subr.mxu0 0.0
    %3087 = vmatpush1.msra.mxu0 0.0
    %3088 = vmatprep.subr.mxu0 0.0
    %3089 = vmatpush1.msra.mxu0 0.0
    %3090 = vmatprep.subr.mxu0 0.0
    %3091 = vmatpush1.msra.mxu0 0.0
    %3092 = vmatprep.subr.mxu0 0.0
    %3093 = vmatpush1.msra.mxu0 0.0
    %3094 = vmatprep.subr.mxu0 0.0
    %3095 = vmatpush1.msra.mxu0 0.0
    %3096 = vmatprep.subr.mxu0 0.0
    %3097 = vmatpush1.msra.mxu0 0.0
    %3098 = vmatprep.subr.mxu0 0.0
    %3099 = vmatpush1.msra.mxu0 0.0
    %3100 = vmatprep.subr.mxu0 0.0
    %3101 = vmatpush1.msra.mxu0 0.0
    %3102 = vmatprep.subr.mxu0 0.0
    %3103 = vmatpush1.msra.mxu0 0.0
    %3104 = vmatprep.subr.mxu0 0.0
    %3105 = vmatpush1.msra.mxu0 0.0
    %3106 = vmatprep.subr.mxu0 0.0
    %3107 = vmatpush1.msra.mxu0 0.0
    %3108 = vmatprep.mubr.f32.mxu0 0.0
    %3109 = vmatmul.mubr.f32.gmra.mrb[0].mxu0 %v3042
    %v3110 = vpop.f32.mrb[0].mxu0
    %v3111 = vadd.f32 0.0, %v3110
    %v3112 = vpop.f32.mrb[0].mxu0
    %3113 = vdwg.mxu0
    %v3115 = vsel %vm299, %v3040, 0
    %3117 = vmatprep.subr.mxu0 0.0
    %3118 = vmatpush1.msra.mxu0 %v2860
    %3119 = vmatprep.subr.mxu0 0.0
    %3120 = vmatpush1.msra.mxu0 0.0
    %3121 = vmatprep.subr.mxu0 0.0
    %3122 = vmatpush1.msra.mxu0 0.0
    %3123 = vmatprep.subr.mxu0 0.0
    %3124 = vmatpush1.msra.mxu0 0.0
    %3125 = vmatprep.subr.mxu0 0.0
    %3126 = vmatpush1.msra.mxu0 0.0
    %3127 = vmatprep.subr.mxu0 0.0
    %3128 = vmatpush1.msra.mxu0 0.0
    %3129 = vmatprep.subr.mxu0 0.0
    %3130 = vmatpush1.msra.mxu0 0.0
    %3131 = vmatprep.subr.mxu0 0.0
    %3132 = vmatpush1.msra.mxu0 0.0
    %3133 = vmatprep.subr.mxu0 0.0
    %3134 = vmatpush1.msra.mxu0 0.0
    %3135 = vmatprep.subr.mxu0 0.0
    %3136 = vmatpush1.msra.mxu0 0.0
    %3137 = vmatprep.subr.mxu0 0.0
    %3138 = vmatpush1.msra.mxu0 0.0
    %3139 = vmatprep.subr.mxu0 0.0
    %3140 = vmatpush1.msra.mxu0 0.0
    %3141 = vmatprep.subr.mxu0 0.0
    %3142 = vmatpush1.msra.mxu0 0.0
    %3143 = vmatprep.subr.mxu0 0.0
    %3144 = vmatpush1.msra.mxu0 0.0
    %3145 = vmatprep.subr.mxu0 0.0
    %3146 = vmatpush1.msra.mxu0 0.0
    %3147 = vmatprep.subr.mxu0 0.0
    %3148 = vmatpush1.msra.mxu0 0.0
    %3149 = vmatprep.subr.mxu0 0.0
    %3150 = vmatpush1.msra.mxu0 0.0
    %3151 = vmatprep.subr.mxu0 0.0
    %3152 = vmatpush1.msra.mxu0 0.0
    %3153 = vmatprep.subr.mxu0 0.0
    %3154 = vmatpush1.msra.mxu0 0.0
    %3155 = vmatprep.subr.mxu0 0.0
    %3156 = vmatpush1.msra.mxu0 0.0
    %3157 = vmatprep.subr.mxu0 0.0
    %3158 = vmatpush1.msra.mxu0 0.0
    %3159 = vmatprep.subr.mxu0 0.0
    %3160 = vmatpush1.msra.mxu0 0.0
    %3161 = vmatprep.subr.mxu0 0.0
    %3162 = vmatpush1.msra.mxu0 0.0
    %3163 = vmatprep.subr.mxu0 0.0
    %3164 = vmatpush1.msra.mxu0 0.0
    %3165 = vmatprep.subr.mxu0 0.0
    %3166 = vmatpush1.msra.mxu0 0.0
    %3167 = vmatprep.subr.mxu0 0.0
    %3168 = vmatpush1.msra.mxu0 0.0
    %3169 = vmatprep.subr.mxu0 0.0
    %3170 = vmatpush1.msra.mxu0 0.0
    %3171 = vmatprep.subr.mxu0 0.0
    %3172 = vmatpush1.msra.mxu0 0.0
    %3173 = vmatprep.subr.mxu0 0.0
    %3174 = vmatpush1.msra.mxu0 0.0
    %3175 = vmatprep.subr.mxu0 0.0
    %3176 = vmatpush1.msra.mxu0 0.0
    %3177 = vmatprep.subr.mxu0 0.0
    %3178 = vmatpush1.msra.mxu0 0.0
    %3179 = vmatprep.subr.mxu0 0.0
    %3180 = vmatpush1.msra.mxu0 0.0
    %3181 = vmatprep.mubr.f32.mxu0 0.0
    %3182 = vmatmul.mubr.f32.gmra.mrb[0].mxu0 %v3115
    %v3183 = vpop.f32.mrb[0].mxu0
    %v3184 = vadd.f32 0.0, %v3183
    %v3185 = vpop.f32.mrb[0].mxu0
    %3186 = vdwg.mxu0
    %v3187 = vpack.c.bf16 %v3184, %v3111
    %s3188 = scalar_lea.vmem %s5, 16
    %v3189 = vld [vmem:[%s3188] sm:$0xf]
    %s3190 = scalar_lea.vmem %s3, 208
    %v3191 = vld [vmem:[%s3190] sm:$0xf]
    %v3192 = vld [vmem:[%s3190 + $0x4] sm:$0xf]
    %v3193 = vld [vmem:[%s3190 + $0x8] sm:$0xf]
    %v3194 = vld [vmem:[%s3190 + $0xc] sm:$0xf]
    %s3195 = scalar_lea.vmem %s4, 13
    %v3196 = vld [vmem:[%s3195] sm:$0x1]
    %v3198 = vlaneseq
    %v3199 = vshrl.u32 %v3198, 7
    %v3200 = vsub.s32 0, %v3199
    %v3201 = vrot.slane %v3196, %v3200
    %v3207 = vunpack.c.l.b16 %v3191
    %v3208 = vunpack.c.l.b16 %v3192
    %v3209 = vunpack.c.l.b16 %v3193
    %v3210 = vunpack.c.l.b16 %v3194
    %v3211 = vpack.c.b16 %v3208, %v3207
    %v3212 = vpack.c.b16 %v3210, %v3209
    %3215 = vmatprep.subr.bf16.mxu0 0
    %3216 = vmatpush1.bf16.msra.mxu0 %v3211
    %3217 = vmatprep.subr.bf16.mxu0 0
    %3218 = vmatpush1.bf16.msra.mxu0 %v3212
    %3219 = vmatprep.subr.bf16.mxu0 0
    %3220 = vmatpush1.bf16.msra.mxu0 0
    %3221 = vmatprep.subr.bf16.mxu0 0
    %3222 = vmatpush1.bf16.msra.mxu0 0
    %3223 = vmatprep.subr.bf16.mxu0 0
    %3224 = vmatpush1.bf16.msra.mxu0 0
    %3225 = vmatprep.subr.bf16.mxu0 0
    %3226 = vmatpush1.bf16.msra.mxu0 0
    %3227 = vmatprep.subr.bf16.mxu0 0
    %3228 = vmatpush1.bf16.msra.mxu0 0
    %3229 = vmatprep.subr.bf16.mxu0 0
    %3230 = vmatpush1.bf16.msra.mxu0 0
    %3231 = vmatprep.subr.bf16.mxu0 0
    %3232 = vmatpush1.bf16.msra.mxu0 0
    %3233 = vmatprep.subr.bf16.mxu0 0
    %3234 = vmatpush1.bf16.msra.mxu0 0
    %3235 = vmatprep.subr.bf16.mxu0 0
    %3236 = vmatpush1.bf16.msra.mxu0 0
    %3237 = vmatprep.subr.bf16.mxu0 0
    %3238 = vmatpush1.bf16.msra.mxu0 0
    %3239 = vmatprep.subr.bf16.mxu0 0
    %3240 = vmatpush1.bf16.msra.mxu0 0
    %3241 = vmatprep.subr.bf16.mxu0 0
    %3242 = vmatpush1.bf16.msra.mxu0 0
    %3243 = vmatprep.subr.bf16.mxu0 0
    %3244 = vmatpush1.bf16.msra.mxu0 0
    %3245 = vmatprep.subr.bf16.mxu0 0
    %3246 = vmatpush1.bf16.msra.mxu0 0
    %3247 = vmatprep.mubr.bf16.mxu0 0
    %3248 = vmatmul.mubr.bf16.gmra.mrb[0].mxu0 %v2688
    %v3249 = vpop.f32.mrb[0].mxu0
    %v3250 = vadd.f32 %v3201, %v3249
    %v3251 = vpop.f32.mrb[0].mxu0
    %v3252 = vpop.f32.mrb[0].mxu0
    %v3253 = vadd.f32 %v3201, %v3252
    %v3254 = vpop.f32.mrb[0].mxu0
    %3255 = vdwg.mxu0
    %s3256 = scalar_lea.vmem %s3, 272
    %v3257 = vld [vmem:[%s3256] sm:$0xf]
    %v3258 = vld [vmem:[%s3256 + $0x4] sm:$0xf]
    %v3259 = vld [vmem:[%s3256 + $0x8] sm:$0xf]
    %v3260 = vld [vmem:[%s3256 + $0xc] sm:$0xf]
    %s3261 = scalar_lea.vmem %s4, 17
    %v3262 = vld [vmem:[%s3261] sm:$0x1]
    %v3264 = vlaneseq
    %v3265 = vshrl.u32 %v3264, 7
    %v3266 = vsub.s32 0, %v3265
    %v3267 = vrot.slane %v3262, %v3266
    %v3273 = vunpack.c.l.b16 %v3257
    %v3274 = vunpack.c.l.b16 %v3258
    %v3275 = vunpack.c.l.b16 %v3259
    %v3276 = vunpack.c.l.b16 %v3260
    %v3277 = vpack.c.b16 %v3274, %v3273
    %v3278 = vpack.c.b16 %v3276, %v3275
    %3281 = vmatprep.subr.bf16.mxu0 0
    %3282 = vmatpush1.bf16.msra.mxu0 %v3277
    %3283 = vmatprep.subr.bf16.mxu0 0
    %3284 = vmatpush1.bf16.msra.mxu0 %v3278
    %3285 = vmatprep.subr.bf16.mxu0 0
    %3286 = vmatpush1.bf16.msra.mxu0 0
    %3287 = vmatprep.subr.bf16.mxu0 0
    %3288 = vmatpush1.bf16.msra.mxu0 0
    %3289 = vmatprep.subr.bf16.mxu0 0
    %3290 = vmatpush1.bf16.msra.mxu0 0
    %3291 = vmatprep.subr.bf16.mxu0 0
    %3292 = vmatpush1.bf16.msra.mxu0 0
    %3293 = vmatprep.subr.bf16.mxu0 0
    %3294 = vmatpush1.bf16.msra.mxu0 0
    %3295 = vmatprep.subr.bf16.mxu0 0
    %3296 = vmatpush1.bf16.msra.mxu0 0
    %3297 = vmatprep.subr.bf16.mxu0 0
    %3298 = vmatpush1.bf16.msra.mxu0 0
    %3299 = vmatprep.subr.bf16.mxu0 0
    %3300 = vmatpush1.bf16.msra.mxu0 0
    %3301 = vmatprep.subr.bf16.mxu0 0
    %3302 = vmatpush1.bf16.msra.mxu0 0
    %3303 = vmatprep.subr.bf16.mxu0 0
    %3304 = vmatpush1.bf16.msra.mxu0 0
    %3305 = vmatprep.subr.bf16.mxu0 0
    %3306 = vmatpush1.bf16.msra.mxu0 0
    %3307 = vmatprep.subr.bf16.mxu0 0
    %3308 = vmatpush1.bf16.msra.mxu0 0
    %3309 = vmatprep.subr.bf16.mxu0 0
    %3310 = vmatpush1.bf16.msra.mxu0 0
    %3311 = vmatprep.subr.bf16.mxu0 0
    %3312 = vmatpush1.bf16.msra.mxu0 0
    %3313 = vmatprep.mubr.bf16.mxu0 0
    %3314 = vmatmul.mubr.bf16.gmra.mrb[0].mxu0 %v2688
    %v3315 = vpop.f32.mrb[0].mxu0
    %v3316 = vadd.f32 %v3267, %v3315
    %v3317 = vpop.f32.mrb[0].mxu0
    %v3318 = vpop.f32.mrb[0].mxu0
    %v3319 = vadd.f32 %v3267, %v3318
    %v3320 = vpop.f32.mrb[0].mxu0
    %3321 = vdwg.mxu0
    %s3322 = scalar_lea.vmem %s3, 336
    %v3323 = vld [vmem:[%s3322] sm:$0xf]
    %v3324 = vld [vmem:[%s3322 + $0x4] sm:$0xf]
    %v3325 = vld [vmem:[%s3322 + $0x8] sm:$0xf]
    %v3326 = vld [vmem:[%s3322 + $0xc] sm:$0xf]
    %s3327 = scalar_lea.vmem %s4, 21
    %v3328 = vld [vmem:[%s3327] sm:$0x1]
    %v3330 = vlaneseq
    %v3331 = vshrl.u32 %v3330, 7
    %v3332 = vsub.s32 0, %v3331
    %v3333 = vrot.slane %v3328, %v3332
    %v3339 = vunpack.c.l.b16 %v3323
    %v3340 = vunpack.c.l.b16 %v3324
    %v3341 = vunpack.c.l.b16 %v3325
    %v3342 = vunpack.c.l.b16 %v3326
    %v3343 = vpack.c.b16 %v3340, %v3339
    %v3344 = vpack.c.b16 %v3342, %v3341
    %3347 = vmatprep.subr.bf16.mxu0 0
    %3348 = vmatpush1.bf16.msra.mxu0 %v3343
    %3349 = vmatprep.subr.bf16.mxu0 0
    %3350 = vmatpush1.bf16.msra.mxu0 %v3344
    %3351 = vmatprep.subr.bf16.mxu0 0
    %3352 = vmatpush1.bf16.msra.mxu0 0
    %3353 = vmatprep.subr.bf16.mxu0 0
    %3354 = vmatpush1.bf16.msra.mxu0 0
    %3355 = vmatprep.subr.bf16.mxu0 0
    %3356 = vmatpush1.bf16.msra.mxu0 0
    %3357 = vmatprep.subr.bf16.mxu0 0
    %3358 = vmatpush1.bf16.msra.mxu0 0
    %3359 = vmatprep.subr.bf16.mxu0 0
    %3360 = vmatpush1.bf16.msra.mxu0 0
    %3361 = vmatprep.subr.bf16.mxu0 0
    %3362 = vmatpush1.bf16.msra.mxu0 0
    %3363 = vmatprep.subr.bf16.mxu0 0
    %3364 = vmatpush1.bf16.msra.mxu0 0
    %3365 = vmatprep.subr.bf16.mxu0 0
    %3366 = vmatpush1.bf16.msra.mxu0 0
    %3367 = vmatprep.subr.bf16.mxu0 0
    %3368 = vmatpush1.bf16.msra.mxu0 0
    %3369 = vmatprep.subr.bf16.mxu0 0
    %3370 = vmatpush1.bf16.msra.mxu0 0
    %3371 = vmatprep.subr.bf16.mxu0 0
    %3372 = vmatpush1.bf16.msra.mxu0 0
    %3373 = vmatprep.subr.bf16.mxu0 0
    %3374 = vmatpush1.bf16.msra.mxu0 0
    %3375 = vmatprep.subr.bf16.mxu0 0
    %3376 = vmatpush1.bf16.msra.mxu0 0
    %3377 = vmatprep.subr.bf16.mxu0 0
    %3378 = vmatpush1.bf16.msra.mxu0 0
    %3379 = vmatprep.mubr.bf16.mxu0 0
    %3380 = vmatmul.mubr.bf16.gmra.mrb[0].mxu0 %v2688
    %v3381 = vpop.f32.mrb[0].mxu0
    %v3382 = vadd.f32 %v3333, %v3381
    %v3383 = vpop.f32.mrb[0].mxu0
    %v3384 = vpop.f32.mrb[0].mxu0
    %v3385 = vadd.f32 %v3333, %v3384
    %v3386 = vpop.f32.mrb[0].mxu0
    %3387 = vdwg.mxu0
    %v3389 = vsel %vm299, %v3250, 0
    %v3392 = vsel %vm299, %v3316, 0
    %3394 = vmatprep.subr.mxu0 0.0
    %3395 = vmatpush1.xpose.msra.mxu0 %v3392
    %3396 = vmatprep.subr.mxu0 0.0
    %3397 = vmatpush1.xpose.msra.mxu0 0.0
    %3398 = vmatprep.subr.mxu0 0.0
    %3399 = vmatpush1.xpose.msra.mxu0 0.0
    %3400 = vmatprep.subr.mxu0 0.0
    %3401 = vmatpush1.xpose.msra.mxu0 0.0
    %3402 = vmatprep.subr.mxu0 0.0
    %3403 = vmatpush1.xpose.msra.mxu0 0.0
    %3404 = vmatprep.subr.mxu0 0.0
    %3405 = vmatpush1.xpose.msra.mxu0 0.0
    %3406 = vmatprep.subr.mxu0 0.0
    %3407 = vmatpush1.xpose.msra.mxu0 0.0
    %3408 = vmatprep.subr.mxu0 0.0
    %3409 = vmatpush1.xpose.msra.mxu0 0.0
    %3410 = vmatprep.subr.mxu0 0.0
    %3411 = vmatpush1.xpose.msra.mxu0 0.0
    %3412 = vmatprep.subr.mxu0 0.0
    %3413 = vmatpush1.xpose.msra.mxu0 0.0
    %3414 = vmatprep.subr.mxu0 0.0
    %3415 = vmatpush1.xpose.msra.mxu0 0.0
    %3416 = vmatprep.subr.mxu0 0.0
    %3417 = vmatpush1.xpose.msra.mxu0 0.0
    %3418 = vmatprep.subr.mxu0 0.0
    %3419 = vmatpush1.xpose.msra.mxu0 0.0
    %3420 = vmatprep.subr.mxu0 0.0
    %3421 = vmatpush1.xpose.msra.mxu0 0.0
    %3422 = vmatprep.subr.mxu0 0.0
    %3423 = vmatpush1.xpose.msra.mxu0 0.0
    %3424 = vmatprep.subr.mxu0 0.0
    %3425 = vmatpush1.xpose.msra.mxu0 0.0
    %3426 = vmatprep.subr.mxu0 0.0
    %3427 = vmatpush1.xpose.msra.mxu0 0.0
    %3428 = vmatprep.subr.mxu0 0.0
    %3429 = vmatpush1.xpose.msra.mxu0 0.0
    %3430 = vmatprep.subr.mxu0 0.0
    %3431 = vmatpush1.xpose.msra.mxu0 0.0
    %3432 = vmatprep.subr.mxu0 0.0
    %3433 = vmatpush1.xpose.msra.mxu0 0.0
    %3434 = vmatprep.subr.mxu0 0.0
    %3435 = vmatpush1.xpose.msra.mxu0 0.0
    %3436 = vmatprep.subr.mxu0 0.0
    %3437 = vmatpush1.xpose.msra.mxu0 0.0
    %3438 = vmatprep.subr.mxu0 0.0
    %3439 = vmatpush1.xpose.msra.mxu0 0.0
    %3440 = vmatprep.subr.mxu0 0.0
    %3441 = vmatpush1.xpose.msra.mxu0 0.0
    %3442 = vmatprep.subr.mxu0 0.0
    %3443 = vmatpush1.xpose.msra.mxu0 0.0
    %3444 = vmatprep.subr.mxu0 0.0
    %3445 = vmatpush1.xpose.msra.mxu0 0.0
    %3446 = vmatprep.subr.mxu0 0.0
    %3447 = vmatpush1.xpose.msra.mxu0 0.0
    %3448 = vmatprep.subr.mxu0 0.0
    %3449 = vmatpush1.xpose.msra.mxu0 0.0
    %3450 = vmatprep.subr.mxu0 0.0
    %3451 = vmatpush1.xpose.msra.mxu0 0.0
    %3452 = vmatprep.subr.mxu0 0.0
    %3453 = vmatpush1.xpose.msra.mxu0 0.0
    %3454 = vmatprep.subr.mxu0 0.0
    %3455 = vmatpush1.xpose.msra.mxu0 0.0
    %3456 = vmatprep.subr.mxu0 0.0
    %3457 = vmatpush1.xpose.msra.mxu0 0.0
    %3458 = vmatprep.mubr.f32.mxu0 0.0
    %3459 = vmatmul.mubr.f32.gmra.mrb[0].mxu0 %v3389
    %v3460 = vpop.f32.mrb[0].mxu0
    %v3461 = vadd.f32 0.0, %v3460
    %v3462 = vpop.f32.mrb[0].mxu0
    %3463 = vdwg.mxu0
    %v3465 = vsel %vm299, %v3253, 0
    %v3468 = vsel %vm299, %v3319, 0
    %3470 = vmatprep.subr.mxu0 0.0
    %3471 = vmatpush1.xpose.msra.mxu0 %v3468
    %3472 = vmatprep.subr.mxu0 0.0
    %3473 = vmatpush1.xpose.msra.mxu0 0.0
    %3474 = vmatprep.subr.mxu0 0.0
    %3475 = vmatpush1.xpose.msra.mxu0 0.0
    %3476 = vmatprep.subr.mxu0 0.0
    %3477 = vmatpush1.xpose.msra.mxu0 0.0
    %3478 = vmatprep.subr.mxu0 0.0
    %3479 = vmatpush1.xpose.msra.mxu0 0.0
    %3480 = vmatprep.subr.mxu0 0.0
    %3481 = vmatpush1.xpose.msra.mxu0 0.0
    %3482 = vmatprep.subr.mxu0 0.0
    %3483 = vmatpush1.xpose.msra.mxu0 0.0
    %3484 = vmatprep.subr.mxu0 0.0
    %3485 = vmatpush1.xpose.msra.mxu0 0.0
    %3486 = vmatprep.subr.mxu0 0.0
    %3487 = vmatpush1.xpose.msra.mxu0 0.0
    %3488 = vmatprep.subr.mxu0 0.0
    %3489 = vmatpush1.xpose.msra.mxu0 0.0
    %3490 = vmatprep.subr.mxu0 0.0
    %3491 = vmatpush1.xpose.msra.mxu0 0.0
    %3492 = vmatprep.subr.mxu0 0.0
    %3493 = vmatpush1.xpose.msra.mxu0 0.0
    %3494 = vmatprep.subr.mxu0 0.0
    %3495 = vmatpush1.xpose.msra.mxu0 0.0
    %3496 = vmatprep.subr.mxu0 0.0
    %3497 = vmatpush1.xpose.msra.mxu0 0.0
    %3498 = vmatprep.subr.mxu0 0.0
    %3499 = vmatpush1.xpose.msra.mxu0 0.0
    %3500 = vmatprep.subr.mxu0 0.0
    %3501 = vmatpush1.xpose.msra.mxu0 0.0
    %3502 = vmatprep.subr.mxu0 0.0
    %3503 = vmatpush1.xpose.msra.mxu0 0.0
    %3504 = vmatprep.subr.mxu0 0.0
    %3505 = vmatpush1.xpose.msra.mxu0 0.0
    %3506 = vmatprep.subr.mxu0 0.0
    %3507 = vmatpush1.xpose.msra.mxu0 0.0
    %3508 = vmatprep.subr.mxu0 0.0
    %3509 = vmatpush1.xpose.msra.mxu0 0.0
    %3510 = vmatprep.subr.mxu0 0.0
    %3511 = vmatpush1.xpose.msra.mxu0 0.0
    %3512 = vmatprep.subr.mxu0 0.0
    %3513 = vmatpush1.xpose.msra.mxu0 0.0
    %3514 = vmatprep.subr.mxu0 0.0
    %3515 = vmatpush1.xpose.msra.mxu0 0.0
    %3516 = vmatprep.subr.mxu0 0.0
    %3517 = vmatpush1.xpose.msra.mxu0 0.0
    %3518 = vmatprep.subr.mxu0 0.0
    %3519 = vmatpush1.xpose.msra.mxu0 0.0
    %3520 = vmatprep.subr.mxu0 0.0
    %3521 = vmatpush1.xpose.msra.mxu0 0.0
    %3522 = vmatprep.subr.mxu0 0.0
    %3523 = vmatpush1.xpose.msra.mxu0 0.0
    %3524 = vmatprep.subr.mxu0 0.0
    %3525 = vmatpush1.xpose.msra.mxu0 0.0
    %3526 = vmatprep.subr.mxu0 0.0
    %3527 = vmatpush1.xpose.msra.mxu0 0.0
    %3528 = vmatprep.subr.mxu0 0.0
    %3529 = vmatpush1.xpose.msra.mxu0 0.0
    %3530 = vmatprep.subr.mxu0 0.0
    %3531 = vmatpush1.xpose.msra.mxu0 0.0
    %3532 = vmatprep.subr.mxu0 0.0
    %3533 = vmatpush1.xpose.msra.mxu0 0.0
    %3534 = vmatprep.mubr.f32.mxu0 0.0
    %3535 = vmatmul.mubr.f32.gmra.mrb[0].mxu0 %v3465
    %v3536 = vpop.f32.mrb[0].mxu0
    %v3537 = vadd.f32 0.0, %v3536
    %v3538 = vpop.f32.mrb[0].mxu0
    %3539 = vdwg.mxu0
    %v3540 = vmul.f32 %v3461, 0.35355338
    %v3541 = vmul.f32 %v3537, 0.35355338
    %v3542 = vadd.f32 %v3540, %v46
    %v3543 = vadd.f32 %v3541, %v47
    %v3544 = vsel %vm299, %v3542, -inf
    %3545 = vmax.xlane.f32.xlu0 %v3544
    %v3546 = vpop.xlane.xlu0 %3545
    %v3547 = vsel %vm299, %v3543, -inf
    %3548 = vmax.xlane.f32.xlu0 %v3547
    %v3549 = vpop.xlane.xlu0 %3548
    %v3550 = vsub.f32 %v3542, %v3546
    %v3551 = vsub.f32 %v3543, %v3549
    %v3552 = vmul.f32 %v3550, 1.442695
    %v3553 = vpow.pop %v3552
    %v3554 = vmul.f32 %v3551, 1.442695
    %v3555 = vpow.pop %v3554
    %v3556 = vsel %vm299, %v3553, 0.0
    %3557 = vadd.xlane.f32.xlu0 %v3556
    %v3558 = vpop.xlane.xlu0 %3557
    %v3559 = vsel %vm299, %v3555, 0.0
    %3560 = vadd.xlane.f32.xlu0 %v3559
    %v3561 = vpop.xlane.xlu0 %3560
    %v3562 = vrcp.pop %v3558
    %v3563 = vrcp.pop %v3561
    %v3564 = vmul.f32 %v3553, %v3562
    %v3565 = vmul.f32 %v3555, %v3563
    %v3567 = vsel %vm299, %v3564, 0
    %3569 = vmatprep.subr.mxu0 0.0
    %3570 = vmatpush1.msra.mxu0 %v3382
    %3571 = vmatprep.subr.mxu0 0.0
    %3572 = vmatpush1.msra.mxu0 0.0
    %3573 = vmatprep.subr.mxu0 0.0
    %3574 = vmatpush1.msra.mxu0 0.0
    %3575 = vmatprep.subr.mxu0 0.0
    %3576 = vmatpush1.msra.mxu0 0.0
    %3577 = vmatprep.subr.mxu0 0.0
    %3578 = vmatpush1.msra.mxu0 0.0
    %3579 = vmatprep.subr.mxu0 0.0
    %3580 = vmatpush1.msra.mxu0 0.0
    %3581 = vmatprep.subr.mxu0 0.0
    %3582 = vmatpush1.msra.mxu0 0.0
    %3583 = vmatprep.subr.mxu0 0.0
    %3584 = vmatpush1.msra.mxu0 0.0
    %3585 = vmatprep.subr.mxu0 0.0
    %3586 = vmatpush1.msra.mxu0 0.0
    %3587 = vmatprep.subr.mxu0 0.0
    %3588 = vmatpush1.msra.mxu0 0.0
    %3589 = vmatprep.subr.mxu0 0.0
    %3590 = vmatpush1.msra.mxu0 0.0
    %3591 = vmatprep.subr.mxu0 0.0
    %3592 = vmatpush1.msra.mxu0 0.0
    %3593 = vmatprep.subr.mxu0 0.0
    %3594 = vmatpush1.msra.mxu0 0.0
    %3595 = vmatprep.subr.mxu0 0.0
    %3596 = vmatpush1.msra.mxu0 0.0
    %3597 = vmatprep.subr.mxu0 0.0
    %3598 = vmatpush1.msra.mxu0 0.0
    %3599 = vmatprep.subr.mxu0 0.0
    %3600 = vmatpush1.msra.mxu0 0.0
    %3601 = vmatprep.subr.mxu0 0.0
    %3602 = vmatpush1.msra.mxu0 0.0
    %3603 = vmatprep.subr.mxu0 0.0
    %3604 = vmatpush1.msra.mxu0 0.0
    %3605 = vmatprep.subr.mxu0 0.0
    %3606 = vmatpush1.msra.mxu0 0.0
    %3607 = vmatprep.subr.mxu0 0.0
    %3608 = vmatpush1.msra.mxu0 0.0
    %3609 = vmatprep.subr.mxu0 0.0
    %3610 = vmatpush1.msra.mxu0 0.0
    %3611 = vmatprep.subr.mxu0 0.0
    %3612 = vmatpush1.msra.mxu0 0.0
    %3613 = vmatprep.subr.mxu0 0.0
    %3614 = vmatpush1.msra.mxu0 0.0
    %3615 = vmatprep.subr.mxu0 0.0
    %3616 = vmatpush1.msra.mxu0 0.0
    %3617 = vmatprep.subr.mxu0 0.0
    %3618 = vmatpush1.msra.mxu0 0.0
    %3619 = vmatprep.subr.mxu0 0.0
    %3620 = vmatpush1.msra.mxu0 0.0
    %3621 = vmatprep.subr.mxu0 0.0
    %3622 = vmatpush1.msra.mxu0 0.0
    %3623 = vmatprep.subr.mxu0 0.0
    %3624 = vmatpush1.msra.mxu0 0.0
    %3625 = vmatprep.subr.mxu0 0.0
    %3626 = vmatpush1.msra.mxu0 0.0
    %3627 = vmatprep.subr.mxu0 0.0
    %3628 = vmatpush1.msra.mxu0 0.0
    %3629 = vmatprep.subr.mxu0 0.0
    %3630 = vmatpush1.msra.mxu0 0.0
    %3631 = vmatprep.subr.mxu0 0.0
    %3632 = vmatpush1.msra.mxu0 0.0
    %3633 = vmatprep.mubr.f32.mxu0 0.0
    %3634 = vmatmul.mubr.f32.gmra.mrb[0].mxu0 %v3567
    %v3635 = vpop.f32.mrb[0].mxu0
    %v3636 = vadd.f32 0.0, %v3635
    %v3637 = vpop.f32.mrb[0].mxu0
    %3638 = vdwg.mxu0
    %v3640 = vsel %vm299, %v3565, 0
    %3642 = vmatprep.subr.mxu0 0.0
    %3643 = vmatpush1.msra.mxu0 %v3385
    %3644 = vmatprep.subr.mxu0 0.0
    %3645 = vmatpush1.msra.mxu0 0.0
    %3646 = vmatprep.subr.mxu0 0.0
    %3647 = vmatpush1.msra.mxu0 0.0
    %3648 = vmatprep.subr.mxu0 0.0
    %3649 = vmatpush1.msra.mxu0 0.0
    %3650 = vmatprep.subr.mxu0 0.0
    %3651 = vmatpush1.msra.mxu0 0.0
    %3652 = vmatprep.subr.mxu0 0.0
    %3653 = vmatpush1.msra.mxu0 0.0
    %3654 = vmatprep.subr.mxu0 0.0
    %3655 = vmatpush1.msra.mxu0 0.0
    %3656 = vmatprep.subr.mxu0 0.0
    %3657 = vmatpush1.msra.mxu0 0.0
    %3658 = vmatprep.subr.mxu0 0.0
    %3659 = vmatpush1.msra.mxu0 0.0
    %3660 = vmatprep.subr.mxu0 0.0
    %3661 = vmatpush1.msra.mxu0 0.0
    %3662 = vmatprep.subr.mxu0 0.0
    %3663 = vmatpush1.msra.mxu0 0.0
    %3664 = vmatprep.subr.mxu0 0.0
    %3665 = vmatpush1.msra.mxu0 0.0
    %3666 = vmatprep.subr.mxu0 0.0
    %3667 = vmatpush1.msra.mxu0 0.0
    %3668 = vmatprep.subr.mxu0 0.0
    %3669 = vmatpush1.msra.mxu0 0.0
    %3670 = vmatprep.subr.mxu0 0.0
    %3671 = vmatpush1.msra.mxu0 0.0
    %3672 = vmatprep.subr.mxu0 0.0
    %3673 = vmatpush1.msra.mxu0 0.0
    %3674 = vmatprep.subr.mxu0 0.0
    %3675 = vmatpush1.msra.mxu0 0.0
    %3676 = vmatprep.subr.mxu0 0.0
    %3677 = vmatpush1.msra.mxu0 0.0
    %3678 = vmatprep.subr.mxu0 0.0
    %3679 = vmatpush1.msra.mxu0 0.0
    %3680 = vmatprep.subr.mxu0 0.0
    %3681 = vmatpush1.msra.mxu0 0.0
    %3682 = vmatprep.subr.mxu0 0.0
    %3683 = vmatpush1.msra.mxu0 0.0
    %3684 = vmatprep.subr.mxu0 0.0
    %3685 = vmatpush1.msra.mxu0 0.0
    %3686 = vmatprep.subr.mxu0 0.0
    %3687 = vmatpush1.msra.mxu0 0.0
    %3688 = vmatprep.subr.mxu0 0.0
    %3689 = vmatpush1.msra.mxu0 0.0
    %3690 = vmatprep.subr.mxu0 0.0
    %3691 = vmatpush1.msra.mxu0 0.0
    %3692 = vmatprep.subr.mxu0 0.0
    %3693 = vmatpush1.msra.mxu0 0.0
    %3694 = vmatprep.subr.mxu0 0.0
    %3695 = vmatpush1.msra.mxu0 0.0
    %3696 = vmatprep.subr.mxu0 0.0
    %3697 = vmatpush1.msra.mxu0 0.0
    %3698 = vmatprep.subr.mxu0 0.0
    %3699 = vmatpush1.msra.mxu0 0.0
    %3700 = vmatprep.subr.mxu0 0.0
    %3701 = vmatpush1.msra.mxu0 0.0
    %3702 = vmatprep.subr.mxu0 0.0
    %3703 = vmatpush1.msra.mxu0 0.0
    %3704 = vmatprep.subr.mxu0 0.0
    %3705 = vmatpush1.msra.mxu0 0.0
    %3706 = vmatprep.mubr.f32.mxu0 0.0
    %3707 = vmatmul.mubr.f32.gmra.mrb[0].mxu0 %v3640
    %v3708 = vpop.f32.mrb[0].mxu0
    %v3709 = vadd.f32 0.0, %v3708
    %v3710 = vpop.f32.mrb[0].mxu0
    %3711 = vdwg.mxu0
    %v3712 = vpack.c.bf16 %v3709, %v3636
    %s3713 = scalar_lea.vmem %s5, 20
    %v3714 = vld [vmem:[%s3713] sm:$0xf]
    %v3716 = vsel %vm299, %v3712, 0
    %v3719 = vsel %vm1154, %v3714, 0
    %3721 = vmatprep.subr.bf16.mxu0 0
    %3722 = vmatpush1.bf16.msra.mxu0 %v3719
    %3723 = vmatprep.subr.bf16.mxu0 0
    %3724 = vmatpush1.bf16.msra.mxu0 0
    %3725 = vmatprep.subr.bf16.mxu0 0
    %3726 = vmatpush1.bf16.msra.mxu0 0
    %3727 = vmatprep.subr.bf16.mxu0 0
    %3728 = vmatpush1.bf16.msra.mxu0 0
    %3729 = vmatprep.subr.bf16.mxu0 0
    %3730 = vmatpush1.bf16.msra.mxu0 0
    %3731 = vmatprep.subr.bf16.mxu0 0
    %3732 = vmatpush1.bf16.msra.mxu0 0
    %3733 = vmatprep.subr.bf16.mxu0 0
    %3734 = vmatpush1.bf16.msra.mxu0 0
    %3735 = vmatprep.subr.bf16.mxu0 0
    %3736 = vmatpush1.bf16.msra.mxu0 0
    %3737 = vmatprep.subr.bf16.mxu0 0
    %3738 = vmatpush1.bf16.msra.mxu0 0
    %3739 = vmatprep.subr.bf16.mxu0 0
    %3740 = vmatpush1.bf16.msra.mxu0 0
    %3741 = vmatprep.subr.bf16.mxu0 0
    %3742 = vmatpush1.bf16.msra.mxu0 0
    %3743 = vmatprep.subr.bf16.mxu0 0
    %3744 = vmatpush1.bf16.msra.mxu0 0
    %3745 = vmatprep.subr.bf16.mxu0 0
    %3746 = vmatpush1.bf16.msra.mxu0 0
    %3747 = vmatprep.subr.bf16.mxu0 0
    %3748 = vmatpush1.bf16.msra.mxu0 0
    %3749 = vmatprep.subr.bf16.mxu0 0
    %3750 = vmatpush1.bf16.msra.mxu0 0
    %3751 = vmatprep.subr.bf16.mxu0 0
    %3752 = vmatpush1.bf16.msra.mxu0 0
    %3753 = vmatprep.mubr.bf16.mxu0 0
    %3754 = vmatmul.mubr.bf16.gmra.mrb[0].mxu0 %v3716
    %v3755 = vpop.f32.mrb[0].mxu0
    %v3756 = vadd.f32 0.0, %v3755
    %v3757 = vpop.f32.mrb[0].mxu0
    %v3758 = vpop.f32.mrb[0].mxu0
    %v3759 = vadd.f32 0.0, %v3758
    %v3760 = vpop.f32.mrb[0].mxu0
    %3761 = vdwg.mxu0
    %v3763 = vsel %vm299, %v3187, 0
    %v3766 = vsel %vm1154, %v3189, 0
    %3768 = vmatprep.subr.bf16.mxu0 0
    %3769 = vmatpush1.bf16.msra.mxu0 %v3766
    %3770 = vmatprep.subr.bf16.mxu0 0
    %3771 = vmatpush1.bf16.msra.mxu0 0
    %3772 = vmatprep.subr.bf16.mxu0 0
    %3773 = vmatpush1.bf16.msra.mxu0 0
    %3774 = vmatprep.subr.bf16.mxu0 0
    %3775 = vmatpush1.bf16.msra.mxu0 0
    %3776 = vmatprep.subr.bf16.mxu0 0
    %3777 = vmatpush1.bf16.msra.mxu0 0
    %3778 = vmatprep.subr.bf16.mxu0 0
    %3779 = vmatpush1.bf16.msra.mxu0 0
    %3780 = vmatprep.subr.bf16.mxu0 0
    %3781 = vmatpush1.bf16.msra.mxu0 0
    %3782 = vmatprep.subr.bf16.mxu0 0
    %3783 = vmatpush1.bf16.msra.mxu0 0
    %3784 = vmatprep.subr.bf16.mxu0 0
    %3785 = vmatpush1.bf16.msra.mxu0 0
    %3786 = vmatprep.subr.bf16.mxu0 0
    %3787 = vmatpush1.bf16.msra.mxu0 0
    %3788 = vmatprep.subr.bf16.mxu0 0
    %3789 = vmatpush1.bf16.msra.mxu0 0
    %3790 = vmatprep.subr.bf16.mxu0 0
    %3791 = vmatpush1.bf16.msra.mxu0 0
    %3792 = vmatprep.subr.bf16.mxu0 0
    %3793 = vmatpush1.bf16.msra.mxu0 0
    %3794 = vmatprep.subr.bf16.mxu0 0
    %3795 = vmatpush1.bf16.msra.mxu0 0
    %3796 = vmatprep.subr.bf16.mxu0 0
    %3797 = vmatpush1.bf16.msra.mxu0 0
    %3798 = vmatprep.subr.bf16.mxu0 0
    %3799 = vmatpush1.bf16.msra.mxu0 0
    %3800 = vmatprep.mubr.bf16.mxu0 0
    %3801 = vmatmul.mubr.bf16.gmra.mrb[0].mxu0 %v3763
    %v3802 = vpop.f32.mrb[0].mxu0
    %v3803 = vadd.f32 %v3756, %v3802
    %v3804 = vpop.f32.mrb[0].mxu0
    %v3805 = vpop.f32.mrb[0].mxu0
    %v3806 = vadd.f32 %v3759, %v3805
    %v3807 = vpop.f32.mrb[0].mxu0
    %3808 = vdwg.mxu0
    %s3809 = scalar_lea.vmem %s3, 224
    %v3810 = vld [vmem:[%s3809] sm:$0xf]
    %v3811 = vld [vmem:[%s3809 + $0x4] sm:$0xf]
    %v3812 = vld [vmem:[%s3809 + $0x8] sm:$0xf]
    %v3813 = vld [vmem:[%s3809 + $0xc] sm:$0xf]
    %s3814 = scalar_lea.vmem %s4, 14
    %v3815 = vld [vmem:[%s3814] sm:$0x1]
    %v3817 = vlaneseq
    %v3818 = vshrl.u32 %v3817, 7
    %v3819 = vsub.s32 0, %v3818
    %v3820 = vrot.slane %v3815, %v3819
    %v3826 = vunpack.c.l.b16 %v3810
    %v3827 = vunpack.c.l.b16 %v3811
    %v3828 = vunpack.c.l.b16 %v3812
    %v3829 = vunpack.c.l.b16 %v3813
    %v3830 = vpack.c.b16 %v3827, %v3826
    %v3831 = vpack.c.b16 %v3829, %v3828
    %3834 = vmatprep.subr.bf16.mxu0 0
    %3835 = vmatpush1.bf16.msra.mxu0 %v3830
    %3836 = vmatprep.subr.bf16.mxu0 0
    %3837 = vmatpush1.bf16.msra.mxu0 %v3831
    %3838 = vmatprep.subr.bf16.mxu0 0
    %3839 = vmatpush1.bf16.msra.mxu0 0
    %3840 = vmatprep.subr.bf16.mxu0 0
    %3841 = vmatpush1.bf16.msra.mxu0 0
    %3842 = vmatprep.subr.bf16.mxu0 0
    %3843 = vmatpush1.bf16.msra.mxu0 0
    %3844 = vmatprep.subr.bf16.mxu0 0
    %3845 = vmatpush1.bf16.msra.mxu0 0
    %3846 = vmatprep.subr.bf16.mxu0 0
    %3847 = vmatpush1.bf16.msra.mxu0 0
    %3848 = vmatprep.subr.bf16.mxu0 0
    %3849 = vmatpush1.bf16.msra.mxu0 0
    %3850 = vmatprep.subr.bf16.mxu0 0
    %3851 = vmatpush1.bf16.msra.mxu0 0
    %3852 = vmatprep.subr.bf16.mxu0 0
    %3853 = vmatpush1.bf16.msra.mxu0 0
    %3854 = vmatprep.subr.bf16.mxu0 0
    %3855 = vmatpush1.bf16.msra.mxu0 0
    %3856 = vmatprep.subr.bf16.mxu0 0
    %3857 = vmatpush1.bf16.msra.mxu0 0
    %3858 = vmatprep.subr.bf16.mxu0 0
    %3859 = vmatpush1.bf16.msra.mxu0 0
    %3860 = vmatprep.subr.bf16.mxu0 0
    %3861 = vmatpush1.bf16.msra.mxu0 0
    %3862 = vmatprep.subr.bf16.mxu0 0
    %3863 = vmatpush1.bf16.msra.mxu0 0
    %3864 = vmatprep.subr.bf16.mxu0 0
    %3865 = vmatpush1.bf16.msra.mxu0 0
    %3866 = vmatprep.mubr.bf16.mxu0 0
    %3867 = vmatmul.mubr.bf16.gmra.mrb[0].mxu0 %v2688
    %v3868 = vpop.f32.mrb[0].mxu0
    %v3869 = vadd.f32 %v3820, %v3868
    %v3870 = vpop.f32.mrb[0].mxu0
    %v3871 = vpop.f32.mrb[0].mxu0
    %v3872 = vadd.f32 %v3820, %v3871
    %v3873 = vpop.f32.mrb[0].mxu0
    %3874 = vdwg.mxu0
    %s3875 = scalar_lea.vmem %s3, 288
    %v3876 = vld [vmem:[%s3875] sm:$0xf]
    %v3877 = vld [vmem:[%s3875 + $0x4] sm:$0xf]
    %v3878 = vld [vmem:[%s3875 + $0x8] sm:$0xf]
    %v3879 = vld [vmem:[%s3875 + $0xc] sm:$0xf]
    %s3880 = scalar_lea.vmem %s4, 18
    %v3881 = vld [vmem:[%s3880] sm:$0x1]
    %v3883 = vlaneseq
    %v3884 = vshrl.u32 %v3883, 7
    %v3885 = vsub.s32 0, %v3884
    %v3886 = vrot.slane %v3881, %v3885
    %v3892 = vunpack.c.l.b16 %v3876
    %v3893 = vunpack.c.l.b16 %v3877
    %v3894 = vunpack.c.l.b16 %v3878
    %v3895 = vunpack.c.l.b16 %v3879
    %v3896 = vpack.c.b16 %v3893, %v3892
    %v3897 = vpack.c.b16 %v3895, %v3894
    %3900 = vmatprep.subr.bf16.mxu0 0
    %3901 = vmatpush1.bf16.msra.mxu0 %v3896
    %3902 = vmatprep.subr.bf16.mxu0 0
    %3903 = vmatpush1.bf16.msra.mxu0 %v3897
    %3904 = vmatprep.subr.bf16.mxu0 0
    %3905 = vmatpush1.bf16.msra.mxu0 0
    %3906 = vmatprep.subr.bf16.mxu0 0
    %3907 = vmatpush1.bf16.msra.mxu0 0
    %3908 = vmatprep.subr.bf16.mxu0 0
    %3909 = vmatpush1.bf16.msra.mxu0 0
    %3910 = vmatprep.subr.bf16.mxu0 0
    %3911 = vmatpush1.bf16.msra.mxu0 0
    %3912 = vmatprep.subr.bf16.mxu0 0
    %3913 = vmatpush1.bf16.msra.mxu0 0
    %3914 = vmatprep.subr.bf16.mxu0 0
    %3915 = vmatpush1.bf16.msra.mxu0 0
    %3916 = vmatprep.subr.bf16.mxu0 0
    %3917 = vmatpush1.bf16.msra.mxu0 0
    %3918 = vmatprep.subr.bf16.mxu0 0
    %3919 = vmatpush1.bf16.msra.mxu0 0
    %3920 = vmatprep.subr.bf16.mxu0 0
    %3921 = vmatpush1.bf16.msra.mxu0 0
    %3922 = vmatprep.subr.bf16.mxu0 0
    %3923 = vmatpush1.bf16.msra.mxu0 0
    %3924 = vmatprep.subr.bf16.mxu0 0
    %3925 = vmatpush1.bf16.msra.mxu0 0
    %3926 = vmatprep.subr.bf16.mxu0 0
    %3927 = vmatpush1.bf16.msra.mxu0 0
    %3928 = vmatprep.subr.bf16.mxu0 0
    %3929 = vmatpush1.bf16.msra.mxu0 0
    %3930 = vmatprep.subr.bf16.mxu0 0
    %3931 = vmatpush1.bf16.msra.mxu0 0
    %3932 = vmatprep.mubr.bf16.mxu0 0
    %3933 = vmatmul.mubr.bf16.gmra.mrb[0].mxu0 %v2688
    %v3934 = vpop.f32.mrb[0].mxu0
    %v3935 = vadd.f32 %v3886, %v3934
    %v3936 = vpop.f32.mrb[0].mxu0
    %v3937 = vpop.f32.mrb[0].mxu0
    %v3938 = vadd.f32 %v3886, %v3937
    %v3939 = vpop.f32.mrb[0].mxu0
    %3940 = vdwg.mxu0
    %s3941 = scalar_lea.vmem %s3, 352
    %v3942 = vld [vmem:[%s3941] sm:$0xf]
    %v3943 = vld [vmem:[%s3941 + $0x4] sm:$0xf]
    %v3944 = vld [vmem:[%s3941 + $0x8] sm:$0xf]
    %v3945 = vld [vmem:[%s3941 + $0xc] sm:$0xf]
    %s3946 = scalar_lea.vmem %s4, 22
    %v3947 = vld [vmem:[%s3946] sm:$0x1]
    %v3949 = vlaneseq
    %v3950 = vshrl.u32 %v3949, 7
    %v3951 = vsub.s32 0, %v3950
    %v3952 = vrot.slane %v3947, %v3951
    %v3958 = vunpack.c.l.b16 %v3942
    %v3959 = vunpack.c.l.b16 %v3943
    %v3960 = vunpack.c.l.b16 %v3944
    %v3961 = vunpack.c.l.b16 %v3945
    %v3962 = vpack.c.b16 %v3959, %v3958
    %v3963 = vpack.c.b16 %v3961, %v3960
    %3966 = vmatprep.subr.bf16.mxu0 0
    %3967 = vmatpush1.bf16.msra.mxu0 %v3962
    %3968 = vmatprep.subr.bf16.mxu0 0
    %3969 = vmatpush1.bf16.msra.mxu0 %v3963
    %3970 = vmatprep.subr.bf16.mxu0 0
    %3971 = vmatpush1.bf16.msra.mxu0 0
    %3972 = vmatprep.subr.bf16.mxu0 0
    %3973 = vmatpush1.bf16.msra.mxu0 0
    %3974 = vmatprep.subr.bf16.mxu0 0
    %3975 = vmatpush1.bf16.msra.mxu0 0
    %3976 = vmatprep.subr.bf16.mxu0 0
    %3977 = vmatpush1.bf16.msra.mxu0 0
    %3978 = vmatprep.subr.bf16.mxu0 0
    %3979 = vmatpush1.bf16.msra.mxu0 0
    %3980 = vmatprep.subr.bf16.mxu0 0
    %3981 = vmatpush1.bf16.msra.mxu0 0
    %3982 = vmatprep.subr.bf16.mxu0 0
    %3983 = vmatpush1.bf16.msra.mxu0 0
    %3984 = vmatprep.subr.bf16.mxu0 0
    %3985 = vmatpush1.bf16.msra.mxu0 0
    %3986 = vmatprep.subr.bf16.mxu0 0
    %3987 = vmatpush1.bf16.msra.mxu0 0
    %3988 = vmatprep.subr.bf16.mxu0 0
    %3989 = vmatpush1.bf16.msra.mxu0 0
    %3990 = vmatprep.subr.bf16.mxu0 0
    %3991 = vmatpush1.bf16.msra.mxu0 0
    %3992 = vmatprep.subr.bf16.mxu0 0
    %3993 = vmatpush1.bf16.msra.mxu0 0
    %3994 = vmatprep.subr.bf16.mxu0 0
    %3995 = vmatpush1.bf16.msra.mxu0 0
    %3996 = vmatprep.subr.bf16.mxu0 0
    %3997 = vmatpush1.bf16.msra.mxu0 0
    %3998 = vmatprep.mubr.bf16.mxu0 0
    %3999 = vmatmul.mubr.bf16.gmra.mrb[0].mxu0 %v2688
    %v4000 = vpop.f32.mrb[0].mxu0
    %v4001 = vadd.f32 %v3952, %v4000
    %v4002 = vpop.f32.mrb[0].mxu0
    %v4003 = vpop.f32.mrb[0].mxu0
    %v4004 = vadd.f32 %v3952, %v4003
    %v4005 = vpop.f32.mrb[0].mxu0
    %4006 = vdwg.mxu0
    %v4008 = vsel %vm299, %v3869, 0
    %v4011 = vsel %vm299, %v3935, 0
    %4013 = vmatprep.subr.mxu0 0.0
    %4014 = vmatpush1.xpose.msra.mxu0 %v4011
    %4015 = vmatprep.subr.mxu0 0.0
    %4016 = vmatpush1.xpose.msra.mxu0 0.0
    %4017 = vmatprep.subr.mxu0 0.0
    %4018 = vmatpush1.xpose.msra.mxu0 0.0
    %4019 = vmatprep.subr.mxu0 0.0
    %4020 = vmatpush1.xpose.msra.mxu0 0.0
    %4021 = vmatprep.subr.mxu0 0.0
    %4022 = vmatpush1.xpose.msra.mxu0 0.0
    %4023 = vmatprep.subr.mxu0 0.0
    %4024 = vmatpush1.xpose.msra.mxu0 0.0
    %4025 = vmatprep.subr.mxu0 0.0
    %4026 = vmatpush1.xpose.msra.mxu0 0.0
    %4027 = vmatprep.subr.mxu0 0.0
    %4028 = vmatpush1.xpose.msra.mxu0 0.0
    %4029 = vmatprep.subr.mxu0 0.0
    %4030 = vmatpush1.xpose.msra.mxu0 0.0
    %4031 = vmatprep.subr.mxu0 0.0
    %4032 = vmatpush1.xpose.msra.mxu0 0.0
    %4033 = vmatprep.subr.mxu0 0.0
    %4034 = vmatpush1.xpose.msra.mxu0 0.0
    %4035 = vmatprep.subr.mxu0 0.0
    %4036 = vmatpush1.xpose.msra.mxu0 0.0
    %4037 = vmatprep.subr.mxu0 0.0
    %4038 = vmatpush1.xpose.msra.mxu0 0.0
    %4039 = vmatprep.subr.mxu0 0.0
    %4040 = vmatpush1.xpose.msra.mxu0 0.0
    %4041 = vmatprep.subr.mxu0 0.0
    %4042 = vmatpush1.xpose.msra.mxu0 0.0
    %4043 = vmatprep.subr.mxu0 0.0
    %4044 = vmatpush1.xpose.msra.mxu0 0.0
    %4045 = vmatprep.subr.mxu0 0.0
    %4046 = vmatpush1.xpose.msra.mxu0 0.0
    %4047 = vmatprep.subr.mxu0 0.0
    %4048 = vmatpush1.xpose.msra.mxu0 0.0
    %4049 = vmatprep.subr.mxu0 0.0
    %4050 = vmatpush1.xpose.msra.mxu0 0.0
    %4051 = vmatprep.subr.mxu0 0.0
    %4052 = vmatpush1.xpose.msra.mxu0 0.0
    %4053 = vmatprep.subr.mxu0 0.0
    %4054 = vmatpush1.xpose.msra.mxu0 0.0
    %4055 = vmatprep.subr.mxu0 0.0
    %4056 = vmatpush1.xpose.msra.mxu0 0.0
    %4057 = vmatprep.subr.mxu0 0.0
    %4058 = vmatpush1.xpose.msra.mxu0 0.0
    %4059 = vmatprep.subr.mxu0 0.0
    %4060 = vmatpush1.xpose.msra.mxu0 0.0
    %4061 = vmatprep.subr.mxu0 0.0
    %4062 = vmatpush1.xpose.msra.mxu0 0.0
    %4063 = vmatprep.subr.mxu0 0.0
    %4064 = vmatpush1.xpose.msra.mxu0 0.0
    %4065 = vmatprep.subr.mxu0 0.0
    %4066 = vmatpush1.xpose.msra.mxu0 0.0
    %4067 = vmatprep.subr.mxu0 0.0
    %4068 = vmatpush1.xpose.msra.mxu0 0.0
    %4069 = vmatprep.subr.mxu0 0.0
    %4070 = vmatpush1.xpose.msra.mxu0 0.0
    %4071 = vmatprep.subr.mxu0 0.0
    %4072 = vmatpush1.xpose.msra.mxu0 0.0
    %4073 = vmatprep.subr.mxu0 0.0
    %4074 = vmatpush1.xpose.msra.mxu0 0.0
    %4075 = vmatprep.subr.mxu0 0.0
    %4076 = vmatpush1.xpose.msra.mxu0 0.0
    %4077 = vmatprep.mubr.f32.mxu0 0.0
    %4078 = vmatmul.mubr.f32.gmra.mrb[0].mxu0 %v4008
    %v4079 = vpop.f32.mrb[0].mxu0
    %v4080 = vadd.f32 0.0, %v4079
    %v4081 = vpop.f32.mrb[0].mxu0
    %4082 = vdwg.mxu0
    %v4084 = vsel %vm299, %v3872, 0
    %v4087 = vsel %vm299, %v3938, 0
    %4089 = vmatprep.subr.mxu0 0.0
    %4090 = vmatpush1.xpose.msra.mxu0 %v4087
    %4091 = vmatprep.subr.mxu0 0.0
    %4092 = vmatpush1.xpose.msra.mxu0 0.0
    %4093 = vmatprep.subr.mxu0 0.0
    %4094 = vmatpush1.xpose.msra.mxu0 0.0
    %4095 = vmatprep.subr.mxu0 0.0
    %4096 = vmatpush1.xpose.msra.mxu0 0.0
    %4097 = vmatprep.subr.mxu0 0.0
    %4098 = vmatpush1.xpose.msra.mxu0 0.0
    %4099 = vmatprep.subr.mxu0 0.0
    %4100 = vmatpush1.xpose.msra.mxu0 0.0
    %4101 = vmatprep.subr.mxu0 0.0
    %4102 = vmatpush1.xpose.msra.mxu0 0.0
    %4103 = vmatprep.subr.mxu0 0.0
    %4104 = vmatpush1.xpose.msra.mxu0 0.0
    %4105 = vmatprep.subr.mxu0 0.0
    %4106 = vmatpush1.xpose.msra.mxu0 0.0
    %4107 = vmatprep.subr.mxu0 0.0
    %4108 = vmatpush1.xpose.msra.mxu0 0.0
    %4109 = vmatprep.subr.mxu0 0.0
    %4110 = vmatpush1.xpose.msra.mxu0 0.0
    %4111 = vmatprep.subr.mxu0 0.0
    %4112 = vmatpush1.xpose.msra.mxu0 0.0
    %4113 = vmatprep.subr.mxu0 0.0
    %4114 = vmatpush1.xpose.msra.mxu0 0.0
    %4115 = vmatprep.subr.mxu0 0.0
    %4116 = vmatpush1.xpose.msra.mxu0 0.0
    %4117 = vmatprep.subr.mxu0 0.0
    %4118 = vmatpush1.xpose.msra.mxu0 0.0
    %4119 = vmatprep.subr.mxu0 0.0
    %4120 = vmatpush1.xpose.msra.mxu0 0.0
    %4121 = vmatprep.subr.mxu0 0.0
    %4122 = vmatpush1.xpose.msra.mxu0 0.0
    %4123 = vmatprep.subr.mxu0 0.0
    %4124 = vmatpush1.xpose.msra.mxu0 0.0
    %4125 = vmatprep.subr.mxu0 0.0
    %4126 = vmatpush1.xpose.msra.mxu0 0.0
    %4127 = vmatprep.subr.mxu0 0.0
    %4128 = vmatpush1.xpose.msra.mxu0 0.0
    %4129 = vmatprep.subr.mxu0 0.0
    %4130 = vmatpush1.xpose.msra.mxu0 0.0
    %4131 = vmatprep.subr.mxu0 0.0
    %4132 = vmatpush1.xpose.msra.mxu0 0.0
    %4133 = vmatprep.subr.mxu0 0.0
    %4134 = vmatpush1.xpose.msra.mxu0 0.0
    %4135 = vmatprep.subr.mxu0 0.0
    %4136 = vmatpush1.xpose.msra.mxu0 0.0
    %4137 = vmatprep.subr.mxu0 0.0
    %4138 = vmatpush1.xpose.msra.mxu0 0.0
    %4139 = vmatprep.subr.mxu0 0.0
    %4140 = vmatpush1.xpose.msra.mxu0 0.0
    %4141 = vmatprep.subr.mxu0 0.0
    %4142 = vmatpush1.xpose.msra.mxu0 0.0
    %4143 = vmatprep.subr.mxu0 0.0
    %4144 = vmatpush1.xpose.msra.mxu0 0.0
    %4145 = vmatprep.subr.mxu0 0.0
    %4146 = vmatpush1.xpose.msra.mxu0 0.0
    %4147 = vmatprep.subr.mxu0 0.0
    %4148 = vmatpush1.xpose.msra.mxu0 0.0
    %4149 = vmatprep.subr.mxu0 0.0
    %4150 = vmatpush1.xpose.msra.mxu0 0.0
    %4151 = vmatprep.subr.mxu0 0.0
    %4152 = vmatpush1.xpose.msra.mxu0 0.0
    %4153 = vmatprep.mubr.f32.mxu0 0.0
    %4154 = vmatmul.mubr.f32.gmra.mrb[0].mxu0 %v4084
    %v4155 = vpop.f32.mrb[0].mxu0
    %v4156 = vadd.f32 0.0, %v4155
    %v4157 = vpop.f32.mrb[0].mxu0
    %4158 = vdwg.mxu0
    %v4159 = vmul.f32 %v4080, 0.35355338
    %v4160 = vmul.f32 %v4156, 0.35355338
    %v4161 = vadd.f32 %v4159, %v46
    %v4162 = vadd.f32 %v4160, %v47
    %v4163 = vsel %vm299, %v4161, -inf
    %4164 = vmax.xlane.f32.xlu0 %v4163
    %v4165 = vpop.xlane.xlu0 %4164
    %v4166 = vsel %vm299, %v4162, -inf
    %4167 = vmax.xlane.f32.xlu0 %v4166
    %v4168 = vpop.xlane.xlu0 %4167
    %v4169 = vsub.f32 %v4161, %v4165
    %v4170 = vsub.f32 %v4162, %v4168
    %v4171 = vmul.f32 %v4169, 1.442695
    %v4172 = vpow.pop %v4171
    %v4173 = vmul.f32 %v4170, 1.442695
    %v4174 = vpow.pop %v4173
    %v4175 = vsel %vm299, %v4172, 0.0
    %4176 = vadd.xlane.f32.xlu0 %v4175
    %v4177 = vpop.xlane.xlu0 %4176
    %v4178 = vsel %vm299, %v4174, 0.0
    %4179 = vadd.xlane.f32.xlu0 %v4178
    %v4180 = vpop.xlane.xlu0 %4179
    %v4181 = vrcp.pop %v4177
    %v4182 = vrcp.pop %v4180
    %v4183 = vmul.f32 %v4172, %v4181
    %v4184 = vmul.f32 %v4174, %v4182
    %v4186 = vsel %vm299, %v4183, 0
    %4188 = vmatprep.subr.mxu0 0.0
    %4189 = vmatpush1.msra.mxu0 %v4001
    %4190 = vmatprep.subr.mxu0 0.0
    %4191 = vmatpush1.msra.mxu0 0.0
    %4192 = vmatprep.subr.mxu0 0.0
    %4193 = vmatpush1.msra.mxu0 0.0
    %4194 = vmatprep.subr.mxu0 0.0
    %4195 = vmatpush1.msra.mxu0 0.0
    %4196 = vmatprep.subr.mxu0 0.0
    %4197 = vmatpush1.msra.mxu0 0.0
    %4198 = vmatprep.subr.mxu0 0.0
    %4199 = vmatpush1.msra.mxu0 0.0
    %4200 = vmatprep.subr.mxu0 0.0
    %4201 = vmatpush1.msra.mxu0 0.0
    %4202 = vmatprep.subr.mxu0 0.0
    %4203 = vmatpush1.msra.mxu0 0.0
    %4204 = vmatprep.subr.mxu0 0.0
    %4205 = vmatpush1.msra.mxu0 0.0
    %4206 = vmatprep.subr.mxu0 0.0
    %4207 = vmatpush1.msra.mxu0 0.0
    %4208 = vmatprep.subr.mxu0 0.0
    %4209 = vmatpush1.msra.mxu0 0.0
    %4210 = vmatprep.subr.mxu0 0.0
    %4211 = vmatpush1.msra.mxu0 0.0
    %4212 = vmatprep.subr.mxu0 0.0
    %4213 = vmatpush1.msra.mxu0 0.0
    %4214 = vmatprep.subr.mxu0 0.0
    %4215 = vmatpush1.msra.mxu0 0.0
    %4216 = vmatprep.subr.mxu0 0.0
    %4217 = vmatpush1.msra.mxu0 0.0
    %4218 = vmatprep.subr.mxu0 0.0
    %4219 = vmatpush1.msra.mxu0 0.0
    %4220 = vmatprep.subr.mxu0 0.0
    %4221 = vmatpush1.msra.mxu0 0.0
    %4222 = vmatprep.subr.mxu0 0.0
    %4223 = vmatpush1.msra.mxu0 0.0
    %4224 = vmatprep.subr.mxu0 0.0
    %4225 = vmatpush1.msra.mxu0 0.0
    %4226 = vmatprep.subr.mxu0 0.0
    %4227 = vmatpush1.msra.mxu0 0.0
    %4228 = vmatprep.subr.mxu0 0.0
    %4229 = vmatpush1.msra.mxu0 0.0
    %4230 = vmatprep.subr.mxu0 0.0
    %4231 = vmatpush1.msra.mxu0 0.0
    %4232 = vmatprep.subr.mxu0 0.0
    %4233 = vmatpush1.msra.mxu0 0.0
    %4234 = vmatprep.subr.mxu0 0.0
    %4235 = vmatpush1.msra.mxu0 0.0
    %4236 = vmatprep.subr.mxu0 0.0
    %4237 = vmatpush1.msra.mxu0 0.0
    %4238 = vmatprep.subr.mxu0 0.0
    %4239 = vmatpush1.msra.mxu0 0.0
    %4240 = vmatprep.subr.mxu0 0.0
    %4241 = vmatpush1.msra.mxu0 0.0
    %4242 = vmatprep.subr.mxu0 0.0
    %4243 = vmatpush1.msra.mxu0 0.0
    %4244 = vmatprep.subr.mxu0 0.0
    %4245 = vmatpush1.msra.mxu0 0.0
    %4246 = vmatprep.subr.mxu0 0.0
    %4247 = vmatpush1.msra.mxu0 0.0
    %4248 = vmatprep.subr.mxu0 0.0
    %4249 = vmatpush1.msra.mxu0 0.0
    %4250 = vmatprep.subr.mxu0 0.0
    %4251 = vmatpush1.msra.mxu0 0.0
    %4252 = vmatprep.mubr.f32.mxu0 0.0
    %4253 = vmatmul.mubr.f32.gmra.mrb[0].mxu0 %v4186
    %v4254 = vpop.f32.mrb[0].mxu0
    %v4255 = vadd.f32 0.0, %v4254
    %v4256 = vpop.f32.mrb[0].mxu0
    %4257 = vdwg.mxu0
    %v4259 = vsel %vm299, %v4184, 0
    %4261 = vmatprep.subr.mxu0 0.0
    %4262 = vmatpush1.msra.mxu0 %v4004
    %4263 = vmatprep.subr.mxu0 0.0
    %4264 = vmatpush1.msra.mxu0 0.0
    %4265 = vmatprep.subr.mxu0 0.0
    %4266 = vmatpush1.msra.mxu0 0.0
    %4267 = vmatprep.subr.mxu0 0.0
    %4268 = vmatpush1.msra.mxu0 0.0
    %4269 = vmatprep.subr.mxu0 0.0
    %4270 = vmatpush1.msra.mxu0 0.0
    %4271 = vmatprep.subr.mxu0 0.0
    %4272 = vmatpush1.msra.mxu0 0.0
    %4273 = vmatprep.subr.mxu0 0.0
    %4274 = vmatpush1.msra.mxu0 0.0
    %4275 = vmatprep.subr.mxu0 0.0
    %4276 = vmatpush1.msra.mxu0 0.0
    %4277 = vmatprep.subr.mxu0 0.0
    %4278 = vmatpush1.msra.mxu0 0.0
    %4279 = vmatprep.subr.mxu0 0.0
    %4280 = vmatpush1.msra.mxu0 0.0
    %4281 = vmatprep.subr.mxu0 0.0
    %4282 = vmatpush1.msra.mxu0 0.0
    %4283 = vmatprep.subr.mxu0 0.0
    %4284 = vmatpush1.msra.mxu0 0.0
    %4285 = vmatprep.subr.mxu0 0.0
    %4286 = vmatpush1.msra.mxu0 0.0
    %4287 = vmatprep.subr.mxu0 0.0
    %4288 = vmatpush1.msra.mxu0 0.0
    %4289 = vmatprep.subr.mxu0 0.0
    %4290 = vmatpush1.msra.mxu0 0.0
    %4291 = vmatprep.subr.mxu0 0.0
    %4292 = vmatpush1.msra.mxu0 0.0
    %4293 = vmatprep.subr.mxu0 0.0
    %4294 = vmatpush1.msra.mxu0 0.0
    %4295 = vmatprep.subr.mxu0 0.0
    %4296 = vmatpush1.msra.mxu0 0.0
    %4297 = vmatprep.subr.mxu0 0.0
    %4298 = vmatpush1.msra.mxu0 0.0
    %4299 = vmatprep.subr.mxu0 0.0
    %4300 = vmatpush1.msra.mxu0 0.0
    %4301 = vmatprep.subr.mxu0 0.0
    %4302 = vmatpush1.msra.mxu0 0.0
    %4303 = vmatprep.subr.mxu0 0.0
    %4304 = vmatpush1.msra.mxu0 0.0
    %4305 = vmatprep.subr.mxu0 0.0
    %4306 = vmatpush1.msra.mxu0 0.0
    %4307 = vmatprep.subr.mxu0 0.0
    %4308 = vmatpush1.msra.mxu0 0.0
    %4309 = vmatprep.subr.mxu0 0.0
    %4310 = vmatpush1.msra.mxu0 0.0
    %4311 = vmatprep.subr.mxu0 0.0
    %4312 = vmatpush1.msra.mxu0 0.0
    %4313 = vmatprep.subr.mxu0 0.0
    %4314 = vmatpush1.msra.mxu0 0.0
    %4315 = vmatprep.subr.mxu0 0.0
    %4316 = vmatpush1.msra.mxu0 0.0
    %4317 = vmatprep.subr.mxu0 0.0
    %4318 = vmatpush1.msra.mxu0 0.0
    %4319 = vmatprep.subr.mxu0 0.0
    %4320 = vmatpush1.msra.mxu0 0.0
    %4321 = vmatprep.subr.mxu0 0.0
    %4322 = vmatpush1.msra.mxu0 0.0
    %4323 = vmatprep.subr.mxu0 0.0
    %4324 = vmatpush1.msra.mxu0 0.0
    %4325 = vmatprep.mubr.f32.mxu0 0.0
    %4326 = vmatmul.mubr.f32.gmra.mrb[0].mxu0 %v4259
    %v4327 = vpop.f32.mrb[0].mxu0
    %v4328 = vadd.f32 0.0, %v4327
    %v4329 = vpop.f32.mrb[0].mxu0
    %4330 = vdwg.mxu0
    %v4331 = vpack.c.bf16 %v4328, %v4255
    %s4332 = scalar_lea.vmem %s5, 24
    %v4333 = vld [vmem:[%s4332] sm:$0xf]
    %v4335 = vsel %vm299, %v4331, 0
    %v4338 = vsel %vm1154, %v4333, 0
    %4340 = vmatprep.subr.bf16.mxu0 0
    %4341 = vmatpush1.bf16.msra.mxu0 %v4338
    %4342 = vmatprep.subr.bf16.mxu0 0
    %4343 = vmatpush1.bf16.msra.mxu0 0
    %4344 = vmatprep.subr.bf16.mxu0 0
    %4345 = vmatpush1.bf16.msra.mxu0 0
    %4346 = vmatprep.subr.bf16.mxu0 0
    %4347 = vmatpush1.bf16.msra.mxu0 0
    %4348 = vmatprep.subr.bf16.mxu0 0
    %4349 = vmatpush1.bf16.msra.mxu0 0
    %4350 = vmatprep.subr.bf16.mxu0 0
    %4351 = vmatpush1.bf16.msra.mxu0 0
    %4352 = vmatprep.subr.bf16.mxu0 0
    %4353 = vmatpush1.bf16.msra.mxu0 0
    %4354 = vmatprep.subr.bf16.mxu0 0
    %4355 = vmatpush1.bf16.msra.mxu0 0
    %4356 = vmatprep.subr.bf16.mxu0 0
    %4357 = vmatpush1.bf16.msra.mxu0 0
    %4358 = vmatprep.subr.bf16.mxu0 0
    %4359 = vmatpush1.bf16.msra.mxu0 0
    %4360 = vmatprep.subr.bf16.mxu0 0
    %4361 = vmatpush1.bf16.msra.mxu0 0
    %4362 = vmatprep.subr.bf16.mxu0 0
    %4363 = vmatpush1.bf16.msra.mxu0 0
    %4364 = vmatprep.subr.bf16.mxu0 0
    %4365 = vmatpush1.bf16.msra.mxu0 0
    %4366 = vmatprep.subr.bf16.mxu0 0
    %4367 = vmatpush1.bf16.msra.mxu0 0
    %4368 = vmatprep.subr.bf16.mxu0 0
    %4369 = vmatpush1.bf16.msra.mxu0 0
    %4370 = vmatprep.subr.bf16.mxu0 0
    %4371 = vmatpush1.bf16.msra.mxu0 0
    %4372 = vmatprep.mubr.bf16.mxu0 0
    %4373 = vmatmul.mubr.bf16.gmra.mrb[0].mxu0 %v4335
    %v4374 = vpop.f32.mrb[0].mxu0
    %v4375 = vadd.f32 0.0, %v4374
    %v4376 = vpop.f32.mrb[0].mxu0
    %v4377 = vpop.f32.mrb[0].mxu0
    %v4378 = vadd.f32 0.0, %v4377
    %v4379 = vpop.f32.mrb[0].mxu0
    %4380 = vdwg.mxu0
    %v4381 = vadd.f32 %v3803, %v4375
    %v4382 = vadd.f32 %v3806, %v4378
    %s4383 = scalar_lea.vmem %s3, 240
    %v4384 = vld [vmem:[%s4383] sm:$0xf]
    %v4385 = vld [vmem:[%s4383 + $0x4] sm:$0xf]
    %v4386 = vld [vmem:[%s4383 + $0x8] sm:$0xf]
    %v4387 = vld [vmem:[%s4383 + $0xc] sm:$0xf]
    %s4388 = scalar_lea.vmem %s4, 15
    %v4389 = vld [vmem:[%s4388] sm:$0x1]
    %v4391 = vlaneseq
    %v4392 = vshrl.u32 %v4391, 7
    %v4393 = vsub.s32 0, %v4392
    %v4394 = vrot.slane %v4389, %v4393
    %v4400 = vunpack.c.l.b16 %v4384
    %v4401 = vunpack.c.l.b16 %v4385
    %v4402 = vunpack.c.l.b16 %v4386
    %v4403 = vunpack.c.l.b16 %v4387
    %v4404 = vpack.c.b16 %v4401, %v4400
    %v4405 = vpack.c.b16 %v4403, %v4402
    %4408 = vmatprep.subr.bf16.mxu0 0
    %4409 = vmatpush1.bf16.msra.mxu0 %v4404
    %4410 = vmatprep.subr.bf16.mxu0 0
    %4411 = vmatpush1.bf16.msra.mxu0 %v4405
    %4412 = vmatprep.subr.bf16.mxu0 0
    %4413 = vmatpush1.bf16.msra.mxu0 0
    %4414 = vmatprep.subr.bf16.mxu0 0
    %4415 = vmatpush1.bf16.msra.mxu0 0
    %4416 = vmatprep.subr.bf16.mxu0 0
    %4417 = vmatpush1.bf16.msra.mxu0 0
    %4418 = vmatprep.subr.bf16.mxu0 0
    %4419 = vmatpush1.bf16.msra.mxu0 0
    %4420 = vmatprep.subr.bf16.mxu0 0
    %4421 = vmatpush1.bf16.msra.mxu0 0
    %4422 = vmatprep.subr.bf16.mxu0 0
    %4423 = vmatpush1.bf16.msra.mxu0 0
    %4424 = vmatprep.subr.bf16.mxu0 0
    %4425 = vmatpush1.bf16.msra.mxu0 0
    %4426 = vmatprep.subr.bf16.mxu0 0
    %4427 = vmatpush1.bf16.msra.mxu0 0
    %4428 = vmatprep.subr.bf16.mxu0 0
    %4429 = vmatpush1.bf16.msra.mxu0 0
    %4430 = vmatprep.subr.bf16.mxu0 0
    %4431 = vmatpush1.bf16.msra.mxu0 0
    %4432 = vmatprep.subr.bf16.mxu0 0
    %4433 = vmatpush1.bf16.msra.mxu0 0
    %4434 = vmatprep.subr.bf16.mxu0 0
    %4435 = vmatpush1.bf16.msra.mxu0 0
    %4436 = vmatprep.subr.bf16.mxu0 0
    %4437 = vmatpush1.bf16.msra.mxu0 0
    %4438 = vmatprep.subr.bf16.mxu0 0
    %4439 = vmatpush1.bf16.msra.mxu0 0
    %4440 = vmatprep.mubr.bf16.mxu0 0
    %4441 = vmatmul.mubr.bf16.gmra.mrb[0].mxu0 %v2688
    %v4442 = vpop.f32.mrb[0].mxu0
    %v4443 = vadd.f32 %v4394, %v4442
    %v4444 = vpop.f32.mrb[0].mxu0
    %v4445 = vpop.f32.mrb[0].mxu0
    %v4446 = vadd.f32 %v4394, %v4445
    %v4447 = vpop.f32.mrb[0].mxu0
    %4448 = vdwg.mxu0
    %s4449 = scalar_lea.vmem %s3, 304
    %v4450 = vld [vmem:[%s4449] sm:$0xf]
    %v4451 = vld [vmem:[%s4449 + $0x4] sm:$0xf]
    %v4452 = vld [vmem:[%s4449 + $0x8] sm:$0xf]
    %v4453 = vld [vmem:[%s4449 + $0xc] sm:$0xf]
    %s4454 = scalar_lea.vmem %s4, 19
    %v4455 = vld [vmem:[%s4454] sm:$0x1]
    %v4457 = vlaneseq
    %v4458 = vshrl.u32 %v4457, 7
    %v4459 = vsub.s32 0, %v4458
    %v4460 = vrot.slane %v4455, %v4459
    %v4466 = vunpack.c.l.b16 %v4450
    %v4467 = vunpack.c.l.b16 %v4451
    %v4468 = vunpack.c.l.b16 %v4452
    %v4469 = vunpack.c.l.b16 %v4453
    %v4470 = vpack.c.b16 %v4467, %v4466
    %v4471 = vpack.c.b16 %v4469, %v4468
    %4474 = vmatprep.subr.bf16.mxu0 0
    %4475 = vmatpush1.bf16.msra.mxu0 %v4470
    %4476 = vmatprep.subr.bf16.mxu0 0
    %4477 = vmatpush1.bf16.msra.mxu0 %v4471
    %4478 = vmatprep.subr.bf16.mxu0 0
    %4479 = vmatpush1.bf16.msra.mxu0 0
    %4480 = vmatprep.subr.bf16.mxu0 0
    %4481 = vmatpush1.bf16.msra.mxu0 0
    %4482 = vmatprep.subr.bf16.mxu0 0
    %4483 = vmatpush1.bf16.msra.mxu0 0
    %4484 = vmatprep.subr.bf16.mxu0 0
    %4485 = vmatpush1.bf16.msra.mxu0 0
    %4486 = vmatprep.subr.bf16.mxu0 0
    %4487 = vmatpush1.bf16.msra.mxu0 0
    %4488 = vmatprep.subr.bf16.mxu0 0
    %4489 = vmatpush1.bf16.msra.mxu0 0
    %4490 = vmatprep.subr.bf16.mxu0 0
    %4491 = vmatpush1.bf16.msra.mxu0 0
    %4492 = vmatprep.subr.bf16.mxu0 0
    %4493 = vmatpush1.bf16.msra.mxu0 0
    %4494 = vmatprep.subr.bf16.mxu0 0
    %4495 = vmatpush1.bf16.msra.mxu0 0
    %4496 = vmatprep.subr.bf16.mxu0 0
    %4497 = vmatpush1.bf16.msra.mxu0 0
    %4498 = vmatprep.subr.bf16.mxu0 0
    %4499 = vmatpush1.bf16.msra.mxu0 0
    %4500 = vmatprep.subr.bf16.mxu0 0
    %4501 = vmatpush1.bf16.msra.mxu0 0
    %4502 = vmatprep.subr.bf16.mxu0 0
    %4503 = vmatpush1.bf16.msra.mxu0 0
    %4504 = vmatprep.subr.bf16.mxu0 0
    %4505 = vmatpush1.bf16.msra.mxu0 0
    %4506 = vmatprep.mubr.bf16.mxu0 0
    %4507 = vmatmul.mubr.bf16.gmra.mrb[0].mxu0 %v2688
    %v4508 = vpop.f32.mrb[0].mxu0
    %v4509 = vadd.f32 %v4460, %v4508
    %v4510 = vpop.f32.mrb[0].mxu0
    %v4511 = vpop.f32.mrb[0].mxu0
    %v4512 = vadd.f32 %v4460, %v4511
    %v4513 = vpop.f32.mrb[0].mxu0
    %4514 = vdwg.mxu0
    %s4515 = scalar_lea.vmem %s3, 368
    %v4516 = vld [vmem:[%s4515] sm:$0xf]
    %v4517 = vld [vmem:[%s4515 + $0x4] sm:$0xf]
    %v4518 = vld [vmem:[%s4515 + $0x8] sm:$0xf]
    %v4519 = vld [vmem:[%s4515 + $0xc] sm:$0xf]
    %s4520 = scalar_lea.vmem %s4, 23
    %v4521 = vld [vmem:[%s4520] sm:$0x1]
    %v4523 = vlaneseq
    %v4524 = vshrl.u32 %v4523, 7
    %v4525 = vsub.s32 0, %v4524
    %v4526 = vrot.slane %v4521, %v4525
    %v4532 = vunpack.c.l.b16 %v4516
    %v4533 = vunpack.c.l.b16 %v4517
    %v4534 = vunpack.c.l.b16 %v4518
    %v4535 = vunpack.c.l.b16 %v4519
    %v4536 = vpack.c.b16 %v4533, %v4532
    %v4537 = vpack.c.b16 %v4535, %v4534
    %4540 = vmatprep.subr.bf16.mxu0 0
    %4541 = vmatpush1.bf16.msra.mxu0 %v4536
    %4542 = vmatprep.subr.bf16.mxu0 0
    %4543 = vmatpush1.bf16.msra.mxu0 %v4537
    %4544 = vmatprep.subr.bf16.mxu0 0
    %4545 = vmatpush1.bf16.msra.mxu0 0
    %4546 = vmatprep.subr.bf16.mxu0 0
    %4547 = vmatpush1.bf16.msra.mxu0 0
    %4548 = vmatprep.subr.bf16.mxu0 0
    %4549 = vmatpush1.bf16.msra.mxu0 0
    %4550 = vmatprep.subr.bf16.mxu0 0
    %4551 = vmatpush1.bf16.msra.mxu0 0
    %4552 = vmatprep.subr.bf16.mxu0 0
    %4553 = vmatpush1.bf16.msra.mxu0 0
    %4554 = vmatprep.subr.bf16.mxu0 0
    %4555 = vmatpush1.bf16.msra.mxu0 0
    %4556 = vmatprep.subr.bf16.mxu0 0
    %4557 = vmatpush1.bf16.msra.mxu0 0
    %4558 = vmatprep.subr.bf16.mxu0 0
    %4559 = vmatpush1.bf16.msra.mxu0 0
    %4560 = vmatprep.subr.bf16.mxu0 0
    %4561 = vmatpush1.bf16.msra.mxu0 0
    %4562 = vmatprep.subr.bf16.mxu0 0
    %4563 = vmatpush1.bf16.msra.mxu0 0
    %4564 = vmatprep.subr.bf16.mxu0 0
    %4565 = vmatpush1.bf16.msra.mxu0 0
    %4566 = vmatprep.subr.bf16.mxu0 0
    %4567 = vmatpush1.bf16.msra.mxu0 0
    %4568 = vmatprep.subr.bf16.mxu0 0
    %4569 = vmatpush1.bf16.msra.mxu0 0
    %4570 = vmatprep.subr.bf16.mxu0 0
    %4571 = vmatpush1.bf16.msra.mxu0 0
    %4572 = vmatprep.mubr.bf16.mxu0 0
    %4573 = vmatmul.mubr.bf16.gmra.mrb[0].mxu0 %v2688
    %v4574 = vpop.f32.mrb[0].mxu0
    %v4575 = vadd.f32 %v4526, %v4574
    %v4576 = vpop.f32.mrb[0].mxu0
    %v4577 = vpop.f32.mrb[0].mxu0
    %v4578 = vadd.f32 %v4526, %v4577
    %v4579 = vpop.f32.mrb[0].mxu0
    %4580 = vdwg.mxu0
    %v4582 = vsel %vm299, %v4443, 0
    %v4585 = vsel %vm299, %v4509, 0
    %4587 = vmatprep.subr.mxu0 0.0
    %4588 = vmatpush1.xpose.msra.mxu0 %v4585
    %4589 = vmatprep.subr.mxu0 0.0
    %4590 = vmatpush1.xpose.msra.mxu0 0.0
    %4591 = vmatprep.subr.mxu0 0.0
    %4592 = vmatpush1.xpose.msra.mxu0 0.0
    %4593 = vmatprep.subr.mxu0 0.0
    %4594 = vmatpush1.xpose.msra.mxu0 0.0
    %4595 = vmatprep.subr.mxu0 0.0
    %4596 = vmatpush1.xpose.msra.mxu0 0.0
    %4597 = vmatprep.subr.mxu0 0.0
    %4598 = vmatpush1.xpose.msra.mxu0 0.0
    %4599 = vmatprep.subr.mxu0 0.0
    %4600 = vmatpush1.xpose.msra.mxu0 0.0
    %4601 = vmatprep.subr.mxu0 0.0
    %4602 = vmatpush1.xpose.msra.mxu0 0.0
    %4603 = vmatprep.subr.mxu0 0.0
    %4604 = vmatpush1.xpose.msra.mxu0 0.0
    %4605 = vmatprep.subr.mxu0 0.0
    %4606 = vmatpush1.xpose.msra.mxu0 0.0
    %4607 = vmatprep.subr.mxu0 0.0
    %4608 = vmatpush1.xpose.msra.mxu0 0.0
    %4609 = vmatprep.subr.mxu0 0.0
    %4610 = vmatpush1.xpose.msra.mxu0 0.0
    %4611 = vmatprep.subr.mxu0 0.0
    %4612 = vmatpush1.xpose.msra.mxu0 0.0
    %4613 = vmatprep.subr.mxu0 0.0
    %4614 = vmatpush1.xpose.msra.mxu0 0.0
    %4615 = vmatprep.subr.mxu0 0.0
    %4616 = vmatpush1.xpose.msra.mxu0 0.0
    %4617 = vmatprep.subr.mxu0 0.0
    %4618 = vmatpush1.xpose.msra.mxu0 0.0
    %4619 = vmatprep.subr.mxu0 0.0
    %4620 = vmatpush1.xpose.msra.mxu0 0.0
    %4621 = vmatprep.subr.mxu0 0.0
    %4622 = vmatpush1.xpose.msra.mxu0 0.0
    %4623 = vmatprep.subr.mxu0 0.0
    %4624 = vmatpush1.xpose.msra.mxu0 0.0
    %4625 = vmatprep.subr.mxu0 0.0
    %4626 = vmatpush1.xpose.msra.mxu0 0.0
    %4627 = vmatprep.subr.mxu0 0.0
    %4628 = vmatpush1.xpose.msra.mxu0 0.0
    %4629 = vmatprep.subr.mxu0 0.0
    %4630 = vmatpush1.xpose.msra.mxu0 0.0
    %4631 = vmatprep.subr.mxu0 0.0
    %4632 = vmatpush1.xpose.msra.mxu0 0.0
    %4633 = vmatprep.subr.mxu0 0.0
    %4634 = vmatpush1.xpose.msra.mxu0 0.0
    %4635 = vmatprep.subr.mxu0 0.0
    %4636 = vmatpush1.xpose.msra.mxu0 0.0
    %4637 = vmatprep.subr.mxu0 0.0
    %4638 = vmatpush1.xpose.msra.mxu0 0.0
    %4639 = vmatprep.subr.mxu0 0.0
    %4640 = vmatpush1.xpose.msra.mxu0 0.0
    %4641 = vmatprep.subr.mxu0 0.0
    %4642 = vmatpush1.xpose.msra.mxu0 0.0
    %4643 = vmatprep.subr.mxu0 0.0
    %4644 = vmatpush1.xpose.msra.mxu0 0.0
    %4645 = vmatprep.subr.mxu0 0.0
    %4646 = vmatpush1.xpose.msra.mxu0 0.0
    %4647 = vmatprep.subr.mxu0 0.0
    %4648 = vmatpush1.xpose.msra.mxu0 0.0
    %4649 = vmatprep.subr.mxu0 0.0
    %4650 = vmatpush1.xpose.msra.mxu0 0.0
    %4651 = vmatprep.mubr.f32.mxu0 0.0
    %4652 = vmatmul.mubr.f32.gmra.mrb[0].mxu0 %v4582
    %v4653 = vpop.f32.mrb[0].mxu0
    %v4654 = vadd.f32 0.0, %v4653
    %v4655 = vpop.f32.mrb[0].mxu0
    %4656 = vdwg.mxu0
    %v4658 = vsel %vm299, %v4446, 0
    %v4661 = vsel %vm299, %v4512, 0
    %4663 = vmatprep.subr.mxu0 0.0
    %4664 = vmatpush1.xpose.msra.mxu0 %v4661
    %4665 = vmatprep.subr.mxu0 0.0
    %4666 = vmatpush1.xpose.msra.mxu0 0.0
    %4667 = vmatprep.subr.mxu0 0.0
    %4668 = vmatpush1.xpose.msra.mxu0 0.0
    %4669 = vmatprep.subr.mxu0 0.0
    %4670 = vmatpush1.xpose.msra.mxu0 0.0
    %4671 = vmatprep.subr.mxu0 0.0
    %4672 = vmatpush1.xpose.msra.mxu0 0.0
    %4673 = vmatprep.subr.mxu0 0.0
    %4674 = vmatpush1.xpose.msra.mxu0 0.0
    %4675 = vmatprep.subr.mxu0 0.0
    %4676 = vmatpush1.xpose.msra.mxu0 0.0
    %4677 = vmatprep.subr.mxu0 0.0
    %4678 = vmatpush1.xpose.msra.mxu0 0.0
    %4679 = vmatprep.subr.mxu0 0.0
    %4680 = vmatpush1.xpose.msra.mxu0 0.0
    %4681 = vmatprep.subr.mxu0 0.0
    %4682 = vmatpush1.xpose.msra.mxu0 0.0
    %4683 = vmatprep.subr.mxu0 0.0
    %4684 = vmatpush1.xpose.msra.mxu0 0.0
    %4685 = vmatprep.subr.mxu0 0.0
    %4686 = vmatpush1.xpose.msra.mxu0 0.0
    %4687 = vmatprep.subr.mxu0 0.0
    %4688 = vmatpush1.xpose.msra.mxu0 0.0
    %4689 = vmatprep.subr.mxu0 0.0
    %4690 = vmatpush1.xpose.msra.mxu0 0.0
    %4691 = vmatprep.subr.mxu0 0.0
    %4692 = vmatpush1.xpose.msra.mxu0 0.0
    %4693 = vmatprep.subr.mxu0 0.0
    %4694 = vmatpush1.xpose.msra.mxu0 0.0
    %4695 = vmatprep.subr.mxu0 0.0
    %4696 = vmatpush1.xpose.msra.mxu0 0.0
    %4697 = vmatprep.subr.mxu0 0.0
    %4698 = vmatpush1.xpose.msra.mxu0 0.0
    %4699 = vmatprep.subr.mxu0 0.0
    %4700 = vmatpush1.xpose.msra.mxu0 0.0
    %4701 = vmatprep.subr.mxu0 0.0
    %4702 = vmatpush1.xpose.msra.mxu0 0.0
    %4703 = vmatprep.subr.mxu0 0.0
    %4704 = vmatpush1.xpose.msra.mxu0 0.0
    %4705 = vmatprep.subr.mxu0 0.0
    %4706 = vmatpush1.xpose.msra.mxu0 0.0
    %4707 = vmatprep.subr.mxu0 0.0
    %4708 = vmatpush1.xpose.msra.mxu0 0.0
    %4709 = vmatprep.subr.mxu0 0.0
    %4710 = vmatpush1.xpose.msra.mxu0 0.0
    %4711 = vmatprep.subr.mxu0 0.0
    %4712 = vmatpush1.xpose.msra.mxu0 0.0
    %4713 = vmatprep.subr.mxu0 0.0
    %4714 = vmatpush1.xpose.msra.mxu0 0.0
    %4715 = vmatprep.subr.mxu0 0.0
    %4716 = vmatpush1.xpose.msra.mxu0 0.0
    %4717 = vmatprep.subr.mxu0 0.0
    %4718 = vmatpush1.xpose.msra.mxu0 0.0
    %4719 = vmatprep.subr.mxu0 0.0
    %4720 = vmatpush1.xpose.msra.mxu0 0.0
    %4721 = vmatprep.subr.mxu0 0.0
    %4722 = vmatpush1.xpose.msra.mxu0 0.0
    %4723 = vmatprep.subr.mxu0 0.0
    %4724 = vmatpush1.xpose.msra.mxu0 0.0
    %4725 = vmatprep.subr.mxu0 0.0
    %4726 = vmatpush1.xpose.msra.mxu0 0.0
    %4727 = vmatprep.mubr.f32.mxu0 0.0
    %4728 = vmatmul.mubr.f32.gmra.mrb[0].mxu0 %v4658
    %v4729 = vpop.f32.mrb[0].mxu0
    %v4730 = vadd.f32 0.0, %v4729
    %v4731 = vpop.f32.mrb[0].mxu0
    %4732 = vdwg.mxu0
    %v4733 = vmul.f32 %v4654, 0.35355338
    %v4734 = vmul.f32 %v4730, 0.35355338
    %v4735 = vadd.f32 %v4733, %v46
    %v4736 = vadd.f32 %v4734, %v47
    %v4737 = vsel %vm299, %v4735, -inf
    %4738 = vmax.xlane.f32.xlu0 %v4737
    %v4739 = vpop.xlane.xlu0 %4738
    %v4740 = vsel %vm299, %v4736, -inf
    %4741 = vmax.xlane.f32.xlu0 %v4740
    %v4742 = vpop.xlane.xlu0 %4741
    %v4743 = vsub.f32 %v4735, %v4739
    %v4744 = vsub.f32 %v4736, %v4742
    %v4745 = vmul.f32 %v4743, 1.442695
    %v4746 = vpow.pop %v4745
    %v4747 = vmul.f32 %v4744, 1.442695
    %v4748 = vpow.pop %v4747
    %v4749 = vsel %vm299, %v4746, 0.0
    %4750 = vadd.xlane.f32.xlu0 %v4749
    %v4751 = vpop.xlane.xlu0 %4750
    %v4752 = vsel %vm299, %v4748, 0.0
    %4753 = vadd.xlane.f32.xlu0 %v4752
    %v4754 = vpop.xlane.xlu0 %4753
    %v4755 = vrcp.pop %v4751
    %v4756 = vrcp.pop %v4754
    %v4757 = vmul.f32 %v4746, %v4755
    %v4758 = vmul.f32 %v4748, %v4756
    %v4760 = vsel %vm299, %v4757, 0
    %4762 = vmatprep.subr.mxu0 0.0
    %4763 = vmatpush1.msra.mxu0 %v4575
    %4764 = vmatprep.subr.mxu0 0.0
    %4765 = vmatpush1.msra.mxu0 0.0
    %4766 = vmatprep.subr.mxu0 0.0
    %4767 = vmatpush1.msra.mxu0 0.0
    %4768 = vmatprep.subr.mxu0 0.0
    %4769 = vmatpush1.msra.mxu0 0.0
    %4770 = vmatprep.subr.mxu0 0.0
    %4771 = vmatpush1.msra.mxu0 0.0
    %4772 = vmatprep.subr.mxu0 0.0
    %4773 = vmatpush1.msra.mxu0 0.0
    %4774 = vmatprep.subr.mxu0 0.0
    %4775 = vmatpush1.msra.mxu0 0.0
    %4776 = vmatprep.subr.mxu0 0.0
    %4777 = vmatpush1.msra.mxu0 0.0
    %4778 = vmatprep.subr.mxu0 0.0
    %4779 = vmatpush1.msra.mxu0 0.0
    %4780 = vmatprep.subr.mxu0 0.0
    %4781 = vmatpush1.msra.mxu0 0.0
    %4782 = vmatprep.subr.mxu0 0.0
    %4783 = vmatpush1.msra.mxu0 0.0
    %4784 = vmatprep.subr.mxu0 0.0
    %4785 = vmatpush1.msra.mxu0 0.0
    %4786 = vmatprep.subr.mxu0 0.0
    %4787 = vmatpush1.msra.mxu0 0.0
    %4788 = vmatprep.subr.mxu0 0.0
    %4789 = vmatpush1.msra.mxu0 0.0
    %4790 = vmatprep.subr.mxu0 0.0
    %4791 = vmatpush1.msra.mxu0 0.0
    %4792 = vmatprep.subr.mxu0 0.0
    %4793 = vmatpush1.msra.mxu0 0.0
    %4794 = vmatprep.subr.mxu0 0.0
    %4795 = vmatpush1.msra.mxu0 0.0
    %4796 = vmatprep.subr.mxu0 0.0
    %4797 = vmatpush1.msra.mxu0 0.0
    %4798 = vmatprep.subr.mxu0 0.0
    %4799 = vmatpush1.msra.mxu0 0.0
    %4800 = vmatprep.subr.mxu0 0.0
    %4801 = vmatpush1.msra.mxu0 0.0
    %4802 = vmatprep.subr.mxu0 0.0
    %4803 = vmatpush1.msra.mxu0 0.0
    %4804 = vmatprep.subr.mxu0 0.0
    %4805 = vmatpush1.msra.mxu0 0.0
    %4806 = vmatprep.subr.mxu0 0.0
    %4807 = vmatpush1.msra.mxu0 0.0
    %4808 = vmatprep.subr.mxu0 0.0
    %4809 = vmatpush1.msra.mxu0 0.0
    %4810 = vmatprep.subr.mxu0 0.0
    %4811 = vmatpush1.msra.mxu0 0.0
    %4812 = vmatprep.subr.mxu0 0.0
    %4813 = vmatpush1.msra.mxu0 0.0
    %4814 = vmatprep.subr.mxu0 0.0
    %4815 = vmatpush1.msra.mxu0 0.0
    %4816 = vmatprep.subr.mxu0 0.0
    %4817 = vmatpush1.msra.mxu0 0.0
    %4818 = vmatprep.subr.mxu0 0.0
    %4819 = vmatpush1.msra.mxu0 0.0
    %4820 = vmatprep.subr.mxu0 0.0
    %4821 = vmatpush1.msra.mxu0 0.0
    %4822 = vmatprep.subr.mxu0 0.0
    %4823 = vmatpush1.msra.mxu0 0.0
    %4824 = vmatprep.subr.mxu0 0.0
    %4825 = vmatpush1.msra.mxu0 0.0
    %4826 = vmatprep.mubr.f32.mxu0 0.0
    %4827 = vmatmul.mubr.f32.gmra.mrb[0].mxu0 %v4760
    %v4828 = vpop.f32.mrb[0].mxu0
    %v4829 = vadd.f32 0.0, %v4828
    %v4830 = vpop.f32.mrb[0].mxu0
    %4831 = vdwg.mxu0
    %v4833 = vsel %vm299, %v4758, 0
    %4835 = vmatprep.subr.mxu0 0.0
    %4836 = vmatpush1.msra.mxu0 %v4578
    %4837 = vmatprep.subr.mxu0 0.0
    %4838 = vmatpush1.msra.mxu0 0.0
    %4839 = vmatprep.subr.mxu0 0.0
    %4840 = vmatpush1.msra.mxu0 0.0
    %4841 = vmatprep.subr.mxu0 0.0
    %4842 = vmatpush1.msra.mxu0 0.0
    %4843 = vmatprep.subr.mxu0 0.0
    %4844 = vmatpush1.msra.mxu0 0.0
    %4845 = vmatprep.subr.mxu0 0.0
    %4846 = vmatpush1.msra.mxu0 0.0
    %4847 = vmatprep.subr.mxu0 0.0
    %4848 = vmatpush1.msra.mxu0 0.0
    %4849 = vmatprep.subr.mxu0 0.0
    %4850 = vmatpush1.msra.mxu0 0.0
    %4851 = vmatprep.subr.mxu0 0.0
    %4852 = vmatpush1.msra.mxu0 0.0
    %4853 = vmatprep.subr.mxu0 0.0
    %4854 = vmatpush1.msra.mxu0 0.0
    %4855 = vmatprep.subr.mxu0 0.0
    %4856 = vmatpush1.msra.mxu0 0.0
    %4857 = vmatprep.subr.mxu0 0.0
    %4858 = vmatpush1.msra.mxu0 0.0
    %4859 = vmatprep.subr.mxu0 0.0
    %4860 = vmatpush1.msra.mxu0 0.0
    %4861 = vmatprep.subr.mxu0 0.0
    %4862 = vmatpush1.msra.mxu0 0.0
    %4863 = vmatprep.subr.mxu0 0.0
    %4864 = vmatpush1.msra.mxu0 0.0
    %4865 = vmatprep.subr.mxu0 0.0
    %4866 = vmatpush1.msra.mxu0 0.0
    %4867 = vmatprep.subr.mxu0 0.0
    %4868 = vmatpush1.msra.mxu0 0.0
    %4869 = vmatprep.subr.mxu0 0.0
    %4870 = vmatpush1.msra.mxu0 0.0
    %4871 = vmatprep.subr.mxu0 0.0
    %4872 = vmatpush1.msra.mxu0 0.0
    %4873 = vmatprep.subr.mxu0 0.0
    %4874 = vmatpush1.msra.mxu0 0.0
    %4875 = vmatprep.subr.mxu0 0.0
    %4876 = vmatpush1.msra.mxu0 0.0
    %4877 = vmatprep.subr.mxu0 0.0
    %4878 = vmatpush1.msra.mxu0 0.0
    %4879 = vmatprep.subr.mxu0 0.0
    %4880 = vmatpush1.msra.mxu0 0.0
    %4881 = vmatprep.subr.mxu0 0.0
    %4882 = vmatpush1.msra.mxu0 0.0
    %4883 = vmatprep.subr.mxu0 0.0
    %4884 = vmatpush1.msra.mxu0 0.0
    %4885 = vmatprep.subr.mxu0 0.0
    %4886 = vmatpush1.msra.mxu0 0.0
    %4887 = vmatprep.subr.mxu0 0.0
    %4888 = vmatpush1.msra.mxu0 0.0
    %4889 = vmatprep.subr.mxu0 0.0
    %4890 = vmatpush1.msra.mxu0 0.0
    %4891 = vmatprep.subr.mxu0 0.0
    %4892 = vmatpush1.msra.mxu0 0.0
    %4893 = vmatprep.subr.mxu0 0.0
    %4894 = vmatpush1.msra.mxu0 0.0
    %4895 = vmatprep.subr.mxu0 0.0
    %4896 = vmatpush1.msra.mxu0 0.0
    %4897 = vmatprep.subr.mxu0 0.0
    %4898 = vmatpush1.msra.mxu0 0.0
    %4899 = vmatprep.mubr.f32.mxu0 0.0
    %4900 = vmatmul.mubr.f32.gmra.mrb[0].mxu0 %v4833
    %v4901 = vpop.f32.mrb[0].mxu0
    %v4902 = vadd.f32 0.0, %v4901
    %v4903 = vpop.f32.mrb[0].mxu0
    %4904 = vdwg.mxu0
    %v4905 = vpack.c.bf16 %v4902, %v4829
    %s4906 = scalar_lea.vmem %s5, 28
    %v4907 = vld [vmem:[%s4906] sm:$0xf]
    %v4909 = vsel %vm299, %v4905, 0
    %v4912 = vsel %vm1154, %v4907, 0
    %4914 = vmatprep.subr.bf16.mxu0 0
    %4915 = vmatpush1.bf16.msra.mxu0 %v4912
    %4916 = vmatprep.subr.bf16.mxu0 0
    %4917 = vmatpush1.bf16.msra.mxu0 0
    %4918 = vmatprep.subr.bf16.mxu0 0
    %4919 = vmatpush1.bf16.msra.mxu0 0
    %4920 = vmatprep.subr.bf16.mxu0 0
    %4921 = vmatpush1.bf16.msra.mxu0 0
    %4922 = vmatprep.subr.bf16.mxu0 0
    %4923 = vmatpush1.bf16.msra.mxu0 0
    %4924 = vmatprep.subr.bf16.mxu0 0
    %4925 = vmatpush1.bf16.msra.mxu0 0
    %4926 = vmatprep.subr.bf16.mxu0 0
    %4927 = vmatpush1.bf16.msra.mxu0 0
    %4928 = vmatprep.subr.bf16.mxu0 0
    %4929 = vmatpush1.bf16.msra.mxu0 0
    %4930 = vmatprep.subr.bf16.mxu0 0
    %4931 = vmatpush1.bf16.msra.mxu0 0
    %4932 = vmatprep.subr.bf16.mxu0 0
    %4933 = vmatpush1.bf16.msra.mxu0 0
    %4934 = vmatprep.subr.bf16.mxu0 0
    %4935 = vmatpush1.bf16.msra.mxu0 0
    %4936 = vmatprep.subr.bf16.mxu0 0
    %4937 = vmatpush1.bf16.msra.mxu0 0
    %4938 = vmatprep.subr.bf16.mxu0 0
    %4939 = vmatpush1.bf16.msra.mxu0 0
    %4940 = vmatprep.subr.bf16.mxu0 0
    %4941 = vmatpush1.bf16.msra.mxu0 0
    %4942 = vmatprep.subr.bf16.mxu0 0
    %4943 = vmatpush1.bf16.msra.mxu0 0
    %4944 = vmatprep.subr.bf16.mxu0 0
    %4945 = vmatpush1.bf16.msra.mxu0 0
    %4946 = vmatprep.mubr.bf16.mxu0 0
    %4947 = vmatmul.mubr.bf16.gmra.mrb[0].mxu0 %v4909
    %v4948 = vpop.f32.mrb[0].mxu0
    %v4949 = vadd.f32 0.0, %v4948
    %v4950 = vpop.f32.mrb[0].mxu0
    %v4951 = vpop.f32.mrb[0].mxu0
    %v4952 = vadd.f32 0.0, %v4951
    %v4953 = vpop.f32.mrb[0].mxu0
    %4954 = vdwg.mxu0
    %v4955 = vadd.f32 %v4381, %v4949
    %v4956 = vadd.f32 %v4382, %v4952
    %v4957 = vadd.f32 %v2611, %v4955
    %v4958 = vadd.f32 %v2612, %v4956
    %s4959 = scalar_lea.vmem %s7, 3
    %v4960 = vld [vmem:[%s4959] sm:$0x1]
    %v4962 = vlaneseq
    %v4963 = vshrl.u32 %v4962, 7
    %v4964 = vsub.s32 0, %v4963
    %v4965 = vrot.slane %v4960, %v4964
    %v4967 = vadd.f32 %v4957, %v4965
    %v4968 = vadd.f32 %v4958, %v4965
    %s4969 = sld [smem:[#allocation2 + $0x6]]
    %s4970 = sld [smem:[#allocation2 + $0x7]]
    %v4971 = vsel %vm50, %v4967, 0.0
    %4972 = vadd.xlane.f32.xlu0 %v4971
    %v4973 = vpop.xlane.xlu0 %4972
    %v4974 = vsel %vm50, %v4968, 0.0
    %4975 = vadd.xlane.f32.xlu0 %v4974
    %v4976 = vpop.xlane.xlu0 %4975
    %v4977 = vmul.f32 %v4973, %v57
    %v4978 = vmul.f32 %v4976, %v57
    %v4979 = vsub.f32 %v4967, %v4977
    %v4980 = vsub.f32 %v4968, %v4978
    %v4981 = vmul.f32 %v4979, %v4979
    %v4982 = vmul.f32 %v4980, %v4980
    %v4983 = vsel %vm50, %v4981, 0.0
    %4984 = vadd.xlane.f32.xlu0 %v4983
    %v4985 = vpop.xlane.xlu0 %4984
    %v4986 = vsel %vm50, %v4982, 0.0
    %4987 = vadd.xlane.f32.xlu0 %v4986
    %v4988 = vpop.xlane.xlu0 %4987
    %v4989 = vmul.f32 %v4985, %v70
    %v4990 = vmul.f32 %v4988, %v70
    %v4991 = vstv %s4969
    %v4992 = vmul.f32 %v4991, %v4979
    %v4993 = vmul.f32 %v4991, %v4980
    %v4994 = vrsqrt.pop %v4989
    %v4995 = vmul.f32 %v4989, %v4994
    %vm4996 = vcmp.eq.f32.partialorder %v4989, inf
    %v4997 = vsel %vm4996, %v4989, %v4995
    %vm4998 = vcmp.eq.f32.partialorder %v4989, 0.0
    %v4999 = vand.u32 %v4989, 2147483648
    %v5000 = vsel %vm4998, %v4999, %v4997
    %v5001 = vrsqrt.pop %v4990
    %v5002 = vmul.f32 %v4990, %v5001
    %vm5003 = vcmp.eq.f32.partialorder %v4990, inf
    %v5004 = vsel %vm5003, %v4990, %v5002
    %vm5005 = vcmp.eq.f32.partialorder %v4990, 0.0
    %v5006 = vand.u32 %v4990, 2147483648
    %v5007 = vsel %vm5005, %v5006, %v5004
    %v5008 = vadd.f32 %v5000, 1e-06
    %v5009 = vadd.f32 %v5007, 1e-06
    %v5010 = vrcp.pop %v5008
    %v5011 = vmul.f32 %v4992, %v5010
    %v5012 = vrcp.pop %v5009
    %v5013 = vmul.f32 %v4993, %v5012
    %v5014 = vstv %s4970
    %v5015 = vadd.f32 %v5011, %v5014
    %v5016 = vadd.f32 %v5013, %v5014
    %v5017 = vpack.c.bf16 %v5016, %v5015
    %s5018 = scalar_lea.vmem %s6, 64
    %v5019 = vld [vmem:[%s5018] sm:$0xf]
    %v5020 = vld [vmem:[%s5018 + $0x4] sm:$0xf]
    %v5021 = vld [vmem:[%s5018 + $0x8] sm:$0xf]
    %v5022 = vld [vmem:[%s5018 + $0xc] sm:$0xf]
    %s5023 = scalar_lea.vmem %s7, 4
    %v5024 = vld [vmem:[%s5023] sm:$0x1]
    %v5026 = vlaneseq
    %v5027 = vshrl.u32 %v5026, 7
    %v5028 = vsub.s32 0, %v5027
    %v5029 = vrot.slane %v5024, %v5028
    %v5035 = vunpack.c.l.b16 %v5019
    %v5036 = vunpack.c.l.b16 %v5020
    %v5037 = vunpack.c.l.b16 %v5021
    %v5038 = vunpack.c.l.b16 %v5022
    %v5039 = vpack.c.b16 %v5036, %v5035
    %v5040 = vpack.c.b16 %v5038, %v5037
    %v5044 = vsel %vm50, %v5017, 0
    %5046 = vmatprep.subr.bf16.mxu0 0
    %5047 = vmatpush1.bf16.msra.mxu0 %v5039
    %5048 = vmatprep.subr.bf16.mxu0 0
    %5049 = vmatpush1.bf16.msra.mxu0 %v5040
    %5050 = vmatprep.subr.bf16.mxu0 0
    %5051 = vmatpush1.bf16.msra.mxu0 0
    %5052 = vmatprep.subr.bf16.mxu0 0
    %5053 = vmatpush1.bf16.msra.mxu0 0
    %5054 = vmatprep.subr.bf16.mxu0 0
    %5055 = vmatpush1.bf16.msra.mxu0 0
    %5056 = vmatprep.subr.bf16.mxu0 0
    %5057 = vmatpush1.bf16.msra.mxu0 0
    %5058 = vmatprep.subr.bf16.mxu0 0
    %5059 = vmatpush1.bf16.msra.mxu0 0
    %5060 = vmatprep.subr.bf16.mxu0 0
    %5061 = vmatpush1.bf16.msra.mxu0 0
    %5062 = vmatprep.subr.bf16.mxu0 0
    %5063 = vmatpush1.bf16.msra.mxu0 0
    %5064 = vmatprep.subr.bf16.mxu0 0
    %5065 = vmatpush1.bf16.msra.mxu0 0
    %5066 = vmatprep.subr.bf16.mxu0 0
    %5067 = vmatpush1.bf16.msra.mxu0 0
    %5068 = vmatprep.subr.bf16.mxu0 0
    %5069 = vmatpush1.bf16.msra.mxu0 0
    %5070 = vmatprep.subr.bf16.mxu0 0
    %5071 = vmatpush1.bf16.msra.mxu0 0
    %5072 = vmatprep.subr.bf16.mxu0 0
    %5073 = vmatpush1.bf16.msra.mxu0 0
    %5074 = vmatprep.subr.bf16.mxu0 0
    %5075 = vmatpush1.bf16.msra.mxu0 0
    %5076 = vmatprep.subr.bf16.mxu0 0
    %5077 = vmatpush1.bf16.msra.mxu0 0
    %5078 = vmatprep.mubr.bf16.mxu0 0
    %5079 = vmatmul.mubr.bf16.gmra.mrb[0].mxu0 %v5044
    %v5080 = vpop.f32.mrb[0].mxu0
    %v5081 = vadd.f32 %v5029, %v5080
    %v5082 = vpop.f32.mrb[0].mxu0
    %v5083 = vpop.f32.mrb[0].mxu0
    %v5084 = vadd.f32 %v5029, %v5083
    %v5085 = vpop.f32.mrb[0].mxu0
    %5086 = vdwg.mxu0
    %v5087 = vmax.f32 %v5081, 0.0
    %v5088 = vmax.f32 %v5084, 0.0
    %v5089 = vpack.c.bf16 %v5088, %v5087
    %s5090 = scalar_lea.vmem %s6, 96
    %v5091 = vld [vmem:[%s5090] sm:$0xf]
    %v5092 = vld [vmem:[%s5090 + $0x4] sm:$0xf]
    %v5093 = vld [vmem:[%s5090 + $0x8] sm:$0xf]
    %v5094 = vld [vmem:[%s5090 + $0xc] sm:$0xf]
    %v5095 = vld [vmem:[%s5090 + $0x10] sm:$0xf]
    %v5096 = vld [vmem:[%s5090 + $0x14] sm:$0xf]
    %v5097 = vld [vmem:[%s5090 + $0x18] sm:$0xf]
    %v5098 = vld [vmem:[%s5090 + $0x1c] sm:$0xf]
    %s5099 = scalar_lea.vmem %s7, 5
    %v5100 = vld [vmem:[%s5099] sm:$0x1]
    %v5102 = vlaneseq
    %v5103 = vshrl.u32 %v5102, 7
    %v5104 = vsub.s32 0, %v5103
    %v5105 = vrot.slane %v5100, %v5104
    %v5115 = vunpack.c.l.b16 %v5091
    %v5116 = vunpack.c.l.b16 %v5092
    %v5117 = vunpack.c.l.b16 %v5093
    %v5118 = vunpack.c.l.b16 %v5094
    %v5119 = vunpack.c.l.b16 %v5095
    %v5120 = vunpack.c.l.b16 %v5096
    %v5121 = vunpack.c.l.b16 %v5097
    %v5122 = vunpack.c.l.b16 %v5098
    %v5123 = vpack.c.b16 %v5116, %v5115
    %v5124 = vpack.c.b16 %v5118, %v5117
    %v5125 = vpack.c.b16 %v5120, %v5119
    %v5126 = vpack.c.b16 %v5122, %v5121
    %v5132 = vsel %vm2566, %v5089, 0
    %5134 = vmatprep.subr.bf16.mxu0 0
    %5135 = vmatpush1.bf16.msra.mxu0 %v5123
    %5136 = vmatprep.subr.bf16.mxu0 0
    %5137 = vmatpush1.bf16.msra.mxu0 %v5124
    %5138 = vmatprep.subr.bf16.mxu0 0
    %5139 = vmatpush1.bf16.msra.mxu0 %v5125
    %5140 = vmatprep.subr.bf16.mxu0 0
    %5141 = vmatpush1.bf16.msra.mxu0 %v5126
    %5142 = vmatprep.subr.bf16.mxu0 0
    %5143 = vmatpush1.bf16.msra.mxu0 0
    %5144 = vmatprep.subr.bf16.mxu0 0
    %5145 = vmatpush1.bf16.msra.mxu0 0
    %5146 = vmatprep.subr.bf16.mxu0 0
    %5147 = vmatpush1.bf16.msra.mxu0 0
    %5148 = vmatprep.subr.bf16.mxu0 0
    %5149 = vmatpush1.bf16.msra.mxu0 0
    %5150 = vmatprep.subr.bf16.mxu0 0
    %5151 = vmatpush1.bf16.msra.mxu0 0
    %5152 = vmatprep.subr.bf16.mxu0 0
    %5153 = vmatpush1.bf16.msra.mxu0 0
    %5154 = vmatprep.subr.bf16.mxu0 0
    %5155 = vmatpush1.bf16.msra.mxu0 0
    %5156 = vmatprep.subr.bf16.mxu0 0
    %5157 = vmatpush1.bf16.msra.mxu0 0
    %5158 = vmatprep.subr.bf16.mxu0 0
    %5159 = vmatpush1.bf16.msra.mxu0 0
    %5160 = vmatprep.subr.bf16.mxu0 0
    %5161 = vmatpush1.bf16.msra.mxu0 0
    %5162 = vmatprep.subr.bf16.mxu0 0
    %5163 = vmatpush1.bf16.msra.mxu0 0
    %5164 = vmatprep.subr.bf16.mxu0 0
    %5165 = vmatpush1.bf16.msra.mxu0 0
    %5166 = vmatprep.mubr.bf16.mxu0 0
    %5167 = vmatmul.mubr.bf16.gmra.mrb[0].mxu0 %v5132
    %v5168 = vpop.f32.mrb[0].mxu0
    %v5169 = vadd.f32 %v5105, %v5168
    %v5170 = vpop.f32.mrb[0].mxu0
    %v5171 = vpop.f32.mrb[0].mxu0
    %v5172 = vadd.f32 %v5105, %v5171
    %v5173 = vpop.f32.mrb[0].mxu0
    %5174 = vdwg.mxu0
    %v5175 = vadd.f32 %v4967, %v5169
    %v5176 = vadd.f32 %v4968, %v5172
    %s5177 = sld [smem:[#allocation2 + $0x8]]
    %s5178 = sld [smem:[#allocation2 + $0x9]]
    %v5179 = vsel %vm50, %v5175, 0.0
    %5180 = vadd.xlane.f32.xlu0 %v5179
    %v5181 = vpop.xlane.xlu0 %5180
    %v5182 = vsel %vm50, %v5176, 0.0
    %5183 = vadd.xlane.f32.xlu0 %v5182
    %v5184 = vpop.xlane.xlu0 %5183
    %v5185 = vmul.f32 %v5181, %v57
    %v5186 = vmul.f32 %v5184, %v57
    %v5187 = vsub.f32 %v5175, %v5185
    %v5188 = vsub.f32 %v5176, %v5186
    %v5189 = vmul.f32 %v5187, %v5187
    %v5190 = vmul.f32 %v5188, %v5188
    %v5191 = vsel %vm50, %v5189, 0.0
    %5192 = vadd.xlane.f32.xlu0 %v5191
    %v5193 = vpop.xlane.xlu0 %5192
    %v5194 = vsel %vm50, %v5190, 0.0
    %5195 = vadd.xlane.f32.xlu0 %v5194
    %v5196 = vpop.xlane.xlu0 %5195
    %v5197 = vmul.f32 %v5193, %v70
    %v5198 = vmul.f32 %v5196, %v70
    %v5199 = vstv %s5177
    %v5200 = vmul.f32 %v5199, %v5187
    %v5201 = vmul.f32 %v5199, %v5188
    %v5202 = vrsqrt.pop %v5197
    %v5203 = vmul.f32 %v5197, %v5202
    %vm5204 = vcmp.eq.f32.partialorder %v5197, inf
    %v5205 = vsel %vm5204, %v5197, %v5203
    %vm5206 = vcmp.eq.f32.partialorder %v5197, 0.0
    %v5207 = vand.u32 %v5197, 2147483648
    %v5208 = vsel %vm5206, %v5207, %v5205
    %v5209 = vrsqrt.pop %v5198
    %v5210 = vmul.f32 %v5198, %v5209
    %vm5211 = vcmp.eq.f32.partialorder %v5198, inf
    %v5212 = vsel %vm5211, %v5198, %v5210
    %vm5213 = vcmp.eq.f32.partialorder %v5198, 0.0
    %v5214 = vand.u32 %v5198, 2147483648
    %v5215 = vsel %vm5213, %v5214, %v5212
    %v5216 = vadd.f32 %v5208, 1e-06
    %v5217 = vadd.f32 %v5215, 1e-06
    %v5218 = vrcp.pop %v5216
    %v5219 = vmul.f32 %v5200, %v5218
    %v5220 = vrcp.pop %v5217
    %v5221 = vmul.f32 %v5201, %v5220
    %v5222 = vstv %s5178
    %v5223 = vadd.f32 %v5219, %v5222
    %v5224 = vadd.f32 %v5221, %v5222
    %5225 = vst.msk [vmem:[#allocation5] sm:$0xff] %vm50, %v5223
    %5226 = vst.msk [vmem:[#allocation5 + $0x8] sm:$0xff] %vm50, %v5224
    // Predicated region
    $region38: #{encoder_forward.1} parent=1 // pred_check
      _
    $region39: #{encoder_forward.1} parent=1 // pred_check_branch
      %5228 = sbr.rel (0) target = $region41
    $region40: #{encoder_forward.1} parent=1 // pred_region
      %s5230 = ssub.s32 256, 256
      %5231 = vsyncadd [#allocation3], %s5230
      %s5232 = sshll.u32 [#allocation5], 4
      %s5233 = int_to_ptr.vmem [resolvable:$true] %s5232
      %5238 = dma.vmem_to_hbm [thread:$0]  %s5233, 256, %s8, [#allocation3], 128, 128, 8
    $region41: #{encoder_forward.1} parent=1 // pred_fallthru
      _
    // Predicated region
    $region42: #{encoder_forward.1} parent=1 // pred_check
      _
    $region43: #{encoder_forward.1} parent=1 // pred_check_branch
      %5240 = sbr.rel (0) target = $region45
    $region44: #{encoder_forward.1} parent=1 // pred_region
      %5241 = dma.done [#allocation3], 256
    $region45: #{encoder_forward.1} parent=1 // pred_fallthru
      _
    %5242 = vsyncpa [#allocation3], 1
    %5243 = vsyncpa [#allocation4], 1

</llo_original>
